<compile_context>
chip_gen: v7x
topology: tpu7x:2x2x1
jax: 0.10.0
libtpu: 0.0.40
codegen_flags: <defaults>
</compile_context>

<pallas_src>
import math

import jax
import jax.numpy as jnp
from jax.experimental import pallas as pl
from jax.experimental.pallas import tpu as pltpu

N_FFT = 400
HOP = 200
N_BINS = N_FFT // 2 + 1            # 201 one-sided frequency bins
PAD_BINS = 256                     # frequency axis padded to a lane multiple
NUM_CLASSES = 30
CLS_PAD = 128                      # classifier lane padding (30 -> 128)
BN_EPS = 1e-5
BN_SCALE = 1.0 / math.sqrt(1.0 + BN_EPS)

F32 = jnp.float32
BF16 = jnp.bfloat16


# ------------------------------ fused kernel ------------------------------

def _fused_forward_kernel(
    frames_ref, dft_ref,
    sel1_ref, sel2_ref, sel3_ref, sel4_ref,
    d1w_ref, d1b_ref, c1w_ref, c1b_ref,
    d2w_ref, d2b_ref, c2w_ref, c2b_ref,
    d3w_ref, d3b_ref, c3w_ref, c3b_ref,
    d4w_ref, d4b_ref, c4w_ref, c4b_ref,
    clsw_ref, clsb_ref,
    out_ref,
):
    def mmw(a, w_bf16):
        # MXU matmul: bf16 operands, f32 accumulation, DEFAULT precision.
        return jnp.dot(a.astype(BF16), w_bf16, preferred_element_type=F32)

    def shift_up(x):
        # out[i] = x[i+1]; zero at the last row (conv padding).
        zero = jnp.zeros((1, x.shape[1]), F32)
        return jnp.concatenate([x[1:, :], zero], axis=0)

    def shift_dn(x):
        # out[i] = x[i-1]; zero at the first row (conv padding).
        zero = jnp.zeros((1, x.shape[1]), F32)
        return jnp.concatenate([zero, x[:-1, :]], axis=0)

    def downsample(x, sel_ref, w_ref, b_ref):
        # Conv1d(kernel=2, stride=2) + ReLU.
        # pair[i] = [x[i] | x[i+1]]; stride-2 row selection is a tiny resident
        # bf16 0/1 matrix; both taps hit one packed (2C, Cout) weight matmul.
        pair = jnp.concatenate([x, shift_up(x)], axis=1)         # (L, 2C)
        xsel = jnp.dot(sel_ref[...], pair.astype(BF16),
                       preferred_element_type=F32)               # (L_out, 2C)
        y = mmw(xsel, w_ref[...]) + b_ref[...]
        return jnp.maximum(y, 0.0)

    def conv3(x, w, bias):
        # Conv1d(kernel=3, padding=1) (+ folded BatchNorm), 3 taps fused into
        # one (L, 3C) x (3C, C) matmul.
        xcat = jnp.concatenate([shift_dn(x), x, shift_up(x)], axis=1)
        return mmw(xcat, w) + bias

    def res_block(x, w_ref, b_ref):
        c = x.shape[1]
        b = b_ref[...]                                   # (8, C) f32
        ba, bb, bsc = b[0:1], b[1:2], b[2:3]
        bse1, bse2, alpha = b[3:4], b[4:5], b[5:6]

        wa = w_ref[0:3 * c, :]                           # conv_a taps (3C, C)
        wb = w_ref[3 * c:6 * c, :]                       # conv_b taps (3C, C)
        wsc = w_ref[6 * c:7 * c, :]                      # 1x1 skip conv (C, C)
        wse1 = w_ref[7 * c:8 * c, :]                     # SE fc1 (C, C)
        wse2 = w_ref[8 * c:9 * c, :]                     # SE fc2 (C, C)

        ya = jnp.maximum(conv3(x, wa, ba), 0.0)          # conv_a + BN + ReLU
        yb = conv3(ya, wb, bb)                           # conv_b + BN
        skip = mmw(x, wsc) + bsc                         # 1x1 conv + BN

        # SELayer: avg-pool over length -> FC -> PReLU -> FC -> sigmoid gate
        m = jnp.mean(yb, axis=0, keepdims=True)          # (1, C)
        h = mmw(m, wse1) + bse1
        h = jnp.maximum(h, 0.0) + alpha * jnp.minimum(h, 0.0)      # PReLU
        s = 1.0 / (1.0 + jnp.exp(-(mmw(h, wse2) + bse2)))          # Sigmoid

        return jnp.maximum(yb * s + skip, 0.0)           # gate + skip + ReLU

    # -------------- spectrogram: |DFT(window * frame)|^2 -------------------
    frames = frames_ref[0]                               # (81, 400) f32
    spec = mmw(frames, dft_ref[...])                     # (81, 2*PAD_BINS)
    re = spec[:, :PAD_BINS]
    im = spec[:, PAD_BINS:]
    x = re * re + im * im                                # (81, 256); lanes 201.. are 0

    # -------------- conv trunk (everything resident in VMEM) ---------------
    x = downsample(x, sel1_ref, d1w_ref, d1b_ref)        # (40, 256)
    x = res_block(x, c1w_ref, c1b_ref)
    x = downsample(x, sel2_ref, d2w_ref, d2b_ref)        # (20, 256)
    x = res_block(x, c2w_ref, c2b_ref)
    x = downsample(x, sel3_ref, d3w_ref, d3b_ref)        # (10, 128)
    x = res_block(x, c3w_ref, c3b_ref)
    x = downsample(x, sel4_ref, d4w_ref, d4b_ref)        # (5, 128)
    x = res_block(x, c4w_ref, c4b_ref)                   # (5, 128)

    # -------------- classifier (640 -> 30, lane padded) + softmax ----------
    # torch flattens NCW (channel-major); that permutation is folded into the
    # packed classifier weight.  Lane-concat the 5 time rows -> one matmul.
    xf = jnp.concatenate([x[t:t + 1, :] for t in range(5)], axis=1)  # (1, 640)
    logits = mmw(xf, clsw_ref[...]) + clsb_ref[...]      # (1, 128); pads -1e30
    z = logits - jnp.max(logits, axis=-1, keepdims=True)
    e = jnp.exp(z)
    p = e * pl.reciprocal(jnp.sum(e, axis=-1, keepdims=True), approx=True)
    out_ref[0] = p


# ------------------------------ host wrapper ------------------------------

def _frames_and_window(x):
    # torchaudio.transforms.Spectrogram defaults: n_fft=400, hop=200, periodic
    # Hann window, center=True with reflect padding, power=2, onesided.
    _, t = x.shape
    n = jnp.arange(N_FFT, dtype=F32)
    window = 0.5 - 0.5 * jnp.cos(2.0 * jnp.pi * n / N_FFT)
    xp = jnp.pad(x, ((0, 0), (N_FFT // 2, N_FFT // 2)), mode="reflect")
    n_frames = 1 + t // HOP
    idx = jnp.arange(n_frames)[:, None] * HOP + jnp.arange(N_FFT)[None, :]
    return (xp[:, idx] * window[None, None, :]).astype(F32)


def _const_map(rank):
    return lambda b: (0,) * rank


def my_module_forward(params, x):
    bs = x.shape[0]
    frames = _frames_and_window(x)                       # (B, 81, 400)

    weight_args = (
        params["dft"],
        params["sel1"], params["sel2"], params["sel3"], params["sel4"],
        params["d1w"], params["d1b"], params["c1w"], params["c1b"],
        params["d2w"], params["d2b"], params["c2w"], params["c2b"],
        params["d3w"], params["d3b"], params["c3w"], params["c3b"],
        params["d4w"], params["d4b"], params["c4w"], params["c4b"],
        params["clsw"], params["clsb"],
    )

    # frames: one batch row per grid step; weights: full-array blocks with a
    # constant index_map -> DMA'd once and kept resident across the batch grid.
    in_specs = [pl.BlockSpec((1,) + frames.shape[1:], lambda b: (b, 0, 0))]
    for a in weight_args:
        in_specs.append(pl.BlockSpec(a.shape, _const_map(a.ndim)))

    weight_bytes = sum(int(a.size) * a.dtype.itemsize for a in weight_args)
    cost = pl.CostEstimate(
        flops=int(1.1e8) * bs,                    # ~110 MFLOP per sample
        transcendentals=1100 * bs,                # sigmoid + softmax exps
        bytes_accessed=int(frames.size) * 4 + weight_bytes + bs * CLS_PAD * 4,
    )

    out_padded = pl.pallas_call(
        _fused_forward_kernel,
        out_shape=jax.ShapeDtypeStruct((bs, 1, CLS_PAD), F32),
        grid_spec=pltpu.PrefetchScalarGridSpec(
            num_scalar_prefetch=0,
            grid=(bs,),
            in_specs=in_specs,
            out_specs=pl.BlockSpec((1, 1, CLS_PAD), lambda b: (b, 0, 0)),
        ),
        compiler_params=pltpu.CompilerParams(
            dimension_semantics=("parallel",),   # batch across v7x's 2 TCs
            vmem_limit_bytes=32 * 1024 * 1024,
        ),
        cost_estimate=cost,
    )(frames, *weight_args)
    # Dropout(p=0.5) is identity at inference; drop the lane padding.
    return out_padded[:, 0, :NUM_CLASSES]


# -------------------------- parameter init / packing --------------------------

def _uniform(key, shape, bound):
    return jax.random.uniform(key, shape, F32, -bound, bound)


def init_conv(key, cout, cin, k):
    kw, kb = jax.random.split(key)
    bound = 1.0 / math.sqrt(cin * k)
    return _uniform(kw, (cout, cin, k), bound), _uniform(kb, (cout,), bound)


def init_linear(key, din, dout):
    kw, kb = jax.random.split(key)
    bound = 1.0 / math.sqrt(din)
    return _uniform(kw, (dout, din), bound), _uniform(kb, (dout,), bound)


def make_dft_matrix():
    # merged [cos | sin] DFT matrix (bf16), frequency axis zero-padded 201 -> 256
    n = jnp.arange(N_FFT, dtype=F32)[:, None]
    k = jnp.arange(N_BINS, dtype=F32)[None, :]
    ang = 2.0 * jnp.pi * n * k / N_FFT
    d = jnp.zeros((N_FFT, 2 * PAD_BINS), F32)
    d = d.at[:, :N_BINS].set(jnp.cos(ang))
    d = d.at[:, PAD_BINS:PAD_BINS + N_BINS].set(jnp.sin(ang))
    return d.astype(BF16)


def make_sel(l_in):
    # 0/1 stride-2 row-selection matrix (host-precomputed, exact in bf16)
    l_out = (l_in - 2) // 2 + 1
    r = jnp.arange(l_out)[:, None]
    c = jnp.arange(l_in)[None, :]
    return (c == 2 * r).astype(BF16)


def pack_down(key, cin, cout, cin_pad=None):
    # DownSample2x: Conv1d(cin, cout, kernel=2, stride=2); taps packed along
    # the input-channel axis -> (2*cin_pad, cout) for a single fused matmul.
    w, b = init_conv(key, cout, cin, 2)
    wt = jnp.transpose(w, (2, 1, 0))                     # (2, cin, cout)
    if cin_pad is not None and cin_pad > cin:
        wt = jnp.pad(wt, ((0, 0), (0, cin_pad - cin), (0, 0)))
    wt = wt.reshape(2 * wt.shape[1], cout)               # [tap0 block; tap1 block]
    return wt.astype(BF16), b.reshape(1, cout).astype(F32)


def pack_res(key, c):
    # ResConv1d(c, c): conv3+BN+ReLU, conv3+BN, 1x1 conv+BN skip, SELayer(c, c)
    ks = jax.random.split(key, 5)
    wa, ba = init_conv(ks[0], c, c, 3)
    wb, bb = init_conv(ks[1], c, c, 3)
    wsc, bsc = init_conv(ks[2], c, c, 1)
    wse1, bse1 = init_linear(ks[3], c, c)
    wse2, bse2 = init_linear(ks[4], c, c)
    s = BN_SCALE    # BatchNorm1d eval with fresh running stats (mean=0, var=1)
    w = jnp.concatenate([
        jnp.transpose(wa, (2, 1, 0)).reshape(3 * c, c) * s,   # conv_a taps (3C, C)
        jnp.transpose(wb, (2, 1, 0)).reshape(3 * c, c) * s,   # conv_b taps (3C, C)
        jnp.transpose(wsc, (2, 1, 0)).reshape(c, c) * s,      # 1x1 skip conv
        jnp.transpose(wse1),                                  # SE fc1 (in, out)
        jnp.transpose(wse2),                                  # SE fc2 (in, out)
    ], axis=0).astype(BF16)                                   # (9c, c)
    bias = jnp.stack([
        ba * s, bb * s, bsc * s, bse1, bse2,
        jnp.full((c,), 0.25, F32),                            # PReLU alpha (init)
        jnp.zeros((c,), F32), jnp.zeros((c,), F32),
    ], axis=0).astype(F32)                                    # (8, c)
    return w, bias


def pack_cls(key):
    # Linear(640, 30); 640 is torch's channel-major (NCW) flatten of (128, 5).
    w, b = init_linear(key, 5 * 128, NUM_CLASSES)             # (30, 640), (30,)
    w3 = jnp.transpose(w.reshape(NUM_CLASSES, 128, 5), (2, 1, 0))   # (5,128,30)
    w3 = w3.reshape(5 * 128, NUM_CLASSES)                     # row = t*128 + c
    w3 = jnp.pad(w3, ((0, 0), (0, CLS_PAD - NUM_CLASSES)))
    b3 = jnp.full((1, CLS_PAD), -1e30, F32).at[0, :NUM_CLASSES].set(b)
    return w3.astype(BF16), b3


def init_params(key):
    ks = jax.random.split(key, 9)
    p = {
        "dft": make_dft_matrix(),
        "sel1": make_sel(81), "sel2": make_sel(40),
        "sel3": make_sel(20), "sel4": make_sel(10),
    }
    p["d1w"], p["d1b"] = pack_down(ks[0], N_BINS, 256, cin_pad=PAD_BINS)
    p["c1w"], p["c1b"] = pack_res(ks[1], 256)
    p["d2w"], p["d2b"] = pack_down(ks[2], 256, 256)
    p["c2w"], p["c2b"] = pack_res(ks[3], 256)
    p["d3w"], p["d3b"] = pack_down(ks[4], 256, 128)
    p["c3w"], p["c3b"] = pack_res(ks[5], 128)
    p["d4w"], p["d4b"] = pack_down(ks[6], 128, 128)
    p["c4w"], p["c4b"] = pack_res(ks[7], 128)
    p["clsw"], p["clsb"] = pack_cls(ks[8])
    return p


if __name__ == "__main__":
    key = jax.random.PRNGKey(0)
    k_in, k_par = jax.random.split(key)

    batch, wav_len = 2, 16000          # 1 second @ 16 kHz, as in load()
    x = jax.random.normal(k_in, (batch, wav_len), F32)
    params = init_params(k_par)

    fwd = jax.jit(my_module_forward)
    out = jax.block_until_ready(fwd(params, x))

    assert out.shape == (batch, NUM_CLASSES)
    assert bool(jnp.all(jnp.isfinite(out)))
    assert bool(jnp.all(jnp.abs(jnp.sum(out, axis=-1) - 1.0) < 1e-2))
    print("KERNEL_OK")
</pallas_src>

<mosaic_0001>
module attributes {stable_mosaic.version = 11 : i64} {
  func.func private @main(%arg0: i32) attributes {dimension_semantics = [#tpu.dimension_semantics<core_parallel>], iteration_bounds = array<i64: 2>, tpu.core_type = #tpu.core_type<sc_scalar_subcore>, window_params = []} {
    return
  }
}

module attributes {stable_mosaic.version = 11 : i64} {
  func.func private @main(%arg0: i32) attributes {dimension_semantics = [#tpu.dimension_semantics<core_parallel>], iteration_bounds = array<i64: 2>, tpu.core_type = #tpu.core_type<sc_scalar_subcore>, window_params = []} {
    return
  }
}

module attributes {stable_mosaic.version = 11 : i64} {
  func.func @_fused_forward_kernel(%arg0: i32, %arg1: memref<1x81x400xf32, #tpu.memory_space<vmem>>, %arg2: memref<400x512xbf16, #tpu.memory_space<vmem>>, %arg3: memref<40x81xbf16, #tpu.memory_space<vmem>>, %arg4: memref<20x40xbf16, #tpu.memory_space<vmem>>, %arg5: memref<10x20xbf16, #tpu.memory_space<vmem>>, %arg6: memref<5x10xbf16, #tpu.memory_space<vmem>>, %arg7: memref<512x256xbf16, #tpu.memory_space<vmem>>, %arg8: memref<1x256xf32, #tpu.memory_space<vmem>>, %arg9: memref<2304x256xbf16, #tpu.memory_space<vmem>>, %arg10: memref<8x256xf32, #tpu.memory_space<vmem>>, %arg11: memref<512x256xbf16, #tpu.memory_space<vmem>>, %arg12: memref<1x256xf32, #tpu.memory_space<vmem>>, %arg13: memref<2304x256xbf16, #tpu.memory_space<vmem>>, %arg14: memref<8x256xf32, #tpu.memory_space<vmem>>, %arg15: memref<512x128xbf16, #tpu.memory_space<vmem>>, %arg16: memref<1x128xf32, #tpu.memory_space<vmem>>, %arg17: memref<1152x128xbf16, #tpu.memory_space<vmem>>, %arg18: memref<8x128xf32, #tpu.memory_space<vmem>>, %arg19: memref<256x128xbf16, #tpu.memory_space<vmem>>, %arg20: memref<1x128xf32, #tpu.memory_space<vmem>>, %arg21: memref<1152x128xbf16, #tpu.memory_space<vmem>>, %arg22: memref<8x128xf32, #tpu.memory_space<vmem>>, %arg23: memref<640x128xbf16, #tpu.memory_space<vmem>>, %arg24: memref<1x128xf32, #tpu.memory_space<vmem>>, %arg25: memref<1x1x128xf32, #tpu.memory_space<vmem>>) attributes {dimension_semantics = [#tpu.dimension_semantics<parallel>], iteration_bounds = array<i64: 2>, scalar_prefetch = 0 : i64, scratch_operands = 0 : i64, tpu.core_type = #tpu.core_type<tc>, window_params = [{transform_indices = @transform_0, window_bounds = array<i64: 1, 81, 400>}, {pipeline_mode = #tpu.pipeline_mode<synchronous>, transform_indices = @transform_1, window_bounds = array<i64: 400, 512>}, {pipeline_mode = #tpu.pipeline_mode<synchronous>, transform_indices = @transform_2, window_bounds = array<i64: 40, 81>}, {pipeline_mode = #tpu.pipeline_mode<synchronous>, transform_indices = @transform_3, window_bounds = array<i64: 20, 40>}, {pipeline_mode = #tpu.pipeline_mode<synchronous>, transform_indices = @transform_4, window_bounds = array<i64: 10, 20>}, {pipeline_mode = #tpu.pipeline_mode<synchronous>, transform_indices = @transform_5, window_bounds = array<i64: 5, 10>}, {pipeline_mode = #tpu.pipeline_mode<synchronous>, transform_indices = @transform_6, window_bounds = array<i64: 512, 256>}, {pipeline_mode = #tpu.pipeline_mode<synchronous>, transform_indices = @transform_7, window_bounds = array<i64: 1, 256>}, {pipeline_mode = #tpu.pipeline_mode<synchronous>, transform_indices = @transform_8, window_bounds = array<i64: 2304, 256>}, {pipeline_mode = #tpu.pipeline_mode<synchronous>, transform_indices = @transform_9, window_bounds = array<i64: 8, 256>}, {pipeline_mode = #tpu.pipeline_mode<synchronous>, transform_indices = @transform_10, window_bounds = array<i64: 512, 256>}, {pipeline_mode = #tpu.pipeline_mode<synchronous>, transform_indices = @transform_11, window_bounds = array<i64: 1, 256>}, {pipeline_mode = #tpu.pipeline_mode<synchronous>, transform_indices = @transform_12, window_bounds = array<i64: 2304, 256>}, {pipeline_mode = #tpu.pipeline_mode<synchronous>, transform_indices = @transform_13, window_bounds = array<i64: 8, 256>}, {pipeline_mode = #tpu.pipeline_mode<synchronous>, transform_indices = @transform_14, window_bounds = array<i64: 512, 128>}, {pipeline_mode = #tpu.pipeline_mode<synchronous>, transform_indices = @transform_15, window_bounds = array<i64: 1, 128>}, {pipeline_mode = #tpu.pipeline_mode<synchronous>, transform_indices = @transform_16, window_bounds = array<i64: 1152, 128>}, {pipeline_mode = #tpu.pipeline_mode<synchronous>, transform_indices = @transform_17, window_bounds = array<i64: 8, 128>}, {pipeline_mode = #tpu.pipeline_mode<synchronous>, transform_indices = @transform_18, window_bounds = array<i64: 256, 128>}, {pipeline_mode = #tpu.pipeline_mode<synchronous>, transform_indices = @transform_19, window_bounds = array<i64: 1, 128>}, {pipeline_mode = #tpu.pipeline_mode<synchronous>, transform_indices = @transform_20, window_bounds = array<i64: 1152, 128>}, {pipeline_mode = #tpu.pipeline_mode<synchronous>, transform_indices = @transform_21, window_bounds = array<i64: 8, 128>}, {pipeline_mode = #tpu.pipeline_mode<synchronous>, transform_indices = @transform_22, window_bounds = array<i64: 640, 128>}, {pipeline_mode = #tpu.pipeline_mode<synchronous>, transform_indices = @transform_23, window_bounds = array<i64: 1, 128>}, {transform_indices = @transform_24, window_bounds = array<i64: 1, 1, 128>}]} {
    %c0 = arith.constant 0 : index
    %c0_0 = arith.constant 0 : index
    %c0_1 = arith.constant 0 : index
    %0 = vector.load %arg1[%c0, %c0_0, %c0_1] : memref<1x81x400xf32, #tpu.memory_space<vmem>>, vector<1x81x400xf32>
    %1 = vector.shape_cast %0 : vector<1x81x400xf32> to vector<81x400xf32>
    %c0_2 = arith.constant 0 : index
    %c0_3 = arith.constant 0 : index
    %2 = vector.load %arg2[%c0_2, %c0_3] : memref<400x512xbf16, #tpu.memory_space<vmem>>, vector<400x512xbf16>
    %3 = arith.truncf %1 : vector<81x400xf32> to vector<81x400xbf16>
    %cst = arith.constant dense<0.000000e+00> : vector<81x512xf32>
    %4 = tpu.matmul %3, %2, %cst {dimension_numbers = #tpu.dot_dimension_numbers<[1], [0], [0], [1], [0, 0, 1, 1], [], []>} : vector<81x400xbf16>, vector<400x512xbf16>, vector<81x512xf32> -> vector<81x512xf32>
    %5 = vector.extract_strided_slice %4 {offsets = [0, 0], sizes = [81, 256], strides = [1, 1]} : vector<81x512xf32> to vector<81x256xf32>
    %6 = vector.extract_strided_slice %4 {offsets = [0, 256], sizes = [81, 256], strides = [1, 1]} : vector<81x512xf32> to vector<81x256xf32>
    %7 = arith.mulf %5, %5 : vector<81x256xf32>
    %8 = arith.mulf %6, %6 : vector<81x256xf32>
    %9 = arith.addf %7, %8 : vector<81x256xf32>
    %cst_4 = arith.constant 0.000000e+00 : f32
    %10 = vector.broadcast %cst_4 : f32 to vector<1x256xf32>
    %11 = vector.extract_strided_slice %9 {offsets = [1, 0], sizes = [80, 256], strides = [1, 1]} : vector<81x256xf32> to vector<80x256xf32>
    %12 = tpu.concatenate %11, %10 in 0 : vector<80x256xf32>, vector<1x256xf32> -> vector<81x256xf32>
    %13 = tpu.concatenate %9, %12 in 1 : vector<81x256xf32>, vector<81x256xf32> -> vector<81x512xf32>
    %c0_5 = arith.constant 0 : index
    %c0_6 = arith.constant 0 : index
    %14 = vector.load %arg3[%c0_5, %c0_6] : memref<40x81xbf16, #tpu.memory_space<vmem>>, vector<40x81xbf16>
    %15 = arith.truncf %13 : vector<81x512xf32> to vector<81x512xbf16>
    %cst_7 = arith.constant dense<0.000000e+00> : vector<40x512xf32>
    %16 = tpu.matmul %14, %15, %cst_7 {dimension_numbers = #tpu.dot_dimension_numbers<[1], [0], [0], [1], [0, 0, 1, 1], [], []>} : vector<40x81xbf16>, vector<81x512xbf16>, vector<40x512xf32> -> vector<40x512xf32>
    %c0_8 = arith.constant 0 : index
    %c0_9 = arith.constant 0 : index
    %17 = vector.load %arg7[%c0_8, %c0_9] : memref<512x256xbf16, #tpu.memory_space<vmem>>, vector<512x256xbf16>
    %18 = arith.truncf %16 : vector<40x512xf32> to vector<40x512xbf16>
    %cst_10 = arith.constant dense<0.000000e+00> : vector<40x256xf32>
    %19 = tpu.matmul %18, %17, %cst_10 {dimension_numbers = #tpu.dot_dimension_numbers<[1], [0], [0], [1], [0, 0, 1, 1], [], []>} : vector<40x512xbf16>, vector<512x256xbf16>, vector<40x256xf32> -> vector<40x256xf32>
    %c0_11 = arith.constant 0 : index
    %c0_12 = arith.constant 0 : index
    %20 = vector.load %arg8[%c0_11, %c0_12] : memref<1x256xf32, #tpu.memory_space<vmem>>, vector<1x256xf32>
    %21 = vector.broadcast %20 : vector<1x256xf32> to vector<40x256xf32>
    %22 = arith.addf %19, %21 : vector<40x256xf32>
    %cst_13 = arith.constant 0.000000e+00 : f32
    %23 = vector.broadcast %cst_13 : f32 to vector<40x256xf32>
    %24 = arith.maximumf %22, %23 : vector<40x256xf32>
    %c0_14 = arith.constant 0 : index
    %c0_15 = arith.constant 0 : index
    %25 = vector.load %arg10[%c0_14, %c0_15] : memref<8x256xf32, #tpu.memory_space<vmem>>, vector<8x256xf32>
    %26 = vector.extract_strided_slice %25 {offsets = [0, 0], sizes = [1, 256], strides = [1, 1]} : vector<8x256xf32> to vector<1x256xf32>
    %27 = vector.extract_strided_slice %25 {offsets = [1, 0], sizes = [1, 256], strides = [1, 1]} : vector<8x256xf32> to vector<1x256xf32>
    %28 = vector.extract_strided_slice %25 {offsets = [2, 0], sizes = [1, 256], strides = [1, 1]} : vector<8x256xf32> to vector<1x256xf32>
    %29 = vector.extract_strided_slice %25 {offsets = [3, 0], sizes = [1, 256], strides = [1, 1]} : vector<8x256xf32> to vector<1x256xf32>
    %30 = vector.extract_strided_slice %25 {offsets = [4, 0], sizes = [1, 256], strides = [1, 1]} : vector<8x256xf32> to vector<1x256xf32>
    %31 = vector.extract_strided_slice %25 {offsets = [5, 0], sizes = [1, 256], strides = [1, 1]} : vector<8x256xf32> to vector<1x256xf32>
    %c0_16 = arith.constant 0 : index
    %c0_17 = arith.constant 0 : index
    %32 = vector.load %arg9[%c0_16, %c0_17] : memref<2304x256xbf16, #tpu.memory_space<vmem>>, vector<768x256xbf16>
    %c768 = arith.constant 768 : index
    %c0_18 = arith.constant 0 : index
    %33 = vector.load %arg9[%c768, %c0_18] : memref<2304x256xbf16, #tpu.memory_space<vmem>>, vector<768x256xbf16>
    %c1536 = arith.constant 1536 : index
    %c0_19 = arith.constant 0 : index
    %34 = vector.load %arg9[%c1536, %c0_19] : memref<2304x256xbf16, #tpu.memory_space<vmem>>, vector<256x256xbf16>
    %c1792 = arith.constant 1792 : index
    %c0_20 = arith.constant 0 : index
    %35 = vector.load %arg9[%c1792, %c0_20] : memref<2304x256xbf16, #tpu.memory_space<vmem>>, vector<256x256xbf16>
    %c2048 = arith.constant 2048 : index
    %c0_21 = arith.constant 0 : index
    %36 = vector.load %arg9[%c2048, %c0_21] : memref<2304x256xbf16, #tpu.memory_space<vmem>>, vector<256x256xbf16>
    %cst_22 = arith.constant 0.000000e+00 : f32
    %37 = vector.broadcast %cst_22 : f32 to vector<1x256xf32>
    %38 = vector.extract_strided_slice %24 {offsets = [0, 0], sizes = [39, 256], strides = [1, 1]} : vector<40x256xf32> to vector<39x256xf32>
    %39 = tpu.concatenate %37, %38 in 0 : vector<1x256xf32>, vector<39x256xf32> -> vector<40x256xf32>
    %cst_23 = arith.constant 0.000000e+00 : f32
    %40 = vector.broadcast %cst_23 : f32 to vector<1x256xf32>
    %41 = vector.extract_strided_slice %24 {offsets = [1, 0], sizes = [39, 256], strides = [1, 1]} : vector<40x256xf32> to vector<39x256xf32>
    %42 = tpu.concatenate %41, %40 in 0 : vector<39x256xf32>, vector<1x256xf32> -> vector<40x256xf32>
    %43 = tpu.concatenate %39, %24, %42 in 1 : vector<40x256xf32>, vector<40x256xf32>, vector<40x256xf32> -> vector<40x768xf32>
    %44 = arith.truncf %43 : vector<40x768xf32> to vector<40x768xbf16>
    %cst_24 = arith.constant dense<0.000000e+00> : vector<40x256xf32>
    %45 = tpu.matmul %44, %32, %cst_24 {dimension_numbers = #tpu.dot_dimension_numbers<[1], [0], [0], [1], [0, 0, 1, 1], [], []>} : vector<40x768xbf16>, vector<768x256xbf16>, vector<40x256xf32> -> vector<40x256xf32>
    %46 = vector.broadcast %26 : vector<1x256xf32> to vector<40x256xf32>
    %47 = arith.addf %45, %46 : vector<40x256xf32>
    %cst_25 = arith.constant 0.000000e+00 : f32
    %48 = vector.broadcast %cst_25 : f32 to vector<40x256xf32>
    %49 = arith.maximumf %47, %48 : vector<40x256xf32>
    %cst_26 = arith.constant 0.000000e+00 : f32
    %50 = vector.broadcast %cst_26 : f32 to vector<1x256xf32>
    %51 = vector.extract_strided_slice %49 {offsets = [0, 0], sizes = [39, 256], strides = [1, 1]} : vector<40x256xf32> to vector<39x256xf32>
    %52 = tpu.concatenate %50, %51 in 0 : vector<1x256xf32>, vector<39x256xf32> -> vector<40x256xf32>
    %cst_27 = arith.constant 0.000000e+00 : f32
    %53 = vector.broadcast %cst_27 : f32 to vector<1x256xf32>
    %54 = vector.extract_strided_slice %49 {offsets = [1, 0], sizes = [39, 256], strides = [1, 1]} : vector<40x256xf32> to vector<39x256xf32>
    %55 = tpu.concatenate %54, %53 in 0 : vector<39x256xf32>, vector<1x256xf32> -> vector<40x256xf32>
    %56 = tpu.concatenate %52, %49, %55 in 1 : vector<40x256xf32>, vector<40x256xf32>, vector<40x256xf32> -> vector<40x768xf32>
    %57 = arith.truncf %56 : vector<40x768xf32> to vector<40x768xbf16>
    %cst_28 = arith.constant dense<0.000000e+00> : vector<40x256xf32>
    %58 = tpu.matmul %57, %33, %cst_28 {dimension_numbers = #tpu.dot_dimension_numbers<[1], [0], [0], [1], [0, 0, 1, 1], [], []>} : vector<40x768xbf16>, vector<768x256xbf16>, vector<40x256xf32> -> vector<40x256xf32>
    %59 = vector.broadcast %27 : vector<1x256xf32> to vector<40x256xf32>
    %60 = arith.addf %58, %59 : vector<40x256xf32>
    %61 = arith.truncf %24 : vector<40x256xf32> to vector<40x256xbf16>
    %cst_29 = arith.constant dense<0.000000e+00> : vector<40x256xf32>
    %62 = tpu.matmul %61, %34, %cst_29 {dimension_numbers = #tpu.dot_dimension_numbers<[1], [0], [0], [1], [0, 0, 1, 1], [], []>} : vector<40x256xbf16>, vector<256x256xbf16>, vector<40x256xf32> -> vector<40x256xf32>
    %63 = vector.broadcast %28 : vector<1x256xf32> to vector<40x256xf32>
    %64 = arith.addf %62, %63 : vector<40x256xf32>
    %cst_30 = arith.constant dense<0.000000e+00> : vector<256xf32>
    %65 = vector.multi_reduction <add>, %60, %cst_30 [0] : vector<40x256xf32> to vector<256xf32>
    %66 = vector.shape_cast %65 : vector<256xf32> to vector<1x256xf32>
    %cst_31 = arith.constant 4.000000e+01 : f32
    %67 = vector.broadcast %cst_31 : f32 to vector<1x256xf32>
    %68 = arith.divf %66, %67 : vector<1x256xf32>
    %69 = arith.truncf %68 : vector<1x256xf32> to vector<1x256xbf16>
    %cst_32 = arith.constant dense<0.000000e+00> : vector<1x256xf32>
    %70 = tpu.matmul %69, %35, %cst_32 {dimension_numbers = #tpu.dot_dimension_numbers<[1], [0], [0], [1], [0, 0, 1, 1], [], []>} : vector<1x256xbf16>, vector<256x256xbf16>, vector<1x256xf32> -> vector<1x256xf32>
    %71 = arith.addf %70, %29 : vector<1x256xf32>
    %cst_33 = arith.constant 0.000000e+00 : f32
    %72 = vector.broadcast %cst_33 : f32 to vector<1x256xf32>
    %73 = arith.maximumf %71, %72 : vector<1x256xf32>
    %cst_34 = arith.constant 0.000000e+00 : f32
    %74 = vector.broadcast %cst_34 : f32 to vector<1x256xf32>
    %75 = arith.minimumf %71, %74 : vector<1x256xf32>
    %76 = arith.mulf %31, %75 : vector<1x256xf32>
    %77 = arith.addf %73, %76 : vector<1x256xf32>
    %78 = arith.truncf %77 : vector<1x256xf32> to vector<1x256xbf16>
    %cst_35 = arith.constant dense<0.000000e+00> : vector<1x256xf32>
    %79 = tpu.matmul %78, %36, %cst_35 {dimension_numbers = #tpu.dot_dimension_numbers<[1], [0], [0], [1], [0, 0, 1, 1], [], []>} : vector<1x256xbf16>, vector<256x256xbf16>, vector<1x256xf32> -> vector<1x256xf32>
    %80 = arith.addf %79, %30 : vector<1x256xf32>
    %cst_36 = arith.constant 0.000000e+00 : f32
    %81 = vector.broadcast %cst_36 : f32 to vector<1x256xf32>
    %82 = arith.subf %81, %80 : vector<1x256xf32>
    %83 = math.exp %82 : vector<1x256xf32>
    %cst_37 = arith.constant 1.000000e+00 : f32
    %84 = vector.broadcast %cst_37 : f32 to vector<1x256xf32>
    %85 = arith.addf %84, %83 : vector<1x256xf32>
    %cst_38 = arith.constant 1.000000e+00 : f32
    %86 = vector.broadcast %cst_38 : f32 to vector<1x256xf32>
    %87 = arith.divf %86, %85 : vector<1x256xf32>
    %88 = vector.broadcast %87 : vector<1x256xf32> to vector<40x256xf32>
    %89 = arith.mulf %60, %88 : vector<40x256xf32>
    %90 = arith.addf %89, %64 : vector<40x256xf32>
    %cst_39 = arith.constant 0.000000e+00 : f32
    %91 = vector.broadcast %cst_39 : f32 to vector<40x256xf32>
    %92 = arith.maximumf %90, %91 : vector<40x256xf32>
    %cst_40 = arith.constant 0.000000e+00 : f32
    %93 = vector.broadcast %cst_40 : f32 to vector<1x256xf32>
    %94 = vector.extract_strided_slice %92 {offsets = [1, 0], sizes = [39, 256], strides = [1, 1]} : vector<40x256xf32> to vector<39x256xf32>
    %95 = tpu.concatenate %94, %93 in 0 : vector<39x256xf32>, vector<1x256xf32> -> vector<40x256xf32>
    %96 = tpu.concatenate %92, %95 in 1 : vector<40x256xf32>, vector<40x256xf32> -> vector<40x512xf32>
    %c0_41 = arith.constant 0 : index
    %c0_42 = arith.constant 0 : index
    %97 = vector.load %arg4[%c0_41, %c0_42] : memref<20x40xbf16, #tpu.memory_space<vmem>>, vector<20x40xbf16>
    %98 = arith.truncf %96 : vector<40x512xf32> to vector<40x512xbf16>
    %cst_43 = arith.constant dense<0.000000e+00> : vector<20x512xf32>
    %99 = tpu.matmul %97, %98, %cst_43 {dimension_numbers = #tpu.dot_dimension_numbers<[1], [0], [0], [1], [0, 0, 1, 1], [], []>} : vector<20x40xbf16>, vector<40x512xbf16>, vector<20x512xf32> -> vector<20x512xf32>
    %c0_44 = arith.constant 0 : index
    %c0_45 = arith.constant 0 : index
    %100 = vector.load %arg11[%c0_44, %c0_45] : memref<512x256xbf16, #tpu.memory_space<vmem>>, vector<512x256xbf16>
    %101 = arith.truncf %99 : vector<20x512xf32> to vector<20x512xbf16>
    %cst_46 = arith.constant dense<0.000000e+00> : vector<20x256xf32>
    %102 = tpu.matmul %101, %100, %cst_46 {dimension_numbers = #tpu.dot_dimension_numbers<[1], [0], [0], [1], [0, 0, 1, 1], [], []>} : vector<20x512xbf16>, vector<512x256xbf16>, vector<20x256xf32> -> vector<20x256xf32>
    %c0_47 = arith.constant 0 : index
    %c0_48 = arith.constant 0 : index
    %103 = vector.load %arg12[%c0_47, %c0_48] : memref<1x256xf32, #tpu.memory_space<vmem>>, vector<1x256xf32>
    %104 = vector.broadcast %103 : vector<1x256xf32> to vector<20x256xf32>
    %105 = arith.addf %102, %104 : vector<20x256xf32>
    %cst_49 = arith.constant 0.000000e+00 : f32
    %106 = vector.broadcast %cst_49 : f32 to vector<20x256xf32>
    %107 = arith.maximumf %105, %106 : vector<20x256xf32>
    %c0_50 = arith.constant 0 : index
    %c0_51 = arith.constant 0 : index
    %108 = vector.load %arg14[%c0_50, %c0_51] : memref<8x256xf32, #tpu.memory_space<vmem>>, vector<8x256xf32>
    %109 = vector.extract_strided_slice %108 {offsets = [0, 0], sizes = [1, 256], strides = [1, 1]} : vector<8x256xf32> to vector<1x256xf32>
    %110 = vector.extract_strided_slice %108 {offsets = [1, 0], sizes = [1, 256], strides = [1, 1]} : vector<8x256xf32> to vector<1x256xf32>
    %111 = vector.extract_strided_slice %108 {offsets = [2, 0], sizes = [1, 256], strides = [1, 1]} : vector<8x256xf32> to vector<1x256xf32>
    %112 = vector.extract_strided_slice %108 {offsets = [3, 0], sizes = [1, 256], strides = [1, 1]} : vector<8x256xf32> to vector<1x256xf32>
    %113 = vector.extract_strided_slice %108 {offsets = [4, 0], sizes = [1, 256], strides = [1, 1]} : vector<8x256xf32> to vector<1x256xf32>
    %114 = vector.extract_strided_slice %108 {offsets = [5, 0], sizes = [1, 256], strides = [1, 1]} : vector<8x256xf32> to vector<1x256xf32>
    %c0_52 = arith.constant 0 : index
    %c0_53 = arith.constant 0 : index
    %115 = vector.load %arg13[%c0_52, %c0_53] : memref<2304x256xbf16, #tpu.memory_space<vmem>>, vector<768x256xbf16>
    %c768_54 = arith.constant 768 : index
    %c0_55 = arith.constant 0 : index
    %116 = vector.load %arg13[%c768_54, %c0_55] : memref<2304x256xbf16, #tpu.memory_space<vmem>>, vector<768x256xbf16>
    %c1536_56 = arith.constant 1536 : index
    %c0_57 = arith.constant 0 : index
    %117 = vector.load %arg13[%c1536_56, %c0_57] : memref<2304x256xbf16, #tpu.memory_space<vmem>>, vector<256x256xbf16>
    %c1792_58 = arith.constant 1792 : index
    %c0_59 = arith.constant 0 : index
    %118 = vector.load %arg13[%c1792_58, %c0_59] : memref<2304x256xbf16, #tpu.memory_space<vmem>>, vector<256x256xbf16>
    %c2048_60 = arith.constant 2048 : index
    %c0_61 = arith.constant 0 : index
    %119 = vector.load %arg13[%c2048_60, %c0_61] : memref<2304x256xbf16, #tpu.memory_space<vmem>>, vector<256x256xbf16>
    %cst_62 = arith.constant 0.000000e+00 : f32
    %120 = vector.broadcast %cst_62 : f32 to vector<1x256xf32>
    %121 = vector.extract_strided_slice %107 {offsets = [0, 0], sizes = [19, 256], strides = [1, 1]} : vector<20x256xf32> to vector<19x256xf32>
    %122 = tpu.concatenate %120, %121 in 0 : vector<1x256xf32>, vector<19x256xf32> -> vector<20x256xf32>
    %cst_63 = arith.constant 0.000000e+00 : f32
    %123 = vector.broadcast %cst_63 : f32 to vector<1x256xf32>
    %124 = vector.extract_strided_slice %107 {offsets = [1, 0], sizes = [19, 256], strides = [1, 1]} : vector<20x256xf32> to vector<19x256xf32>
    %125 = tpu.concatenate %124, %123 in 0 : vector<19x256xf32>, vector<1x256xf32> -> vector<20x256xf32>
    %126 = tpu.concatenate %122, %107, %125 in 1 : vector<20x256xf32>, vector<20x256xf32>, vector<20x256xf32> -> vector<20x768xf32>
    %127 = arith.truncf %126 : vector<20x768xf32> to vector<20x768xbf16>
    %cst_64 = arith.constant dense<0.000000e+00> : vector<20x256xf32>
    %128 = tpu.matmul %127, %115, %cst_64 {dimension_numbers = #tpu.dot_dimension_numbers<[1], [0], [0], [1], [0, 0, 1, 1], [], []>} : vector<20x768xbf16>, vector<768x256xbf16>, vector<20x256xf32> -> vector<20x256xf32>
    %129 = vector.broadcast %109 : vector<1x256xf32> to vector<20x256xf32>
    %130 = arith.addf %128, %129 : vector<20x256xf32>
    %cst_65 = arith.constant 0.000000e+00 : f32
    %131 = vector.broadcast %cst_65 : f32 to vector<20x256xf32>
    %132 = arith.maximumf %130, %131 : vector<20x256xf32>
    %cst_66 = arith.constant 0.000000e+00 : f32
    %133 = vector.broadcast %cst_66 : f32 to vector<1x256xf32>
    %134 = vector.extract_strided_slice %132 {offsets = [0, 0], sizes = [19, 256], strides = [1, 1]} : vector<20x256xf32> to vector<19x256xf32>
    %135 = tpu.concatenate %133, %134 in 0 : vector<1x256xf32>, vector<19x256xf32> -> vector<20x256xf32>
    %cst_67 = arith.constant 0.000000e+00 : f32
    %136 = vector.broadcast %cst_67 : f32 to vector<1x256xf32>
    %137 = vector.extract_strided_slice %132 {offsets = [1, 0], sizes = [19, 256], strides = [1, 1]} : vector<20x256xf32> to vector<19x256xf32>
    %138 = tpu.concatenate %137, %136 in 0 : vector<19x256xf32>, vector<1x256xf32> -> vector<20x256xf32>
    %139 = tpu.concatenate %135, %132, %138 in 1 : vector<20x256xf32>, vector<20x256xf32>, vector<20x256xf32> -> vector<20x768xf32>
    %140 = arith.truncf %139 : vector<20x768xf32> to vector<20x768xbf16>
    %cst_68 = arith.constant dense<0.000000e+00> : vector<20x256xf32>
    %141 = tpu.matmul %140, %116, %cst_68 {dimension_numbers = #tpu.dot_dimension_numbers<[1], [0], [0], [1], [0, 0, 1, 1], [], []>} : vector<20x768xbf16>, vector<768x256xbf16>, vector<20x256xf32> -> vector<20x256xf32>
    %142 = vector.broadcast %110 : vector<1x256xf32> to vector<20x256xf32>
    %143 = arith.addf %141, %142 : vector<20x256xf32>
    %144 = arith.truncf %107 : vector<20x256xf32> to vector<20x256xbf16>
    %cst_69 = arith.constant dense<0.000000e+00> : vector<20x256xf32>
    %145 = tpu.matmul %144, %117, %cst_69 {dimension_numbers = #tpu.dot_dimension_numbers<[1], [0], [0], [1], [0, 0, 1, 1], [], []>} : vector<20x256xbf16>, vector<256x256xbf16>, vector<20x256xf32> -> vector<20x256xf32>
    %146 = vector.broadcast %111 : vector<1x256xf32> to vector<20x256xf32>
    %147 = arith.addf %145, %146 : vector<20x256xf32>
    %cst_70 = arith.constant dense<0.000000e+00> : vector<256xf32>
    %148 = vector.multi_reduction <add>, %143, %cst_70 [0] : vector<20x256xf32> to vector<256xf32>
    %149 = vector.shape_cast %148 : vector<256xf32> to vector<1x256xf32>
    %cst_71 = arith.constant 2.000000e+01 : f32
    %150 = vector.broadcast %cst_71 : f32 to vector<1x256xf32>
    %151 = arith.divf %149, %150 : vector<1x256xf32>
    %152 = arith.truncf %151 : vector<1x256xf32> to vector<1x256xbf16>
    %cst_72 = arith.constant dense<0.000000e+00> : vector<1x256xf32>
    %153 = tpu.matmul %152, %118, %cst_72 {dimension_numbers = #tpu.dot_dimension_numbers<[1], [0], [0], [1], [0, 0, 1, 1], [], []>} : vector<1x256xbf16>, vector<256x256xbf16>, vector<1x256xf32> -> vector<1x256xf32>
    %154 = arith.addf %153, %112 : vector<1x256xf32>
    %cst_73 = arith.constant 0.000000e+00 : f32
    %155 = vector.broadcast %cst_73 : f32 to vector<1x256xf32>
    %156 = arith.maximumf %154, %155 : vector<1x256xf32>
    %cst_74 = arith.constant 0.000000e+00 : f32
    %157 = vector.broadcast %cst_74 : f32 to vector<1x256xf32>
    %158 = arith.minimumf %154, %157 : vector<1x256xf32>
    %159 = arith.mulf %114, %158 : vector<1x256xf32>
    %160 = arith.addf %156, %159 : vector<1x256xf32>
    %161 = arith.truncf %160 : vector<1x256xf32> to vector<1x256xbf16>
    %cst_75 = arith.constant dense<0.000000e+00> : vector<1x256xf32>
    %162 = tpu.matmul %161, %119, %cst_75 {dimension_numbers = #tpu.dot_dimension_numbers<[1], [0], [0], [1], [0, 0, 1, 1], [], []>} : vector<1x256xbf16>, vector<256x256xbf16>, vector<1x256xf32> -> vector<1x256xf32>
    %163 = arith.addf %162, %113 : vector<1x256xf32>
    %cst_76 = arith.constant 0.000000e+00 : f32
    %164 = vector.broadcast %cst_76 : f32 to vector<1x256xf32>
    %165 = arith.subf %164, %163 : vector<1x256xf32>
    %166 = math.exp %165 : vector<1x256xf32>
    %cst_77 = arith.constant 1.000000e+00 : f32
    %167 = vector.broadcast %cst_77 : f32 to vector<1x256xf32>
    %168 = arith.addf %167, %166 : vector<1x256xf32>
    %cst_78 = arith.constant 1.000000e+00 : f32
    %169 = vector.broadcast %cst_78 : f32 to vector<1x256xf32>
    %170 = arith.divf %169, %168 : vector<1x256xf32>
    %171 = vector.broadcast %170 : vector<1x256xf32> to vector<20x256xf32>
    %172 = arith.mulf %143, %171 : vector<20x256xf32>
    %173 = arith.addf %172, %147 : vector<20x256xf32>
    %cst_79 = arith.constant 0.000000e+00 : f32
    %174 = vector.broadcast %cst_79 : f32 to vector<20x256xf32>
    %175 = arith.maximumf %173, %174 : vector<20x256xf32>
    %cst_80 = arith.constant 0.000000e+00 : f32
    %176 = vector.broadcast %cst_80 : f32 to vector<1x256xf32>
    %177 = vector.extract_strided_slice %175 {offsets = [1, 0], sizes = [19, 256], strides = [1, 1]} : vector<20x256xf32> to vector<19x256xf32>
    %178 = tpu.concatenate %177, %176 in 0 : vector<19x256xf32>, vector<1x256xf32> -> vector<20x256xf32>
    %179 = tpu.concatenate %175, %178 in 1 : vector<20x256xf32>, vector<20x256xf32> -> vector<20x512xf32>
    %c0_81 = arith.constant 0 : index
    %c0_82 = arith.constant 0 : index
    %180 = vector.load %arg5[%c0_81, %c0_82] : memref<10x20xbf16, #tpu.memory_space<vmem>>, vector<10x20xbf16>
    %181 = arith.truncf %179 : vector<20x512xf32> to vector<20x512xbf16>
    %cst_83 = arith.constant dense<0.000000e+00> : vector<10x512xf32>
    %182 = tpu.matmul %180, %181, %cst_83 {dimension_numbers = #tpu.dot_dimension_numbers<[1], [0], [0], [1], [0, 0, 1, 1], [], []>} : vector<10x20xbf16>, vector<20x512xbf16>, vector<10x512xf32> -> vector<10x512xf32>
    %c0_84 = arith.constant 0 : index
    %c0_85 = arith.constant 0 : index
    %183 = vector.load %arg15[%c0_84, %c0_85] : memref<512x128xbf16, #tpu.memory_space<vmem>>, vector<512x128xbf16>
    %184 = arith.truncf %182 : vector<10x512xf32> to vector<10x512xbf16>
    %cst_86 = arith.constant dense<0.000000e+00> : vector<10x128xf32>
    %185 = tpu.matmul %184, %183, %cst_86 {dimension_numbers = #tpu.dot_dimension_numbers<[1], [0], [0], [1], [0, 0, 1, 1], [], []>} : vector<10x512xbf16>, vector<512x128xbf16>, vector<10x128xf32> -> vector<10x128xf32>
    %c0_87 = arith.constant 0 : index
    %c0_88 = arith.constant 0 : index
    %186 = vector.load %arg16[%c0_87, %c0_88] : memref<1x128xf32, #tpu.memory_space<vmem>>, vector<1x128xf32>
    %187 = vector.broadcast %186 : vector<1x128xf32> to vector<10x128xf32>
    %188 = arith.addf %185, %187 : vector<10x128xf32>
    %cst_89 = arith.constant 0.000000e+00 : f32
    %189 = vector.broadcast %cst_89 : f32 to vector<10x128xf32>
    %190 = arith.maximumf %188, %189 : vector<10x128xf32>
    %c0_90 = arith.constant 0 : index
    %c0_91 = arith.constant 0 : index
    %191 = vector.load %arg18[%c0_90, %c0_91] : memref<8x128xf32, #tpu.memory_space<vmem>>, vector<8x128xf32>
    %192 = vector.extract_strided_slice %191 {offsets = [0, 0], sizes = [1, 128], strides = [1, 1]} : vector<8x128xf32> to vector<1x128xf32>
    %193 = vector.extract_strided_slice %191 {offsets = [1, 0], sizes = [1, 128], strides = [1, 1]} : vector<8x128xf32> to vector<1x128xf32>
    %194 = vector.extract_strided_slice %191 {offsets = [2, 0], sizes = [1, 128], strides = [1, 1]} : vector<8x128xf32> to vector<1x128xf32>
    %195 = vector.extract_strided_slice %191 {offsets = [3, 0], sizes = [1, 128], strides = [1, 1]} : vector<8x128xf32> to vector<1x128xf32>
    %196 = vector.extract_strided_slice %191 {offsets = [4, 0], sizes = [1, 128], strides = [1, 1]} : vector<8x128xf32> to vector<1x128xf32>
    %197 = vector.extract_strided_slice %191 {offsets = [5, 0], sizes = [1, 128], strides = [1, 1]} : vector<8x128xf32> to vector<1x128xf32>
    %c0_92 = arith.constant 0 : index
    %c0_93 = arith.constant 0 : index
    %198 = vector.load %arg17[%c0_92, %c0_93] : memref<1152x128xbf16, #tpu.memory_space<vmem>>, vector<384x128xbf16>
    %c384 = arith.constant 384 : index
    %c0_94 = arith.constant 0 : index
    %199 = vector.load %arg17[%c384, %c0_94] : memref<1152x128xbf16, #tpu.memory_space<vmem>>, vector<384x128xbf16>
    %c768_95 = arith.constant 768 : index
    %c0_96 = arith.constant 0 : index
    %200 = vector.load %arg17[%c768_95, %c0_96] : memref<1152x128xbf16, #tpu.memory_space<vmem>>, vector<128x128xbf16>
    %c896 = arith.constant 896 : index
    %c0_97 = arith.constant 0 : index
    %201 = vector.load %arg17[%c896, %c0_97] : memref<1152x128xbf16, #tpu.memory_space<vmem>>, vector<128x128xbf16>
    %c1024 = arith.constant 1024 : index
    %c0_98 = arith.constant 0 : index
    %202 = vector.load %arg17[%c1024, %c0_98] : memref<1152x128xbf16, #tpu.memory_space<vmem>>, vector<128x128xbf16>
    %cst_99 = arith.constant 0.000000e+00 : f32
    %203 = vector.broadcast %cst_99 : f32 to vector<1x128xf32>
    %204 = vector.extract_strided_slice %190 {offsets = [0, 0], sizes = [9, 128], strides = [1, 1]} : vector<10x128xf32> to vector<9x128xf32>
    %205 = tpu.concatenate %203, %204 in 0 : vector<1x128xf32>, vector<9x128xf32> -> vector<10x128xf32>
    %cst_100 = arith.constant 0.000000e+00 : f32
    %206 = vector.broadcast %cst_100 : f32 to vector<1x128xf32>
    %207 = vector.extract_strided_slice %190 {offsets = [1, 0], sizes = [9, 128], strides = [1, 1]} : vector<10x128xf32> to vector<9x128xf32>
    %208 = tpu.concatenate %207, %206 in 0 : vector<9x128xf32>, vector<1x128xf32> -> vector<10x128xf32>
    %209 = tpu.concatenate %205, %190, %208 in 1 : vector<10x128xf32>, vector<10x128xf32>, vector<10x128xf32> -> vector<10x384xf32>
    %210 = arith.truncf %209 : vector<10x384xf32> to vector<10x384xbf16>
    %cst_101 = arith.constant dense<0.000000e+00> : vector<10x128xf32>
    %211 = tpu.matmul %210, %198, %cst_101 {dimension_numbers = #tpu.dot_dimension_numbers<[1], [0], [0], [1], [0, 0, 1, 1], [], []>} : vector<10x384xbf16>, vector<384x128xbf16>, vector<10x128xf32> -> vector<10x128xf32>
    %212 = vector.broadcast %192 : vector<1x128xf32> to vector<10x128xf32>
    %213 = arith.addf %211, %212 : vector<10x128xf32>
    %cst_102 = arith.constant 0.000000e+00 : f32
    %214 = vector.broadcast %cst_102 : f32 to vector<10x128xf32>
    %215 = arith.maximumf %213, %214 : vector<10x128xf32>
    %cst_103 = arith.constant 0.000000e+00 : f32
    %216 = vector.broadcast %cst_103 : f32 to vector<1x128xf32>
    %217 = vector.extract_strided_slice %215 {offsets = [0, 0], sizes = [9, 128], strides = [1, 1]} : vector<10x128xf32> to vector<9x128xf32>
    %218 = tpu.concatenate %216, %217 in 0 : vector<1x128xf32>, vector<9x128xf32> -> vector<10x128xf32>
    %cst_104 = arith.constant 0.000000e+00 : f32
    %219 = vector.broadcast %cst_104 : f32 to vector<1x128xf32>
    %220 = vector.extract_strided_slice %215 {offsets = [1, 0], sizes = [9, 128], strides = [1, 1]} : vector<10x128xf32> to vector<9x128xf32>
    %221 = tpu.concatenate %220, %219 in 0 : vector<9x128xf32>, vector<1x128xf32> -> vector<10x128xf32>
    %222 = tpu.concatenate %218, %215, %221 in 1 : vector<10x128xf32>, vector<10x128xf32>, vector<10x128xf32> -> vector<10x384xf32>
    %223 = arith.truncf %222 : vector<10x384xf32> to vector<10x384xbf16>
    %cst_105 = arith.constant dense<0.000000e+00> : vector<10x128xf32>
    %224 = tpu.matmul %223, %199, %cst_105 {dimension_numbers = #tpu.dot_dimension_numbers<[1], [0], [0], [1], [0, 0, 1, 1], [], []>} : vector<10x384xbf16>, vector<384x128xbf16>, vector<10x128xf32> -> vector<10x128xf32>
    %225 = vector.broadcast %193 : vector<1x128xf32> to vector<10x128xf32>
    %226 = arith.addf %224, %225 : vector<10x128xf32>
    %227 = arith.truncf %190 : vector<10x128xf32> to vector<10x128xbf16>
    %cst_106 = arith.constant dense<0.000000e+00> : vector<10x128xf32>
    %228 = tpu.matmul %227, %200, %cst_106 {dimension_numbers = #tpu.dot_dimension_numbers<[1], [0], [0], [1], [0, 0, 1, 1], [], []>} : vector<10x128xbf16>, vector<128x128xbf16>, vector<10x128xf32> -> vector<10x128xf32>
    %229 = vector.broadcast %194 : vector<1x128xf32> to vector<10x128xf32>
    %230 = arith.addf %228, %229 : vector<10x128xf32>
    %cst_107 = arith.constant dense<0.000000e+00> : vector<128xf32>
    %231 = vector.multi_reduction <add>, %226, %cst_107 [0] : vector<10x128xf32> to vector<128xf32>
    %232 = vector.shape_cast %231 : vector<128xf32> to vector<1x128xf32>
    %cst_108 = arith.constant 1.000000e+01 : f32
    %233 = vector.broadcast %cst_108 : f32 to vector<1x128xf32>
    %234 = arith.divf %232, %233 : vector<1x128xf32>
    %235 = arith.truncf %234 : vector<1x128xf32> to vector<1x128xbf16>
    %cst_109 = arith.constant dense<0.000000e+00> : vector<1x128xf32>
    %236 = tpu.matmul %235, %201, %cst_109 {dimension_numbers = #tpu.dot_dimension_numbers<[1], [0], [0], [1], [0, 0, 1, 1], [], []>} : vector<1x128xbf16>, vector<128x128xbf16>, vector<1x128xf32> -> vector<1x128xf32>
    %237 = arith.addf %236, %195 : vector<1x128xf32>
    %cst_110 = arith.constant 0.000000e+00 : f32
    %238 = vector.broadcast %cst_110 : f32 to vector<1x128xf32>
    %239 = arith.maximumf %237, %238 : vector<1x128xf32>
    %cst_111 = arith.constant 0.000000e+00 : f32
    %240 = vector.broadcast %cst_111 : f32 to vector<1x128xf32>
    %241 = arith.minimumf %237, %240 : vector<1x128xf32>
    %242 = arith.mulf %197, %241 : vector<1x128xf32>
    %243 = arith.addf %239, %242 : vector<1x128xf32>
    %244 = arith.truncf %243 : vector<1x128xf32> to vector<1x128xbf16>
    %cst_112 = arith.constant dense<0.000000e+00> : vector<1x128xf32>
    %245 = tpu.matmul %244, %202, %cst_112 {dimension_numbers = #tpu.dot_dimension_numbers<[1], [0], [0], [1], [0, 0, 1, 1], [], []>} : vector<1x128xbf16>, vector<128x128xbf16>, vector<1x128xf32> -> vector<1x128xf32>
    %246 = arith.addf %245, %196 : vector<1x128xf32>
    %cst_113 = arith.constant 0.000000e+00 : f32
    %247 = vector.broadcast %cst_113 : f32 to vector<1x128xf32>
    %248 = arith.subf %247, %246 : vector<1x128xf32>
    %249 = math.exp %248 : vector<1x128xf32>
    %cst_114 = arith.constant 1.000000e+00 : f32
    %250 = vector.broadcast %cst_114 : f32 to vector<1x128xf32>
    %251 = arith.addf %250, %249 : vector<1x128xf32>
    %cst_115 = arith.constant 1.000000e+00 : f32
    %252 = vector.broadcast %cst_115 : f32 to vector<1x128xf32>
    %253 = arith.divf %252, %251 : vector<1x128xf32>
    %254 = vector.broadcast %253 : vector<1x128xf32> to vector<10x128xf32>
    %255 = arith.mulf %226, %254 : vector<10x128xf32>
    %256 = arith.addf %255, %230 : vector<10x128xf32>
    %cst_116 = arith.constant 0.000000e+00 : f32
    %257 = vector.broadcast %cst_116 : f32 to vector<10x128xf32>
    %258 = arith.maximumf %256, %257 : vector<10x128xf32>
    %cst_117 = arith.constant 0.000000e+00 : f32
    %259 = vector.broadcast %cst_117 : f32 to vector<1x128xf32>
    %260 = vector.extract_strided_slice %258 {offsets = [1, 0], sizes = [9, 128], strides = [1, 1]} : vector<10x128xf32> to vector<9x128xf32>
    %261 = tpu.concatenate %260, %259 in 0 : vector<9x128xf32>, vector<1x128xf32> -> vector<10x128xf32>
    %262 = tpu.concatenate %258, %261 in 1 : vector<10x128xf32>, vector<10x128xf32> -> vector<10x256xf32>
    %c0_118 = arith.constant 0 : index
    %c0_119 = arith.constant 0 : index
    %263 = vector.load %arg6[%c0_118, %c0_119] : memref<5x10xbf16, #tpu.memory_space<vmem>>, vector<5x10xbf16>
    %264 = arith.truncf %262 : vector<10x256xf32> to vector<10x256xbf16>
    %cst_120 = arith.constant dense<0.000000e+00> : vector<5x256xf32>
    %265 = tpu.matmul %263, %264, %cst_120 {dimension_numbers = #tpu.dot_dimension_numbers<[1], [0], [0], [1], [0, 0, 1, 1], [], []>} : vector<5x10xbf16>, vector<10x256xbf16>, vector<5x256xf32> -> vector<5x256xf32>
    %c0_121 = arith.constant 0 : index
    %c0_122 = arith.constant 0 : index
    %266 = vector.load %arg19[%c0_121, %c0_122] : memref<256x128xbf16, #tpu.memory_space<vmem>>, vector<256x128xbf16>
    %267 = arith.truncf %265 : vector<5x256xf32> to vector<5x256xbf16>
    %cst_123 = arith.constant dense<0.000000e+00> : vector<5x128xf32>
    %268 = tpu.matmul %267, %266, %cst_123 {dimension_numbers = #tpu.dot_dimension_numbers<[1], [0], [0], [1], [0, 0, 1, 1], [], []>} : vector<5x256xbf16>, vector<256x128xbf16>, vector<5x128xf32> -> vector<5x128xf32>
    %c0_124 = arith.constant 0 : index
    %c0_125 = arith.constant 0 : index
    %269 = vector.load %arg20[%c0_124, %c0_125] : memref<1x128xf32, #tpu.memory_space<vmem>>, vector<1x128xf32>
    %270 = vector.broadcast %269 : vector<1x128xf32> to vector<5x128xf32>
    %271 = arith.addf %268, %270 : vector<5x128xf32>
    %cst_126 = arith.constant 0.000000e+00 : f32
    %272 = vector.broadcast %cst_126 : f32 to vector<5x128xf32>
    %273 = arith.maximumf %271, %272 : vector<5x128xf32>
    %c0_127 = arith.constant 0 : index
    %c0_128 = arith.constant 0 : index
    %274 = vector.load %arg22[%c0_127, %c0_128] : memref<8x128xf32, #tpu.memory_space<vmem>>, vector<8x128xf32>
    %275 = vector.extract_strided_slice %274 {offsets = [0, 0], sizes = [1, 128], strides = [1, 1]} : vector<8x128xf32> to vector<1x128xf32>
    %276 = vector.extract_strided_slice %274 {offsets = [1, 0], sizes = [1, 128], strides = [1, 1]} : vector<8x128xf32> to vector<1x128xf32>
    %277 = vector.extract_strided_slice %274 {offsets = [2, 0], sizes = [1, 128], strides = [1, 1]} : vector<8x128xf32> to vector<1x128xf32>
    %278 = vector.extract_strided_slice %274 {offsets = [3, 0], sizes = [1, 128], strides = [1, 1]} : vector<8x128xf32> to vector<1x128xf32>
    %279 = vector.extract_strided_slice %274 {offsets = [4, 0], sizes = [1, 128], strides = [1, 1]} : vector<8x128xf32> to vector<1x128xf32>
    %280 = vector.extract_strided_slice %274 {offsets = [5, 0], sizes = [1, 128], strides = [1, 1]} : vector<8x128xf32> to vector<1x128xf32>
    %c0_129 = arith.constant 0 : index
    %c0_130 = arith.constant 0 : index
    %281 = vector.load %arg21[%c0_129, %c0_130] : memref<1152x128xbf16, #tpu.memory_space<vmem>>, vector<384x128xbf16>
    %c384_131 = arith.constant 384 : index
    %c0_132 = arith.constant 0 : index
    %282 = vector.load %arg21[%c384_131, %c0_132] : memref<1152x128xbf16, #tpu.memory_space<vmem>>, vector<384x128xbf16>
    %c768_133 = arith.constant 768 : index
    %c0_134 = arith.constant 0 : index
    %283 = vector.load %arg21[%c768_133, %c0_134] : memref<1152x128xbf16, #tpu.memory_space<vmem>>, vector<128x128xbf16>
    %c896_135 = arith.constant 896 : index
    %c0_136 = arith.constant 0 : index
    %284 = vector.load %arg21[%c896_135, %c0_136] : memref<1152x128xbf16, #tpu.memory_space<vmem>>, vector<128x128xbf16>
    %c1024_137 = arith.constant 1024 : index
    %c0_138 = arith.constant 0 : index
    %285 = vector.load %arg21[%c1024_137, %c0_138] : memref<1152x128xbf16, #tpu.memory_space<vmem>>, vector<128x128xbf16>
    %cst_139 = arith.constant 0.000000e+00 : f32
    %286 = vector.broadcast %cst_139 : f32 to vector<1x128xf32>
    %287 = vector.extract_strided_slice %273 {offsets = [0, 0], sizes = [4, 128], strides = [1, 1]} : vector<5x128xf32> to vector<4x128xf32>
    %288 = tpu.concatenate %286, %287 in 0 : vector<1x128xf32>, vector<4x128xf32> -> vector<5x128xf32>
    %cst_140 = arith.constant 0.000000e+00 : f32
    %289 = vector.broadcast %cst_140 : f32 to vector<1x128xf32>
    %290 = vector.extract_strided_slice %273 {offsets = [1, 0], sizes = [4, 128], strides = [1, 1]} : vector<5x128xf32> to vector<4x128xf32>
    %291 = tpu.concatenate %290, %289 in 0 : vector<4x128xf32>, vector<1x128xf32> -> vector<5x128xf32>
    %292 = tpu.concatenate %288, %273, %291 in 1 : vector<5x128xf32>, vector<5x128xf32>, vector<5x128xf32> -> vector<5x384xf32>
    %293 = arith.truncf %292 : vector<5x384xf32> to vector<5x384xbf16>
    %cst_141 = arith.constant dense<0.000000e+00> : vector<5x128xf32>
    %294 = tpu.matmul %293, %281, %cst_141 {dimension_numbers = #tpu.dot_dimension_numbers<[1], [0], [0], [1], [0, 0, 1, 1], [], []>} : vector<5x384xbf16>, vector<384x128xbf16>, vector<5x128xf32> -> vector<5x128xf32>
    %295 = vector.broadcast %275 : vector<1x128xf32> to vector<5x128xf32>
    %296 = arith.addf %294, %295 : vector<5x128xf32>
    %cst_142 = arith.constant 0.000000e+00 : f32
    %297 = vector.broadcast %cst_142 : f32 to vector<5x128xf32>
    %298 = arith.maximumf %296, %297 : vector<5x128xf32>
    %cst_143 = arith.constant 0.000000e+00 : f32
    %299 = vector.broadcast %cst_143 : f32 to vector<1x128xf32>
    %300 = vector.extract_strided_slice %298 {offsets = [0, 0], sizes = [4, 128], strides = [1, 1]} : vector<5x128xf32> to vector<4x128xf32>
    %301 = tpu.concatenate %299, %300 in 0 : vector<1x128xf32>, vector<4x128xf32> -> vector<5x128xf32>
    %cst_144 = arith.constant 0.000000e+00 : f32
    %302 = vector.broadcast %cst_144 : f32 to vector<1x128xf32>
    %303 = vector.extract_strided_slice %298 {offsets = [1, 0], sizes = [4, 128], strides = [1, 1]} : vector<5x128xf32> to vector<4x128xf32>
    %304 = tpu.concatenate %303, %302 in 0 : vector<4x128xf32>, vector<1x128xf32> -> vector<5x128xf32>
    %305 = tpu.concatenate %301, %298, %304 in 1 : vector<5x128xf32>, vector<5x128xf32>, vector<5x128xf32> -> vector<5x384xf32>
    %306 = arith.truncf %305 : vector<5x384xf32> to vector<5x384xbf16>
    %cst_145 = arith.constant dense<0.000000e+00> : vector<5x128xf32>
    %307 = tpu.matmul %306, %282, %cst_145 {dimension_numbers = #tpu.dot_dimension_numbers<[1], [0], [0], [1], [0, 0, 1, 1], [], []>} : vector<5x384xbf16>, vector<384x128xbf16>, vector<5x128xf32> -> vector<5x128xf32>
    %308 = vector.broadcast %276 : vector<1x128xf32> to vector<5x128xf32>
    %309 = arith.addf %307, %308 : vector<5x128xf32>
    %310 = arith.truncf %273 : vector<5x128xf32> to vector<5x128xbf16>
    %cst_146 = arith.constant dense<0.000000e+00> : vector<5x128xf32>
    %311 = tpu.matmul %310, %283, %cst_146 {dimension_numbers = #tpu.dot_dimension_numbers<[1], [0], [0], [1], [0, 0, 1, 1], [], []>} : vector<5x128xbf16>, vector<128x128xbf16>, vector<5x128xf32> -> vector<5x128xf32>
    %312 = vector.broadcast %277 : vector<1x128xf32> to vector<5x128xf32>
    %313 = arith.addf %311, %312 : vector<5x128xf32>
    %cst_147 = arith.constant dense<0.000000e+00> : vector<128xf32>
    %314 = vector.multi_reduction <add>, %309, %cst_147 [0] : vector<5x128xf32> to vector<128xf32>
    %315 = vector.shape_cast %314 : vector<128xf32> to vector<1x128xf32>
    %cst_148 = arith.constant 5.000000e+00 : f32
    %316 = vector.broadcast %cst_148 : f32 to vector<1x128xf32>
    %317 = arith.divf %315, %316 : vector<1x128xf32>
    %318 = arith.truncf %317 : vector<1x128xf32> to vector<1x128xbf16>
    %cst_149 = arith.constant dense<0.000000e+00> : vector<1x128xf32>
    %319 = tpu.matmul %318, %284, %cst_149 {dimension_numbers = #tpu.dot_dimension_numbers<[1], [0], [0], [1], [0, 0, 1, 1], [], []>} : vector<1x128xbf16>, vector<128x128xbf16>, vector<1x128xf32> -> vector<1x128xf32>
    %320 = arith.addf %319, %278 : vector<1x128xf32>
    %cst_150 = arith.constant 0.000000e+00 : f32
    %321 = vector.broadcast %cst_150 : f32 to vector<1x128xf32>
    %322 = arith.maximumf %320, %321 : vector<1x128xf32>
    %cst_151 = arith.constant 0.000000e+00 : f32
    %323 = vector.broadcast %cst_151 : f32 to vector<1x128xf32>
    %324 = arith.minimumf %320, %323 : vector<1x128xf32>
    %325 = arith.mulf %280, %324 : vector<1x128xf32>
    %326 = arith.addf %322, %325 : vector<1x128xf32>
    %327 = arith.truncf %326 : vector<1x128xf32> to vector<1x128xbf16>
    %cst_152 = arith.constant dense<0.000000e+00> : vector<1x128xf32>
    %328 = tpu.matmul %327, %285, %cst_152 {dimension_numbers = #tpu.dot_dimension_numbers<[1], [0], [0], [1], [0, 0, 1, 1], [], []>} : vector<1x128xbf16>, vector<128x128xbf16>, vector<1x128xf32> -> vector<1x128xf32>
    %329 = arith.addf %328, %279 : vector<1x128xf32>
    %cst_153 = arith.constant 0.000000e+00 : f32
    %330 = vector.broadcast %cst_153 : f32 to vector<1x128xf32>
    %331 = arith.subf %330, %329 : vector<1x128xf32>
    %332 = math.exp %331 : vector<1x128xf32>
    %cst_154 = arith.constant 1.000000e+00 : f32
    %333 = vector.broadcast %cst_154 : f32 to vector<1x128xf32>
    %334 = arith.addf %333, %332 : vector<1x128xf32>
    %cst_155 = arith.constant 1.000000e+00 : f32
    %335 = vector.broadcast %cst_155 : f32 to vector<1x128xf32>
    %336 = arith.divf %335, %334 : vector<1x128xf32>
    %337 = vector.broadcast %336 : vector<1x128xf32> to vector<5x128xf32>
    %338 = arith.mulf %309, %337 : vector<5x128xf32>
    %339 = arith.addf %338, %313 : vector<5x128xf32>
    %cst_156 = arith.constant 0.000000e+00 : f32
    %340 = vector.broadcast %cst_156 : f32 to vector<5x128xf32>
    %341 = arith.maximumf %339, %340 : vector<5x128xf32>
    %342 = vector.extract_strided_slice %341 {offsets = [0, 0], sizes = [1, 128], strides = [1, 1]} : vector<5x128xf32> to vector<1x128xf32>
    %343 = vector.extract_strided_slice %341 {offsets = [1, 0], sizes = [1, 128], strides = [1, 1]} : vector<5x128xf32> to vector<1x128xf32>
    %344 = vector.extract_strided_slice %341 {offsets = [2, 0], sizes = [1, 128], strides = [1, 1]} : vector<5x128xf32> to vector<1x128xf32>
    %345 = vector.extract_strided_slice %341 {offsets = [3, 0], sizes = [1, 128], strides = [1, 1]} : vector<5x128xf32> to vector<1x128xf32>
    %346 = vector.extract_strided_slice %341 {offsets = [4, 0], sizes = [1, 128], strides = [1, 1]} : vector<5x128xf32> to vector<1x128xf32>
    %347 = tpu.concatenate %342, %343, %344, %345, %346 in 1 : vector<1x128xf32>, vector<1x128xf32>, vector<1x128xf32>, vector<1x128xf32>, vector<1x128xf32> -> vector<1x640xf32>
    %c0_157 = arith.constant 0 : index
    %c0_158 = arith.constant 0 : index
    %348 = vector.load %arg23[%c0_157, %c0_158] : memref<640x128xbf16, #tpu.memory_space<vmem>>, vector<640x128xbf16>
    %349 = arith.truncf %347 : vector<1x640xf32> to vector<1x640xbf16>
    %cst_159 = arith.constant dense<0.000000e+00> : vector<1x128xf32>
    %350 = tpu.matmul %349, %348, %cst_159 {dimension_numbers = #tpu.dot_dimension_numbers<[1], [0], [0], [1], [0, 0, 1, 1], [], []>} : vector<1x640xbf16>, vector<640x128xbf16>, vector<1x128xf32> -> vector<1x128xf32>
    %c0_160 = arith.constant 0 : index
    %c0_161 = arith.constant 0 : index
    %351 = vector.load %arg24[%c0_160, %c0_161] : memref<1x128xf32, #tpu.memory_space<vmem>>, vector<1x128xf32>
    %352 = arith.addf %350, %351 : vector<1x128xf32>
    %cst_162 = arith.constant dense<0xFF800000> : vector<1xf32>
    %353 = vector.multi_reduction <maximumf>, %352, %cst_162 [1] : vector<1x128xf32> to vector<1xf32>
    %354 = vector.shape_cast %353 : vector<1xf32> to vector<1x1xf32>
    %355 = vector.broadcast %354 : vector<1x1xf32> to vector<1x128xf32>
    %356 = arith.subf %352, %355 : vector<1x128xf32>
    %357 = math.exp %356 : vector<1x128xf32>
    %cst_163 = arith.constant dense<0.000000e+00> : vector<1xf32>
    %358 = vector.multi_reduction <add>, %357, %cst_163 [1] : vector<1x128xf32> to vector<1xf32>
    %359 = vector.shape_cast %358 : vector<1xf32> to vector<1x1xf32>
    %360 = tpu.reciprocal %359 {approx = true} : vector<1x1xf32> -> vector<1x1xf32>
    %361 = vector.broadcast %360 : vector<1x1xf32> to vector<1x128xf32>
    %362 = arith.mulf %357, %361 : vector<1x128xf32>
    %c0_164 = arith.constant 0 : index
    %c0_165 = arith.constant 0 : index
    %c0_166 = arith.constant 0 : index
    %363 = vector.load %arg25[%c0_164, %c0_165, %c0_166] : memref<1x1x128xf32, #tpu.memory_space<vmem>>, vector<1x1x128xf32>
    %364 = vector.shape_cast %363 : vector<1x1x128xf32> to vector<1x128xf32>
    %365 = vector.shape_cast %362 : vector<1x128xf32> to vector<1x1x128xf32>
    tpu.vector_store %arg25[%c0_164, %c0_165, %c0_166], %365 {strides = array<i32>} : memref<1x1x128xf32, #tpu.memory_space<vmem>>, vector<1x1x128xf32>,
    return
  }
  func.func @transform_0(%arg0: i32) -> (i32, i32, i32) {
    %c0_i32 = arith.constant 0 : i32
    %c0_i32_0 = arith.constant 0 : i32
    %c0_i32_1 = arith.constant 0 : i32
    return %arg0, %c0_i32, %c0_i32_0 : i32, i32, i32
  }
  func.func @transform_1(%arg0: i32) -> (i32, i32) {
    %c0_i32 = arith.constant 0 : i32
    %c0_i32_0 = arith.constant 0 : i32
    %c0_i32_1 = arith.constant 0 : i32
    return %c0_i32, %c0_i32_0 : i32, i32
  }
  func.func @transform_2(%arg0: i32) -> (i32, i32) {
    %c0_i32 = arith.constant 0 : i32
    %c0_i32_0 = arith.constant 0 : i32
    %c0_i32_1 = arith.constant 0 : i32
    return %c0_i32, %c0_i32_0 : i32, i32
  }
  func.func @transform_3(%arg0: i32) -> (i32, i32) {
    %c0_i32 = arith.constant 0 : i32
    %c0_i32_0 = arith.constant 0 : i32
    %c0_i32_1 = arith.constant 0 : i32
    return %c0_i32, %c0_i32_0 : i32, i32
  }
  func.func @transform_4(%arg0: i32) -> (i32, i32) {
    %c0_i32 = arith.constant 0 : i32
    %c0_i32_0 = arith.constant 0 : i32
    %c0_i32_1 = arith.constant 0 : i32
    return %c0_i32, %c0_i32_0 : i32, i32
  }
  func.func @transform_5(%arg0: i32) -> (i32, i32) {
    %c0_i32 = arith.constant 0 : i32
    %c0_i32_0 = arith.constant 0 : i32
    %c0_i32_1 = arith.constant 0 : i32
    return %c0_i32, %c0_i32_0 : i32, i32
  }
  func.func @transform_6(%arg0: i32) -> (i32, i32) {
    %c0_i32 = arith.constant 0 : i32
    %c0_i32_0 = arith.constant 0 : i32
    %c0_i32_1 = arith.constant 0 : i32
    return %c0_i32, %c0_i32_0 : i32, i32
  }
  func.func @transform_7(%arg0: i32) -> (i32, i32) {
    %c0_i32 = arith.constant 0 : i32
    %c0_i32_0 = arith.constant 0 : i32
    %c0_i32_1 = arith.constant 0 : i32
    return %c0_i32, %c0_i32_0 : i32, i32
  }
  func.func @transform_8(%arg0: i32) -> (i32, i32) {
    %c0_i32 = arith.constant 0 : i32
    %c0_i32_0 = arith.constant 0 : i32
    %c0_i32_1 = arith.constant 0 : i32
    return %c0_i32, %c0_i32_0 : i32, i32
  }
  func.func @transform_9(%arg0: i32) -> (i32, i32) {
    %c0_i32 = arith.constant 0 : i32
    %c0_i32_0 = arith.constant 0 : i32
    %c0_i32_1 = arith.constant 0 : i32
    return %c0_i32, %c0_i32_0 : i32, i32
  }
  func.func @transform_10(%arg0: i32) -> (i32, i32) {
    %c0_i32 = arith.constant 0 : i32
    %c0_i32_0 = arith.constant 0 : i32
    %c0_i32_1 = arith.constant 0 : i32
    return %c0_i32, %c0_i32_0 : i32, i32
  }
  func.func @transform_11(%arg0: i32) -> (i32, i32) {
    %c0_i32 = arith.constant 0 : i32
    %c0_i32_0 = arith.constant 0 : i32
    %c0_i32_1 = arith.constant 0 : i32
    return %c0_i32, %c0_i32_0 : i32, i32
  }
  func.func @transform_12(%arg0: i32) -> (i32, i32) {
    %c0_i32 = arith.constant 0 : i32
    %c0_i32_0 = arith.constant 0 : i32
    %c0_i32_1 = arith.constant 0 : i32
    return %c0_i32, %c0_i32_0 : i32, i32
  }
  func.func @transform_13(%arg0: i32) -> (i32, i32) {
    %c0_i32 = arith.constant 0 : i32
    %c0_i32_0 = arith.constant 0 : i32
    %c0_i32_1 = arith.constant 0 : i32
    return %c0_i32, %c0_i32_0 : i32, i32
  }
  func.func @transform_14(%arg0: i32) -> (i32, i32) {
    %c0_i32 = arith.constant 0 : i32
    %c0_i32_0 = arith.constant 0 : i32
    %c0_i32_1 = arith.constant 0 : i32
    return %c0_i32, %c0_i32_0 : i32, i32
  }
  func.func @transform_15(%arg0: i32) -> (i32, i32) {
    %c0_i32 = arith.constant 0 : i32
    %c0_i32_0 = arith.constant 0 : i32
    %c0_i32_1 = arith.constant 0 : i32
    return %c0_i32, %c0_i32_0 : i32, i32
  }
  func.func @transform_16(%arg0: i32) -> (i32, i32) {
    %c0_i32 = arith.constant 0 : i32
    %c0_i32_0 = arith.constant 0 : i32
    %c0_i32_1 = arith.constant 0 : i32
    return %c0_i32, %c0_i32_0 : i32, i32
  }
  func.func @transform_17(%arg0: i32) -> (i32, i32) {
    %c0_i32 = arith.constant 0 : i32
    %c0_i32_0 = arith.constant 0 : i32
    %c0_i32_1 = arith.constant 0 : i32
    return %c0_i32, %c0_i32_0 : i32, i32
  }
  func.func @transform_18(%arg0: i32) -> (i32, i32) {
    %c0_i32 = arith.constant 0 : i32
    %c0_i32_0 = arith.constant 0 : i32
    %c0_i32_1 = arith.constant 0 : i32
    return %c0_i32, %c0_i32_0 : i32, i32
  }
  func.func @transform_19(%arg0: i32) -> (i32, i32) {
    %c0_i32 = arith.constant 0 : i32
    %c0_i32_0 = arith.constant 0 : i32
    %c0_i32_1 = arith.constant 0 : i32
    return %c0_i32, %c0_i32_0 : i32, i32
  }
  func.func @transform_20(%arg0: i32) -> (i32, i32) {
    %c0_i32 = arith.constant 0 : i32
    %c0_i32_0 = arith.constant 0 : i32
    %c0_i32_1 = arith.constant 0 : i32
    return %c0_i32, %c0_i32_0 : i32, i32
  }
  func.func @transform_21(%arg0: i32) -> (i32, i32) {
    %c0_i32 = arith.constant 0 : i32
    %c0_i32_0 = arith.constant 0 : i32
    %c0_i32_1 = arith.constant 0 : i32
    return %c0_i32, %c0_i32_0 : i32, i32
  }
  func.func @transform_22(%arg0: i32) -> (i32, i32) {
    %c0_i32 = arith.constant 0 : i32
    %c0_i32_0 = arith.constant 0 : i32
    %c0_i32_1 = arith.constant 0 : i32
    return %c0_i32, %c0_i32_0 : i32, i32
  }
  func.func @transform_23(%arg0: i32) -> (i32, i32) {
    %c0_i32 = arith.constant 0 : i32
    %c0_i32_0 = arith.constant 0 : i32
    %c0_i32_1 = arith.constant 0 : i32
    return %c0_i32, %c0_i32_0 : i32, i32
  }
  func.func @transform_24(%arg0: i32) -> (i32, i32, i32) {
    %c0_i32 = arith.constant 0 : i32
    %c0_i32_0 = arith.constant 0 : i32
    %c0_i32_1 = arith.constant 0 : i32
    return %arg0, %c0_i32, %c0_i32_0 : i32, i32, i32
  }
}

</mosaic_0001>

<llo_original>
// kernel: reverse
$region0: #{reverse}
  %s0 = inlined_call_operand.vmem [shape: f32[2,256], index: 0, kind: input, shape index: {}]
  %s1 = inlined_call_operand.vmem [shape: f32[2,256], index: 1, kind: output, shape index: {}]
  %v2 = vlaneseq
  %v3 = vsub.s32 127, %v2
  %4 = vset.pattern.permute.xlu0 %v3
  $region1: #{reverse} parent=0
    #allocation0 [shape = 'u8[4096]{0}', space=vmem, size = 0x1000, scoped, tag = 'operand span for operand 0']
    #allocation1 [shape = 'u8[2048]{0}', space=vmem, size = 0x800, scoped, tag = 'packed  for operand 0']
    #allocation2 [shape = 'u8[4096]{0}', space=vmem, size = 0x1000, scoped, tag = 'operand span for operand 1']
    #allocation3 [shape = 'u8[2048]{0}', space=vmem, size = 0x800, scoped, tag = 'packed  for operand 1']
    loop: start=0, step=1, limit=4
    $region2: #{reverse} parent=1 // loop_pre_header
      _
    $region3: #{reverse} parent=1 // loop_header
      %s6 = sphi 0, %s10
      %p7 = scmp.ge.s32.totalorder %s6, 4
      %s13 = sphi 0, %s25
      %s14 = sphi 0, %s21
      %s15 = sphi 0, %s13
      %s16 = sphi 0, %s14
      %s17 = sphi 0, %s15
      %s18 = sphi 0, %s16
    $region4: #{reverse} parent=1 // loop_header_branch
      %9 = sbr.rel (%p7) target = $region8
    $region5: #{reverse} parent=1 // loop_body
      %s11 = ssub.s32 %s6, 1
      %s12 = ssub.s32 %s6, 2
      %s19 = sadd.s32 1, %s14
      %p20 = scmp.ge.s32.totalorder %s19, 2
      %s21 = scalar_select %p20, 0, %s19
      %s22 = sadd.s32 1, %s13
      %s23 = scalar_select %p20, %s22, %s13
      %p24 = scmp.ge.s32.totalorder %s23, 1
      %s25 = scalar_select %p24, 0, %s23
      %p26 = scmp.le.s32.totalorder 1, %s6
      %p27 = scmp.lt.s32.totalorder %s6, 3
      %p28 = pnand %p26, %p27
      %p29 = pneg %p28
      // Predicated region
      $region9: #{reverse} parent=5 // pred_check
        _
      $region10: #{reverse} parent=5 // pred_check_branch
        %31 = sbr.rel (%p28) target = $region12
      $region11: #{reverse} parent=5 // pred_region
        %s32 = ssub.s32 %s6, 1
      $region12: #{reverse} parent=5 // pred_fallthru
        _
      %p33 = scmp.lt.s32.totalorder %s6, 2
      // Predicated region
      $region13: #{reverse} parent=5 // pred_check
        %p34 = pneg %p33
      $region14: #{reverse} parent=5 // pred_check_branch
        %36 = sbr.rel (%p34) target = $region16
      $region15: #{reverse} parent=5 // pred_region
        %s37 = sand.u32 %s6, 1
        %s38 = sand.u32 %s6, 1
        %s39 = smul.addr %s38, 2
        %s40 = scalar_lea.vmem [#allocation1], %s39
        %s41 = ssub.s32 1, %s14
        %s42 = smul.addr %s13, 2
        %s43 = sadd.s32 %s41, %s42
        %s44 = smul.addr %s43, 2
        %s45 = scalar_lea.vmem %s0, %s44
        // Predicated region
        $region17: #{reverse} parent=15 // pred_check
          _
        $region18: #{reverse} parent=15 // pred_check_branch
          %47 = sbr.rel (0) target = $region20
        $region19: #{reverse} parent=15 // pred_region
          // Predicated region
          $region21: #{reverse} parent=19 // pred_check
            _
          $region22: #{reverse} parent=19 // pred_check_branch
            %49 = sbr.rel target = $region24
          $region23: #{reverse} parent=19 // pred_region
            // Predicated region
            $region36: #{reverse} parent=23 // pred_check
              _
            $region37: #{reverse} parent=23 // pred_check_branch
              %64 = sbr.rel (0) target = $region39
            $region38: #{reverse} parent=23 // pred_region
              loop: start=0, step=1, limit=1
              $region40: #{reverse} parent=38 // loop_pre_header
                _
              $region41: #{reverse} parent=38 // loop_header
                %s67 = sphi 0, %s71
                %p68 = scmp.ge.s32.totalorder %s67, 1
                %s72 = sphi %s45, %s45
                %s73 = sphi %s40, %s40
              $region42: #{reverse} parent=38 // loop_header_branch
                %70 = sbr.rel (%p68) target = $region46
              $region43: #{reverse} parent=38 // loop_body
                %v74 = vld [vmem:[%s72] sm:$0x3]
                %75 = vst [vmem:[%s73] sm:$0x3] %v74
              $region44: #{reverse} parent=38 // loop_footer
                %s71 = sadd.s32 1, %s67
              $region45: #{reverse} parent=38 // loop_footer_branch
                %66 = sbr.rel target = $region41
              $region46: #{reverse} parent=38 // loop_exit
                _
            $region39: #{reverse} parent=23 // pred_fallthru
              _
          $region24: #{reverse} parent=19 // pred_fallthru
            _
          // Predicated region
          $region25: #{reverse} parent=19 // pred_check
            _
          $region26: #{reverse} parent=19 // pred_check_branch
            %51 = sbr.rel (0) target = $region28
          $region27: #{reverse} parent=19 // pred_region
            loop: start=0, step=1, limit=1
            $region29: #{reverse} parent=27 // loop_pre_header
              _
            $region30: #{reverse} parent=27 // loop_header
              %s54 = sphi 0, %s58
              %p55 = scmp.ge.s32.totalorder %s54, 1
              %s59 = sphi %s45, %s45
              %s60 = sphi %s40, %s40
            $region31: #{reverse} parent=27 // loop_header_branch
              %57 = sbr.rel (%p55) target = $region35
            $region32: #{reverse} parent=27 // loop_body
              %v61 = vld [vmem:[%s59] sm:$0x3]
              %62 = vst [vmem:[%s60] sm:$0x3] %v61
            $region33: #{reverse} parent=27 // loop_footer
              %s58 = sadd.s32 1, %s54
            $region34: #{reverse} parent=27 // loop_footer_branch
              %53 = sbr.rel target = $region30
            $region35: #{reverse} parent=27 // loop_exit
              _
          $region28: #{reverse} parent=19 // pred_fallthru
            _
        $region20: #{reverse} parent=15 // pred_fallthru
          _
        %76 = vnop
      $region16: #{reverse} parent=5 // pred_fallthru
        _
      %p77 = scmp.le.s32.totalorder 1, %s6
      %p78 = scmp.lt.s32.totalorder %s6, 3
      %p79 = pnand %p77, %p78
      %p80 = pneg %p79
      // Predicated region
      $region47: #{reverse} parent=5 // pred_check
        _
      $region48: #{reverse} parent=5 // pred_check_branch
        %82 = sbr.rel (%p79) target = $region50
      $region49: #{reverse} parent=5 // pred_region
        %s83 = ssub.s32 %s6, 1
        %s84 = sand.u32 %s11, 1
        %s85 = sand.u32 %s11, 1
        %s86 = smul.addr %s85, 2
        %s87 = scalar_lea.vmem [#allocation1], %s86
        %s88 = sand.u32 %s11, 1
        %s89 = sand.u32 %s11, 1
        %s90 = smul.addr %s89, 2
        %s91 = scalar_lea.vmem [#allocation1], %s90
        %s92 = sand.u32 %s11, 1
        %s93 = sand.u32 %s11, 1
        %s94 = smul.addr %s93, 2
        %s95 = scalar_lea.vmem [#allocation3], %s94
        %s97 = sshllo.u32 0, 2
        %v98 = vld [vmem:[%s91] sm:%s97]
        %99 = vst [vmem:[#allocation0] sm:%s97] %v98
        %s100 = ssub.s32 1, %s16
        %v101 = vld [vmem:[#allocation0] sm:$0xff]
        %102 = vperm.xlu0 %4, %v101
        %v103 = vpop.permute.xlu0 %102
        %104 = vst [vmem:[#allocation2] sm:$0xff] %v103
        %s106 = sshllo.u32 0, 2
        %v108 = vld [vmem:[#allocation2] sm:%s106]
        %s109 = sshllo.u32 0, 2
        %110 = vst [vmem:[%s95] sm:%s109] %v108
        %s111 = sand.u32 %s11, 1
        %s112 = sand.u32 %s11, 1
        %s113 = smul.addr %s112, 2
        %s114 = scalar_lea.vmem [#allocation3], %s113
        %s115 = smul.addr %s15, 2
        %s116 = sadd.s32 %s16, %s115
        %s117 = smul.addr %s116, 2
        %s118 = scalar_lea.vmem %s1, %s117
        // Predicated region
        $region51: #{reverse} parent=49 // pred_check
          _
        $region52: #{reverse} parent=49 // pred_check_branch
          %120 = sbr.rel (0) target = $region54
        $region53: #{reverse} parent=49 // pred_region
          // Predicated region
          $region55: #{reverse} parent=53 // pred_check
            _
          $region56: #{reverse} parent=53 // pred_check_branch
            %122 = sbr.rel target = $region58
          $region57: #{reverse} parent=53 // pred_region
            // Predicated region
            $region70: #{reverse} parent=57 // pred_check
              _
            $region71: #{reverse} parent=57 // pred_check_branch
              %137 = sbr.rel (0) target = $region73
            $region72: #{reverse} parent=57 // pred_region
              loop: start=0, step=1, limit=1
              $region74: #{reverse} parent=72 // loop_pre_header
                _
              $region75: #{reverse} parent=72 // loop_header
                %s140 = sphi 0, %s144
                %p141 = scmp.ge.s32.totalorder %s140, 1
                %s145 = sphi %s114, %s114
                %s146 = sphi %s118, %s118
              $region76: #{reverse} parent=72 // loop_header_branch
                %143 = sbr.rel (%p141) target = $region80
              $region77: #{reverse} parent=72 // loop_body
                %v147 = vld [vmem:[%s145] sm:$0x3]
                %148 = vst [vmem:[%s146] sm:$0x3] %v147
              $region78: #{reverse} parent=72 // loop_footer
                %s144 = sadd.s32 1, %s140
              $region79: #{reverse} parent=72 // loop_footer_branch
                %139 = sbr.rel target = $region75
              $region80: #{reverse} parent=72 // loop_exit
                _
            $region73: #{reverse} parent=57 // pred_fallthru
              _
          $region58: #{reverse} parent=53 // pred_fallthru
            _
          // Predicated region
          $region59: #{reverse} parent=53 // pred_check
            _
          $region60: #{reverse} parent=53 // pred_check_branch
            %124 = sbr.rel (0) target = $region62
          $region61: #{reverse} parent=53 // pred_region
            loop: start=0, step=1, limit=1
            $region63: #{reverse} parent=61 // loop_pre_header
              _
            $region64: #{reverse} parent=61 // loop_header
              %s127 = sphi 0, %s131
              %p128 = scmp.ge.s32.totalorder %s127, 1
              %s132 = sphi %s114, %s114
              %s133 = sphi %s118, %s118
            $region65: #{reverse} parent=61 // loop_header_branch
              %130 = sbr.rel (%p128) target = $region69
            $region66: #{reverse} parent=61 // loop_body
              %v134 = vld [vmem:[%s132] sm:$0x3]
              %135 = vst [vmem:[%s133] sm:$0x3] %v134
            $region67: #{reverse} parent=61 // loop_footer
              %s131 = sadd.s32 1, %s127
            $region68: #{reverse} parent=61 // loop_footer_branch
              %126 = sbr.rel target = $region64
            $region69: #{reverse} parent=61 // loop_exit
              _
          $region62: #{reverse} parent=53 // pred_fallthru
            _
        $region54: #{reverse} parent=49 // pred_fallthru
          _
        %149 = vnop
      $region50: #{reverse} parent=5 // pred_fallthru
        _
      %p150 = scmp.le.s32.totalorder 2, %s6
      // Predicated region
      $region81: #{reverse} parent=5 // pred_check
        %p151 = pneg %p150
      $region82: #{reverse} parent=5 // pred_check_branch
        %153 = sbr.rel (%p151) target = $region84
      $region83: #{reverse} parent=5 // pred_region
        %s154 = ssub.s32 %s6, 2
        %s155 = sand.u32 %s12, 1
        %s156 = sand.u32 %s12, 1
        %s157 = smul.addr %s156, 2
        %s158 = scalar_lea.vmem [#allocation3], %s157
      $region84: #{reverse} parent=5 // pred_fallthru
        _
    $region6: #{reverse} parent=1 // loop_footer
      %s10 = sadd.s32 1, %s6
    $region7: #{reverse} parent=1 // loop_footer_branch
      %5 = sbr.rel target = $region3
    $region8: #{reverse} parent=1 // loop_exit
      _

// kernel: my_module_forward.1
$region0: #{my_module_forward.1}
  #allocation0 [shape = 'u32[]', space=smem, size = 0x4, offset = 0x4, fixed_abs, tag = 'smem constant byte address 0x4 - core index']
  #allocation1 [shape = 'u32[144,128]{1,0:T(1,128)}', space=vmem, size = 0x12000, scoped, tag = 'internal scratch']
  %s0 = inlined_call_operand.vmem [shape: f32[2,81,400], index: 0, kind: input, shape index: {}]
  %s1 = inlined_call_operand.vmem [shape: bf16[400,512], index: 1, kind: input, shape index: {}]
  %s2 = inlined_call_operand.vmem [shape: bf16[40,81], index: 2, kind: input, shape index: {}]
  %s3 = inlined_call_operand.vmem [shape: bf16[20,40], index: 3, kind: input, shape index: {}]
  %s4 = inlined_call_operand.vmem [shape: bf16[10,20], index: 4, kind: input, shape index: {}]
  %s5 = inlined_call_operand.vmem [shape: bf16[5,10], index: 5, kind: input, shape index: {}]
  %s6 = inlined_call_operand.vmem [shape: bf16[512,256], index: 6, kind: input, shape index: {}]
  %s7 = inlined_call_operand.vmem [shape: f32[1,256], index: 7, kind: input, shape index: {}]
  %s8 = inlined_call_operand.vmem [shape: bf16[2304,256], index: 8, kind: input, shape index: {}]
  %s9 = inlined_call_operand.vmem [shape: f32[8,256], index: 9, kind: input, shape index: {}]
  %s10 = inlined_call_operand.vmem [shape: bf16[512,256], index: 10, kind: input, shape index: {}]
  %s11 = inlined_call_operand.vmem [shape: f32[1,256], index: 11, kind: input, shape index: {}]
  %s12 = inlined_call_operand.vmem [shape: bf16[2304,256], index: 12, kind: input, shape index: {}]
  %s13 = inlined_call_operand.vmem [shape: f32[8,256], index: 13, kind: input, shape index: {}]
  %s14 = inlined_call_operand.vmem [shape: bf16[512,128], index: 14, kind: input, shape index: {}]
  %s15 = inlined_call_operand.vmem [shape: f32[1,128], index: 15, kind: input, shape index: {}]
  %s16 = inlined_call_operand.vmem [shape: bf16[1152,128], index: 16, kind: input, shape index: {}]
  %s17 = inlined_call_operand.vmem [shape: f32[8,128], index: 17, kind: input, shape index: {}]
  %s18 = inlined_call_operand.vmem [shape: bf16[256,128], index: 18, kind: input, shape index: {}]
  %s19 = inlined_call_operand.vmem [shape: f32[1,128], index: 19, kind: input, shape index: {}]
  %s20 = inlined_call_operand.vmem [shape: bf16[1152,128], index: 20, kind: input, shape index: {}]
  %s21 = inlined_call_operand.vmem [shape: f32[8,128], index: 21, kind: input, shape index: {}]
  %s22 = inlined_call_operand.vmem [shape: bf16[640,128], index: 22, kind: input, shape index: {}]
  %s23 = inlined_call_operand.vmem [shape: f32[1,128], index: 23, kind: input, shape index: {}]
  %s24 = inlined_call_operand.hbm [shape: f32[2,1,128], index: 24, kind: output, shape index: {}]
  %s25 = sld [smem:[#allocation0]]
  $region129: #{my_module_forward.1} parent=0
    _
  %s27 = ssub.s32 1, %s25
  %s28 = scalar_select 0, %s27, %s25
  $region1: #{my_module_forward.1} parent=0
    #allocation2 [shape = 'u8[1024]{0}', space=vmem, size = 0x400, scoped, tag = 'output window, operand 0']
    #allocation3 [shape = 's32[2]{0}', space=sflag, size = 0x8, scoped, tag = 'scoped memory for my_module_forward.1']
    %29 = vsyncpa [#allocation3], 0
    %s30 = scalar_lea.sflag [#allocation3], 1
    %31 = vsyncpa %s30, 0
    loop: start=0, step=1, limit=4
    $region2: #{my_module_forward.1} parent=1 // loop_pre_header
      _
    $region3: #{my_module_forward.1} parent=1 // loop_header
      %s33 = sphi 0, %s37
      %p34 = scmp.ge.s32.totalorder %s33, 4
      %s43 = sphi 0, %s45
      %s46 = sphi 0, %s43
      %s47 = sphi 0, %s46
      %s63 = sphi 0, %s47
      %s67 = sphi 0, %s67
      %s69 = sphi 0, %s67
      %s70 = sphi 0, %s69
      %s84 = sphi 0, %s70
      %s88 = sphi 0, %s88
      %s90 = sphi 0, %s88
      %s91 = sphi 0, %s90
      %s105 = sphi 0, %s91
      %s109 = sphi 0, %s109
      %s111 = sphi 0, %s109
      %s112 = sphi 0, %s111
      %s126 = sphi 0, %s112
      %s130 = sphi 0, %s130
      %s132 = sphi 0, %s130
      %s133 = sphi 0, %s132
      %s147 = sphi 0, %s133
      %s151 = sphi 0, %s151
      %s153 = sphi 0, %s151
      %s154 = sphi 0, %s153
      %s168 = sphi 0, %s154
      %s172 = sphi 0, %s172
      %s174 = sphi 0, %s172
      %s175 = sphi 0, %s174
      %s189 = sphi 0, %s175
      %s193 = sphi 0, %s193
      %s195 = sphi 0, %s193
      %s196 = sphi 0, %s195
      %s210 = sphi 0, %s196
      %s214 = sphi 0, %s214
      %s216 = sphi 0, %s214
      %s217 = sphi 0, %s216
      %s231 = sphi 0, %s217
      %s235 = sphi 0, %s235
      %s237 = sphi 0, %s235
      %s238 = sphi 0, %s237
      %s252 = sphi 0, %s238
      %s256 = sphi 0, %s256
      %s258 = sphi 0, %s256
      %s259 = sphi 0, %s258
      %s273 = sphi 0, %s259
      %s277 = sphi 0, %s277
      %s279 = sphi 0, %s277
      %s280 = sphi 0, %s279
      %s294 = sphi 0, %s280
      %s298 = sphi 0, %s298
      %s300 = sphi 0, %s298
      %s301 = sphi 0, %s300
      %s315 = sphi 0, %s301
      %s319 = sphi 0, %s319
      %s321 = sphi 0, %s319
      %s322 = sphi 0, %s321
      %s336 = sphi 0, %s322
      %s340 = sphi 0, %s340
      %s342 = sphi 0, %s340
      %s343 = sphi 0, %s342
      %s357 = sphi 0, %s343
      %s361 = sphi 0, %s361
      %s363 = sphi 0, %s361
      %s364 = sphi 0, %s363
      %s378 = sphi 0, %s364
      %s382 = sphi 0, %s382
      %s384 = sphi 0, %s382
      %s385 = sphi 0, %s384
      %s399 = sphi 0, %s385
      %s403 = sphi 0, %s403
      %s405 = sphi 0, %s403
      %s406 = sphi 0, %s405
      %s420 = sphi 0, %s406
      %s424 = sphi 0, %s424
      %s426 = sphi 0, %s424
      %s427 = sphi 0, %s426
      %s441 = sphi 0, %s427
      %s445 = sphi 0, %s445
      %s447 = sphi 0, %s445
      %s448 = sphi 0, %s447
      %s462 = sphi 0, %s448
      %s466 = sphi 0, %s466
      %s468 = sphi 0, %s466
      %s469 = sphi 0, %s468
      %s483 = sphi 0, %s469
      %s487 = sphi 0, %s487
      %s489 = sphi 0, %s487
      %s490 = sphi 0, %s489
      %s504 = sphi 0, %s490
      %s508 = sphi 0, %s508
      %s510 = sphi 0, %s508
      %s511 = sphi 0, %s510
      %s525 = sphi 0, %s511
      %s529 = sphi 0, %s529
      %s531 = sphi 0, %s529
      %s532 = sphi 0, %s531
      %s546 = sphi 0, %s532
      %s552 = sphi 0, %s554
      %s555 = sphi 0, %s552
      %s556 = sphi 0, %s555
      %s572 = sphi 0, %s556
    $region4: #{my_module_forward.1} parent=1 // loop_header_branch
      %36 = sbr.rel (%p34) target = $region8
    $region5: #{my_module_forward.1} parent=1 // loop_body
      %s38 = ssub.s32 %s33, 1
      %s39 = ssub.s32 %s33, 2
      %s40 = sadd.s32 %s33, 1
      %s41 = ssub.s32 %s33, %s40
      %p42 = scmp.eq.s32.totalorder %s41, 0
      %s44 = sadd.s32 %s43, 1
      %s45 = scalar_select %p42, %s43, %s44
      %p48 = pneg %p42
      %p49 = scmp.eq.s32.totalorder %s33, 1
      %p50 = por %p48, %p49
      %p51 = scmp.ne.s32.totalorder %s43, %s46
      %p52 = scmp.eq.s32.totalorder %s33, 0
      %p53 = por %p51, %p52
      %p54 = scmp.ne.s32.totalorder %s43, %s46
      %p55 = scmp.eq.s32.totalorder %s38, 1
      %p56 = por %p54, %p55
      %p57 = scmp.ne.s32.totalorder %s46, %s47
      %p58 = scmp.eq.s32.totalorder %s38, 0
      %p59 = por %p57, %p58
      %p60 = scmp.ne.s32.totalorder %s46, %s47
      %p61 = scmp.eq.s32.totalorder %s39, 1
      %p62 = por %p60, %p61
      %p64 = scmp.ne.s32.totalorder %s47, %s63
      %p65 = scmp.eq.s32.totalorder %s39, 0
      %p66 = por %p64, %p65
      %s68 = sadd.s32 %s67, 1
      %p71 = scmp.eq.s32.totalorder %s33, 1
      %p72 = scmp.ne.s32.totalorder %s67, %s69
      %p73 = scmp.eq.s32.totalorder %s33, 0
      %p74 = por %p72, %p73
      %p75 = scmp.ne.s32.totalorder %s67, %s69
      %p76 = scmp.eq.s32.totalorder %s38, 1
      %p77 = por %p75, %p76
      %p78 = scmp.ne.s32.totalorder %s69, %s70
      %p79 = scmp.eq.s32.totalorder %s38, 0
      %p80 = por %p78, %p79
      %p81 = scmp.ne.s32.totalorder %s69, %s70
      %p82 = scmp.eq.s32.totalorder %s39, 1
      %p83 = por %p81, %p82
      %p85 = scmp.ne.s32.totalorder %s70, %s84
      %p86 = scmp.eq.s32.totalorder %s39, 0
      %p87 = por %p85, %p86
      %s89 = sadd.s32 %s88, 1
      %p92 = scmp.eq.s32.totalorder %s33, 1
      %p93 = scmp.ne.s32.totalorder %s88, %s90
      %p94 = scmp.eq.s32.totalorder %s33, 0
      %p95 = por %p93, %p94
      %p96 = scmp.ne.s32.totalorder %s88, %s90
      %p97 = scmp.eq.s32.totalorder %s38, 1
      %p98 = por %p96, %p97
      %p99 = scmp.ne.s32.totalorder %s90, %s91
      %p100 = scmp.eq.s32.totalorder %s38, 0
      %p101 = por %p99, %p100
      %p102 = scmp.ne.s32.totalorder %s90, %s91
      %p103 = scmp.eq.s32.totalorder %s39, 1
      %p104 = por %p102, %p103
      %p106 = scmp.ne.s32.totalorder %s91, %s105
      %p107 = scmp.eq.s32.totalorder %s39, 0
      %p108 = por %p106, %p107
      %s110 = sadd.s32 %s109, 1
      %p113 = scmp.eq.s32.totalorder %s33, 1
      %p114 = scmp.ne.s32.totalorder %s109, %s111
      %p115 = scmp.eq.s32.totalorder %s33, 0
      %p116 = por %p114, %p115
      %p117 = scmp.ne.s32.totalorder %s109, %s111
      %p118 = scmp.eq.s32.totalorder %s38, 1
      %p119 = por %p117, %p118
      %p120 = scmp.ne.s32.totalorder %s111, %s112
      %p121 = scmp.eq.s32.totalorder %s38, 0
      %p122 = por %p120, %p121
      %p123 = scmp.ne.s32.totalorder %s111, %s112
      %p124 = scmp.eq.s32.totalorder %s39, 1
      %p125 = por %p123, %p124
      %p127 = scmp.ne.s32.totalorder %s112, %s126
      %p128 = scmp.eq.s32.totalorder %s39, 0
      %p129 = por %p127, %p128
      %s131 = sadd.s32 %s130, 1
      %p134 = scmp.eq.s32.totalorder %s33, 1
      %p135 = scmp.ne.s32.totalorder %s130, %s132
      %p136 = scmp.eq.s32.totalorder %s33, 0
      %p137 = por %p135, %p136
      %p138 = scmp.ne.s32.totalorder %s130, %s132
      %p139 = scmp.eq.s32.totalorder %s38, 1
      %p140 = por %p138, %p139
      %p141 = scmp.ne.s32.totalorder %s132, %s133
      %p142 = scmp.eq.s32.totalorder %s38, 0
      %p143 = por %p141, %p142
      %p144 = scmp.ne.s32.totalorder %s132, %s133
      %p145 = scmp.eq.s32.totalorder %s39, 1
      %p146 = por %p144, %p145
      %p148 = scmp.ne.s32.totalorder %s133, %s147
      %p149 = scmp.eq.s32.totalorder %s39, 0
      %p150 = por %p148, %p149
      %s152 = sadd.s32 %s151, 1
      %p155 = scmp.eq.s32.totalorder %s33, 1
      %p156 = scmp.ne.s32.totalorder %s151, %s153
      %p157 = scmp.eq.s32.totalorder %s33, 0
      %p158 = por %p156, %p157
      %p159 = scmp.ne.s32.totalorder %s151, %s153
      %p160 = scmp.eq.s32.totalorder %s38, 1
      %p161 = por %p159, %p160
      %p162 = scmp.ne.s32.totalorder %s153, %s154
      %p163 = scmp.eq.s32.totalorder %s38, 0
      %p164 = por %p162, %p163
      %p165 = scmp.ne.s32.totalorder %s153, %s154
      %p166 = scmp.eq.s32.totalorder %s39, 1
      %p167 = por %p165, %p166
      %p169 = scmp.ne.s32.totalorder %s154, %s168
      %p170 = scmp.eq.s32.totalorder %s39, 0
      %p171 = por %p169, %p170
      %s173 = sadd.s32 %s172, 1
      %p176 = scmp.eq.s32.totalorder %s33, 1
      %p177 = scmp.ne.s32.totalorder %s172, %s174
      %p178 = scmp.eq.s32.totalorder %s33, 0
      %p179 = por %p177, %p178
      %p180 = scmp.ne.s32.totalorder %s172, %s174
      %p181 = scmp.eq.s32.totalorder %s38, 1
      %p182 = por %p180, %p181
      %p183 = scmp.ne.s32.totalorder %s174, %s175
      %p184 = scmp.eq.s32.totalorder %s38, 0
      %p185 = por %p183, %p184
      %p186 = scmp.ne.s32.totalorder %s174, %s175
      %p187 = scmp.eq.s32.totalorder %s39, 1
      %p188 = por %p186, %p187
      %p190 = scmp.ne.s32.totalorder %s175, %s189
      %p191 = scmp.eq.s32.totalorder %s39, 0
      %p192 = por %p190, %p191
      %s194 = sadd.s32 %s193, 1
      %p197 = scmp.eq.s32.totalorder %s33, 1
      %p198 = scmp.ne.s32.totalorder %s193, %s195
      %p199 = scmp.eq.s32.totalorder %s33, 0
      %p200 = por %p198, %p199
      %p201 = scmp.ne.s32.totalorder %s193, %s195
      %p202 = scmp.eq.s32.totalorder %s38, 1
      %p203 = por %p201, %p202
      %p204 = scmp.ne.s32.totalorder %s195, %s196
      %p205 = scmp.eq.s32.totalorder %s38, 0
      %p206 = por %p204, %p205
      %p207 = scmp.ne.s32.totalorder %s195, %s196
      %p208 = scmp.eq.s32.totalorder %s39, 1
      %p209 = por %p207, %p208
      %p211 = scmp.ne.s32.totalorder %s196, %s210
      %p212 = scmp.eq.s32.totalorder %s39, 0
      %p213 = por %p211, %p212
      %s215 = sadd.s32 %s214, 1
      %p218 = scmp.eq.s32.totalorder %s33, 1
      %p219 = scmp.ne.s32.totalorder %s214, %s216
      %p220 = scmp.eq.s32.totalorder %s33, 0
      %p221 = por %p219, %p220
      %p222 = scmp.ne.s32.totalorder %s214, %s216
      %p223 = scmp.eq.s32.totalorder %s38, 1
      %p224 = por %p222, %p223
      %p225 = scmp.ne.s32.totalorder %s216, %s217
      %p226 = scmp.eq.s32.totalorder %s38, 0
      %p227 = por %p225, %p226
      %p228 = scmp.ne.s32.totalorder %s216, %s217
      %p229 = scmp.eq.s32.totalorder %s39, 1
      %p230 = por %p228, %p229
      %p232 = scmp.ne.s32.totalorder %s217, %s231
      %p233 = scmp.eq.s32.totalorder %s39, 0
      %p234 = por %p232, %p233
      %s236 = sadd.s32 %s235, 1
      %p239 = scmp.eq.s32.totalorder %s33, 1
      %p240 = scmp.ne.s32.totalorder %s235, %s237
      %p241 = scmp.eq.s32.totalorder %s33, 0
      %p242 = por %p240, %p241
      %p243 = scmp.ne.s32.totalorder %s235, %s237
      %p244 = scmp.eq.s32.totalorder %s38, 1
      %p245 = por %p243, %p244
      %p246 = scmp.ne.s32.totalorder %s237, %s238
      %p247 = scmp.eq.s32.totalorder %s38, 0
      %p248 = por %p246, %p247
      %p249 = scmp.ne.s32.totalorder %s237, %s238
      %p250 = scmp.eq.s32.totalorder %s39, 1
      %p251 = por %p249, %p250
      %p253 = scmp.ne.s32.totalorder %s238, %s252
      %p254 = scmp.eq.s32.totalorder %s39, 0
      %p255 = por %p253, %p254
      %s257 = sadd.s32 %s256, 1
      %p260 = scmp.eq.s32.totalorder %s33, 1
      %p261 = scmp.ne.s32.totalorder %s256, %s258
      %p262 = scmp.eq.s32.totalorder %s33, 0
      %p263 = por %p261, %p262
      %p264 = scmp.ne.s32.totalorder %s256, %s258
      %p265 = scmp.eq.s32.totalorder %s38, 1
      %p266 = por %p264, %p265
      %p267 = scmp.ne.s32.totalorder %s258, %s259
      %p268 = scmp.eq.s32.totalorder %s38, 0
      %p269 = por %p267, %p268
      %p270 = scmp.ne.s32.totalorder %s258, %s259
      %p271 = scmp.eq.s32.totalorder %s39, 1
      %p272 = por %p270, %p271
      %p274 = scmp.ne.s32.totalorder %s259, %s273
      %p275 = scmp.eq.s32.totalorder %s39, 0
      %p276 = por %p274, %p275
      %s278 = sadd.s32 %s277, 1
      %p281 = scmp.eq.s32.totalorder %s33, 1
      %p282 = scmp.ne.s32.totalorder %s277, %s279
      %p283 = scmp.eq.s32.totalorder %s33, 0
      %p284 = por %p282, %p283
      %p285 = scmp.ne.s32.totalorder %s277, %s279
      %p286 = scmp.eq.s32.totalorder %s38, 1
      %p287 = por %p285, %p286
      %p288 = scmp.ne.s32.totalorder %s279, %s280
      %p289 = scmp.eq.s32.totalorder %s38, 0
      %p290 = por %p288, %p289
      %p291 = scmp.ne.s32.totalorder %s279, %s280
      %p292 = scmp.eq.s32.totalorder %s39, 1
      %p293 = por %p291, %p292
      %p295 = scmp.ne.s32.totalorder %s280, %s294
      %p296 = scmp.eq.s32.totalorder %s39, 0
      %p297 = por %p295, %p296
      %s299 = sadd.s32 %s298, 1
      %p302 = scmp.eq.s32.totalorder %s33, 1
      %p303 = scmp.ne.s32.totalorder %s298, %s300
      %p304 = scmp.eq.s32.totalorder %s33, 0
      %p305 = por %p303, %p304
      %p306 = scmp.ne.s32.totalorder %s298, %s300
      %p307 = scmp.eq.s32.totalorder %s38, 1
      %p308 = por %p306, %p307
      %p309 = scmp.ne.s32.totalorder %s300, %s301
      %p310 = scmp.eq.s32.totalorder %s38, 0
      %p311 = por %p309, %p310
      %p312 = scmp.ne.s32.totalorder %s300, %s301
      %p313 = scmp.eq.s32.totalorder %s39, 1
      %p314 = por %p312, %p313
      %p316 = scmp.ne.s32.totalorder %s301, %s315
      %p317 = scmp.eq.s32.totalorder %s39, 0
      %p318 = por %p316, %p317
      %s320 = sadd.s32 %s319, 1
      %p323 = scmp.eq.s32.totalorder %s33, 1
      %p324 = scmp.ne.s32.totalorder %s319, %s321
      %p325 = scmp.eq.s32.totalorder %s33, 0
      %p326 = por %p324, %p325
      %p327 = scmp.ne.s32.totalorder %s319, %s321
      %p328 = scmp.eq.s32.totalorder %s38, 1
      %p329 = por %p327, %p328
      %p330 = scmp.ne.s32.totalorder %s321, %s322
      %p331 = scmp.eq.s32.totalorder %s38, 0
      %p332 = por %p330, %p331
      %p333 = scmp.ne.s32.totalorder %s321, %s322
      %p334 = scmp.eq.s32.totalorder %s39, 1
      %p335 = por %p333, %p334
      %p337 = scmp.ne.s32.totalorder %s322, %s336
      %p338 = scmp.eq.s32.totalorder %s39, 0
      %p339 = por %p337, %p338
      %s341 = sadd.s32 %s340, 1
      %p344 = scmp.eq.s32.totalorder %s33, 1
      %p345 = scmp.ne.s32.totalorder %s340, %s342
      %p346 = scmp.eq.s32.totalorder %s33, 0
      %p347 = por %p345, %p346
      %p348 = scmp.ne.s32.totalorder %s340, %s342
      %p349 = scmp.eq.s32.totalorder %s38, 1
      %p350 = por %p348, %p349
      %p351 = scmp.ne.s32.totalorder %s342, %s343
      %p352 = scmp.eq.s32.totalorder %s38, 0
      %p353 = por %p351, %p352
      %p354 = scmp.ne.s32.totalorder %s342, %s343
      %p355 = scmp.eq.s32.totalorder %s39, 1
      %p356 = por %p354, %p355
      %p358 = scmp.ne.s32.totalorder %s343, %s357
      %p359 = scmp.eq.s32.totalorder %s39, 0
      %p360 = por %p358, %p359
      %s362 = sadd.s32 %s361, 1
      %p365 = scmp.eq.s32.totalorder %s33, 1
      %p366 = scmp.ne.s32.totalorder %s361, %s363
      %p367 = scmp.eq.s32.totalorder %s33, 0
      %p368 = por %p366, %p367
      %p369 = scmp.ne.s32.totalorder %s361, %s363
      %p370 = scmp.eq.s32.totalorder %s38, 1
      %p371 = por %p369, %p370
      %p372 = scmp.ne.s32.totalorder %s363, %s364
      %p373 = scmp.eq.s32.totalorder %s38, 0
      %p374 = por %p372, %p373
      %p375 = scmp.ne.s32.totalorder %s363, %s364
      %p376 = scmp.eq.s32.totalorder %s39, 1
      %p377 = por %p375, %p376
      %p379 = scmp.ne.s32.totalorder %s364, %s378
      %p380 = scmp.eq.s32.totalorder %s39, 0
      %p381 = por %p379, %p380
      %s383 = sadd.s32 %s382, 1
      %p386 = scmp.eq.s32.totalorder %s33, 1
      %p387 = scmp.ne.s32.totalorder %s382, %s384
      %p388 = scmp.eq.s32.totalorder %s33, 0
      %p389 = por %p387, %p388
      %p390 = scmp.ne.s32.totalorder %s382, %s384
      %p391 = scmp.eq.s32.totalorder %s38, 1
      %p392 = por %p390, %p391
      %p393 = scmp.ne.s32.totalorder %s384, %s385
      %p394 = scmp.eq.s32.totalorder %s38, 0
      %p395 = por %p393, %p394
      %p396 = scmp.ne.s32.totalorder %s384, %s385
      %p397 = scmp.eq.s32.totalorder %s39, 1
      %p398 = por %p396, %p397
      %p400 = scmp.ne.s32.totalorder %s385, %s399
      %p401 = scmp.eq.s32.totalorder %s39, 0
      %p402 = por %p400, %p401
      %s404 = sadd.s32 %s403, 1
      %p407 = scmp.eq.s32.totalorder %s33, 1
      %p408 = scmp.ne.s32.totalorder %s403, %s405
      %p409 = scmp.eq.s32.totalorder %s33, 0
      %p410 = por %p408, %p409
      %p411 = scmp.ne.s32.totalorder %s403, %s405
      %p412 = scmp.eq.s32.totalorder %s38, 1
      %p413 = por %p411, %p412
      %p414 = scmp.ne.s32.totalorder %s405, %s406
      %p415 = scmp.eq.s32.totalorder %s38, 0
      %p416 = por %p414, %p415
      %p417 = scmp.ne.s32.totalorder %s405, %s406
      %p418 = scmp.eq.s32.totalorder %s39, 1
      %p419 = por %p417, %p418
      %p421 = scmp.ne.s32.totalorder %s406, %s420
      %p422 = scmp.eq.s32.totalorder %s39, 0
      %p423 = por %p421, %p422
      %s425 = sadd.s32 %s424, 1
      %p428 = scmp.eq.s32.totalorder %s33, 1
      %p429 = scmp.ne.s32.totalorder %s424, %s426
      %p430 = scmp.eq.s32.totalorder %s33, 0
      %p431 = por %p429, %p430
      %p432 = scmp.ne.s32.totalorder %s424, %s426
      %p433 = scmp.eq.s32.totalorder %s38, 1
      %p434 = por %p432, %p433
      %p435 = scmp.ne.s32.totalorder %s426, %s427
      %p436 = scmp.eq.s32.totalorder %s38, 0
      %p437 = por %p435, %p436
      %p438 = scmp.ne.s32.totalorder %s426, %s427
      %p439 = scmp.eq.s32.totalorder %s39, 1
      %p440 = por %p438, %p439
      %p442 = scmp.ne.s32.totalorder %s427, %s441
      %p443 = scmp.eq.s32.totalorder %s39, 0
      %p444 = por %p442, %p443
      %s446 = sadd.s32 %s445, 1
      %p449 = scmp.eq.s32.totalorder %s33, 1
      %p450 = scmp.ne.s32.totalorder %s445, %s447
      %p451 = scmp.eq.s32.totalorder %s33, 0
      %p452 = por %p450, %p451
      %p453 = scmp.ne.s32.totalorder %s445, %s447
      %p454 = scmp.eq.s32.totalorder %s38, 1
      %p455 = por %p453, %p454
      %p456 = scmp.ne.s32.totalorder %s447, %s448
      %p457 = scmp.eq.s32.totalorder %s38, 0
      %p458 = por %p456, %p457
      %p459 = scmp.ne.s32.totalorder %s447, %s448
      %p460 = scmp.eq.s32.totalorder %s39, 1
      %p461 = por %p459, %p460
      %p463 = scmp.ne.s32.totalorder %s448, %s462
      %p464 = scmp.eq.s32.totalorder %s39, 0
      %p465 = por %p463, %p464
      %s467 = sadd.s32 %s466, 1
      %p470 = scmp.eq.s32.totalorder %s33, 1
      %p471 = scmp.ne.s32.totalorder %s466, %s468
      %p472 = scmp.eq.s32.totalorder %s33, 0
      %p473 = por %p471, %p472
      %p474 = scmp.ne.s32.totalorder %s466, %s468
      %p475 = scmp.eq.s32.totalorder %s38, 1
      %p476 = por %p474, %p475
      %p477 = scmp.ne.s32.totalorder %s468, %s469
      %p478 = scmp.eq.s32.totalorder %s38, 0
      %p479 = por %p477, %p478
      %p480 = scmp.ne.s32.totalorder %s468, %s469
      %p481 = scmp.eq.s32.totalorder %s39, 1
      %p482 = por %p480, %p481
      %p484 = scmp.ne.s32.totalorder %s469, %s483
      %p485 = scmp.eq.s32.totalorder %s39, 0
      %p486 = por %p484, %p485
      %s488 = sadd.s32 %s487, 1
      %p491 = scmp.eq.s32.totalorder %s33, 1
      %p492 = scmp.ne.s32.totalorder %s487, %s489
      %p493 = scmp.eq.s32.totalorder %s33, 0
      %p494 = por %p492, %p493
      %p495 = scmp.ne.s32.totalorder %s487, %s489
      %p496 = scmp.eq.s32.totalorder %s38, 1
      %p497 = por %p495, %p496
      %p498 = scmp.ne.s32.totalorder %s489, %s490
      %p499 = scmp.eq.s32.totalorder %s38, 0
      %p500 = por %p498, %p499
      %p501 = scmp.ne.s32.totalorder %s489, %s490
      %p502 = scmp.eq.s32.totalorder %s39, 1
      %p503 = por %p501, %p502
      %p505 = scmp.ne.s32.totalorder %s490, %s504
      %p506 = scmp.eq.s32.totalorder %s39, 0
      %p507 = por %p505, %p506
      %s509 = sadd.s32 %s508, 1
      %p512 = scmp.eq.s32.totalorder %s33, 1
      %p513 = scmp.ne.s32.totalorder %s508, %s510
      %p514 = scmp.eq.s32.totalorder %s33, 0
      %p515 = por %p513, %p514
      %p516 = scmp.ne.s32.totalorder %s508, %s510
      %p517 = scmp.eq.s32.totalorder %s38, 1
      %p518 = por %p516, %p517
      %p519 = scmp.ne.s32.totalorder %s510, %s511
      %p520 = scmp.eq.s32.totalorder %s38, 0
      %p521 = por %p519, %p520
      %p522 = scmp.ne.s32.totalorder %s510, %s511
      %p523 = scmp.eq.s32.totalorder %s39, 1
      %p524 = por %p522, %p523
      %p526 = scmp.ne.s32.totalorder %s511, %s525
      %p527 = scmp.eq.s32.totalorder %s39, 0
      %p528 = por %p526, %p527
      %s530 = sadd.s32 %s529, 1
      %p533 = scmp.eq.s32.totalorder %s33, 1
      %p534 = scmp.ne.s32.totalorder %s529, %s531
      %p535 = scmp.eq.s32.totalorder %s33, 0
      %p536 = por %p534, %p535
      %p537 = scmp.ne.s32.totalorder %s529, %s531
      %p538 = scmp.eq.s32.totalorder %s38, 1
      %p539 = por %p537, %p538
      %p540 = scmp.ne.s32.totalorder %s531, %s532
      %p541 = scmp.eq.s32.totalorder %s38, 0
      %p542 = por %p540, %p541
      %p543 = scmp.ne.s32.totalorder %s531, %s532
      %p544 = scmp.eq.s32.totalorder %s39, 1
      %p545 = por %p543, %p544
      %p547 = scmp.ne.s32.totalorder %s532, %s546
      %p548 = scmp.eq.s32.totalorder %s39, 0
      %p549 = por %p547, %p548
      %s550 = ssub.s32 %s33, %s40
      %p551 = scmp.eq.s32.totalorder %s550, 0
      %s553 = sadd.s32 %s552, 1
      %s554 = scalar_select %p551, %s552, %s553
      %p557 = pneg %p551
      %p558 = scmp.eq.s32.totalorder %s33, 1
      %p559 = por %p557, %p558
      %p560 = scmp.ne.s32.totalorder %s552, %s555
      %p561 = scmp.eq.s32.totalorder %s33, 0
      %p562 = por %p560, %p561
      %p563 = scmp.ne.s32.totalorder %s552, %s555
      %p564 = scmp.eq.s32.totalorder %s38, 1
      %p565 = por %p563, %p564
      %p566 = scmp.ne.s32.totalorder %s555, %s556
      %p567 = scmp.eq.s32.totalorder %s38, 0
      %p568 = por %p566, %p567
      %p569 = scmp.ne.s32.totalorder %s555, %s556
      %p570 = scmp.eq.s32.totalorder %s39, 1
      %p571 = por %p569, %p570
      %p573 = scmp.ne.s32.totalorder %s556, %s572
      %p574 = scmp.eq.s32.totalorder %s39, 0
      %p575 = por %p573, %p574
      %p576 = scmp.le.s32.totalorder 1, %s33
      %p577 = scmp.lt.s32.totalorder %s33, 3
      %p578 = pnand %p576, %p577
      %p579 = pneg %p578
      // Predicated region
      $region9: #{my_module_forward.1} parent=5 // pred_check
        _
      $region10: #{my_module_forward.1} parent=5 // pred_check_branch
        %581 = sbr.rel (%p578) target = $region12
      $region11: #{my_module_forward.1} parent=5 // pred_region
        %s582 = ssub.s32 %s33, 1
        // Predicated region
        $region13: #{my_module_forward.1} parent=11 // pred_check
          %p583 = pneg %p80
        $region14: #{my_module_forward.1} parent=11 // pred_check_branch
          %585 = sbr.rel (%p583) target = $region16
        $region15: #{my_module_forward.1} parent=11 // pred_region
          _
        $region16: #{my_module_forward.1} parent=11 // pred_fallthru
          _
        // Predicated region
        $region17: #{my_module_forward.1} parent=11 // pred_check
          %p586 = pneg %p101
        $region18: #{my_module_forward.1} parent=11 // pred_check_branch
          %588 = sbr.rel (%p586) target = $region20
        $region19: #{my_module_forward.1} parent=11 // pred_region
          _
        $region20: #{my_module_forward.1} parent=11 // pred_fallthru
          _
        // Predicated region
        $region21: #{my_module_forward.1} parent=11 // pred_check
          %p589 = pneg %p122
        $region22: #{my_module_forward.1} parent=11 // pred_check_branch
          %591 = sbr.rel (%p589) target = $region24
        $region23: #{my_module_forward.1} parent=11 // pred_region
          _
        $region24: #{my_module_forward.1} parent=11 // pred_fallthru
          _
        // Predicated region
        $region25: #{my_module_forward.1} parent=11 // pred_check
          %p592 = pneg %p143
        $region26: #{my_module_forward.1} parent=11 // pred_check_branch
          %594 = sbr.rel (%p592) target = $region28
        $region27: #{my_module_forward.1} parent=11 // pred_region
          _
        $region28: #{my_module_forward.1} parent=11 // pred_fallthru
          _
        // Predicated region
        $region29: #{my_module_forward.1} parent=11 // pred_check
          %p595 = pneg %p164
        $region30: #{my_module_forward.1} parent=11 // pred_check_branch
          %597 = sbr.rel (%p595) target = $region32
        $region31: #{my_module_forward.1} parent=11 // pred_region
          _
        $region32: #{my_module_forward.1} parent=11 // pred_fallthru
          _
        // Predicated region
        $region33: #{my_module_forward.1} parent=11 // pred_check
          %p598 = pneg %p185
        $region34: #{my_module_forward.1} parent=11 // pred_check_branch
          %600 = sbr.rel (%p598) target = $region36
        $region35: #{my_module_forward.1} parent=11 // pred_region
          _
        $region36: #{my_module_forward.1} parent=11 // pred_fallthru
          _
        // Predicated region
        $region37: #{my_module_forward.1} parent=11 // pred_check
          %p601 = pneg %p206
        $region38: #{my_module_forward.1} parent=11 // pred_check_branch
          %603 = sbr.rel (%p601) target = $region40
        $region39: #{my_module_forward.1} parent=11 // pred_region
          _
        $region40: #{my_module_forward.1} parent=11 // pred_fallthru
          _
        // Predicated region
        $region41: #{my_module_forward.1} parent=11 // pred_check
          %p604 = pneg %p227
        $region42: #{my_module_forward.1} parent=11 // pred_check_branch
          %606 = sbr.rel (%p604) target = $region44
        $region43: #{my_module_forward.1} parent=11 // pred_region
          _
        $region44: #{my_module_forward.1} parent=11 // pred_fallthru
          _
        // Predicated region
        $region45: #{my_module_forward.1} parent=11 // pred_check
          %p607 = pneg %p248
        $region46: #{my_module_forward.1} parent=11 // pred_check_branch
          %609 = sbr.rel (%p607) target = $region48
        $region47: #{my_module_forward.1} parent=11 // pred_region
          _
        $region48: #{my_module_forward.1} parent=11 // pred_fallthru
          _
        // Predicated region
        $region49: #{my_module_forward.1} parent=11 // pred_check
          %p610 = pneg %p269
        $region50: #{my_module_forward.1} parent=11 // pred_check_branch
          %612 = sbr.rel (%p610) target = $region52
        $region51: #{my_module_forward.1} parent=11 // pred_region
          _
        $region52: #{my_module_forward.1} parent=11 // pred_fallthru
          _
        // Predicated region
        $region53: #{my_module_forward.1} parent=11 // pred_check
          %p613 = pneg %p290
        $region54: #{my_module_forward.1} parent=11 // pred_check_branch
          %615 = sbr.rel (%p613) target = $region56
        $region55: #{my_module_forward.1} parent=11 // pred_region
          _
        $region56: #{my_module_forward.1} parent=11 // pred_fallthru
          _
        // Predicated region
        $region57: #{my_module_forward.1} parent=11 // pred_check
          %p616 = pneg %p311
        $region58: #{my_module_forward.1} parent=11 // pred_check_branch
          %618 = sbr.rel (%p616) target = $region60
        $region59: #{my_module_forward.1} parent=11 // pred_region
          _
        $region60: #{my_module_forward.1} parent=11 // pred_fallthru
          _
        // Predicated region
        $region61: #{my_module_forward.1} parent=11 // pred_check
          %p619 = pneg %p332
        $region62: #{my_module_forward.1} parent=11 // pred_check_branch
          %621 = sbr.rel (%p619) target = $region64
        $region63: #{my_module_forward.1} parent=11 // pred_region
          _
        $region64: #{my_module_forward.1} parent=11 // pred_fallthru
          _
        // Predicated region
        $region65: #{my_module_forward.1} parent=11 // pred_check
          %p622 = pneg %p353
        $region66: #{my_module_forward.1} parent=11 // pred_check_branch
          %624 = sbr.rel (%p622) target = $region68
        $region67: #{my_module_forward.1} parent=11 // pred_region
          _
        $region68: #{my_module_forward.1} parent=11 // pred_fallthru
          _
        // Predicated region
        $region69: #{my_module_forward.1} parent=11 // pred_check
          %p625 = pneg %p374
        $region70: #{my_module_forward.1} parent=11 // pred_check_branch
          %627 = sbr.rel (%p625) target = $region72
        $region71: #{my_module_forward.1} parent=11 // pred_region
          _
        $region72: #{my_module_forward.1} parent=11 // pred_fallthru
          _
        // Predicated region
        $region73: #{my_module_forward.1} parent=11 // pred_check
          %p628 = pneg %p395
        $region74: #{my_module_forward.1} parent=11 // pred_check_branch
          %630 = sbr.rel (%p628) target = $region76
        $region75: #{my_module_forward.1} parent=11 // pred_region
          _
        $region76: #{my_module_forward.1} parent=11 // pred_fallthru
          _
        // Predicated region
        $region77: #{my_module_forward.1} parent=11 // pred_check
          %p631 = pneg %p416
        $region78: #{my_module_forward.1} parent=11 // pred_check_branch
          %633 = sbr.rel (%p631) target = $region80
        $region79: #{my_module_forward.1} parent=11 // pred_region
          _
        $region80: #{my_module_forward.1} parent=11 // pred_fallthru
          _
        // Predicated region
        $region81: #{my_module_forward.1} parent=11 // pred_check
          %p634 = pneg %p437
        $region82: #{my_module_forward.1} parent=11 // pred_check_branch
          %636 = sbr.rel (%p634) target = $region84
        $region83: #{my_module_forward.1} parent=11 // pred_region
          _
        $region84: #{my_module_forward.1} parent=11 // pred_fallthru
          _
        // Predicated region
        $region85: #{my_module_forward.1} parent=11 // pred_check
          %p637 = pneg %p458
        $region86: #{my_module_forward.1} parent=11 // pred_check_branch
          %639 = sbr.rel (%p637) target = $region88
        $region87: #{my_module_forward.1} parent=11 // pred_region
          _
        $region88: #{my_module_forward.1} parent=11 // pred_fallthru
          _
        // Predicated region
        $region89: #{my_module_forward.1} parent=11 // pred_check
          %p640 = pneg %p479
        $region90: #{my_module_forward.1} parent=11 // pred_check_branch
          %642 = sbr.rel (%p640) target = $region92
        $region91: #{my_module_forward.1} parent=11 // pred_region
          _
        $region92: #{my_module_forward.1} parent=11 // pred_fallthru
          _
        // Predicated region
        $region93: #{my_module_forward.1} parent=11 // pred_check
          %p643 = pneg %p500
        $region94: #{my_module_forward.1} parent=11 // pred_check_branch
          %645 = sbr.rel (%p643) target = $region96
        $region95: #{my_module_forward.1} parent=11 // pred_region
          _
        $region96: #{my_module_forward.1} parent=11 // pred_fallthru
          _
        // Predicated region
        $region97: #{my_module_forward.1} parent=11 // pred_check
          %p646 = pneg %p521
        $region98: #{my_module_forward.1} parent=11 // pred_check_branch
          %648 = sbr.rel (%p646) target = $region100
        $region99: #{my_module_forward.1} parent=11 // pred_region
          _
        $region100: #{my_module_forward.1} parent=11 // pred_fallthru
          _
        // Predicated region
        $region101: #{my_module_forward.1} parent=11 // pred_check
          %p649 = pneg %p542
        $region102: #{my_module_forward.1} parent=11 // pred_check_branch
          %651 = sbr.rel (%p649) target = $region104
        $region103: #{my_module_forward.1} parent=11 // pred_region
          _
        $region104: #{my_module_forward.1} parent=11 // pred_fallthru
          _
      $region12: #{my_module_forward.1} parent=5 // pred_fallthru
        _
      %p652 = scmp.lt.s32.totalorder %s33, 2
      // Predicated region
      $region105: #{my_module_forward.1} parent=5 // pred_check
        %p653 = pneg %p652
      $region106: #{my_module_forward.1} parent=5 // pred_check_branch
        %655 = sbr.rel (%p653) target = $region108
      $region107: #{my_module_forward.1} parent=5 // pred_region
        // Predicated region
        $region109: #{my_module_forward.1} parent=107 // pred_check
          %p656 = pneg %p53
        $region110: #{my_module_forward.1} parent=107 // pred_check_branch
          %658 = sbr.rel (%p656) target = $region112
        $region111: #{my_module_forward.1} parent=107 // pred_region
          %p659 = scmp.lt.s32.totalorder %s33, 1
          %s660 = scalar_select %p659, %s33, 1
          %s661 = smul.addr %s660, 44
          %s662 = smul.addr %s661, 8
          %s663 = scalar_lea.vmem %s0, %s662
        $region112: #{my_module_forward.1} parent=107 // pred_fallthru
          _
      $region108: #{my_module_forward.1} parent=5 // pred_fallthru
        _
      %p664 = scmp.le.s32.totalorder 1, %s33
      %p665 = scmp.lt.s32.totalorder %s33, 3
      %p666 = pnand %p664, %p665
      %p667 = pneg %p666
      // Predicated region
      $region113: #{my_module_forward.1} parent=5 // pred_check
        _
      $region114: #{my_module_forward.1} parent=5 // pred_check_branch
        %669 = sbr.rel (%p666) target = $region116
      $region115: #{my_module_forward.1} parent=5 // pred_region
        %s670 = ssub.s32 %s33, 1
        %p671 = scmp.lt.s32.totalorder %s38, 1
        %s672 = scalar_select %p671, %s38, 1
        %s673 = smul.addr %s672, 44
        %s674 = smul.addr %s673, 8
        %s675 = scalar_lea.vmem %s0, %s674
        %p676 = pneg %p59
        %p677 = pneg %p56
        %p678 = pneg %p80
        %p679 = pneg %p77
        %p680 = pneg %p101
        %p681 = pneg %p98
        %p682 = pneg %p122
        %p683 = pneg %p119
        %p684 = pneg %p143
        %p685 = pneg %p140
        %p686 = pneg %p164
        %p687 = pneg %p161
        %p688 = pneg %p185
        %p689 = pneg %p182
        %p690 = pneg %p206
        %p691 = pneg %p203
        %p692 = pneg %p227
        %p693 = pneg %p224
        %p694 = pneg %p248
        %p695 = pneg %p245
        %p696 = pneg %p269
        %p697 = pneg %p266
        %p698 = pneg %p290
        %p699 = pneg %p287
        %p700 = pneg %p311
        %p701 = pneg %p308
        %p702 = pneg %p332
        %p703 = pneg %p329
        %p704 = pneg %p353
        %p705 = pneg %p350
        %p706 = pneg %p374
        %p707 = pneg %p371
        %p708 = pneg %p395
        %p709 = pneg %p392
        %p710 = pneg %p416
        %p711 = pneg %p413
        %p712 = pneg %p437
        %p713 = pneg %p434
        %p714 = pneg %p458
        %p715 = pneg %p455
        %p716 = pneg %p479
        %p717 = pneg %p476
        %p718 = pneg %p500
        %p719 = pneg %p497
        %p720 = pneg %p521
        %p721 = pneg %p518
        %p722 = pneg %p542
        %p723 = pneg %p539
        %p724 = pneg %p568
        %p725 = pneg %p565
        %s726 = sand.u32 %s555, 1
        %s727 = scalar_lea.sflag [#allocation3], %s726
        %s728 = sand.u32 %s555, 1
        %s729 = scalar_lea.vmem [#allocation2], %s728
        %p730 = scmp.lt.s32.totalorder %s38, 1
        %s731 = scalar_select %p730, %s38, 1
        %s732 = smul.addr %s731, 44
        %s733 = smul.addr %s732, 8
        %s734 = scalar_lea.vmem %s0, %s733
        %v736 = vld [vmem:[%s734] sm:$0xff]
        %v737 = vld [vmem:[%s734 + $0x8] sm:$0xff]
        %v738 = vld [vmem:[%s734 + $0x10] sm:$0xff]
        %v739 = vld [vmem:[%s734 + $0x18] sm:$0xff]
        %v740 = vld [vmem:[%s734 + $0x20] sm:$0xff]
        %v741 = vld [vmem:[%s734 + $0x28] sm:$0xff]
        %v742 = vld [vmem:[%s734 + $0x30] sm:$0xff]
        %v743 = vld [vmem:[%s734 + $0x38] sm:$0xff]
        %v744 = vld [vmem:[%s734 + $0x40] sm:$0xff]
        %v745 = vld [vmem:[%s734 + $0x48] sm:$0xff]
        %v746 = vld [vmem:[%s734 + $0x50] sm:$0xff]
        %v747 = vld [vmem:[%s734 + $0x58] sm:$0xff]
        %v748 = vld [vmem:[%s734 + $0x60] sm:$0xff]
        %v749 = vld [vmem:[%s734 + $0x68] sm:$0xff]
        %v750 = vld [vmem:[%s734 + $0x70] sm:$0xff]
        %v751 = vld [vmem:[%s734 + $0x78] sm:$0xff]
        %v752 = vld [vmem:[%s734 + $0x80] sm:$0xff]
        %v753 = vld [vmem:[%s734 + $0x88] sm:$0xff]
        %v754 = vld [vmem:[%s734 + $0x90] sm:$0xff]
        %v755 = vld [vmem:[%s734 + $0x98] sm:$0xff]
        %v756 = vld [vmem:[%s734 + $0xa0] sm:$0xff]
        %v757 = vld [vmem:[%s734 + $0xa8] sm:$0xff]
        %v758 = vld [vmem:[%s734 + $0xb0] sm:$0xff]
        %v759 = vld [vmem:[%s734 + $0xb8] sm:$0xff]
        %v760 = vld [vmem:[%s734 + $0xc0] sm:$0xff]
        %v761 = vld [vmem:[%s734 + $0xc8] sm:$0xff]
        %v762 = vld [vmem:[%s734 + $0xd0] sm:$0xff]
        %v763 = vld [vmem:[%s734 + $0xd8] sm:$0xff]
        %v764 = vld [vmem:[%s734 + $0xe0] sm:$0xff]
        %v765 = vld [vmem:[%s734 + $0xe8] sm:$0xff]
        %v766 = vld [vmem:[%s734 + $0xf0] sm:$0xff]
        %v767 = vld [vmem:[%s734 + $0xf8] sm:$0xff]
        %v768 = vld [vmem:[%s734 + $0x100] sm:$0xff]
        %v769 = vld [vmem:[%s734 + $0x108] sm:$0xff]
        %v770 = vld [vmem:[%s734 + $0x110] sm:$0xff]
        %v771 = vld [vmem:[%s734 + $0x118] sm:$0xff]
        %v772 = vld [vmem:[%s734 + $0x120] sm:$0xff]
        %v773 = vld [vmem:[%s734 + $0x128] sm:$0xff]
        %v774 = vld [vmem:[%s734 + $0x130] sm:$0xff]
        %v775 = vld [vmem:[%s734 + $0x138] sm:$0xff]
        %v776 = vld [vmem:[%s734 + $0x140] sm:$0x1]
        %v777 = vld [vmem:[%s734 + $0x148] sm:$0x1]
        %v778 = vld [vmem:[%s734 + $0x150] sm:$0x1]
        %v779 = vld [vmem:[%s734 + $0x158] sm:$0x1]
        %v780 = vld [vmem:[%s1] sm:$0xff]
        %v781 = vld [vmem:[%s1 + $0x8] sm:$0xff]
        %v782 = vld [vmem:[%s1 + $0x10] sm:$0xff]
        %v783 = vld [vmem:[%s1 + $0x18] sm:$0xff]
        %v784 = vld [vmem:[%s1 + $0x20] sm:$0xff]
        %v785 = vld [vmem:[%s1 + $0x28] sm:$0xff]
        %v786 = vld [vmem:[%s1 + $0x30] sm:$0xff]
        %v787 = vld [vmem:[%s1 + $0x38] sm:$0xff]
        %v788 = vld [vmem:[%s1 + $0x40] sm:$0xff]
        %v789 = vld [vmem:[%s1 + $0x48] sm:$0xff]
        %v790 = vld [vmem:[%s1 + $0x50] sm:$0xff]
        %v791 = vld [vmem:[%s1 + $0x58] sm:$0xff]
        %v792 = vld [vmem:[%s1 + $0x60] sm:$0xff]
        %v793 = vld [vmem:[%s1 + $0x68] sm:$0xff]
        %v794 = vld [vmem:[%s1 + $0x70] sm:$0xff]
        %v795 = vld [vmem:[%s1 + $0x78] sm:$0xff]
        %v796 = vld [vmem:[%s1 + $0x80] sm:$0xff]
        %v797 = vld [vmem:[%s1 + $0x88] sm:$0xff]
        %v798 = vld [vmem:[%s1 + $0x90] sm:$0xff]
        %v799 = vld [vmem:[%s1 + $0x98] sm:$0xff]
        %v800 = vld [vmem:[%s1 + $0xa0] sm:$0xff]
        %v801 = vld [vmem:[%s1 + $0xa8] sm:$0xff]
        %v802 = vld [vmem:[%s1 + $0xb0] sm:$0xff]
        %v803 = vld [vmem:[%s1 + $0xb8] sm:$0xff]
        %v804 = vld [vmem:[%s1 + $0xc0] sm:$0xff]
        %v805 = vld [vmem:[%s1 + $0xc8] sm:$0xff]
        %v806 = vld [vmem:[%s1 + $0xd0] sm:$0xff]
        %v807 = vld [vmem:[%s1 + $0xd8] sm:$0xff]
        %v808 = vld [vmem:[%s1 + $0xe0] sm:$0xff]
        %v809 = vld [vmem:[%s1 + $0xe8] sm:$0xff]
        %v810 = vld [vmem:[%s1 + $0xf0] sm:$0xff]
        %v811 = vld [vmem:[%s1 + $0xf8] sm:$0xff]
        %v812 = vld [vmem:[%s1 + $0x100] sm:$0xff]
        %v813 = vld [vmem:[%s1 + $0x108] sm:$0xff]
        %v814 = vld [vmem:[%s1 + $0x110] sm:$0xff]
        %v815 = vld [vmem:[%s1 + $0x118] sm:$0xff]
        %v816 = vld [vmem:[%s1 + $0x120] sm:$0xff]
        %v817 = vld [vmem:[%s1 + $0x128] sm:$0xff]
        %v818 = vld [vmem:[%s1 + $0x130] sm:$0xff]
        %v819 = vld [vmem:[%s1 + $0x138] sm:$0xff]
        %v820 = vld [vmem:[%s1 + $0x140] sm:$0xff]
        %v821 = vld [vmem:[%s1 + $0x148] sm:$0xff]
        %v822 = vld [vmem:[%s1 + $0x150] sm:$0xff]
        %v823 = vld [vmem:[%s1 + $0x158] sm:$0xff]
        %v824 = vld [vmem:[%s1 + $0x160] sm:$0xff]
        %v825 = vld [vmem:[%s1 + $0x168] sm:$0xff]
        %v826 = vld [vmem:[%s1 + $0x170] sm:$0xff]
        %v827 = vld [vmem:[%s1 + $0x178] sm:$0xff]
        %v828 = vld [vmem:[%s1 + $0x180] sm:$0xff]
        %v829 = vld [vmem:[%s1 + $0x188] sm:$0xff]
        %v830 = vld [vmem:[%s1 + $0x190] sm:$0xff]
        %v831 = vld [vmem:[%s1 + $0x198] sm:$0xff]
        %v832 = vld [vmem:[%s1 + $0x1a0] sm:$0xff]
        %v833 = vld [vmem:[%s1 + $0x1a8] sm:$0xff]
        %v834 = vld [vmem:[%s1 + $0x1b0] sm:$0xff]
        %v835 = vld [vmem:[%s1 + $0x1b8] sm:$0xff]
        %v836 = vld [vmem:[%s1 + $0x1c0] sm:$0xff]
        %v837 = vld [vmem:[%s1 + $0x1c8] sm:$0xff]
        %v838 = vld [vmem:[%s1 + $0x1d0] sm:$0xff]
        %v839 = vld [vmem:[%s1 + $0x1d8] sm:$0xff]
        %v840 = vld [vmem:[%s1 + $0x1e0] sm:$0xff]
        %v841 = vld [vmem:[%s1 + $0x1e8] sm:$0xff]
        %v842 = vld [vmem:[%s1 + $0x1f0] sm:$0xff]
        %v843 = vld [vmem:[%s1 + $0x1f8] sm:$0xff]
        %v844 = vld [vmem:[%s1 + $0x200] sm:$0xff]
        %v845 = vld [vmem:[%s1 + $0x208] sm:$0xff]
        %v846 = vld [vmem:[%s1 + $0x210] sm:$0xff]
        %v847 = vld [vmem:[%s1 + $0x218] sm:$0xff]
        %v848 = vld [vmem:[%s1 + $0x220] sm:$0xff]
        %v849 = vld [vmem:[%s1 + $0x228] sm:$0xff]
        %v850 = vld [vmem:[%s1 + $0x230] sm:$0xff]
        %v851 = vld [vmem:[%s1 + $0x238] sm:$0xff]
        %v852 = vld [vmem:[%s1 + $0x240] sm:$0xff]
        %v853 = vld [vmem:[%s1 + $0x248] sm:$0xff]
        %v854 = vld [vmem:[%s1 + $0x250] sm:$0xff]
        %v855 = vld [vmem:[%s1 + $0x258] sm:$0xff]
        %v856 = vld [vmem:[%s1 + $0x260] sm:$0xff]
        %v857 = vld [vmem:[%s1 + $0x268] sm:$0xff]
        %v858 = vld [vmem:[%s1 + $0x270] sm:$0xff]
        %v859 = vld [vmem:[%s1 + $0x278] sm:$0xff]
        %v860 = vld [vmem:[%s1 + $0x280] sm:$0xff]
        %v861 = vld [vmem:[%s1 + $0x288] sm:$0xff]
        %v862 = vld [vmem:[%s1 + $0x290] sm:$0xff]
        %v863 = vld [vmem:[%s1 + $0x298] sm:$0xff]
        %v864 = vld [vmem:[%s1 + $0x2a0] sm:$0xff]
        %v865 = vld [vmem:[%s1 + $0x2a8] sm:$0xff]
        %v866 = vld [vmem:[%s1 + $0x2b0] sm:$0xff]
        %v867 = vld [vmem:[%s1 + $0x2b8] sm:$0xff]
        %v868 = vld [vmem:[%s1 + $0x2c0] sm:$0xff]
        %v869 = vld [vmem:[%s1 + $0x2c8] sm:$0xff]
        %v870 = vld [vmem:[%s1 + $0x2d0] sm:$0xff]
        %v871 = vld [vmem:[%s1 + $0x2d8] sm:$0xff]
        %v872 = vld [vmem:[%s1 + $0x2e0] sm:$0xff]
        %v873 = vld [vmem:[%s1 + $0x2e8] sm:$0xff]
        %v874 = vld [vmem:[%s1 + $0x2f0] sm:$0xff]
        %v875 = vld [vmem:[%s1 + $0x2f8] sm:$0xff]
        %v876 = vld [vmem:[%s1 + $0x300] sm:$0xff]
        %v877 = vld [vmem:[%s1 + $0x308] sm:$0xff]
        %v878 = vld [vmem:[%s1 + $0x310] sm:$0xff]
        %v879 = vld [vmem:[%s1 + $0x318] sm:$0xff]
        %v880 = vpack.c.bf16 %v740, %v736
        %v881 = vpack.c.bf16 %v741, %v737
        %v882 = vpack.c.bf16 %v742, %v738
        %v883 = vpack.c.bf16 %v743, %v739
        %v884 = vpack.c.bf16 %v748, %v744
        %v885 = vpack.c.bf16 %v749, %v745
        %v886 = vpack.c.bf16 %v750, %v746
        %v887 = vpack.c.bf16 %v751, %v747
        %v888 = vpack.c.bf16 %v756, %v752
        %v889 = vpack.c.bf16 %v757, %v753
        %v890 = vpack.c.bf16 %v758, %v754
        %v891 = vpack.c.bf16 %v759, %v755
        %v892 = vpack.c.bf16 %v764, %v760
        %v893 = vpack.c.bf16 %v765, %v761
        %v894 = vpack.c.bf16 %v766, %v762
        %v895 = vpack.c.bf16 %v767, %v763
        %v896 = vpack.c.bf16 %v772, %v768
        %v897 = vpack.c.bf16 %v773, %v769
        %v898 = vpack.c.bf16 %v774, %v770
        %v899 = vpack.c.bf16 %v775, %v771
        %v900 = vpack.c.bf16 %v776, %v776
        %v901 = vpack.c.bf16 %v777, %v777
        %v902 = vpack.c.bf16 %v778, %v778
        %v903 = vpack.c.bf16 %v779, %v779
        %v1004 = vunpack.c.l.b16 %v780
        %v1005 = vunpack.c.h.b16 %v780
        %v1006 = vunpack.c.l.b16 %v781
        %v1007 = vunpack.c.h.b16 %v781
        %v1008 = vunpack.c.l.b16 %v782
        %v1009 = vunpack.c.h.b16 %v782
        %v1010 = vunpack.c.l.b16 %v783
        %v1011 = vunpack.c.h.b16 %v783
        %v1012 = vunpack.c.l.b16 %v784
        %v1013 = vunpack.c.h.b16 %v784
        %v1014 = vunpack.c.l.b16 %v785
        %v1015 = vunpack.c.h.b16 %v785
        %v1016 = vunpack.c.l.b16 %v786
        %v1017 = vunpack.c.h.b16 %v786
        %v1018 = vunpack.c.l.b16 %v787
        %v1019 = vunpack.c.h.b16 %v787
        %v1020 = vunpack.c.l.b16 %v788
        %v1021 = vunpack.c.h.b16 %v788
        %v1022 = vunpack.c.l.b16 %v789
        %v1023 = vunpack.c.h.b16 %v789
        %v1024 = vunpack.c.l.b16 %v790
        %v1025 = vunpack.c.h.b16 %v790
        %v1026 = vunpack.c.l.b16 %v791
        %v1027 = vunpack.c.h.b16 %v791
        %v1028 = vunpack.c.l.b16 %v792
        %v1029 = vunpack.c.h.b16 %v792
        %v1030 = vunpack.c.l.b16 %v793
        %v1031 = vunpack.c.h.b16 %v793
        %v1032 = vunpack.c.l.b16 %v794
        %v1033 = vunpack.c.h.b16 %v794
        %v1034 = vunpack.c.l.b16 %v795
        %v1035 = vunpack.c.h.b16 %v795
        %v1036 = vunpack.c.l.b16 %v796
        %v1037 = vunpack.c.h.b16 %v796
        %v1038 = vunpack.c.l.b16 %v797
        %v1039 = vunpack.c.h.b16 %v797
        %v1040 = vunpack.c.l.b16 %v798
        %v1041 = vunpack.c.h.b16 %v798
        %v1042 = vunpack.c.l.b16 %v799
        %v1043 = vunpack.c.h.b16 %v799
        %v1044 = vunpack.c.l.b16 %v800
        %v1045 = vunpack.c.h.b16 %v800
        %v1046 = vunpack.c.l.b16 %v801
        %v1047 = vunpack.c.h.b16 %v801
        %v1048 = vunpack.c.l.b16 %v802
        %v1049 = vunpack.c.h.b16 %v802
        %v1050 = vunpack.c.l.b16 %v803
        %v1051 = vunpack.c.h.b16 %v803
        %v1052 = vunpack.c.l.b16 %v804
        %v1053 = vunpack.c.h.b16 %v804
        %v1054 = vunpack.c.l.b16 %v805
        %v1055 = vunpack.c.h.b16 %v805
        %v1056 = vunpack.c.l.b16 %v806
        %v1057 = vunpack.c.h.b16 %v806
        %v1058 = vunpack.c.l.b16 %v807
        %v1059 = vunpack.c.h.b16 %v807
        %v1060 = vunpack.c.l.b16 %v808
        %v1061 = vunpack.c.h.b16 %v808
        %v1062 = vunpack.c.l.b16 %v809
        %v1063 = vunpack.c.h.b16 %v809
        %v1064 = vunpack.c.l.b16 %v810
        %v1065 = vunpack.c.h.b16 %v810
        %v1066 = vunpack.c.l.b16 %v811
        %v1067 = vunpack.c.h.b16 %v811
        %v1068 = vunpack.c.l.b16 %v812
        %v1069 = vunpack.c.h.b16 %v812
        %v1070 = vunpack.c.l.b16 %v813
        %v1071 = vunpack.c.h.b16 %v813
        %v1072 = vunpack.c.l.b16 %v814
        %v1073 = vunpack.c.h.b16 %v814
        %v1074 = vunpack.c.l.b16 %v815
        %v1075 = vunpack.c.h.b16 %v815
        %v1076 = vunpack.c.l.b16 %v816
        %v1077 = vunpack.c.h.b16 %v816
        %v1078 = vunpack.c.l.b16 %v817
        %v1079 = vunpack.c.h.b16 %v817
        %v1080 = vunpack.c.l.b16 %v818
        %v1081 = vunpack.c.h.b16 %v818
        %v1082 = vunpack.c.l.b16 %v819
        %v1083 = vunpack.c.h.b16 %v819
        %v1084 = vunpack.c.l.b16 %v820
        %v1085 = vunpack.c.h.b16 %v820
        %v1086 = vunpack.c.l.b16 %v821
        %v1087 = vunpack.c.h.b16 %v821
        %v1088 = vunpack.c.l.b16 %v822
        %v1089 = vunpack.c.h.b16 %v822
        %v1090 = vunpack.c.l.b16 %v823
        %v1091 = vunpack.c.h.b16 %v823
        %v1092 = vunpack.c.l.b16 %v824
        %v1093 = vunpack.c.h.b16 %v824
        %v1094 = vunpack.c.l.b16 %v825
        %v1095 = vunpack.c.h.b16 %v825
        %v1096 = vunpack.c.l.b16 %v826
        %v1097 = vunpack.c.h.b16 %v826
        %v1098 = vunpack.c.l.b16 %v827
        %v1099 = vunpack.c.h.b16 %v827
        %v1100 = vunpack.c.l.b16 %v828
        %v1101 = vunpack.c.h.b16 %v828
        %v1102 = vunpack.c.l.b16 %v829
        %v1103 = vunpack.c.h.b16 %v829
        %v1104 = vunpack.c.l.b16 %v830
        %v1105 = vunpack.c.h.b16 %v830
        %v1106 = vunpack.c.l.b16 %v831
        %v1107 = vunpack.c.h.b16 %v831
        %v1108 = vunpack.c.l.b16 %v832
        %v1109 = vunpack.c.h.b16 %v832
        %v1110 = vunpack.c.l.b16 %v833
        %v1111 = vunpack.c.h.b16 %v833
        %v1112 = vunpack.c.l.b16 %v834
        %v1113 = vunpack.c.h.b16 %v834
        %v1114 = vunpack.c.l.b16 %v835
        %v1115 = vunpack.c.h.b16 %v835
        %v1116 = vunpack.c.l.b16 %v836
        %v1117 = vunpack.c.h.b16 %v836
        %v1118 = vunpack.c.l.b16 %v837
        %v1119 = vunpack.c.h.b16 %v837
        %v1120 = vunpack.c.l.b16 %v838
        %v1121 = vunpack.c.h.b16 %v838
        %v1122 = vunpack.c.l.b16 %v839
        %v1123 = vunpack.c.h.b16 %v839
        %v1124 = vunpack.c.l.b16 %v840
        %v1125 = vunpack.c.h.b16 %v840
        %v1126 = vunpack.c.l.b16 %v841
        %v1127 = vunpack.c.h.b16 %v841
        %v1128 = vunpack.c.l.b16 %v842
        %v1129 = vunpack.c.h.b16 %v842
        %v1130 = vunpack.c.l.b16 %v843
        %v1131 = vunpack.c.h.b16 %v843
        %v1132 = vunpack.c.l.b16 %v844
        %v1133 = vunpack.c.h.b16 %v844
        %v1134 = vunpack.c.l.b16 %v845
        %v1135 = vunpack.c.h.b16 %v845
        %v1136 = vunpack.c.l.b16 %v846
        %v1137 = vunpack.c.h.b16 %v846
        %v1138 = vunpack.c.l.b16 %v847
        %v1139 = vunpack.c.h.b16 %v847
        %v1140 = vunpack.c.l.b16 %v848
        %v1141 = vunpack.c.h.b16 %v848
        %v1142 = vunpack.c.l.b16 %v849
        %v1143 = vunpack.c.h.b16 %v849
        %v1144 = vunpack.c.l.b16 %v850
        %v1145 = vunpack.c.h.b16 %v850
        %v1146 = vunpack.c.l.b16 %v851
        %v1147 = vunpack.c.h.b16 %v851
        %v1148 = vunpack.c.l.b16 %v852
        %v1149 = vunpack.c.h.b16 %v852
        %v1150 = vunpack.c.l.b16 %v853
        %v1151 = vunpack.c.h.b16 %v853
        %v1152 = vunpack.c.l.b16 %v854
        %v1153 = vunpack.c.h.b16 %v854
        %v1154 = vunpack.c.l.b16 %v855
        %v1155 = vunpack.c.h.b16 %v855
        %v1156 = vunpack.c.l.b16 %v856
        %v1157 = vunpack.c.h.b16 %v856
        %v1158 = vunpack.c.l.b16 %v857
        %v1159 = vunpack.c.h.b16 %v857
        %v1160 = vunpack.c.l.b16 %v858
        %v1161 = vunpack.c.h.b16 %v858
        %v1162 = vunpack.c.l.b16 %v859
        %v1163 = vunpack.c.h.b16 %v859
        %v1164 = vunpack.c.l.b16 %v860
        %v1165 = vunpack.c.h.b16 %v860
        %v1166 = vunpack.c.l.b16 %v861
        %v1167 = vunpack.c.h.b16 %v861
        %v1168 = vunpack.c.l.b16 %v862
        %v1169 = vunpack.c.h.b16 %v862
        %v1170 = vunpack.c.l.b16 %v863
        %v1171 = vunpack.c.h.b16 %v863
        %v1172 = vunpack.c.l.b16 %v864
        %v1173 = vunpack.c.h.b16 %v864
        %v1174 = vunpack.c.l.b16 %v865
        %v1175 = vunpack.c.h.b16 %v865
        %v1176 = vunpack.c.l.b16 %v866
        %v1177 = vunpack.c.h.b16 %v866
        %v1178 = vunpack.c.l.b16 %v867
        %v1179 = vunpack.c.h.b16 %v867
        %v1180 = vunpack.c.l.b16 %v868
        %v1181 = vunpack.c.h.b16 %v868
        %v1182 = vunpack.c.l.b16 %v869
        %v1183 = vunpack.c.h.b16 %v869
        %v1184 = vunpack.c.l.b16 %v870
        %v1185 = vunpack.c.h.b16 %v870
        %v1186 = vunpack.c.l.b16 %v871
        %v1187 = vunpack.c.h.b16 %v871
        %v1188 = vunpack.c.l.b16 %v872
        %v1189 = vunpack.c.h.b16 %v872
        %v1190 = vunpack.c.l.b16 %v873
        %v1191 = vunpack.c.h.b16 %v873
        %v1192 = vunpack.c.l.b16 %v874
        %v1193 = vunpack.c.h.b16 %v874
        %v1194 = vunpack.c.l.b16 %v875
        %v1195 = vunpack.c.h.b16 %v875
        %v1196 = vunpack.c.l.b16 %v876
        %v1197 = vunpack.c.h.b16 %v876
        %v1198 = vunpack.c.l.b16 %v877
        %v1199 = vunpack.c.h.b16 %v877
        %v1200 = vunpack.c.l.b16 %v878
        %v1201 = vunpack.c.h.b16 %v878
        %v1202 = vunpack.c.l.b16 %v879
        %v1203 = vunpack.c.h.b16 %v879
        %v1204 = vpack.c.b16 %v1008, %v1004
        %v1205 = vpack.c.b16 %v1009, %v1005
        %v1206 = vpack.c.b16 %v1010, %v1006
        %v1207 = vpack.c.b16 %v1011, %v1007
        %v1208 = vpack.c.b16 %v1016, %v1012
        %v1209 = vpack.c.b16 %v1017, %v1013
        %v1210 = vpack.c.b16 %v1018, %v1014
        %v1211 = vpack.c.b16 %v1019, %v1015
        %v1212 = vpack.c.b16 %v1024, %v1020
        %v1213 = vpack.c.b16 %v1025, %v1021
        %v1214 = vpack.c.b16 %v1026, %v1022
        %v1215 = vpack.c.b16 %v1027, %v1023
        %v1216 = vpack.c.b16 %v1032, %v1028
        %v1217 = vpack.c.b16 %v1033, %v1029
        %v1218 = vpack.c.b16 %v1034, %v1030
        %v1219 = vpack.c.b16 %v1035, %v1031
        %v1220 = vpack.c.b16 %v1040, %v1036
        %v1221 = vpack.c.b16 %v1041, %v1037
        %v1222 = vpack.c.b16 %v1042, %v1038
        %v1223 = vpack.c.b16 %v1043, %v1039
        %v1224 = vpack.c.b16 %v1048, %v1044
        %v1225 = vpack.c.b16 %v1049, %v1045
        %v1226 = vpack.c.b16 %v1050, %v1046
        %v1227 = vpack.c.b16 %v1051, %v1047
        %v1228 = vpack.c.b16 %v1056, %v1052
        %v1229 = vpack.c.b16 %v1057, %v1053
        %v1230 = vpack.c.b16 %v1058, %v1054
        %v1231 = vpack.c.b16 %v1059, %v1055
        %v1232 = vpack.c.b16 %v1064, %v1060
        %v1233 = vpack.c.b16 %v1065, %v1061
        %v1234 = vpack.c.b16 %v1066, %v1062
        %v1235 = vpack.c.b16 %v1067, %v1063
        %v1236 = vpack.c.b16 %v1072, %v1068
        %v1237 = vpack.c.b16 %v1073, %v1069
        %v1238 = vpack.c.b16 %v1074, %v1070
        %v1239 = vpack.c.b16 %v1075, %v1071
        %v1240 = vpack.c.b16 %v1080, %v1076
        %v1241 = vpack.c.b16 %v1081, %v1077
        %v1242 = vpack.c.b16 %v1082, %v1078
        %v1243 = vpack.c.b16 %v1083, %v1079
        %v1244 = vpack.c.b16 %v1088, %v1084
        %v1245 = vpack.c.b16 %v1089, %v1085
        %v1246 = vpack.c.b16 %v1090, %v1086
        %v1247 = vpack.c.b16 %v1091, %v1087
        %v1248 = vpack.c.b16 %v1096, %v1092
        %v1249 = vpack.c.b16 %v1097, %v1093
        %v1250 = vpack.c.b16 %v1098, %v1094
        %v1251 = vpack.c.b16 %v1099, %v1095
        %v1252 = vpack.c.b16 %v1104, %v1100
        %v1253 = vpack.c.b16 %v1105, %v1101
        %v1254 = vpack.c.b16 %v1106, %v1102
        %v1255 = vpack.c.b16 %v1107, %v1103
        %v1256 = vpack.c.b16 %v1112, %v1108
        %v1257 = vpack.c.b16 %v1113, %v1109
        %v1258 = vpack.c.b16 %v1114, %v1110
        %v1259 = vpack.c.b16 %v1115, %v1111
        %v1260 = vpack.c.b16 %v1120, %v1116
        %v1261 = vpack.c.b16 %v1121, %v1117
        %v1262 = vpack.c.b16 %v1122, %v1118
        %v1263 = vpack.c.b16 %v1123, %v1119
        %v1264 = vpack.c.b16 %v1128, %v1124
        %v1265 = vpack.c.b16 %v1129, %v1125
        %v1266 = vpack.c.b16 %v1130, %v1126
        %v1267 = vpack.c.b16 %v1131, %v1127
        %v1268 = vpack.c.b16 %v1136, %v1132
        %v1269 = vpack.c.b16 %v1137, %v1133
        %v1270 = vpack.c.b16 %v1138, %v1134
        %v1271 = vpack.c.b16 %v1139, %v1135
        %v1272 = vpack.c.b16 %v1144, %v1140
        %v1273 = vpack.c.b16 %v1145, %v1141
        %v1274 = vpack.c.b16 %v1146, %v1142
        %v1275 = vpack.c.b16 %v1147, %v1143
        %v1276 = vpack.c.b16 %v1152, %v1148
        %v1277 = vpack.c.b16 %v1153, %v1149
        %v1278 = vpack.c.b16 %v1154, %v1150
        %v1279 = vpack.c.b16 %v1155, %v1151
        %v1280 = vpack.c.b16 %v1160, %v1156
        %v1281 = vpack.c.b16 %v1161, %v1157
        %v1282 = vpack.c.b16 %v1162, %v1158
        %v1283 = vpack.c.b16 %v1163, %v1159
        %v1284 = vpack.c.b16 %v1168, %v1164
        %v1285 = vpack.c.b16 %v1169, %v1165
        %v1286 = vpack.c.b16 %v1170, %v1166
        %v1287 = vpack.c.b16 %v1171, %v1167
        %v1288 = vpack.c.b16 %v1176, %v1172
        %v1289 = vpack.c.b16 %v1177, %v1173
        %v1290 = vpack.c.b16 %v1178, %v1174
        %v1291 = vpack.c.b16 %v1179, %v1175
        %v1292 = vpack.c.b16 %v1184, %v1180
        %v1293 = vpack.c.b16 %v1185, %v1181
        %v1294 = vpack.c.b16 %v1186, %v1182
        %v1295 = vpack.c.b16 %v1187, %v1183
        %v1296 = vpack.c.b16 %v1192, %v1188
        %v1297 = vpack.c.b16 %v1193, %v1189
        %v1298 = vpack.c.b16 %v1194, %v1190
        %v1299 = vpack.c.b16 %v1195, %v1191
        %v1300 = vpack.c.b16 %v1200, %v1196
        %v1301 = vpack.c.b16 %v1201, %v1197
        %v1302 = vpack.c.b16 %v1202, %v1198
        %v1303 = vpack.c.b16 %v1203, %v1199
        %vm1404 = vcmask 130048
        %v1406 = vsel %vm1404, %v883, 0
        %v1409 = vsel %vm1404, %v887, 0
        %v1412 = vsel %vm1404, %v891, 0
        %v1415 = vsel %vm1404, %v895, 0
        %v1418 = vsel %vm1404, %v899, 0
        %v1421 = vsel %vm1404, %v903, 0
        %1423 = vmatprep.subr.bf16.mxu0 %v1205
        %1424 = vmatpush1.bf16.msra.mxu0 %v1204
        %1425 = vmatprep.subr.bf16.mxu0 %v1209
        %1426 = vmatpush1.bf16.msra.mxu0 %v1208
        %1427 = vmatprep.subr.bf16.mxu0 %v1213
        %1428 = vmatpush1.bf16.msra.mxu0 %v1212
        %1429 = vmatprep.subr.bf16.mxu0 %v1217
        %1430 = vmatpush1.bf16.msra.mxu0 %v1216
        %1431 = vmatprep.subr.bf16.mxu0 %v1221
        %1432 = vmatpush1.bf16.msra.mxu0 %v1220
        %1433 = vmatprep.subr.bf16.mxu0 %v1225
        %1434 = vmatpush1.bf16.msra.mxu0 %v1224
        %1435 = vmatprep.subr.bf16.mxu0 %v1229
        %1436 = vmatpush1.bf16.msra.mxu0 %v1228
        %1437 = vmatprep.subr.bf16.mxu0 %v1233
        %1438 = vmatpush1.bf16.msra.mxu0 %v1232
        %1439 = vmatprep.subr.bf16.mxu0 %v1237
        %1440 = vmatpush1.bf16.msra.mxu0 %v1236
        %1441 = vmatprep.subr.bf16.mxu0 %v1241
        %1442 = vmatpush1.bf16.msra.mxu0 %v1240
        %1443 = vmatprep.subr.bf16.mxu0 %v1245
        %1444 = vmatpush1.bf16.msra.mxu0 %v1244
        %1445 = vmatprep.subr.bf16.mxu0 %v1249
        %1446 = vmatpush1.bf16.msra.mxu0 %v1248
        %1447 = vmatprep.subr.bf16.mxu0 %v1253
        %1448 = vmatpush1.bf16.msra.mxu0 %v1252
        %1449 = vmatprep.subr.bf16.mxu0 %v1257
        %1450 = vmatpush1.bf16.msra.mxu0 %v1256
        %1451 = vmatprep.subr.bf16.mxu0 %v1261
        %1452 = vmatpush1.bf16.msra.mxu0 %v1260
        %1453 = vmatprep.subr.bf16.mxu0 %v1265
        %1454 = vmatpush1.bf16.msra.mxu0 %v1264
        %1455 = vmatprep.mubr.bf16.mxu0 %v881
        %1456 = vmatmul.mubr.bf16.gmra.mrb[0].mxu0 %v880
        %v1457 = vpop.f32.mrb[0].mxu0
        %v1458 = vadd.f32 0.0, %v1457
        %v1459 = vpop.f32.mrb[0].mxu0
        %v1460 = vadd.f32 0.0, %v1459
        %v1461 = vpop.f32.mrb[0].mxu0
        %v1462 = vadd.f32 0.0, %v1461
        %v1463 = vpop.f32.mrb[0].mxu0
        %v1464 = vadd.f32 0.0, %v1463
        %1465 = vmatprep.mubr.bf16.mxu0 %v885
        %1466 = vmatmul.mubr.bf16.gmra.mrb[0].mxu0 %v884
        %v1467 = vpop.f32.mrb[0].mxu0
        %v1468 = vadd.f32 0.0, %v1467
        %v1469 = vpop.f32.mrb[0].mxu0
        %v1470 = vadd.f32 0.0, %v1469
        %v1471 = vpop.f32.mrb[0].mxu0
        %v1472 = vadd.f32 0.0, %v1471
        %v1473 = vpop.f32.mrb[0].mxu0
        %v1474 = vadd.f32 0.0, %v1473
        %1475 = vmatprep.mubr.bf16.mxu0 %v889
        %1476 = vmatmul.mubr.bf16.gmra.mrb[0].mxu0 %v888
        %v1477 = vpop.f32.mrb[0].mxu0
        %v1478 = vadd.f32 0.0, %v1477
        %v1479 = vpop.f32.mrb[0].mxu0
        %v1480 = vadd.f32 0.0, %v1479
        %v1481 = vpop.f32.mrb[0].mxu0
        %v1482 = vadd.f32 0.0, %v1481
        %v1483 = vpop.f32.mrb[0].mxu0
        %v1484 = vadd.f32 0.0, %v1483
        %1485 = vmatprep.mubr.bf16.mxu0 %v893
        %1486 = vmatmul.mubr.bf16.gmra.mrb[0].mxu0 %v892
        %v1487 = vpop.f32.mrb[0].mxu0
        %v1488 = vadd.f32 0.0, %v1487
        %v1489 = vpop.f32.mrb[0].mxu0
        %v1490 = vadd.f32 0.0, %v1489
        %v1491 = vpop.f32.mrb[0].mxu0
        %v1492 = vadd.f32 0.0, %v1491
        %v1493 = vpop.f32.mrb[0].mxu0
        %v1494 = vadd.f32 0.0, %v1493
        %1495 = vmatprep.mubr.bf16.mxu0 %v897
        %1496 = vmatmul.mubr.bf16.gmra.mrb[0].mxu0 %v896
        %v1497 = vpop.f32.mrb[0].mxu0
        %v1498 = vadd.f32 0.0, %v1497
        %v1499 = vpop.f32.mrb[0].mxu0
        %v1500 = vadd.f32 0.0, %v1499
        %v1501 = vpop.f32.mrb[0].mxu0
        %v1502 = vadd.f32 0.0, %v1501
        %v1503 = vpop.f32.mrb[0].mxu0
        %v1504 = vadd.f32 0.0, %v1503
        %1505 = vmatprep.mubr.bf16.mxu0 %v901
        %1506 = vmatmul.mubr.bf16.gmra.mrb[0].mxu0 %v900
        %v1507 = vpop.f32.mrb[0].mxu0
        %v1508 = vadd.f32 0.0, %v1507
        %v1509 = vpop.f32.mrb[0].mxu0
        %v1510 = vadd.f32 0.0, %v1509
        %v1511 = vpop.f32.mrb[0].mxu0
        %v1512 = vpop.f32.mrb[0].mxu0
        %1513 = vdwg.mxu0
        %1514 = vmatprep.subr.bf16.mxu0 %v1269
        %1515 = vmatpush1.bf16.msra.mxu0 %v1268
        %1516 = vmatprep.subr.bf16.mxu0 %v1273
        %1517 = vmatpush1.bf16.msra.mxu0 %v1272
        %1518 = vmatprep.subr.bf16.mxu0 %v1277
        %1519 = vmatpush1.bf16.msra.mxu0 %v1276
        %1520 = vmatprep.subr.bf16.mxu0 %v1281
        %1521 = vmatpush1.bf16.msra.mxu0 %v1280
        %1522 = vmatprep.subr.bf16.mxu0 %v1285
        %1523 = vmatpush1.bf16.msra.mxu0 %v1284
        %1524 = vmatprep.subr.bf16.mxu0 %v1289
        %1525 = vmatpush1.bf16.msra.mxu0 %v1288
        %1526 = vmatprep.subr.bf16.mxu0 %v1293
        %1527 = vmatpush1.bf16.msra.mxu0 %v1292
        %1528 = vmatprep.subr.bf16.mxu0 %v1297
        %1529 = vmatpush1.bf16.msra.mxu0 %v1296
        %1530 = vmatprep.subr.bf16.mxu0 %v1301
        %1531 = vmatpush1.bf16.msra.mxu0 %v1300
        %1532 = vmatprep.subr.bf16.mxu0 0
        %1533 = vmatpush1.bf16.msra.mxu0 0
        %1534 = vmatprep.subr.bf16.mxu0 0
        %1535 = vmatpush1.bf16.msra.mxu0 0
        %1536 = vmatprep.subr.bf16.mxu0 0
        %1537 = vmatpush1.bf16.msra.mxu0 0
        %1538 = vmatprep.subr.bf16.mxu0 0
        %1539 = vmatpush1.bf16.msra.mxu0 0
        %1540 = vmatprep.subr.bf16.mxu0 0
        %1541 = vmatpush1.bf16.msra.mxu0 0
        %1542 = vmatprep.subr.bf16.mxu0 0
        %1543 = vmatpush1.bf16.msra.mxu0 0
        %1544 = vmatprep.subr.bf16.mxu0 0
        %1545 = vmatpush1.bf16.msra.mxu0 0
        %1546 = vmatprep.mubr.bf16.mxu0 %v1406
        %1547 = vmatmul.mubr.bf16.gmra.mrb[0].mxu0 %v882
        %v1548 = vpop.f32.mrb[0].mxu0
        %v1549 = vadd.f32 %v1458, %v1548
        %v1550 = vpop.f32.mrb[0].mxu0
        %v1551 = vadd.f32 %v1460, %v1550
        %v1552 = vpop.f32.mrb[0].mxu0
        %v1553 = vadd.f32 %v1462, %v1552
        %v1554 = vpop.f32.mrb[0].mxu0
        %v1555 = vadd.f32 %v1464, %v1554
        %1556 = vmatprep.mubr.bf16.mxu0 %v1409
        %1557 = vmatmul.mubr.bf16.gmra.mrb[0].mxu0 %v886
        %v1558 = vpop.f32.mrb[0].mxu0
        %v1559 = vadd.f32 %v1468, %v1558
        %v1560 = vpop.f32.mrb[0].mxu0
        %v1561 = vadd.f32 %v1470, %v1560
        %v1562 = vpop.f32.mrb[0].mxu0
        %v1563 = vadd.f32 %v1472, %v1562
        %v1564 = vpop.f32.mrb[0].mxu0
        %v1565 = vadd.f32 %v1474, %v1564
        %1566 = vmatprep.mubr.bf16.mxu0 %v1412
        %1567 = vmatmul.mubr.bf16.gmra.mrb[0].mxu0 %v890
        %v1568 = vpop.f32.mrb[0].mxu0
        %v1569 = vadd.f32 %v1478, %v1568
        %v1570 = vpop.f32.mrb[0].mxu0
        %v1571 = vadd.f32 %v1480, %v1570
        %v1572 = vpop.f32.mrb[0].mxu0
        %v1573 = vadd.f32 %v1482, %v1572
        %v1574 = vpop.f32.mrb[0].mxu0
        %v1575 = vadd.f32 %v1484, %v1574
        %1576 = vmatprep.mubr.bf16.mxu0 %v1415
        %1577 = vmatmul.mubr.bf16.gmra.mrb[0].mxu0 %v894
        %v1578 = vpop.f32.mrb[0].mxu0
        %v1579 = vadd.f32 %v1488, %v1578
        %v1580 = vpop.f32.mrb[0].mxu0
        %v1581 = vadd.f32 %v1490, %v1580
        %v1582 = vpop.f32.mrb[0].mxu0
        %v1583 = vadd.f32 %v1492, %v1582
        %v1584 = vpop.f32.mrb[0].mxu0
        %v1585 = vadd.f32 %v1494, %v1584
        %1586 = vmatprep.mubr.bf16.mxu0 %v1418
        %1587 = vmatmul.mubr.bf16.gmra.mrb[0].mxu0 %v898
        %v1588 = vpop.f32.mrb[0].mxu0
        %v1589 = vadd.f32 %v1498, %v1588
        %v1590 = vpop.f32.mrb[0].mxu0
        %v1591 = vadd.f32 %v1500, %v1590
        %v1592 = vpop.f32.mrb[0].mxu0
        %v1593 = vadd.f32 %v1502, %v1592
        %v1594 = vpop.f32.mrb[0].mxu0
        %v1595 = vadd.f32 %v1504, %v1594
        %1596 = vmatprep.mubr.bf16.mxu0 %v1421
        %1597 = vmatmul.mubr.bf16.gmra.mrb[0].mxu0 %v902
        %v1598 = vpop.f32.mrb[0].mxu0
        %v1599 = vadd.f32 %v1508, %v1598
        %v1600 = vpop.f32.mrb[0].mxu0
        %v1601 = vadd.f32 %v1510, %v1600
        %v1602 = vpop.f32.mrb[0].mxu0
        %v1603 = vpop.f32.mrb[0].mxu0
        %1604 = vdwg.mxu0
        %1605 = vmatprep.subr.bf16.mxu0 %v1207
        %1606 = vmatpush1.bf16.msra.mxu0 %v1206
        %1607 = vmatprep.subr.bf16.mxu0 %v1211
        %1608 = vmatpush1.bf16.msra.mxu0 %v1210
        %1609 = vmatprep.subr.bf16.mxu0 %v1215
        %1610 = vmatpush1.bf16.msra.mxu0 %v1214
        %1611 = vmatprep.subr.bf16.mxu0 %v1219
        %1612 = vmatpush1.bf16.msra.mxu0 %v1218
        %1613 = vmatprep.subr.bf16.mxu0 %v1223
        %1614 = vmatpush1.bf16.msra.mxu0 %v1222
        %1615 = vmatprep.subr.bf16.mxu0 %v1227
        %1616 = vmatpush1.bf16.msra.mxu0 %v1226
        %1617 = vmatprep.subr.bf16.mxu0 %v1231
        %1618 = vmatpush1.bf16.msra.mxu0 %v1230
        %1619 = vmatprep.subr.bf16.mxu0 %v1235
        %1620 = vmatpush1.bf16.msra.mxu0 %v1234
        %1621 = vmatprep.subr.bf16.mxu0 %v1239
        %1622 = vmatpush1.bf16.msra.mxu0 %v1238
        %1623 = vmatprep.subr.bf16.mxu0 %v1243
        %1624 = vmatpush1.bf16.msra.mxu0 %v1242
        %1625 = vmatprep.subr.bf16.mxu0 %v1247
        %1626 = vmatpush1.bf16.msra.mxu0 %v1246
        %1627 = vmatprep.subr.bf16.mxu0 %v1251
        %1628 = vmatpush1.bf16.msra.mxu0 %v1250
        %1629 = vmatprep.subr.bf16.mxu0 %v1255
        %1630 = vmatpush1.bf16.msra.mxu0 %v1254
        %1631 = vmatprep.subr.bf16.mxu0 %v1259
        %1632 = vmatpush1.bf16.msra.mxu0 %v1258
        %1633 = vmatprep.subr.bf16.mxu0 %v1263
        %1634 = vmatpush1.bf16.msra.mxu0 %v1262
        %1635 = vmatprep.subr.bf16.mxu0 %v1267
        %1636 = vmatpush1.bf16.msra.mxu0 %v1266
        %1637 = vmatprep.mubr.bf16.mxu0 %v881
        %1638 = vmatmul.mubr.bf16.gmra.mrb[0].mxu0 %v880
        %v1639 = vpop.f32.mrb[0].mxu0
        %v1640 = vadd.f32 0.0, %v1639
        %v1641 = vpop.f32.mrb[0].mxu0
        %v1642 = vadd.f32 0.0, %v1641
        %v1643 = vpop.f32.mrb[0].mxu0
        %v1644 = vadd.f32 0.0, %v1643
        %v1645 = vpop.f32.mrb[0].mxu0
        %v1646 = vadd.f32 0.0, %v1645
        %1647 = vmatprep.mubr.bf16.mxu0 %v885
        %1648 = vmatmul.mubr.bf16.gmra.mrb[0].mxu0 %v884
        %v1649 = vpop.f32.mrb[0].mxu0
        %v1650 = vadd.f32 0.0, %v1649
        %v1651 = vpop.f32.mrb[0].mxu0
        %v1652 = vadd.f32 0.0, %v1651
        %v1653 = vpop.f32.mrb[0].mxu0
        %v1654 = vadd.f32 0.0, %v1653
        %v1655 = vpop.f32.mrb[0].mxu0
        %v1656 = vadd.f32 0.0, %v1655
        %1657 = vmatprep.mubr.bf16.mxu0 %v889
        %1658 = vmatmul.mubr.bf16.gmra.mrb[0].mxu0 %v888
        %v1659 = vpop.f32.mrb[0].mxu0
        %v1660 = vadd.f32 0.0, %v1659
        %v1661 = vpop.f32.mrb[0].mxu0
        %v1662 = vadd.f32 0.0, %v1661
        %v1663 = vpop.f32.mrb[0].mxu0
        %v1664 = vadd.f32 0.0, %v1663
        %v1665 = vpop.f32.mrb[0].mxu0
        %v1666 = vadd.f32 0.0, %v1665
        %1667 = vmatprep.mubr.bf16.mxu0 %v893
        %1668 = vmatmul.mubr.bf16.gmra.mrb[0].mxu0 %v892
        %v1669 = vpop.f32.mrb[0].mxu0
        %v1670 = vadd.f32 0.0, %v1669
        %v1671 = vpop.f32.mrb[0].mxu0
        %v1672 = vadd.f32 0.0, %v1671
        %v1673 = vpop.f32.mrb[0].mxu0
        %v1674 = vadd.f32 0.0, %v1673
        %v1675 = vpop.f32.mrb[0].mxu0
        %v1676 = vadd.f32 0.0, %v1675
        %1677 = vmatprep.mubr.bf16.mxu0 %v897
        %1678 = vmatmul.mubr.bf16.gmra.mrb[0].mxu0 %v896
        %v1679 = vpop.f32.mrb[0].mxu0
        %v1680 = vadd.f32 0.0, %v1679
        %v1681 = vpop.f32.mrb[0].mxu0
        %v1682 = vadd.f32 0.0, %v1681
        %v1683 = vpop.f32.mrb[0].mxu0
        %v1684 = vadd.f32 0.0, %v1683
        %v1685 = vpop.f32.mrb[0].mxu0
        %v1686 = vadd.f32 0.0, %v1685
        %1687 = vmatprep.mubr.bf16.mxu0 %v901
        %1688 = vmatmul.mubr.bf16.gmra.mrb[0].mxu0 %v900
        %v1689 = vpop.f32.mrb[0].mxu0
        %v1690 = vadd.f32 0.0, %v1689
        %v1691 = vpop.f32.mrb[0].mxu0
        %v1692 = vadd.f32 0.0, %v1691
        %v1693 = vpop.f32.mrb[0].mxu0
        %v1694 = vpop.f32.mrb[0].mxu0
        %1695 = vdwg.mxu0
        %1696 = vmatprep.subr.bf16.mxu0 %v1271
        %1697 = vmatpush1.bf16.msra.mxu0 %v1270
        %1698 = vmatprep.subr.bf16.mxu0 %v1275
        %1699 = vmatpush1.bf16.msra.mxu0 %v1274
        %1700 = vmatprep.subr.bf16.mxu0 %v1279
        %1701 = vmatpush1.bf16.msra.mxu0 %v1278
        %1702 = vmatprep.subr.bf16.mxu0 %v1283
        %1703 = vmatpush1.bf16.msra.mxu0 %v1282
        %1704 = vmatprep.subr.bf16.mxu0 %v1287
        %1705 = vmatpush1.bf16.msra.mxu0 %v1286
        %1706 = vmatprep.subr.bf16.mxu0 %v1291
        %1707 = vmatpush1.bf16.msra.mxu0 %v1290
        %1708 = vmatprep.subr.bf16.mxu0 %v1295
        %1709 = vmatpush1.bf16.msra.mxu0 %v1294
        %1710 = vmatprep.subr.bf16.mxu0 %v1299
        %1711 = vmatpush1.bf16.msra.mxu0 %v1298
        %1712 = vmatprep.subr.bf16.mxu0 %v1303
        %1713 = vmatpush1.bf16.msra.mxu0 %v1302
        %1714 = vmatprep.subr.bf16.mxu0 0
        %1715 = vmatpush1.bf16.msra.mxu0 0
        %1716 = vmatprep.subr.bf16.mxu0 0
        %1717 = vmatpush1.bf16.msra.mxu0 0
        %1718 = vmatprep.subr.bf16.mxu0 0
        %1719 = vmatpush1.bf16.msra.mxu0 0
        %1720 = vmatprep.subr.bf16.mxu0 0
        %1721 = vmatpush1.bf16.msra.mxu0 0
        %1722 = vmatprep.subr.bf16.mxu0 0
        %1723 = vmatpush1.bf16.msra.mxu0 0
        %1724 = vmatprep.subr.bf16.mxu0 0
        %1725 = vmatpush1.bf16.msra.mxu0 0
        %1726 = vmatprep.subr.bf16.mxu0 0
        %1727 = vmatpush1.bf16.msra.mxu0 0
        %1728 = vmatprep.mubr.bf16.mxu0 %v1406
        %1729 = vmatmul.mubr.bf16.gmra.mrb[0].mxu0 %v882
        %v1730 = vpop.f32.mrb[0].mxu0
        %v1731 = vadd.f32 %v1640, %v1730
        %v1732 = vpop.f32.mrb[0].mxu0
        %v1733 = vadd.f32 %v1642, %v1732
        %v1734 = vpop.f32.mrb[0].mxu0
        %v1735 = vadd.f32 %v1644, %v1734
        %v1736 = vpop.f32.mrb[0].mxu0
        %v1737 = vadd.f32 %v1646, %v1736
        %1738 = vmatprep.mubr.bf16.mxu0 %v1409
        %1739 = vmatmul.mubr.bf16.gmra.mrb[0].mxu0 %v886
        %v1740 = vpop.f32.mrb[0].mxu0
        %v1741 = vadd.f32 %v1650, %v1740
        %v1742 = vpop.f32.mrb[0].mxu0
        %v1743 = vadd.f32 %v1652, %v1742
        %v1744 = vpop.f32.mrb[0].mxu0
        %v1745 = vadd.f32 %v1654, %v1744
        %v1746 = vpop.f32.mrb[0].mxu0
        %v1747 = vadd.f32 %v1656, %v1746
        %1748 = vmatprep.mubr.bf16.mxu0 %v1412
        %1749 = vmatmul.mubr.bf16.gmra.mrb[0].mxu0 %v890
        %v1750 = vpop.f32.mrb[0].mxu0
        %v1751 = vadd.f32 %v1660, %v1750
        %v1752 = vpop.f32.mrb[0].mxu0
        %v1753 = vadd.f32 %v1662, %v1752
        %v1754 = vpop.f32.mrb[0].mxu0
        %v1755 = vadd.f32 %v1664, %v1754
        %v1756 = vpop.f32.mrb[0].mxu0
        %v1757 = vadd.f32 %v1666, %v1756
        %1758 = vmatprep.mubr.bf16.mxu0 %v1415
        %1759 = vmatmul.mubr.bf16.gmra.mrb[0].mxu0 %v894
        %v1760 = vpop.f32.mrb[0].mxu0
        %v1761 = vadd.f32 %v1670, %v1760
        %v1762 = vpop.f32.mrb[0].mxu0
        %v1763 = vadd.f32 %v1672, %v1762
        %v1764 = vpop.f32.mrb[0].mxu0
        %v1765 = vadd.f32 %v1674, %v1764
        %v1766 = vpop.f32.mrb[0].mxu0
        %v1767 = vadd.f32 %v1676, %v1766
        %1768 = vmatprep.mubr.bf16.mxu0 %v1418
        %1769 = vmatmul.mubr.bf16.gmra.mrb[0].mxu0 %v898
        %v1770 = vpop.f32.mrb[0].mxu0
        %v1771 = vadd.f32 %v1680, %v1770
        %v1772 = vpop.f32.mrb[0].mxu0
        %v1773 = vadd.f32 %v1682, %v1772
        %v1774 = vpop.f32.mrb[0].mxu0
        %v1775 = vadd.f32 %v1684, %v1774
        %v1776 = vpop.f32.mrb[0].mxu0
        %v1777 = vadd.f32 %v1686, %v1776
        %1778 = vmatprep.mubr.bf16.mxu0 %v1421
        %1779 = vmatmul.mubr.bf16.gmra.mrb[0].mxu0 %v902
        %v1780 = vpop.f32.mrb[0].mxu0
        %v1781 = vadd.f32 %v1690, %v1780
        %v1782 = vpop.f32.mrb[0].mxu0
        %v1783 = vadd.f32 %v1692, %v1782
        %v1784 = vpop.f32.mrb[0].mxu0
        %v1785 = vpop.f32.mrb[0].mxu0
        %1786 = vdwg.mxu0
        %v1787 = vmul.f32 %v1549, %v1549
        %v1788 = vmul.f32 %v1551, %v1551
        %v1789 = vmul.f32 %v1553, %v1553
        %v1790 = vmul.f32 %v1555, %v1555
        %v1791 = vmul.f32 %v1559, %v1559
        %v1792 = vmul.f32 %v1561, %v1561
        %v1793 = vmul.f32 %v1563, %v1563
        %v1794 = vmul.f32 %v1565, %v1565
        %v1795 = vmul.f32 %v1569, %v1569
        %v1796 = vmul.f32 %v1571, %v1571
        %v1797 = vmul.f32 %v1573, %v1573
        %v1798 = vmul.f32 %v1575, %v1575
        %v1799 = vmul.f32 %v1579, %v1579
        %v1800 = vmul.f32 %v1581, %v1581
        %v1801 = vmul.f32 %v1583, %v1583
        %v1802 = vmul.f32 %v1585, %v1585
        %v1803 = vmul.f32 %v1589, %v1589
        %v1804 = vmul.f32 %v1591, %v1591
        %v1805 = vmul.f32 %v1593, %v1593
        %v1806 = vmul.f32 %v1595, %v1595
        %v1807 = vmul.f32 %v1599, %v1599
        %v1808 = vmul.f32 %v1601, %v1601
        %v1809 = vmul.f32 %v1731, %v1731
        %v1810 = vmul.f32 %v1733, %v1733
        %v1811 = vmul.f32 %v1735, %v1735
        %v1812 = vmul.f32 %v1737, %v1737
        %v1813 = vmul.f32 %v1741, %v1741
        %v1814 = vmul.f32 %v1743, %v1743
        %v1815 = vmul.f32 %v1745, %v1745
        %v1816 = vmul.f32 %v1747, %v1747
        %v1817 = vmul.f32 %v1751, %v1751
        %v1818 = vmul.f32 %v1753, %v1753
        %v1819 = vmul.f32 %v1755, %v1755
        %v1820 = vmul.f32 %v1757, %v1757
        %v1821 = vmul.f32 %v1761, %v1761
        %v1822 = vmul.f32 %v1763, %v1763
        %v1823 = vmul.f32 %v1765, %v1765
        %v1824 = vmul.f32 %v1767, %v1767
        %v1825 = vmul.f32 %v1771, %v1771
        %v1826 = vmul.f32 %v1773, %v1773
        %v1827 = vmul.f32 %v1775, %v1775
        %v1828 = vmul.f32 %v1777, %v1777
        %v1829 = vmul.f32 %v1781, %v1781
        %v1830 = vmul.f32 %v1783, %v1783
        %v1831 = vadd.f32 %v1787, %v1809
        %v1832 = vadd.f32 %v1788, %v1810
        %v1833 = vadd.f32 %v1789, %v1811
        %v1834 = vadd.f32 %v1790, %v1812
        %v1835 = vadd.f32 %v1791, %v1813
        %v1836 = vadd.f32 %v1792, %v1814
        %v1837 = vadd.f32 %v1793, %v1815
        %v1838 = vadd.f32 %v1794, %v1816
        %v1839 = vadd.f32 %v1795, %v1817
        %v1840 = vadd.f32 %v1796, %v1818
        %v1841 = vadd.f32 %v1797, %v1819
        %v1842 = vadd.f32 %v1798, %v1820
        %v1843 = vadd.f32 %v1799, %v1821
        %v1844 = vadd.f32 %v1800, %v1822
        %v1845 = vadd.f32 %v1801, %v1823
        %v1846 = vadd.f32 %v1802, %v1824
        %v1847 = vadd.f32 %v1803, %v1825
        %v1848 = vadd.f32 %v1804, %v1826
        %v1849 = vadd.f32 %v1805, %v1827
        %v1850 = vadd.f32 %v1806, %v1828
        %v1851 = vadd.f32 %v1807, %v1829
        %v1852 = vadd.f32 %v1808, %v1830
        %vm1875 = vcmask 1046528
        %v1876 = vrot.slane %v1831, 1
        %v1877 = vrot.slane %v1833, 1
        %v1878 = vsel %vm1875, %v1876, %v1877
        %v1879 = vrot.slane %v1832, 1
        %v1880 = vrot.slane %v1834, 1
        %v1881 = vsel %vm1875, %v1879, %v1880
        %v1882 = vrot.slane %v1835, 1
        %v1883 = vsel %vm1875, %v1877, %v1882
        %v1884 = vrot.slane %v1836, 1
        %v1885 = vsel %vm1875, %v1880, %v1884
        %v1886 = vrot.slane %v1837, 1
        %v1887 = vsel %vm1875, %v1882, %v1886
        %v1888 = vrot.slane %v1838, 1
        %v1889 = vsel %vm1875, %v1884, %v1888
        %v1890 = vrot.slane %v1839, 1
        %v1891 = vsel %vm1875, %v1886, %v1890
        %v1892 = vrot.slane %v1840, 1
        %v1893 = vsel %vm1875, %v1888, %v1892
        %v1894 = vrot.slane %v1841, 1
        %v1895 = vsel %vm1875, %v1890, %v1894
        %v1896 = vrot.slane %v1842, 1
        %v1897 = vsel %vm1875, %v1892, %v1896
        %v1898 = vrot.slane %v1843, 1
        %v1899 = vsel %vm1875, %v1894, %v1898
        %v1900 = vrot.slane %v1844, 1
        %v1901 = vsel %vm1875, %v1896, %v1900
        %v1902 = vrot.slane %v1845, 1
        %v1903 = vsel %vm1875, %v1898, %v1902
        %v1904 = vrot.slane %v1846, 1
        %v1905 = vsel %vm1875, %v1900, %v1904
        %v1906 = vrot.slane %v1847, 1
        %v1907 = vsel %vm1875, %v1902, %v1906
        %v1908 = vrot.slane %v1848, 1
        %v1909 = vsel %vm1875, %v1904, %v1908
        %v1910 = vrot.slane %v1849, 1
        %v1911 = vsel %vm1875, %v1906, %v1910
        %v1912 = vrot.slane %v1850, 1
        %v1913 = vsel %vm1875, %v1908, %v1912
        %v1914 = vrot.slane %v1851, 1
        %v1915 = vsel %vm1875, %v1910, %v1914
        %v1916 = vrot.slane %v1852, 1
        %v1917 = vsel %vm1875, %v1912, %v1916
        %v1938 = vld [vmem:[%s2] sm:$0xf]
        %v1939 = vld [vmem:[%s2 + $0x4] sm:$0xf]
        %v1940 = vld [vmem:[%s2 + $0x8] sm:$0xf]
        %v1941 = vld [vmem:[%s2 + $0xc] sm:$0xf]
        %v1942 = vld [vmem:[%s2 + $0x10] sm:$0xf]
        %v1943 = vpack.c.bf16 %v1833, %v1831
        %v1944 = vpack.c.bf16 %v1834, %v1832
        %v1945 = vpack.c.bf16 %v1883, %v1878
        %v1946 = vpack.c.bf16 %v1885, %v1881
        %v1947 = vpack.c.bf16 %v1837, %v1835
        %v1948 = vpack.c.bf16 %v1838, %v1836
        %v1949 = vpack.c.bf16 %v1891, %v1887
        %v1950 = vpack.c.bf16 %v1893, %v1889
        %v1951 = vpack.c.bf16 %v1841, %v1839
        %v1952 = vpack.c.bf16 %v1842, %v1840
        %v1953 = vpack.c.bf16 %v1899, %v1895
        %v1954 = vpack.c.bf16 %v1901, %v1897
        %v1955 = vpack.c.bf16 %v1845, %v1843
        %v1956 = vpack.c.bf16 %v1846, %v1844
        %v1957 = vpack.c.bf16 %v1907, %v1903
        %v1958 = vpack.c.bf16 %v1909, %v1905
        %v1959 = vpack.c.bf16 %v1849, %v1847
        %v1960 = vpack.c.bf16 %v1850, %v1848
        %v1961 = vpack.c.bf16 %v1915, %v1911
        %v1962 = vpack.c.bf16 %v1917, %v1913
        %v1963 = vpack.c.bf16 %v1851, %v1851
        %v1964 = vpack.c.bf16 %v1852, %v1852
        %v1965 = vpack.c.bf16 0.0, 0.0
        %v1971 = vunpack.c.l.b16 %v1938
        %v1972 = vunpack.c.l.b16 %v1939
        %v1973 = vunpack.c.l.b16 %v1940
        %v1974 = vunpack.c.l.b16 %v1941
        %v1975 = vunpack.c.l.b16 %v1942
        %v1976 = vpack.c.b16 %v1972, %v1971
        %v1977 = vpack.c.b16 %v1974, %v1973
        %v1978 = vpack.c.b16 %v1975, %v1975
        %vm1979 = vcmask 662528
        %v1981 = vsel %vm1979, %v1976, 0
        %v1984 = vsel %vm1979, %v1977, 0
        %v1987 = vsel %vm1979, %v1978, 0
        %vm1989 = vcmask 1040384
        %v1990 = vsel 0, 4294967295, 65535
        %v1991 = vsel %vm1989, %v1990, 0
        %v1993 = vand.u32 %v1963, %v1991
        %v1996 = vand.u32 %v1964, %v1991
        %v1999 = vand.u32 %v1965, %v1991
        %2001 = vmatprep.subr.bf16.mxu0 %v1944
        %2002 = vmatpush1.bf16.msra.mxu0 %v1943
        %2003 = vmatprep.subr.bf16.mxu0 %v1948
        %2004 = vmatpush1.bf16.msra.mxu0 %v1947
        %2005 = vmatprep.subr.bf16.mxu0 %v1952
        %2006 = vmatpush1.bf16.msra.mxu0 %v1951
        %2007 = vmatprep.subr.bf16.mxu0 %v1956
        %2008 = vmatpush1.bf16.msra.mxu0 %v1955
        %2009 = vmatprep.subr.bf16.mxu0 %v1960
        %2010 = vmatpush1.bf16.msra.mxu0 %v1959
        %2011 = vmatprep.subr.bf16.mxu0 %v1996
        %2012 = vmatpush1.bf16.msra.mxu0 %v1993
        %2013 = vmatprep.subr.bf16.mxu0 0
        %2014 = vmatpush1.bf16.msra.mxu0 0
        %2015 = vmatprep.subr.bf16.mxu0 0
        %2016 = vmatpush1.bf16.msra.mxu0 0
        %2017 = vmatprep.subr.bf16.mxu0 0
        %2018 = vmatpush1.bf16.msra.mxu0 0
        %2019 = vmatprep.subr.bf16.mxu0 0
        %2020 = vmatpush1.bf16.msra.mxu0 0
        %2021 = vmatprep.subr.bf16.mxu0 0
        %2022 = vmatpush1.bf16.msra.mxu0 0
        %2023 = vmatprep.subr.bf16.mxu0 0
        %2024 = vmatpush1.bf16.msra.mxu0 0
        %2025 = vmatprep.subr.bf16.mxu0 0
        %2026 = vmatpush1.bf16.msra.mxu0 0
        %2027 = vmatprep.subr.bf16.mxu0 0
        %2028 = vmatpush1.bf16.msra.mxu0 0
        %2029 = vmatprep.subr.bf16.mxu0 0
        %2030 = vmatpush1.bf16.msra.mxu0 0
        %2031 = vmatprep.subr.bf16.mxu0 0
        %2032 = vmatpush1.bf16.msra.mxu0 0
        %2033 = vmatprep.mubr.bf16.mxu0 0
        %2034 = vmatmul.mubr.bf16.gmra.mrb[0].mxu0 %v1981
        %v2035 = vpop.f32.mrb[0].mxu0
        %v2036 = vadd.f32 0.0, %v2035
        %v2037 = vpop.f32.mrb[0].mxu0
        %v2038 = vadd.f32 0.0, %v2037
        %v2039 = vpop.f32.mrb[0].mxu0
        %v2040 = vadd.f32 0.0, %v2039
        %v2041 = vpop.f32.mrb[0].mxu0
        %v2042 = vadd.f32 0.0, %v2041
        %2043 = vmatprep.mubr.bf16.mxu0 0
        %2044 = vmatmul.mubr.bf16.gmra.mrb[0].mxu0 %v1984
        %v2045 = vpop.f32.mrb[0].mxu0
        %v2046 = vadd.f32 0.0, %v2045
        %v2047 = vpop.f32.mrb[0].mxu0
        %v2048 = vadd.f32 0.0, %v2047
        %v2049 = vpop.f32.mrb[0].mxu0
        %v2050 = vadd.f32 0.0, %v2049
        %v2051 = vpop.f32.mrb[0].mxu0
        %v2052 = vadd.f32 0.0, %v2051
        %2053 = vmatprep.mubr.bf16.mxu0 0
        %2054 = vmatmul.mubr.bf16.gmra.mrb[0].mxu0 %v1987
        %v2055 = vpop.f32.mrb[0].mxu0
        %v2056 = vadd.f32 0.0, %v2055
        %v2057 = vpop.f32.mrb[0].mxu0
        %v2058 = vadd.f32 0.0, %v2057
        %v2059 = vpop.f32.mrb[0].mxu0
        %v2060 = vpop.f32.mrb[0].mxu0
        %2061 = vdwg.mxu0
        %2062 = vmatprep.subr.bf16.mxu0 %v1946
        %2063 = vmatpush1.bf16.msra.mxu0 %v1945
        %2064 = vmatprep.subr.bf16.mxu0 %v1950
        %2065 = vmatpush1.bf16.msra.mxu0 %v1949
        %2066 = vmatprep.subr.bf16.mxu0 %v1954
        %2067 = vmatpush1.bf16.msra.mxu0 %v1953
        %2068 = vmatprep.subr.bf16.mxu0 %v1958
        %2069 = vmatpush1.bf16.msra.mxu0 %v1957
        %2070 = vmatprep.subr.bf16.mxu0 %v1962
        %2071 = vmatpush1.bf16.msra.mxu0 %v1961
        %2072 = vmatprep.subr.bf16.mxu0 %v1999
        %2073 = vmatpush1.bf16.msra.mxu0 %v1999
        %2074 = vmatprep.subr.bf16.mxu0 0
        %2075 = vmatpush1.bf16.msra.mxu0 0
        %2076 = vmatprep.subr.bf16.mxu0 0
        %2077 = vmatpush1.bf16.msra.mxu0 0
        %2078 = vmatprep.subr.bf16.mxu0 0
        %2079 = vmatpush1.bf16.msra.mxu0 0
        %2080 = vmatprep.subr.bf16.mxu0 0
        %2081 = vmatpush1.bf16.msra.mxu0 0
        %2082 = vmatprep.subr.bf16.mxu0 0
        %2083 = vmatpush1.bf16.msra.mxu0 0
        %2084 = vmatprep.subr.bf16.mxu0 0
        %2085 = vmatpush1.bf16.msra.mxu0 0
        %2086 = vmatprep.subr.bf16.mxu0 0
        %2087 = vmatpush1.bf16.msra.mxu0 0
        %2088 = vmatprep.subr.bf16.mxu0 0
        %2089 = vmatpush1.bf16.msra.mxu0 0
        %2090 = vmatprep.subr.bf16.mxu0 0
        %2091 = vmatpush1.bf16.msra.mxu0 0
        %2092 = vmatprep.subr.bf16.mxu0 0
        %2093 = vmatpush1.bf16.msra.mxu0 0
        %2094 = vmatprep.mubr.bf16.mxu0 0
        %2095 = vmatmul.mubr.bf16.gmra.mrb[0].mxu0 %v1981
        %v2096 = vpop.f32.mrb[0].mxu0
        %v2097 = vadd.f32 0.0, %v2096
        %v2098 = vpop.f32.mrb[0].mxu0
        %v2099 = vadd.f32 0.0, %v2098
        %v2100 = vpop.f32.mrb[0].mxu0
        %v2101 = vadd.f32 0.0, %v2100
        %v2102 = vpop.f32.mrb[0].mxu0
        %v2103 = vadd.f32 0.0, %v2102
        %2104 = vmatprep.mubr.bf16.mxu0 0
        %2105 = vmatmul.mubr.bf16.gmra.mrb[0].mxu0 %v1984
        %v2106 = vpop.f32.mrb[0].mxu0
        %v2107 = vadd.f32 0.0, %v2106
        %v2108 = vpop.f32.mrb[0].mxu0
        %v2109 = vadd.f32 0.0, %v2108
        %v2110 = vpop.f32.mrb[0].mxu0
        %v2111 = vadd.f32 0.0, %v2110
        %v2112 = vpop.f32.mrb[0].mxu0
        %v2113 = vadd.f32 0.0, %v2112
        %2114 = vmatprep.mubr.bf16.mxu0 0
        %2115 = vmatmul.mubr.bf16.gmra.mrb[0].mxu0 %v1987
        %v2116 = vpop.f32.mrb[0].mxu0
        %v2117 = vadd.f32 0.0, %v2116
        %v2118 = vpop.f32.mrb[0].mxu0
        %v2119 = vadd.f32 0.0, %v2118
        %v2120 = vpop.f32.mrb[0].mxu0
        %v2121 = vpop.f32.mrb[0].mxu0
        %2122 = vdwg.mxu0
        %v2123 = vld [vmem:[%s6] sm:$0xff]
        %v2124 = vld [vmem:[%s6 + $0x8] sm:$0xff]
        %v2125 = vld [vmem:[%s6 + $0x10] sm:$0xff]
        %v2126 = vld [vmem:[%s6 + $0x18] sm:$0xff]
        %v2127 = vld [vmem:[%s6 + $0x20] sm:$0xff]
        %v2128 = vld [vmem:[%s6 + $0x28] sm:$0xff]
        %v2129 = vld [vmem:[%s6 + $0x30] sm:$0xff]
        %v2130 = vld [vmem:[%s6 + $0x38] sm:$0xff]
        %v2131 = vld [vmem:[%s6 + $0x40] sm:$0xff]
        %v2132 = vld [vmem:[%s6 + $0x48] sm:$0xff]
        %v2133 = vld [vmem:[%s6 + $0x50] sm:$0xff]
        %v2134 = vld [vmem:[%s6 + $0x58] sm:$0xff]
        %v2135 = vld [vmem:[%s6 + $0x60] sm:$0xff]
        %v2136 = vld [vmem:[%s6 + $0x68] sm:$0xff]
        %v2137 = vld [vmem:[%s6 + $0x70] sm:$0xff]
        %v2138 = vld [vmem:[%s6 + $0x78] sm:$0xff]
        %v2139 = vld [vmem:[%s6 + $0x80] sm:$0xff]
        %v2140 = vld [vmem:[%s6 + $0x88] sm:$0xff]
        %v2141 = vld [vmem:[%s6 + $0x90] sm:$0xff]
        %v2142 = vld [vmem:[%s6 + $0x98] sm:$0xff]
        %v2143 = vld [vmem:[%s6 + $0xa0] sm:$0xff]
        %v2144 = vld [vmem:[%s6 + $0xa8] sm:$0xff]
        %v2145 = vld [vmem:[%s6 + $0xb0] sm:$0xff]
        %v2146 = vld [vmem:[%s6 + $0xb8] sm:$0xff]
        %v2147 = vld [vmem:[%s6 + $0xc0] sm:$0xff]
        %v2148 = vld [vmem:[%s6 + $0xc8] sm:$0xff]
        %v2149 = vld [vmem:[%s6 + $0xd0] sm:$0xff]
        %v2150 = vld [vmem:[%s6 + $0xd8] sm:$0xff]
        %v2151 = vld [vmem:[%s6 + $0xe0] sm:$0xff]
        %v2152 = vld [vmem:[%s6 + $0xe8] sm:$0xff]
        %v2153 = vld [vmem:[%s6 + $0xf0] sm:$0xff]
        %v2154 = vld [vmem:[%s6 + $0xf8] sm:$0xff]
        %v2155 = vld [vmem:[%s6 + $0x100] sm:$0xff]
        %v2156 = vld [vmem:[%s6 + $0x108] sm:$0xff]
        %v2157 = vld [vmem:[%s6 + $0x110] sm:$0xff]
        %v2158 = vld [vmem:[%s6 + $0x118] sm:$0xff]
        %v2159 = vld [vmem:[%s6 + $0x120] sm:$0xff]
        %v2160 = vld [vmem:[%s6 + $0x128] sm:$0xff]
        %v2161 = vld [vmem:[%s6 + $0x130] sm:$0xff]
        %v2162 = vld [vmem:[%s6 + $0x138] sm:$0xff]
        %v2163 = vld [vmem:[%s6 + $0x140] sm:$0xff]
        %v2164 = vld [vmem:[%s6 + $0x148] sm:$0xff]
        %v2165 = vld [vmem:[%s6 + $0x150] sm:$0xff]
        %v2166 = vld [vmem:[%s6 + $0x158] sm:$0xff]
        %v2167 = vld [vmem:[%s6 + $0x160] sm:$0xff]
        %v2168 = vld [vmem:[%s6 + $0x168] sm:$0xff]
        %v2169 = vld [vmem:[%s6 + $0x170] sm:$0xff]
        %v2170 = vld [vmem:[%s6 + $0x178] sm:$0xff]
        %v2171 = vld [vmem:[%s6 + $0x180] sm:$0xff]
        %v2172 = vld [vmem:[%s6 + $0x188] sm:$0xff]
        %v2173 = vld [vmem:[%s6 + $0x190] sm:$0xff]
        %v2174 = vld [vmem:[%s6 + $0x198] sm:$0xff]
        %v2175 = vld [vmem:[%s6 + $0x1a0] sm:$0xff]
        %v2176 = vld [vmem:[%s6 + $0x1a8] sm:$0xff]
        %v2177 = vld [vmem:[%s6 + $0x1b0] sm:$0xff]
        %v2178 = vld [vmem:[%s6 + $0x1b8] sm:$0xff]
        %v2179 = vld [vmem:[%s6 + $0x1c0] sm:$0xff]
        %v2180 = vld [vmem:[%s6 + $0x1c8] sm:$0xff]
        %v2181 = vld [vmem:[%s6 + $0x1d0] sm:$0xff]
        %v2182 = vld [vmem:[%s6 + $0x1d8] sm:$0xff]
        %v2183 = vld [vmem:[%s6 + $0x1e0] sm:$0xff]
        %v2184 = vld [vmem:[%s6 + $0x1e8] sm:$0xff]
        %v2185 = vld [vmem:[%s6 + $0x1f0] sm:$0xff]
        %v2186 = vld [vmem:[%s6 + $0x1f8] sm:$0xff]
        %v2187 = vpack.c.bf16 %v2040, %v2036
        %v2188 = vpack.c.bf16 %v2042, %v2038
        %v2189 = vpack.c.bf16 %v2101, %v2097
        %v2190 = vpack.c.bf16 %v2103, %v2099
        %v2191 = vpack.c.bf16 %v2050, %v2046
        %v2192 = vpack.c.bf16 %v2052, %v2048
        %v2193 = vpack.c.bf16 %v2111, %v2107
        %v2194 = vpack.c.bf16 %v2113, %v2109
        %v2195 = vpack.c.bf16 %v2056, %v2056
        %v2196 = vpack.c.bf16 %v2058, %v2058
        %v2197 = vpack.c.bf16 %v2117, %v2117
        %v2198 = vpack.c.bf16 %v2119, %v2119
        %v2199 = vld [vmem:[%s7] sm:$0x3]
        %v2201 = vlaneseq
        %v2202 = vshrl.u32 %v2201, 7
        %v2203 = vsub.s32 0, %v2202
        %v2204 = vrot.slane %v2199, %v2203
        %v2205 = vlaneseq
        %v2206 = vshrl.u32 %v2205, 7
        %v2207 = vsub.s32 1, %v2206
        %v2208 = vrot.slane %v2199, %v2207
        %v2275 = vunpack.c.l.b16 %v2123
        %v2276 = vunpack.c.h.b16 %v2123
        %v2277 = vunpack.c.l.b16 %v2124
        %v2278 = vunpack.c.h.b16 %v2124
        %v2279 = vunpack.c.l.b16 %v2125
        %v2280 = vunpack.c.h.b16 %v2125
        %v2281 = vunpack.c.l.b16 %v2126
        %v2282 = vunpack.c.h.b16 %v2126
        %v2283 = vunpack.c.l.b16 %v2127
        %v2284 = vunpack.c.h.b16 %v2127
        %v2285 = vunpack.c.l.b16 %v2128
        %v2286 = vunpack.c.h.b16 %v2128
        %v2287 = vunpack.c.l.b16 %v2129
        %v2288 = vunpack.c.h.b16 %v2129
        %v2289 = vunpack.c.l.b16 %v2130
        %v2290 = vunpack.c.h.b16 %v2130
        %v2291 = vunpack.c.l.b16 %v2131
        %v2292 = vunpack.c.h.b16 %v2131
        %v2293 = vunpack.c.l.b16 %v2132
        %v2294 = vunpack.c.h.b16 %v2132
        %v2295 = vunpack.c.l.b16 %v2133
        %v2296 = vunpack.c.h.b16 %v2133
        %v2297 = vunpack.c.l.b16 %v2134
        %v2298 = vunpack.c.h.b16 %v2134
        %v2299 = vunpack.c.l.b16 %v2135
        %v2300 = vunpack.c.h.b16 %v2135
        %v2301 = vunpack.c.l.b16 %v2136
        %v2302 = vunpack.c.h.b16 %v2136
        %v2303 = vunpack.c.l.b16 %v2137
        %v2304 = vunpack.c.h.b16 %v2137
        %v2305 = vunpack.c.l.b16 %v2138
        %v2306 = vunpack.c.h.b16 %v2138
        %v2307 = vunpack.c.l.b16 %v2139
        %v2308 = vunpack.c.h.b16 %v2139
        %v2309 = vunpack.c.l.b16 %v2140
        %v2310 = vunpack.c.h.b16 %v2140
        %v2311 = vunpack.c.l.b16 %v2141
        %v2312 = vunpack.c.h.b16 %v2141
        %v2313 = vunpack.c.l.b16 %v2142
        %v2314 = vunpack.c.h.b16 %v2142
        %v2315 = vunpack.c.l.b16 %v2143
        %v2316 = vunpack.c.h.b16 %v2143
        %v2317 = vunpack.c.l.b16 %v2144
        %v2318 = vunpack.c.h.b16 %v2144
        %v2319 = vunpack.c.l.b16 %v2145
        %v2320 = vunpack.c.h.b16 %v2145
        %v2321 = vunpack.c.l.b16 %v2146
        %v2322 = vunpack.c.h.b16 %v2146
        %v2323 = vunpack.c.l.b16 %v2147
        %v2324 = vunpack.c.h.b16 %v2147
        %v2325 = vunpack.c.l.b16 %v2148
        %v2326 = vunpack.c.h.b16 %v2148
        %v2327 = vunpack.c.l.b16 %v2149
        %v2328 = vunpack.c.h.b16 %v2149
        %v2329 = vunpack.c.l.b16 %v2150
        %v2330 = vunpack.c.h.b16 %v2150
        %v2331 = vunpack.c.l.b16 %v2151
        %v2332 = vunpack.c.h.b16 %v2151
        %v2333 = vunpack.c.l.b16 %v2152
        %v2334 = vunpack.c.h.b16 %v2152
        %v2335 = vunpack.c.l.b16 %v2153
        %v2336 = vunpack.c.h.b16 %v2153
        %v2337 = vunpack.c.l.b16 %v2154
        %v2338 = vunpack.c.h.b16 %v2154
        %v2339 = vunpack.c.l.b16 %v2155
        %v2340 = vunpack.c.h.b16 %v2155
        %v2341 = vunpack.c.l.b16 %v2156
        %v2342 = vunpack.c.h.b16 %v2156
        %v2343 = vunpack.c.l.b16 %v2157
        %v2344 = vunpack.c.h.b16 %v2157
        %v2345 = vunpack.c.l.b16 %v2158
        %v2346 = vunpack.c.h.b16 %v2158
        %v2347 = vunpack.c.l.b16 %v2159
        %v2348 = vunpack.c.h.b16 %v2159
        %v2349 = vunpack.c.l.b16 %v2160
        %v2350 = vunpack.c.h.b16 %v2160
        %v2351 = vunpack.c.l.b16 %v2161
        %v2352 = vunpack.c.h.b16 %v2161
        %v2353 = vunpack.c.l.b16 %v2162
        %v2354 = vunpack.c.h.b16 %v2162
        %v2355 = vunpack.c.l.b16 %v2163
        %v2356 = vunpack.c.h.b16 %v2163
        %v2357 = vunpack.c.l.b16 %v2164
        %v2358 = vunpack.c.h.b16 %v2164
        %v2359 = vunpack.c.l.b16 %v2165
        %v2360 = vunpack.c.h.b16 %v2165
        %v2361 = vunpack.c.l.b16 %v2166
        %v2362 = vunpack.c.h.b16 %v2166
        %v2363 = vunpack.c.l.b16 %v2167
        %v2364 = vunpack.c.h.b16 %v2167
        %v2365 = vunpack.c.l.b16 %v2168
        %v2366 = vunpack.c.h.b16 %v2168
        %v2367 = vunpack.c.l.b16 %v2169
        %v2368 = vunpack.c.h.b16 %v2169
        %v2369 = vunpack.c.l.b16 %v2170
        %v2370 = vunpack.c.h.b16 %v2170
        %v2371 = vunpack.c.l.b16 %v2171
        %v2372 = vunpack.c.h.b16 %v2171
        %v2373 = vunpack.c.l.b16 %v2172
        %v2374 = vunpack.c.h.b16 %v2172
        %v2375 = vunpack.c.l.b16 %v2173
        %v2376 = vunpack.c.h.b16 %v2173
        %v2377 = vunpack.c.l.b16 %v2174
        %v2378 = vunpack.c.h.b16 %v2174
        %v2379 = vunpack.c.l.b16 %v2175
        %v2380 = vunpack.c.h.b16 %v2175
        %v2381 = vunpack.c.l.b16 %v2176
        %v2382 = vunpack.c.h.b16 %v2176
        %v2383 = vunpack.c.l.b16 %v2177
        %v2384 = vunpack.c.h.b16 %v2177
        %v2385 = vunpack.c.l.b16 %v2178
        %v2386 = vunpack.c.h.b16 %v2178
        %v2387 = vunpack.c.l.b16 %v2179
        %v2388 = vunpack.c.h.b16 %v2179
        %v2389 = vunpack.c.l.b16 %v2180
        %v2390 = vunpack.c.h.b16 %v2180
        %v2391 = vunpack.c.l.b16 %v2181
        %v2392 = vunpack.c.h.b16 %v2181
        %v2393 = vunpack.c.l.b16 %v2182
        %v2394 = vunpack.c.h.b16 %v2182
        %v2395 = vunpack.c.l.b16 %v2183
        %v2396 = vunpack.c.h.b16 %v2183
        %v2397 = vunpack.c.l.b16 %v2184
        %v2398 = vunpack.c.h.b16 %v2184
        %v2399 = vunpack.c.l.b16 %v2185
        %v2400 = vunpack.c.h.b16 %v2185
        %v2401 = vunpack.c.l.b16 %v2186
        %v2402 = vunpack.c.h.b16 %v2186
        %v2403 = vpack.c.b16 %v2277, %v2275
        %v2404 = vpack.c.b16 %v2278, %v2276
        %v2405 = vpack.c.b16 %v2281, %v2279
        %v2406 = vpack.c.b16 %v2282, %v2280
        %v2407 = vpack.c.b16 %v2285, %v2283
        %v2408 = vpack.c.b16 %v2286, %v2284
        %v2409 = vpack.c.b16 %v2289, %v2287
        %v2410 = vpack.c.b16 %v2290, %v2288
        %v2411 = vpack.c.b16 %v2293, %v2291
        %v2412 = vpack.c.b16 %v2294, %v2292
        %v2413 = vpack.c.b16 %v2297, %v2295
        %v2414 = vpack.c.b16 %v2298, %v2296
        %v2415 = vpack.c.b16 %v2301, %v2299
        %v2416 = vpack.c.b16 %v2302, %v2300
        %v2417 = vpack.c.b16 %v2305, %v2303
        %v2418 = vpack.c.b16 %v2306, %v2304
        %v2419 = vpack.c.b16 %v2309, %v2307
        %v2420 = vpack.c.b16 %v2310, %v2308
        %v2421 = vpack.c.b16 %v2313, %v2311
        %v2422 = vpack.c.b16 %v2314, %v2312
        %v2423 = vpack.c.b16 %v2317, %v2315
        %v2424 = vpack.c.b16 %v2318, %v2316
        %v2425 = vpack.c.b16 %v2321, %v2319
        %v2426 = vpack.c.b16 %v2322, %v2320
        %v2427 = vpack.c.b16 %v2325, %v2323
        %v2428 = vpack.c.b16 %v2326, %v2324
        %v2429 = vpack.c.b16 %v2329, %v2327
        %v2430 = vpack.c.b16 %v2330, %v2328
        %v2431 = vpack.c.b16 %v2333, %v2331
        %v2432 = vpack.c.b16 %v2334, %v2332
        %v2433 = vpack.c.b16 %v2337, %v2335
        %v2434 = vpack.c.b16 %v2338, %v2336
        %v2435 = vpack.c.b16 %v2341, %v2339
        %v2436 = vpack.c.b16 %v2342, %v2340
        %v2437 = vpack.c.b16 %v2345, %v2343
        %v2438 = vpack.c.b16 %v2346, %v2344
        %v2439 = vpack.c.b16 %v2349, %v2347
        %v2440 = vpack.c.b16 %v2350, %v2348
        %v2441 = vpack.c.b16 %v2353, %v2351
        %v2442 = vpack.c.b16 %v2354, %v2352
        %v2443 = vpack.c.b16 %v2357, %v2355
        %v2444 = vpack.c.b16 %v2358, %v2356
        %v2445 = vpack.c.b16 %v2361, %v2359
        %v2446 = vpack.c.b16 %v2362, %v2360
        %v2447 = vpack.c.b16 %v2365, %v2363
        %v2448 = vpack.c.b16 %v2366, %v2364
        %v2449 = vpack.c.b16 %v2369, %v2367
        %v2450 = vpack.c.b16 %v2370, %v2368
        %v2451 = vpack.c.b16 %v2373, %v2371
        %v2452 = vpack.c.b16 %v2374, %v2372
        %v2453 = vpack.c.b16 %v2377, %v2375
        %v2454 = vpack.c.b16 %v2378, %v2376
        %v2455 = vpack.c.b16 %v2381, %v2379
        %v2456 = vpack.c.b16 %v2382, %v2380
        %v2457 = vpack.c.b16 %v2385, %v2383
        %v2458 = vpack.c.b16 %v2386, %v2384
        %v2459 = vpack.c.b16 %v2389, %v2387
        %v2460 = vpack.c.b16 %v2390, %v2388
        %v2461 = vpack.c.b16 %v2393, %v2391
        %v2462 = vpack.c.b16 %v2394, %v2392
        %v2463 = vpack.c.b16 %v2397, %v2395
        %v2464 = vpack.c.b16 %v2398, %v2396
        %v2465 = vpack.c.b16 %v2401, %v2399
        %v2466 = vpack.c.b16 %v2402, %v2400
        %2531 = vmatprep.subr.bf16.mxu0 %v2404
        %2532 = vmatpush1.bf16.msra.mxu0 %v2403
        %2533 = vmatprep.subr.bf16.mxu0 %v2406
        %2534 = vmatpush1.bf16.msra.mxu0 %v2405
        %2535 = vmatprep.subr.bf16.mxu0 %v2408
        %2536 = vmatpush1.bf16.msra.mxu0 %v2407
        %2537 = vmatprep.subr.bf16.mxu0 %v2410
        %2538 = vmatpush1.bf16.msra.mxu0 %v2409
        %2539 = vmatprep.subr.bf16.mxu0 %v2412
        %2540 = vmatpush1.bf16.msra.mxu0 %v2411
        %2541 = vmatprep.subr.bf16.mxu0 %v2414
        %2542 = vmatpush1.bf16.msra.mxu0 %v2413
        %2543 = vmatprep.subr.bf16.mxu0 %v2416
        %2544 = vmatpush1.bf16.msra.mxu0 %v2415
        %2545 = vmatprep.subr.bf16.mxu0 %v2418
        %2546 = vmatpush1.bf16.msra.mxu0 %v2417
        %2547 = vmatprep.subr.bf16.mxu0 %v2420
        %2548 = vmatpush1.bf16.msra.mxu0 %v2419
        %2549 = vmatprep.subr.bf16.mxu0 %v2422
        %2550 = vmatpush1.bf16.msra.mxu0 %v2421
        %2551 = vmatprep.subr.bf16.mxu0 %v2424
        %2552 = vmatpush1.bf16.msra.mxu0 %v2423
        %2553 = vmatprep.subr.bf16.mxu0 %v2426
        %2554 = vmatpush1.bf16.msra.mxu0 %v2425
        %2555 = vmatprep.subr.bf16.mxu0 %v2428
        %2556 = vmatpush1.bf16.msra.mxu0 %v2427
        %2557 = vmatprep.subr.bf16.mxu0 %v2430
        %2558 = vmatpush1.bf16.msra.mxu0 %v2429
        %2559 = vmatprep.subr.bf16.mxu0 %v2432
        %2560 = vmatpush1.bf16.msra.mxu0 %v2431
        %2561 = vmatprep.subr.bf16.mxu0 %v2434
        %2562 = vmatpush1.bf16.msra.mxu0 %v2433
        %2563 = vmatprep.mubr.bf16.mxu0 %v2188
        %2564 = vmatmul.mubr.bf16.gmra.mrb[0].mxu0 %v2187
        %v2565 = vpop.f32.mrb[0].mxu0
        %v2566 = vadd.f32 %v2204, %v2565
        %v2567 = vpop.f32.mrb[0].mxu0
        %v2568 = vadd.f32 %v2208, %v2567
        %v2569 = vpop.f32.mrb[0].mxu0
        %v2570 = vadd.f32 %v2204, %v2569
        %v2571 = vpop.f32.mrb[0].mxu0
        %v2572 = vadd.f32 %v2208, %v2571
        %2573 = vmatprep.mubr.bf16.mxu0 %v2192
        %2574 = vmatmul.mubr.bf16.gmra.mrb[0].mxu0 %v2191
        %v2575 = vpop.f32.mrb[0].mxu0
        %v2576 = vadd.f32 %v2204, %v2575
        %v2577 = vpop.f32.mrb[0].mxu0
        %v2578 = vadd.f32 %v2208, %v2577
        %v2579 = vpop.f32.mrb[0].mxu0
        %v2580 = vadd.f32 %v2204, %v2579
        %v2581 = vpop.f32.mrb[0].mxu0
        %v2582 = vadd.f32 %v2208, %v2581
        %2583 = vmatprep.mubr.bf16.mxu0 %v2196
        %2584 = vmatmul.mubr.bf16.gmra.mrb[0].mxu0 %v2195
        %v2585 = vpop.f32.mrb[0].mxu0
        %v2586 = vadd.f32 %v2204, %v2585
        %v2587 = vpop.f32.mrb[0].mxu0
        %v2588 = vadd.f32 %v2208, %v2587
        %v2589 = vpop.f32.mrb[0].mxu0
        %v2590 = vpop.f32.mrb[0].mxu0
        %2591 = vdwg.mxu0
        %2592 = vmatprep.subr.bf16.mxu0 %v2436
        %2593 = vmatpush1.bf16.msra.mxu0 %v2435
        %2594 = vmatprep.subr.bf16.mxu0 %v2438
        %2595 = vmatpush1.bf16.msra.mxu0 %v2437
        %2596 = vmatprep.subr.bf16.mxu0 %v2440
        %2597 = vmatpush1.bf16.msra.mxu0 %v2439
        %2598 = vmatprep.subr.bf16.mxu0 %v2442
        %2599 = vmatpush1.bf16.msra.mxu0 %v2441
        %2600 = vmatprep.subr.bf16.mxu0 %v2444
        %2601 = vmatpush1.bf16.msra.mxu0 %v2443
        %2602 = vmatprep.subr.bf16.mxu0 %v2446
        %2603 = vmatpush1.bf16.msra.mxu0 %v2445
        %2604 = vmatprep.subr.bf16.mxu0 %v2448
        %2605 = vmatpush1.bf16.msra.mxu0 %v2447
        %2606 = vmatprep.subr.bf16.mxu0 %v2450
        %2607 = vmatpush1.bf16.msra.mxu0 %v2449
        %2608 = vmatprep.subr.bf16.mxu0 %v2452
        %2609 = vmatpush1.bf16.msra.mxu0 %v2451
        %2610 = vmatprep.subr.bf16.mxu0 %v2454
        %2611 = vmatpush1.bf16.msra.mxu0 %v2453
        %2612 = vmatprep.subr.bf16.mxu0 %v2456
        %2613 = vmatpush1.bf16.msra.mxu0 %v2455
        %2614 = vmatprep.subr.bf16.mxu0 %v2458
        %2615 = vmatpush1.bf16.msra.mxu0 %v2457
        %2616 = vmatprep.subr.bf16.mxu0 %v2460
        %2617 = vmatpush1.bf16.msra.mxu0 %v2459
        %2618 = vmatprep.subr.bf16.mxu0 %v2462
        %2619 = vmatpush1.bf16.msra.mxu0 %v2461
        %2620 = vmatprep.subr.bf16.mxu0 %v2464
        %2621 = vmatpush1.bf16.msra.mxu0 %v2463
        %2622 = vmatprep.subr.bf16.mxu0 %v2466
        %2623 = vmatpush1.bf16.msra.mxu0 %v2465
        %2624 = vmatprep.mubr.bf16.mxu0 %v2190
        %2625 = vmatmul.mubr.bf16.gmra.mrb[0].mxu0 %v2189
        %v2626 = vpop.f32.mrb[0].mxu0
        %v2627 = vadd.f32 %v2566, %v2626
        %v2628 = vpop.f32.mrb[0].mxu0
        %v2629 = vadd.f32 %v2568, %v2628
        %v2630 = vpop.f32.mrb[0].mxu0
        %v2631 = vadd.f32 %v2570, %v2630
        %v2632 = vpop.f32.mrb[0].mxu0
        %v2633 = vadd.f32 %v2572, %v2632
        %2634 = vmatprep.mubr.bf16.mxu0 %v2194
        %2635 = vmatmul.mubr.bf16.gmra.mrb[0].mxu0 %v2193
        %v2636 = vpop.f32.mrb[0].mxu0
        %v2637 = vadd.f32 %v2576, %v2636
        %v2638 = vpop.f32.mrb[0].mxu0
        %v2639 = vadd.f32 %v2578, %v2638
        %v2640 = vpop.f32.mrb[0].mxu0
        %v2641 = vadd.f32 %v2580, %v2640
        %v2642 = vpop.f32.mrb[0].mxu0
        %v2643 = vadd.f32 %v2582, %v2642
        %2644 = vmatprep.mubr.bf16.mxu0 %v2198
        %2645 = vmatmul.mubr.bf16.gmra.mrb[0].mxu0 %v2197
        %v2646 = vpop.f32.mrb[0].mxu0
        %v2647 = vadd.f32 %v2586, %v2646
        %v2648 = vpop.f32.mrb[0].mxu0
        %v2649 = vadd.f32 %v2588, %v2648
        %v2650 = vpop.f32.mrb[0].mxu0
        %v2651 = vpop.f32.mrb[0].mxu0
        %2652 = vdwg.mxu0
        %v2653 = vmax.f32 %v2627, 0.0
        %v2654 = vmax.f32 %v2629, 0.0
        %v2655 = vmax.f32 %v2631, 0.0
        %v2656 = vmax.f32 %v2633, 0.0
        %v2657 = vmax.f32 %v2637, 0.0
        %v2658 = vmax.f32 %v2639, 0.0
        %v2659 = vmax.f32 %v2641, 0.0
        %v2660 = vmax.f32 %v2643, 0.0
        %v2661 = vmax.f32 %v2647, 0.0
        %v2662 = vmax.f32 %v2649, 0.0
        %v2663 = vld [vmem:[%s9] sm:$0xff]
        %v2664 = vld [vmem:[%s9 + $0x8] sm:$0xff]
        %v2665 = vld [vmem:[%s8] sm:$0xff]
        %v2666 = vld [vmem:[%s8 + $0x8] sm:$0xff]
        %v2667 = vld [vmem:[%s8 + $0x10] sm:$0xff]
        %v2668 = vld [vmem:[%s8 + $0x18] sm:$0xff]
        %v2669 = vld [vmem:[%s8 + $0x20] sm:$0xff]
        %v2670 = vld [vmem:[%s8 + $0x28] sm:$0xff]
        %v2671 = vld [vmem:[%s8 + $0x30] sm:$0xff]
        %v2672 = vld [vmem:[%s8 + $0x38] sm:$0xff]
        %v2673 = vld [vmem:[%s8 + $0x40] sm:$0xff]
        %v2674 = vld [vmem:[%s8 + $0x48] sm:$0xff]
        %v2675 = vld [vmem:[%s8 + $0x50] sm:$0xff]
        %v2676 = vld [vmem:[%s8 + $0x58] sm:$0xff]
        %v2677 = vld [vmem:[%s8 + $0x60] sm:$0xff]
        %v2678 = vld [vmem:[%s8 + $0x68] sm:$0xff]
        %v2679 = vld [vmem:[%s8 + $0x70] sm:$0xff]
        %v2680 = vld [vmem:[%s8 + $0x78] sm:$0xff]
        %v2681 = vld [vmem:[%s8 + $0x80] sm:$0xff]
        %v2682 = vld [vmem:[%s8 + $0x88] sm:$0xff]
        %v2683 = vld [vmem:[%s8 + $0x90] sm:$0xff]
        %v2684 = vld [vmem:[%s8 + $0x98] sm:$0xff]
        %v2685 = vld [vmem:[%s8 + $0xa0] sm:$0xff]
        %v2686 = vld [vmem:[%s8 + $0xa8] sm:$0xff]
        %v2687 = vld [vmem:[%s8 + $0xb0] sm:$0xff]
        %v2688 = vld [vmem:[%s8 + $0xb8] sm:$0xff]
        %v2689 = vld [vmem:[%s8 + $0xc0] sm:$0xff]
        %v2690 = vld [vmem:[%s8 + $0xc8] sm:$0xff]
        %v2691 = vld [vmem:[%s8 + $0xd0] sm:$0xff]
        %v2692 = vld [vmem:[%s8 + $0xd8] sm:$0xff]
        %v2693 = vld [vmem:[%s8 + $0xe0] sm:$0xff]
        %v2694 = vld [vmem:[%s8 + $0xe8] sm:$0xff]
        %v2695 = vld [vmem:[%s8 + $0xf0] sm:$0xff]
        %v2696 = vld [vmem:[%s8 + $0xf8] sm:$0xff]
        %v2697 = vld [vmem:[%s8 + $0x100] sm:$0xff]
        %v2698 = vld [vmem:[%s8 + $0x108] sm:$0xff]
        %v2699 = vld [vmem:[%s8 + $0x110] sm:$0xff]
        %v2700 = vld [vmem:[%s8 + $0x118] sm:$0xff]
        %v2701 = vld [vmem:[%s8 + $0x120] sm:$0xff]
        %v2702 = vld [vmem:[%s8 + $0x128] sm:$0xff]
        %v2703 = vld [vmem:[%s8 + $0x130] sm:$0xff]
        %v2704 = vld [vmem:[%s8 + $0x138] sm:$0xff]
        %v2705 = vld [vmem:[%s8 + $0x140] sm:$0xff]
        %v2706 = vld [vmem:[%s8 + $0x148] sm:$0xff]
        %v2707 = vld [vmem:[%s8 + $0x150] sm:$0xff]
        %v2708 = vld [vmem:[%s8 + $0x158] sm:$0xff]
        %v2709 = vld [vmem:[%s8 + $0x160] sm:$0xff]
        %v2710 = vld [vmem:[%s8 + $0x168] sm:$0xff]
        %v2711 = vld [vmem:[%s8 + $0x170] sm:$0xff]
        %v2712 = vld [vmem:[%s8 + $0x178] sm:$0xff]
        %v2713 = vld [vmem:[%s8 + $0x180] sm:$0xff]
        %v2714 = vld [vmem:[%s8 + $0x188] sm:$0xff]
        %v2715 = vld [vmem:[%s8 + $0x190] sm:$0xff]
        %v2716 = vld [vmem:[%s8 + $0x198] sm:$0xff]
        %v2717 = vld [vmem:[%s8 + $0x1a0] sm:$0xff]
        %v2718 = vld [vmem:[%s8 + $0x1a8] sm:$0xff]
        %v2719 = vld [vmem:[%s8 + $0x1b0] sm:$0xff]
        %v2720 = vld [vmem:[%s8 + $0x1b8] sm:$0xff]
        %v2721 = vld [vmem:[%s8 + $0x1c0] sm:$0xff]
        %v2722 = vld [vmem:[%s8 + $0x1c8] sm:$0xff]
        %v2723 = vld [vmem:[%s8 + $0x1d0] sm:$0xff]
        %v2724 = vld [vmem:[%s8 + $0x1d8] sm:$0xff]
        %v2725 = vld [vmem:[%s8 + $0x1e0] sm:$0xff]
        %v2726 = vld [vmem:[%s8 + $0x1e8] sm:$0xff]
        %v2727 = vld [vmem:[%s8 + $0x1f0] sm:$0xff]
        %v2728 = vld [vmem:[%s8 + $0x1f8] sm:$0xff]
        %v2729 = vld [vmem:[%s8 + $0x200] sm:$0xff]
        %v2730 = vld [vmem:[%s8 + $0x208] sm:$0xff]
        %v2731 = vld [vmem:[%s8 + $0x210] sm:$0xff]
        %v2732 = vld [vmem:[%s8 + $0x218] sm:$0xff]
        %v2733 = vld [vmem:[%s8 + $0x220] sm:$0xff]
        %v2734 = vld [vmem:[%s8 + $0x228] sm:$0xff]
        %v2735 = vld [vmem:[%s8 + $0x230] sm:$0xff]
        %v2736 = vld [vmem:[%s8 + $0x238] sm:$0xff]
        %v2737 = vld [vmem:[%s8 + $0x240] sm:$0xff]
        %v2738 = vld [vmem:[%s8 + $0x248] sm:$0xff]
        %v2739 = vld [vmem:[%s8 + $0x250] sm:$0xff]
        %v2740 = vld [vmem:[%s8 + $0x258] sm:$0xff]
        %v2741 = vld [vmem:[%s8 + $0x260] sm:$0xff]
        %v2742 = vld [vmem:[%s8 + $0x268] sm:$0xff]
        %v2743 = vld [vmem:[%s8 + $0x270] sm:$0xff]
        %v2744 = vld [vmem:[%s8 + $0x278] sm:$0xff]
        %v2745 = vld [vmem:[%s8 + $0x280] sm:$0xff]
        %v2746 = vld [vmem:[%s8 + $0x288] sm:$0xff]
        %v2747 = vld [vmem:[%s8 + $0x290] sm:$0xff]
        %v2748 = vld [vmem:[%s8 + $0x298] sm:$0xff]
        %v2749 = vld [vmem:[%s8 + $0x2a0] sm:$0xff]
        %v2750 = vld [vmem:[%s8 + $0x2a8] sm:$0xff]
        %v2751 = vld [vmem:[%s8 + $0x2b0] sm:$0xff]
        %v2752 = vld [vmem:[%s8 + $0x2b8] sm:$0xff]
        %v2753 = vld [vmem:[%s8 + $0x2c0] sm:$0xff]
        %v2754 = vld [vmem:[%s8 + $0x2c8] sm:$0xff]
        %v2755 = vld [vmem:[%s8 + $0x2d0] sm:$0xff]
        %v2756 = vld [vmem:[%s8 + $0x2d8] sm:$0xff]
        %v2757 = vld [vmem:[%s8 + $0x2e0] sm:$0xff]
        %v2758 = vld [vmem:[%s8 + $0x2e8] sm:$0xff]
        %v2759 = vld [vmem:[%s8 + $0x2f0] sm:$0xff]
        %v2760 = vld [vmem:[%s8 + $0x2f8] sm:$0xff]
        %v2761 = vld [vmem:[%s8 + $0x300] sm:$0xff]
        %v2762 = vld [vmem:[%s8 + $0x308] sm:$0xff]
        %v2763 = vld [vmem:[%s8 + $0x310] sm:$0xff]
        %v2764 = vld [vmem:[%s8 + $0x318] sm:$0xff]
        %v2765 = vld [vmem:[%s8 + $0x320] sm:$0xff]
        %v2766 = vld [vmem:[%s8 + $0x328] sm:$0xff]
        %v2767 = vld [vmem:[%s8 + $0x330] sm:$0xff]
        %v2768 = vld [vmem:[%s8 + $0x338] sm:$0xff]
        %v2769 = vld [vmem:[%s8 + $0x340] sm:$0xff]
        %v2770 = vld [vmem:[%s8 + $0x348] sm:$0xff]
        %v2771 = vld [vmem:[%s8 + $0x350] sm:$0xff]
        %v2772 = vld [vmem:[%s8 + $0x358] sm:$0xff]
        %v2773 = vld [vmem:[%s8 + $0x360] sm:$0xff]
        %v2774 = vld [vmem:[%s8 + $0x368] sm:$0xff]
        %v2775 = vld [vmem:[%s8 + $0x370] sm:$0xff]
        %v2776 = vld [vmem:[%s8 + $0x378] sm:$0xff]
        %v2777 = vld [vmem:[%s8 + $0x380] sm:$0xff]
        %v2778 = vld [vmem:[%s8 + $0x388] sm:$0xff]
        %v2779 = vld [vmem:[%s8 + $0x390] sm:$0xff]
        %v2780 = vld [vmem:[%s8 + $0x398] sm:$0xff]
        %v2781 = vld [vmem:[%s8 + $0x3a0] sm:$0xff]
        %v2782 = vld [vmem:[%s8 + $0x3a8] sm:$0xff]
        %v2783 = vld [vmem:[%s8 + $0x3b0] sm:$0xff]
        %v2784 = vld [vmem:[%s8 + $0x3b8] sm:$0xff]
        %v2785 = vld [vmem:[%s8 + $0x3c0] sm:$0xff]
        %v2786 = vld [vmem:[%s8 + $0x3c8] sm:$0xff]
        %v2787 = vld [vmem:[%s8 + $0x3d0] sm:$0xff]
        %v2788 = vld [vmem:[%s8 + $0x3d8] sm:$0xff]
        %v2789 = vld [vmem:[%s8 + $0x3e0] sm:$0xff]
        %v2790 = vld [vmem:[%s8 + $0x3e8] sm:$0xff]
        %v2791 = vld [vmem:[%s8 + $0x3f0] sm:$0xff]
        %v2792 = vld [vmem:[%s8 + $0x3f8] sm:$0xff]
        %v2793 = vld [vmem:[%s8 + $0x400] sm:$0xff]
        %v2794 = vld [vmem:[%s8 + $0x408] sm:$0xff]
        %v2795 = vld [vmem:[%s8 + $0x410] sm:$0xff]
        %v2796 = vld [vmem:[%s8 + $0x418] sm:$0xff]
        %v2797 = vld [vmem:[%s8 + $0x420] sm:$0xff]
        %v2798 = vld [vmem:[%s8 + $0x428] sm:$0xff]
        %v2799 = vld [vmem:[%s8 + $0x430] sm:$0xff]
        %v2800 = vld [vmem:[%s8 + $0x438] sm:$0xff]
        %v2801 = vld [vmem:[%s8 + $0x440] sm:$0xff]
        %v2802 = vld [vmem:[%s8 + $0x448] sm:$0xff]
        %v2803 = vld [vmem:[%s8 + $0x450] sm:$0xff]
        %v2804 = vld [vmem:[%s8 + $0x458] sm:$0xff]
        %v2805 = vld [vmem:[%s8 + $0x460] sm:$0xff]
        %v2806 = vld [vmem:[%s8 + $0x468] sm:$0xff]
        %v2807 = vld [vmem:[%s8 + $0x470] sm:$0xff]
        %v2808 = vld [vmem:[%s8 + $0x478] sm:$0xff]
        %v2809 = vld [vmem:[%s8 + $0x480] sm:$0xff]
        %v2810 = vld [vmem:[%s8 + $0x488] sm:$0xff]
        %v2811 = vld [vmem:[%s8 + $0x490] sm:$0xff]
        %v2812 = vld [vmem:[%s8 + $0x498] sm:$0xff]
        %v2813 = vld [vmem:[%s8 + $0x4a0] sm:$0xff]
        %v2814 = vld [vmem:[%s8 + $0x4a8] sm:$0xff]
        %v2815 = vld [vmem:[%s8 + $0x4b0] sm:$0xff]
        %v2816 = vld [vmem:[%s8 + $0x4b8] sm:$0xff]
        %v2817 = vld [vmem:[%s8 + $0x4c0] sm:$0xff]
        %v2818 = vld [vmem:[%s8 + $0x4c8] sm:$0xff]
        %v2819 = vld [vmem:[%s8 + $0x4d0] sm:$0xff]
        %v2820 = vld [vmem:[%s8 + $0x4d8] sm:$0xff]
        %v2821 = vld [vmem:[%s8 + $0x4e0] sm:$0xff]
        %v2822 = vld [vmem:[%s8 + $0x4e8] sm:$0xff]
        %v2823 = vld [vmem:[%s8 + $0x4f0] sm:$0xff]
        %v2824 = vld [vmem:[%s8 + $0x4f8] sm:$0xff]
        %v2825 = vld [vmem:[%s8 + $0x500] sm:$0xff]
        %v2826 = vld [vmem:[%s8 + $0x508] sm:$0xff]
        %v2827 = vld [vmem:[%s8 + $0x510] sm:$0xff]
        %v2828 = vld [vmem:[%s8 + $0x518] sm:$0xff]
        %v2829 = vld [vmem:[%s8 + $0x520] sm:$0xff]
        %v2830 = vld [vmem:[%s8 + $0x528] sm:$0xff]
        %v2831 = vld [vmem:[%s8 + $0x530] sm:$0xff]
        %v2832 = vld [vmem:[%s8 + $0x538] sm:$0xff]
        %v2833 = vld [vmem:[%s8 + $0x540] sm:$0xff]
        %v2834 = vld [vmem:[%s8 + $0x548] sm:$0xff]
        %v2835 = vld [vmem:[%s8 + $0x550] sm:$0xff]
        %v2836 = vld [vmem:[%s8 + $0x558] sm:$0xff]
        %v2837 = vld [vmem:[%s8 + $0x560] sm:$0xff]
        %v2838 = vld [vmem:[%s8 + $0x568] sm:$0xff]
        %v2839 = vld [vmem:[%s8 + $0x570] sm:$0xff]
        %v2840 = vld [vmem:[%s8 + $0x578] sm:$0xff]
        %v2841 = vld [vmem:[%s8 + $0x580] sm:$0xff]
        %v2842 = vld [vmem:[%s8 + $0x588] sm:$0xff]
        %v2843 = vld [vmem:[%s8 + $0x590] sm:$0xff]
        %v2844 = vld [vmem:[%s8 + $0x598] sm:$0xff]
        %v2845 = vld [vmem:[%s8 + $0x5a0] sm:$0xff]
        %v2846 = vld [vmem:[%s8 + $0x5a8] sm:$0xff]
        %v2847 = vld [vmem:[%s8 + $0x5b0] sm:$0xff]
        %v2848 = vld [vmem:[%s8 + $0x5b8] sm:$0xff]
        %v2849 = vld [vmem:[%s8 + $0x5c0] sm:$0xff]
        %v2850 = vld [vmem:[%s8 + $0x5c8] sm:$0xff]
        %v2851 = vld [vmem:[%s8 + $0x5d0] sm:$0xff]
        %v2852 = vld [vmem:[%s8 + $0x5d8] sm:$0xff]
        %v2853 = vld [vmem:[%s8 + $0x5e0] sm:$0xff]
        %v2854 = vld [vmem:[%s8 + $0x5e8] sm:$0xff]
        %v2855 = vld [vmem:[%s8 + $0x5f0] sm:$0xff]
        %v2856 = vld [vmem:[%s8 + $0x5f8] sm:$0xff]
        %v2857 = vld [vmem:[%s8 + $0x600] sm:$0xff]
        %v2858 = vld [vmem:[%s8 + $0x608] sm:$0xff]
        %v2859 = vld [vmem:[%s8 + $0x610] sm:$0xff]
        %v2860 = vld [vmem:[%s8 + $0x618] sm:$0xff]
        %v2861 = vld [vmem:[%s8 + $0x620] sm:$0xff]
        %v2862 = vld [vmem:[%s8 + $0x628] sm:$0xff]
        %v2863 = vld [vmem:[%s8 + $0x630] sm:$0xff]
        %v2864 = vld [vmem:[%s8 + $0x638] sm:$0xff]
        %v2865 = vld [vmem:[%s8 + $0x640] sm:$0xff]
        %v2866 = vld [vmem:[%s8 + $0x648] sm:$0xff]
        %v2867 = vld [vmem:[%s8 + $0x650] sm:$0xff]
        %v2868 = vld [vmem:[%s8 + $0x658] sm:$0xff]
        %v2869 = vld [vmem:[%s8 + $0x660] sm:$0xff]
        %v2870 = vld [vmem:[%s8 + $0x668] sm:$0xff]
        %v2871 = vld [vmem:[%s8 + $0x670] sm:$0xff]
        %v2872 = vld [vmem:[%s8 + $0x678] sm:$0xff]
        %v2873 = vld [vmem:[%s8 + $0x680] sm:$0xff]
        %v2874 = vld [vmem:[%s8 + $0x688] sm:$0xff]
        %v2875 = vld [vmem:[%s8 + $0x690] sm:$0xff]
        %v2876 = vld [vmem:[%s8 + $0x698] sm:$0xff]
        %v2877 = vld [vmem:[%s8 + $0x6a0] sm:$0xff]
        %v2878 = vld [vmem:[%s8 + $0x6a8] sm:$0xff]
        %v2879 = vld [vmem:[%s8 + $0x6b0] sm:$0xff]
        %v2880 = vld [vmem:[%s8 + $0x6b8] sm:$0xff]
        %v2881 = vld [vmem:[%s8 + $0x6c0] sm:$0xff]
        %v2882 = vld [vmem:[%s8 + $0x6c8] sm:$0xff]
        %v2883 = vld [vmem:[%s8 + $0x6d0] sm:$0xff]
        %v2884 = vld [vmem:[%s8 + $0x6d8] sm:$0xff]
        %v2885 = vld [vmem:[%s8 + $0x6e0] sm:$0xff]
        %v2886 = vld [vmem:[%s8 + $0x6e8] sm:$0xff]
        %v2887 = vld [vmem:[%s8 + $0x6f0] sm:$0xff]
        %v2888 = vld [vmem:[%s8 + $0x6f8] sm:$0xff]
        %v2889 = vld [vmem:[%s8 + $0x700] sm:$0xff]
        %v2890 = vld [vmem:[%s8 + $0x708] sm:$0xff]
        %v2891 = vld [vmem:[%s8 + $0x710] sm:$0xff]
        %v2892 = vld [vmem:[%s8 + $0x718] sm:$0xff]
        %v2893 = vld [vmem:[%s8 + $0x720] sm:$0xff]
        %v2894 = vld [vmem:[%s8 + $0x728] sm:$0xff]
        %v2895 = vld [vmem:[%s8 + $0x730] sm:$0xff]
        %v2896 = vld [vmem:[%s8 + $0x738] sm:$0xff]
        %v2897 = vld [vmem:[%s8 + $0x740] sm:$0xff]
        %v2898 = vld [vmem:[%s8 + $0x748] sm:$0xff]
        %v2899 = vld [vmem:[%s8 + $0x750] sm:$0xff]
        %v2900 = vld [vmem:[%s8 + $0x758] sm:$0xff]
        %v2901 = vld [vmem:[%s8 + $0x760] sm:$0xff]
        %v2902 = vld [vmem:[%s8 + $0x768] sm:$0xff]
        %v2903 = vld [vmem:[%s8 + $0x770] sm:$0xff]
        %v2904 = vld [vmem:[%s8 + $0x778] sm:$0xff]
        %v2905 = vld [vmem:[%s8 + $0x780] sm:$0xff]
        %v2906 = vld [vmem:[%s8 + $0x788] sm:$0xff]
        %v2907 = vld [vmem:[%s8 + $0x790] sm:$0xff]
        %v2908 = vld [vmem:[%s8 + $0x798] sm:$0xff]
        %v2909 = vld [vmem:[%s8 + $0x7a0] sm:$0xff]
        %v2910 = vld [vmem:[%s8 + $0x7a8] sm:$0xff]
        %v2911 = vld [vmem:[%s8 + $0x7b0] sm:$0xff]
        %v2912 = vld [vmem:[%s8 + $0x7b8] sm:$0xff]
        %v2913 = vld [vmem:[%s8 + $0x7c0] sm:$0xff]
        %v2914 = vld [vmem:[%s8 + $0x7c8] sm:$0xff]
        %v2915 = vld [vmem:[%s8 + $0x7d0] sm:$0xff]
        %v2916 = vld [vmem:[%s8 + $0x7d8] sm:$0xff]
        %v2917 = vld [vmem:[%s8 + $0x7e0] sm:$0xff]
        %v2918 = vld [vmem:[%s8 + $0x7e8] sm:$0xff]
        %v2919 = vld [vmem:[%s8 + $0x7f0] sm:$0xff]
        %v2920 = vld [vmem:[%s8 + $0x7f8] sm:$0xff]
        %v2921 = vld [vmem:[%s8 + $0x800] sm:$0xff]
        %v2922 = vld [vmem:[%s8 + $0x808] sm:$0xff]
        %v2923 = vld [vmem:[%s8 + $0x810] sm:$0xff]
        %v2924 = vld [vmem:[%s8 + $0x818] sm:$0xff]
        %v2925 = vld [vmem:[%s8 + $0x820] sm:$0xff]
        %v2926 = vld [vmem:[%s8 + $0x828] sm:$0xff]
        %v2927 = vld [vmem:[%s8 + $0x830] sm:$0xff]
        %v2928 = vld [vmem:[%s8 + $0x838] sm:$0xff]
        %v2929 = vld [vmem:[%s8 + $0x840] sm:$0xff]
        %v2930 = vld [vmem:[%s8 + $0x848] sm:$0xff]
        %v2931 = vld [vmem:[%s8 + $0x850] sm:$0xff]
        %v2932 = vld [vmem:[%s8 + $0x858] sm:$0xff]
        %v2933 = vld [vmem:[%s8 + $0x860] sm:$0xff]
        %v2934 = vld [vmem:[%s8 + $0x868] sm:$0xff]
        %v2935 = vld [vmem:[%s8 + $0x870] sm:$0xff]
        %v2936 = vld [vmem:[%s8 + $0x878] sm:$0xff]
        %v2937 = vld [vmem:[%s8 + $0x880] sm:$0xff]
        %v2938 = vld [vmem:[%s8 + $0x888] sm:$0xff]
        %v2939 = vld [vmem:[%s8 + $0x890] sm:$0xff]
        %v2940 = vld [vmem:[%s8 + $0x898] sm:$0xff]
        %v2941 = vld [vmem:[%s8 + $0x8a0] sm:$0xff]
        %v2942 = vld [vmem:[%s8 + $0x8a8] sm:$0xff]
        %v2943 = vld [vmem:[%s8 + $0x8b0] sm:$0xff]
        %v2944 = vld [vmem:[%s8 + $0x8b8] sm:$0xff]
        %v2945 = vld [vmem:[%s8 + $0x8c0] sm:$0xff]
        %v2946 = vld [vmem:[%s8 + $0x8c8] sm:$0xff]
        %v2947 = vld [vmem:[%s8 + $0x8d0] sm:$0xff]
        %v2948 = vld [vmem:[%s8 + $0x8d8] sm:$0xff]
        %v2949 = vld [vmem:[%s8 + $0x8e0] sm:$0xff]
        %v2950 = vld [vmem:[%s8 + $0x8e8] sm:$0xff]
        %v2951 = vld [vmem:[%s8 + $0x8f0] sm:$0xff]
        %v2952 = vld [vmem:[%s8 + $0x8f8] sm:$0xff]
        %v2963 = vrot.slane %v2653, 7
        %v2964 = vrot.slane %v2654, 7
        %v2965 = vrot.slane %v2655, 7
        %v2966 = vsel %vm1989, %v2963, %v2965
        %v2967 = vrot.slane %v2656, 7
        %v2968 = vsel %vm1989, %v2964, %v2967
        %v2969 = vrot.slane %v2657, 7
        %v2970 = vsel %vm1989, %v2965, %v2969
        %v2971 = vrot.slane %v2658, 7
        %v2972 = vsel %vm1989, %v2967, %v2971
        %v2973 = vrot.slane %v2659, 7
        %v2974 = vsel %vm1989, %v2969, %v2973
        %v2975 = vrot.slane %v2660, 7
        %v2976 = vsel %vm1989, %v2971, %v2975
        %v2977 = vrot.slane %v2661, 7
        %v2978 = vsel %vm1989, %v2973, %v2977
        %v2979 = vrot.slane %v2662, 7
        %v2980 = vsel %vm1989, %v2975, %v2979
        %v2991 = vsel %vm1989, 0.0, %v2963
        %v2992 = vsel %vm1989, 0.0, %v2964
        %v2993 = vrot.slane %v2653, 1
        %v2994 = vrot.slane %v2655, 1
        %v2995 = vsel %vm1875, %v2993, %v2994
        %v2996 = vrot.slane %v2654, 1
        %v2997 = vrot.slane %v2656, 1
        %v2998 = vsel %vm1875, %v2996, %v2997
        %v2999 = vrot.slane %v2657, 1
        %v3000 = vsel %vm1875, %v2994, %v2999
        %v3001 = vrot.slane %v2658, 1
        %v3002 = vsel %vm1875, %v2997, %v3001
        %v3003 = vrot.slane %v2659, 1
        %v3004 = vsel %vm1875, %v2999, %v3003
        %v3005 = vrot.slane %v2660, 1
        %v3006 = vsel %vm1875, %v3001, %v3005
        %v3007 = vrot.slane %v2661, 1
        %v3008 = vsel %vm1875, %v3003, %v3007
        %v3009 = vrot.slane %v2662, 1
        %v3010 = vsel %vm1875, %v3005, %v3009
        %v3021 = vsel %vm1875, %v3007, 0.0
        %v3022 = vsel %vm1875, %v3009, 0.0
        %v3023 = vpack.c.bf16 %v2966, %v2991
        %v3024 = vpack.c.bf16 %v2968, %v2992
        %v3025 = vpack.c.bf16 %v2655, %v2653
        %v3026 = vpack.c.bf16 %v2656, %v2654
        %v3027 = vpack.c.bf16 %v3000, %v2995
        %v3028 = vpack.c.bf16 %v3002, %v2998
        %v3029 = vpack.c.bf16 %v2974, %v2970
        %v3030 = vpack.c.bf16 %v2976, %v2972
        %v3031 = vpack.c.bf16 %v2659, %v2657
        %v3032 = vpack.c.bf16 %v2660, %v2658
        %v3033 = vpack.c.bf16 %v3008, %v3004
        %v3034 = vpack.c.bf16 %v3010, %v3006
        %v3035 = vpack.c.bf16 %v2978, %v2978
        %v3036 = vpack.c.bf16 %v2980, %v2980
        %v3037 = vpack.c.bf16 %v2661, %v2661
        %v3038 = vpack.c.bf16 %v2662, %v2662
        %v3039 = vpack.c.bf16 %v3021, %v3021
        %v3040 = vpack.c.bf16 %v3022, %v3022
        %v3041 = vlaneseq
        %v3042 = vshrl.u32 %v3041, 7
        %v3043 = vsub.s32 0, %v3042
        %v3044 = vrot.slane %v2663, %v3043
        %v3045 = vlaneseq
        %v3046 = vshrl.u32 %v3045, 7
        %v3047 = vsub.s32 0, %v3046
        %v3048 = vrot.slane %v2664, %v3047
        %v3145 = vunpack.c.l.b16 %v2665
        %v3146 = vunpack.c.h.b16 %v2665
        %v3147 = vunpack.c.l.b16 %v2666
        %v3148 = vunpack.c.h.b16 %v2666
        %v3149 = vunpack.c.l.b16 %v2667
        %v3150 = vunpack.c.h.b16 %v2667
        %v3151 = vunpack.c.l.b16 %v2668
        %v3152 = vunpack.c.h.b16 %v2668
        %v3153 = vunpack.c.l.b16 %v2669
        %v3154 = vunpack.c.h.b16 %v2669
        %v3155 = vunpack.c.l.b16 %v2670
        %v3156 = vunpack.c.h.b16 %v2670
        %v3157 = vunpack.c.l.b16 %v2671
        %v3158 = vunpack.c.h.b16 %v2671
        %v3159 = vunpack.c.l.b16 %v2672
        %v3160 = vunpack.c.h.b16 %v2672
        %v3161 = vunpack.c.l.b16 %v2673
        %v3162 = vunpack.c.h.b16 %v2673
        %v3163 = vunpack.c.l.b16 %v2674
        %v3164 = vunpack.c.h.b16 %v2674
        %v3165 = vunpack.c.l.b16 %v2675
        %v3166 = vunpack.c.h.b16 %v2675
        %v3167 = vunpack.c.l.b16 %v2676
        %v3168 = vunpack.c.h.b16 %v2676
        %v3169 = vunpack.c.l.b16 %v2677
        %v3170 = vunpack.c.h.b16 %v2677
        %v3171 = vunpack.c.l.b16 %v2678
        %v3172 = vunpack.c.h.b16 %v2678
        %v3173 = vunpack.c.l.b16 %v2679
        %v3174 = vunpack.c.h.b16 %v2679
        %v3175 = vunpack.c.l.b16 %v2680
        %v3176 = vunpack.c.h.b16 %v2680
        %v3177 = vunpack.c.l.b16 %v2681
        %v3178 = vunpack.c.h.b16 %v2681
        %v3179 = vunpack.c.l.b16 %v2682
        %v3180 = vunpack.c.h.b16 %v2682
        %v3181 = vunpack.c.l.b16 %v2683
        %v3182 = vunpack.c.h.b16 %v2683
        %v3183 = vunpack.c.l.b16 %v2684
        %v3184 = vunpack.c.h.b16 %v2684
        %v3185 = vunpack.c.l.b16 %v2685
        %v3186 = vunpack.c.h.b16 %v2685
        %v3187 = vunpack.c.l.b16 %v2686
        %v3188 = vunpack.c.h.b16 %v2686
        %v3189 = vunpack.c.l.b16 %v2687
        %v3190 = vunpack.c.h.b16 %v2687
        %v3191 = vunpack.c.l.b16 %v2688
        %v3192 = vunpack.c.h.b16 %v2688
        %v3193 = vunpack.c.l.b16 %v2689
        %v3194 = vunpack.c.h.b16 %v2689
        %v3195 = vunpack.c.l.b16 %v2690
        %v3196 = vunpack.c.h.b16 %v2690
        %v3197 = vunpack.c.l.b16 %v2691
        %v3198 = vunpack.c.h.b16 %v2691
        %v3199 = vunpack.c.l.b16 %v2692
        %v3200 = vunpack.c.h.b16 %v2692
        %v3201 = vunpack.c.l.b16 %v2693
        %v3202 = vunpack.c.h.b16 %v2693
        %v3203 = vunpack.c.l.b16 %v2694
        %v3204 = vunpack.c.h.b16 %v2694
        %v3205 = vunpack.c.l.b16 %v2695
        %v3206 = vunpack.c.h.b16 %v2695
        %v3207 = vunpack.c.l.b16 %v2696
        %v3208 = vunpack.c.h.b16 %v2696
        %v3209 = vunpack.c.l.b16 %v2697
        %v3210 = vunpack.c.h.b16 %v2697
        %v3211 = vunpack.c.l.b16 %v2698
        %v3212 = vunpack.c.h.b16 %v2698
        %v3213 = vunpack.c.l.b16 %v2699
        %v3214 = vunpack.c.h.b16 %v2699
        %v3215 = vunpack.c.l.b16 %v2700
        %v3216 = vunpack.c.h.b16 %v2700
        %v3217 = vunpack.c.l.b16 %v2701
        %v3218 = vunpack.c.h.b16 %v2701
        %v3219 = vunpack.c.l.b16 %v2702
        %v3220 = vunpack.c.h.b16 %v2702
        %v3221 = vunpack.c.l.b16 %v2703
        %v3222 = vunpack.c.h.b16 %v2703
        %v3223 = vunpack.c.l.b16 %v2704
        %v3224 = vunpack.c.h.b16 %v2704
        %v3225 = vunpack.c.l.b16 %v2705
        %v3226 = vunpack.c.h.b16 %v2705
        %v3227 = vunpack.c.l.b16 %v2706
        %v3228 = vunpack.c.h.b16 %v2706
        %v3229 = vunpack.c.l.b16 %v2707
        %v3230 = vunpack.c.h.b16 %v2707
        %v3231 = vunpack.c.l.b16 %v2708
        %v3232 = vunpack.c.h.b16 %v2708
        %v3233 = vunpack.c.l.b16 %v2709
        %v3234 = vunpack.c.h.b16 %v2709
        %v3235 = vunpack.c.l.b16 %v2710
        %v3236 = vunpack.c.h.b16 %v2710
        %v3237 = vunpack.c.l.b16 %v2711
        %v3238 = vunpack.c.h.b16 %v2711
        %v3239 = vunpack.c.l.b16 %v2712
        %v3240 = vunpack.c.h.b16 %v2712
        %v3241 = vunpack.c.l.b16 %v2713
        %v3242 = vunpack.c.h.b16 %v2713
        %v3243 = vunpack.c.l.b16 %v2714
        %v3244 = vunpack.c.h.b16 %v2714
        %v3245 = vunpack.c.l.b16 %v2715
        %v3246 = vunpack.c.h.b16 %v2715
        %v3247 = vunpack.c.l.b16 %v2716
        %v3248 = vunpack.c.h.b16 %v2716
        %v3249 = vunpack.c.l.b16 %v2717
        %v3250 = vunpack.c.h.b16 %v2717
        %v3251 = vunpack.c.l.b16 %v2718
        %v3252 = vunpack.c.h.b16 %v2718
        %v3253 = vunpack.c.l.b16 %v2719
        %v3254 = vunpack.c.h.b16 %v2719
        %v3255 = vunpack.c.l.b16 %v2720
        %v3256 = vunpack.c.h.b16 %v2720
        %v3257 = vunpack.c.l.b16 %v2721
        %v3258 = vunpack.c.h.b16 %v2721
        %v3259 = vunpack.c.l.b16 %v2722
        %v3260 = vunpack.c.h.b16 %v2722
        %v3261 = vunpack.c.l.b16 %v2723
        %v3262 = vunpack.c.h.b16 %v2723
        %v3263 = vunpack.c.l.b16 %v2724
        %v3264 = vunpack.c.h.b16 %v2724
        %v3265 = vunpack.c.l.b16 %v2725
        %v3266 = vunpack.c.h.b16 %v2725
        %v3267 = vunpack.c.l.b16 %v2726
        %v3268 = vunpack.c.h.b16 %v2726
        %v3269 = vunpack.c.l.b16 %v2727
        %v3270 = vunpack.c.h.b16 %v2727
        %v3271 = vunpack.c.l.b16 %v2728
        %v3272 = vunpack.c.h.b16 %v2728
        %v3273 = vunpack.c.l.b16 %v2729
        %v3274 = vunpack.c.h.b16 %v2729
        %v3275 = vunpack.c.l.b16 %v2730
        %v3276 = vunpack.c.h.b16 %v2730
        %v3277 = vunpack.c.l.b16 %v2731
        %v3278 = vunpack.c.h.b16 %v2731
        %v3279 = vunpack.c.l.b16 %v2732
        %v3280 = vunpack.c.h.b16 %v2732
        %v3281 = vunpack.c.l.b16 %v2733
        %v3282 = vunpack.c.h.b16 %v2733
        %v3283 = vunpack.c.l.b16 %v2734
        %v3284 = vunpack.c.h.b16 %v2734
        %v3285 = vunpack.c.l.b16 %v2735
        %v3286 = vunpack.c.h.b16 %v2735
        %v3287 = vunpack.c.l.b16 %v2736
        %v3288 = vunpack.c.h.b16 %v2736
        %v3289 = vunpack.c.l.b16 %v2737
        %v3290 = vunpack.c.h.b16 %v2737
        %v3291 = vunpack.c.l.b16 %v2738
        %v3292 = vunpack.c.h.b16 %v2738
        %v3293 = vunpack.c.l.b16 %v2739
        %v3294 = vunpack.c.h.b16 %v2739
        %v3295 = vunpack.c.l.b16 %v2740
        %v3296 = vunpack.c.h.b16 %v2740
        %v3297 = vunpack.c.l.b16 %v2741
        %v3298 = vunpack.c.h.b16 %v2741
        %v3299 = vunpack.c.l.b16 %v2742
        %v3300 = vunpack.c.h.b16 %v2742
        %v3301 = vunpack.c.l.b16 %v2743
        %v3302 = vunpack.c.h.b16 %v2743
        %v3303 = vunpack.c.l.b16 %v2744
        %v3304 = vunpack.c.h.b16 %v2744
        %v3305 = vunpack.c.l.b16 %v2745
        %v3306 = vunpack.c.h.b16 %v2745
        %v3307 = vunpack.c.l.b16 %v2746
        %v3308 = vunpack.c.h.b16 %v2746
        %v3309 = vunpack.c.l.b16 %v2747
        %v3310 = vunpack.c.h.b16 %v2747
        %v3311 = vunpack.c.l.b16 %v2748
        %v3312 = vunpack.c.h.b16 %v2748
        %v3313 = vunpack.c.l.b16 %v2749
        %v3314 = vunpack.c.h.b16 %v2749
        %v3315 = vunpack.c.l.b16 %v2750
        %v3316 = vunpack.c.h.b16 %v2750
        %v3317 = vunpack.c.l.b16 %v2751
        %v3318 = vunpack.c.h.b16 %v2751
        %v3319 = vunpack.c.l.b16 %v2752
        %v3320 = vunpack.c.h.b16 %v2752
        %v3321 = vunpack.c.l.b16 %v2753
        %v3322 = vunpack.c.h.b16 %v2753
        %v3323 = vunpack.c.l.b16 %v2754
        %v3324 = vunpack.c.h.b16 %v2754
        %v3325 = vunpack.c.l.b16 %v2755
        %v3326 = vunpack.c.h.b16 %v2755
        %v3327 = vunpack.c.l.b16 %v2756
        %v3328 = vunpack.c.h.b16 %v2756
        %v3329 = vunpack.c.l.b16 %v2757
        %v3330 = vunpack.c.h.b16 %v2757
        %v3331 = vunpack.c.l.b16 %v2758
        %v3332 = vunpack.c.h.b16 %v2758
        %v3333 = vunpack.c.l.b16 %v2759
        %v3334 = vunpack.c.h.b16 %v2759
        %v3335 = vunpack.c.l.b16 %v2760
        %v3336 = vunpack.c.h.b16 %v2760
        %v3337 = vpack.c.b16 %v3147, %v3145
        %v3338 = vpack.c.b16 %v3148, %v3146
        %v3339 = vpack.c.b16 %v3151, %v3149
        %v3340 = vpack.c.b16 %v3152, %v3150
        %v3341 = vpack.c.b16 %v3155, %v3153
        %v3342 = vpack.c.b16 %v3156, %v3154
        %v3343 = vpack.c.b16 %v3159, %v3157
        %v3344 = vpack.c.b16 %v3160, %v3158
        %v3345 = vpack.c.b16 %v3163, %v3161
        %v3346 = vpack.c.b16 %v3164, %v3162
        %v3347 = vpack.c.b16 %v3167, %v3165
        %v3348 = vpack.c.b16 %v3168, %v3166
        %v3349 = vpack.c.b16 %v3171, %v3169
        %v3350 = vpack.c.b16 %v3172, %v3170
        %v3351 = vpack.c.b16 %v3175, %v3173
        %v3352 = vpack.c.b16 %v3176, %v3174
        %v3353 = vpack.c.b16 %v3179, %v3177
        %v3354 = vpack.c.b16 %v3180, %v3178
        %v3355 = vpack.c.b16 %v3183, %v3181
        %v3356 = vpack.c.b16 %v3184, %v3182
        %v3357 = vpack.c.b16 %v3187, %v3185
        %v3358 = vpack.c.b16 %v3188, %v3186
        %v3359 = vpack.c.b16 %v3191, %v3189
        %v3360 = vpack.c.b16 %v3192, %v3190
        %v3361 = vpack.c.b16 %v3195, %v3193
        %v3362 = vpack.c.b16 %v3196, %v3194
        %v3363 = vpack.c.b16 %v3199, %v3197
        %v3364 = vpack.c.b16 %v3200, %v3198
        %v3365 = vpack.c.b16 %v3203, %v3201
        %v3366 = vpack.c.b16 %v3204, %v3202
        %v3367 = vpack.c.b16 %v3207, %v3205
        %v3368 = vpack.c.b16 %v3208, %v3206
        %v3369 = vpack.c.b16 %v3211, %v3209
        %v3370 = vpack.c.b16 %v3212, %v3210
        %v3371 = vpack.c.b16 %v3215, %v3213
        %v3372 = vpack.c.b16 %v3216, %v3214
        %v3373 = vpack.c.b16 %v3219, %v3217
        %v3374 = vpack.c.b16 %v3220, %v3218
        %v3375 = vpack.c.b16 %v3223, %v3221
        %v3376 = vpack.c.b16 %v3224, %v3222
        %v3377 = vpack.c.b16 %v3227, %v3225
        %v3378 = vpack.c.b16 %v3228, %v3226
        %v3379 = vpack.c.b16 %v3231, %v3229
        %v3380 = vpack.c.b16 %v3232, %v3230
        %v3381 = vpack.c.b16 %v3235, %v3233
        %v3382 = vpack.c.b16 %v3236, %v3234
        %v3383 = vpack.c.b16 %v3239, %v3237
        %v3384 = vpack.c.b16 %v3240, %v3238
        %v3385 = vpack.c.b16 %v3243, %v3241
        %v3386 = vpack.c.b16 %v3244, %v3242
        %v3387 = vpack.c.b16 %v3247, %v3245
        %v3388 = vpack.c.b16 %v3248, %v3246
        %v3389 = vpack.c.b16 %v3251, %v3249
        %v3390 = vpack.c.b16 %v3252, %v3250
        %v3391 = vpack.c.b16 %v3255, %v3253
        %v3392 = vpack.c.b16 %v3256, %v3254
        %v3393 = vpack.c.b16 %v3259, %v3257
        %v3394 = vpack.c.b16 %v3260, %v3258
        %v3395 = vpack.c.b16 %v3263, %v3261
        %v3396 = vpack.c.b16 %v3264, %v3262
        %v3397 = vpack.c.b16 %v3267, %v3265
        %v3398 = vpack.c.b16 %v3268, %v3266
        %v3399 = vpack.c.b16 %v3271, %v3269
        %v3400 = vpack.c.b16 %v3272, %v3270
        %v3401 = vpack.c.b16 %v3275, %v3273
        %v3402 = vpack.c.b16 %v3276, %v3274
        %v3403 = vpack.c.b16 %v3279, %v3277
        %v3404 = vpack.c.b16 %v3280, %v3278
        %v3405 = vpack.c.b16 %v3283, %v3281
        %v3406 = vpack.c.b16 %v3284, %v3282
        %v3407 = vpack.c.b16 %v3287, %v3285
        %v3408 = vpack.c.b16 %v3288, %v3286
        %v3409 = vpack.c.b16 %v3291, %v3289
        %v3410 = vpack.c.b16 %v3292, %v3290
        %v3411 = vpack.c.b16 %v3295, %v3293
        %v3412 = vpack.c.b16 %v3296, %v3294
        %v3413 = vpack.c.b16 %v3299, %v3297
        %v3414 = vpack.c.b16 %v3300, %v3298
        %v3415 = vpack.c.b16 %v3303, %v3301
        %v3416 = vpack.c.b16 %v3304, %v3302
        %v3417 = vpack.c.b16 %v3307, %v3305
        %v3418 = vpack.c.b16 %v3308, %v3306
        %v3419 = vpack.c.b16 %v3311, %v3309
        %v3420 = vpack.c.b16 %v3312, %v3310
        %v3421 = vpack.c.b16 %v3315, %v3313
        %v3422 = vpack.c.b16 %v3316, %v3314
        %v3423 = vpack.c.b16 %v3319, %v3317
        %v3424 = vpack.c.b16 %v3320, %v3318
        %v3425 = vpack.c.b16 %v3323, %v3321
        %v3426 = vpack.c.b16 %v3324, %v3322
        %v3427 = vpack.c.b16 %v3327, %v3325
        %v3428 = vpack.c.b16 %v3328, %v3326
        %v3429 = vpack.c.b16 %v3331, %v3329
        %v3430 = vpack.c.b16 %v3332, %v3330
        %v3431 = vpack.c.b16 %v3335, %v3333
        %v3432 = vpack.c.b16 %v3336, %v3334
        %3529 = vmatprep.subr.bf16.mxu0 %v3338
        %3530 = vmatpush1.bf16.msra.mxu0 %v3337
        %3531 = vmatprep.subr.bf16.mxu0 %v3340
        %3532 = vmatpush1.bf16.msra.mxu0 %v3339
        %3533 = vmatprep.subr.bf16.mxu0 %v3342
        %3534 = vmatpush1.bf16.msra.mxu0 %v3341
        %3535 = vmatprep.subr.bf16.mxu0 %v3344
        %3536 = vmatpush1.bf16.msra.mxu0 %v3343
        %3537 = vmatprep.subr.bf16.mxu0 %v3346
        %3538 = vmatpush1.bf16.msra.mxu0 %v3345
        %3539 = vmatprep.subr.bf16.mxu0 %v3348
        %3540 = vmatpush1.bf16.msra.mxu0 %v3347
        %3541 = vmatprep.subr.bf16.mxu0 %v3350
        %3542 = vmatpush1.bf16.msra.mxu0 %v3349
        %3543 = vmatprep.subr.bf16.mxu0 %v3352
        %3544 = vmatpush1.bf16.msra.mxu0 %v3351
        %3545 = vmatprep.subr.bf16.mxu0 %v3354
        %3546 = vmatpush1.bf16.msra.mxu0 %v3353
        %3547 = vmatprep.subr.bf16.mxu0 %v3356
        %3548 = vmatpush1.bf16.msra.mxu0 %v3355
        %3549 = vmatprep.subr.bf16.mxu0 %v3358
        %3550 = vmatpush1.bf16.msra.mxu0 %v3357
        %3551 = vmatprep.subr.bf16.mxu0 %v3360
        %3552 = vmatpush1.bf16.msra.mxu0 %v3359
        %3553 = vmatprep.subr.bf16.mxu0 %v3362
        %3554 = vmatpush1.bf16.msra.mxu0 %v3361
        %3555 = vmatprep.subr.bf16.mxu0 %v3364
        %3556 = vmatpush1.bf16.msra.mxu0 %v3363
        %3557 = vmatprep.subr.bf16.mxu0 %v3366
        %3558 = vmatpush1.bf16.msra.mxu0 %v3365
        %3559 = vmatprep.subr.bf16.mxu0 %v3368
        %3560 = vmatpush1.bf16.msra.mxu0 %v3367
        %3561 = vmatprep.mubr.bf16.mxu0 %v3024
        %3562 = vmatmul.mubr.bf16.gmra.mrb[0].mxu0 %v3023
        %v3563 = vpop.f32.mrb[0].mxu0
        %v3564 = vadd.f32 %v3044, %v3563
        %v3565 = vpop.f32.mrb[0].mxu0
        %v3566 = vadd.f32 %v3048, %v3565
        %v3567 = vpop.f32.mrb[0].mxu0
        %v3568 = vadd.f32 %v3044, %v3567
        %v3569 = vpop.f32.mrb[0].mxu0
        %v3570 = vadd.f32 %v3048, %v3569
        %3571 = vmatprep.mubr.bf16.mxu0 %v3030
        %3572 = vmatmul.mubr.bf16.gmra.mrb[0].mxu0 %v3029
        %v3573 = vpop.f32.mrb[0].mxu0
        %v3574 = vadd.f32 %v3044, %v3573
        %v3575 = vpop.f32.mrb[0].mxu0
        %v3576 = vadd.f32 %v3048, %v3575
        %v3577 = vpop.f32.mrb[0].mxu0
        %v3578 = vadd.f32 %v3044, %v3577
        %v3579 = vpop.f32.mrb[0].mxu0
        %v3580 = vadd.f32 %v3048, %v3579
        %3581 = vmatprep.mubr.bf16.mxu0 %v3036
        %3582 = vmatmul.mubr.bf16.gmra.mrb[0].mxu0 %v3035
        %v3583 = vpop.f32.mrb[0].mxu0
        %v3584 = vadd.f32 %v3044, %v3583
        %v3585 = vpop.f32.mrb[0].mxu0
        %v3586 = vadd.f32 %v3048, %v3585
        %v3587 = vpop.f32.mrb[0].mxu0
        %v3588 = vpop.f32.mrb[0].mxu0
        %3589 = vdwg.mxu0
        %3590 = vmatprep.subr.bf16.mxu0 %v3370
        %3591 = vmatpush1.bf16.msra.mxu0 %v3369
        %3592 = vmatprep.subr.bf16.mxu0 %v3372
        %3593 = vmatpush1.bf16.msra.mxu0 %v3371
        %3594 = vmatprep.subr.bf16.mxu0 %v3374
        %3595 = vmatpush1.bf16.msra.mxu0 %v3373
        %3596 = vmatprep.subr.bf16.mxu0 %v3376
        %3597 = vmatpush1.bf16.msra.mxu0 %v3375
        %3598 = vmatprep.subr.bf16.mxu0 %v3378
        %3599 = vmatpush1.bf16.msra.mxu0 %v3377
        %3600 = vmatprep.subr.bf16.mxu0 %v3380
        %3601 = vmatpush1.bf16.msra.mxu0 %v3379
        %3602 = vmatprep.subr.bf16.mxu0 %v3382
        %3603 = vmatpush1.bf16.msra.mxu0 %v3381
        %3604 = vmatprep.subr.bf16.mxu0 %v3384
        %3605 = vmatpush1.bf16.msra.mxu0 %v3383
        %3606 = vmatprep.subr.bf16.mxu0 %v3386
        %3607 = vmatpush1.bf16.msra.mxu0 %v3385
        %3608 = vmatprep.subr.bf16.mxu0 %v3388
        %3609 = vmatpush1.bf16.msra.mxu0 %v3387
        %3610 = vmatprep.subr.bf16.mxu0 %v3390
        %3611 = vmatpush1.bf16.msra.mxu0 %v3389
        %3612 = vmatprep.subr.bf16.mxu0 %v3392
        %3613 = vmatpush1.bf16.msra.mxu0 %v3391
        %3614 = vmatprep.subr.bf16.mxu0 %v3394
        %3615 = vmatpush1.bf16.msra.mxu0 %v3393
        %3616 = vmatprep.subr.bf16.mxu0 %v3396
        %3617 = vmatpush1.bf16.msra.mxu0 %v3395
        %3618 = vmatprep.subr.bf16.mxu0 %v3398
        %3619 = vmatpush1.bf16.msra.mxu0 %v3397
        %3620 = vmatprep.subr.bf16.mxu0 %v3400
        %3621 = vmatpush1.bf16.msra.mxu0 %v3399
        %3622 = vmatprep.mubr.bf16.mxu0 %v3026
        %3623 = vmatmul.mubr.bf16.gmra.mrb[0].mxu0 %v3025
        %v3624 = vpop.f32.mrb[0].mxu0
        %v3625 = vadd.f32 %v3564, %v3624
        %v3626 = vpop.f32.mrb[0].mxu0
        %v3627 = vadd.f32 %v3566, %v3626
        %v3628 = vpop.f32.mrb[0].mxu0
        %v3629 = vadd.f32 %v3568, %v3628
        %v3630 = vpop.f32.mrb[0].mxu0
        %v3631 = vadd.f32 %v3570, %v3630
        %3632 = vmatprep.mubr.bf16.mxu0 %v3032
        %3633 = vmatmul.mubr.bf16.gmra.mrb[0].mxu0 %v3031
        %v3634 = vpop.f32.mrb[0].mxu0
        %v3635 = vadd.f32 %v3574, %v3634
        %v3636 = vpop.f32.mrb[0].mxu0
        %v3637 = vadd.f32 %v3576, %v3636
        %v3638 = vpop.f32.mrb[0].mxu0
        %v3639 = vadd.f32 %v3578, %v3638
        %v3640 = vpop.f32.mrb[0].mxu0
        %v3641 = vadd.f32 %v3580, %v3640
        %3642 = vmatprep.mubr.bf16.mxu0 %v3038
        %3643 = vmatmul.mubr.bf16.gmra.mrb[0].mxu0 %v3037
        %v3644 = vpop.f32.mrb[0].mxu0
        %v3645 = vadd.f32 %v3584, %v3644
        %v3646 = vpop.f32.mrb[0].mxu0
        %v3647 = vadd.f32 %v3586, %v3646
        %v3648 = vpop.f32.mrb[0].mxu0
        %v3649 = vpop.f32.mrb[0].mxu0
        %3650 = vdwg.mxu0
        %3651 = vmatprep.subr.bf16.mxu0 %v3402
        %3652 = vmatpush1.bf16.msra.mxu0 %v3401
        %3653 = vmatprep.subr.bf16.mxu0 %v3404
        %3654 = vmatpush1.bf16.msra.mxu0 %v3403
        %3655 = vmatprep.subr.bf16.mxu0 %v3406
        %3656 = vmatpush1.bf16.msra.mxu0 %v3405
        %3657 = vmatprep.subr.bf16.mxu0 %v3408
        %3658 = vmatpush1.bf16.msra.mxu0 %v3407
        %3659 = vmatprep.subr.bf16.mxu0 %v3410
        %3660 = vmatpush1.bf16.msra.mxu0 %v3409
        %3661 = vmatprep.subr.bf16.mxu0 %v3412
        %3662 = vmatpush1.bf16.msra.mxu0 %v3411
        %3663 = vmatprep.subr.bf16.mxu0 %v3414
        %3664 = vmatpush1.bf16.msra.mxu0 %v3413
        %3665 = vmatprep.subr.bf16.mxu0 %v3416
        %3666 = vmatpush1.bf16.msra.mxu0 %v3415
        %3667 = vmatprep.subr.bf16.mxu0 %v3418
        %3668 = vmatpush1.bf16.msra.mxu0 %v3417
        %3669 = vmatprep.subr.bf16.mxu0 %v3420
        %3670 = vmatpush1.bf16.msra.mxu0 %v3419
        %3671 = vmatprep.subr.bf16.mxu0 %v3422
        %3672 = vmatpush1.bf16.msra.mxu0 %v3421
        %3673 = vmatprep.subr.bf16.mxu0 %v3424
        %3674 = vmatpush1.bf16.msra.mxu0 %v3423
        %3675 = vmatprep.subr.bf16.mxu0 %v3426
        %3676 = vmatpush1.bf16.msra.mxu0 %v3425
        %3677 = vmatprep.subr.bf16.mxu0 %v3428
        %3678 = vmatpush1.bf16.msra.mxu0 %v3427
        %3679 = vmatprep.subr.bf16.mxu0 %v3430
        %3680 = vmatpush1.bf16.msra.mxu0 %v3429
        %3681 = vmatprep.subr.bf16.mxu0 %v3432
        %3682 = vmatpush1.bf16.msra.mxu0 %v3431
        %3683 = vmatprep.mubr.bf16.mxu0 %v3028
        %3684 = vmatmul.mubr.bf16.gmra.mrb[0].mxu0 %v3027
        %v3685 = vpop.f32.mrb[0].mxu0
        %v3686 = vadd.f32 %v3625, %v3685
        %v3687 = vpop.f32.mrb[0].mxu0
        %v3688 = vadd.f32 %v3627, %v3687
        %v3689 = vpop.f32.mrb[0].mxu0
        %v3690 = vadd.f32 %v3629, %v3689
        %v3691 = vpop.f32.mrb[0].mxu0
        %v3692 = vadd.f32 %v3631, %v3691
        %3693 = vmatprep.mubr.bf16.mxu0 %v3034
        %3694 = vmatmul.mubr.bf16.gmra.mrb[0].mxu0 %v3033
        %v3695 = vpop.f32.mrb[0].mxu0
        %v3696 = vadd.f32 %v3635, %v3695
        %v3697 = vpop.f32.mrb[0].mxu0
        %v3698 = vadd.f32 %v3637, %v3697
        %v3699 = vpop.f32.mrb[0].mxu0
        %v3700 = vadd.f32 %v3639, %v3699
        %v3701 = vpop.f32.mrb[0].mxu0
        %v3702 = vadd.f32 %v3641, %v3701
        %3703 = vmatprep.mubr.bf16.mxu0 %v3040
        %3704 = vmatmul.mubr.bf16.gmra.mrb[0].mxu0 %v3039
        %v3705 = vpop.f32.mrb[0].mxu0
        %v3706 = vadd.f32 %v3645, %v3705
        %v3707 = vpop.f32.mrb[0].mxu0
        %v3708 = vadd.f32 %v3647, %v3707
        %v3709 = vpop.f32.mrb[0].mxu0
        %v3710 = vpop.f32.mrb[0].mxu0
        %3711 = vdwg.mxu0
        %v3712 = vmax.f32 %v3686, 0.0
        %v3713 = vmax.f32 %v3688, 0.0
        %v3714 = vmax.f32 %v3690, 0.0
        %v3715 = vmax.f32 %v3692, 0.0
        %v3716 = vmax.f32 %v3696, 0.0
        %v3717 = vmax.f32 %v3698, 0.0
        %v3718 = vmax.f32 %v3700, 0.0
        %v3719 = vmax.f32 %v3702, 0.0
        %v3720 = vmax.f32 %v3706, 0.0
        %v3721 = vmax.f32 %v3708, 0.0
        %v3732 = vrot.slane %v3712, 7
        %v3733 = vrot.slane %v3713, 7
        %v3734 = vrot.slane %v3714, 7
        %v3735 = vsel %vm1989, %v3732, %v3734
        %v3736 = vrot.slane %v3715, 7
        %v3737 = vsel %vm1989, %v3733, %v3736
        %v3738 = vrot.slane %v3716, 7
        %v3739 = vsel %vm1989, %v3734, %v3738
        %v3740 = vrot.slane %v3717, 7
        %v3741 = vsel %vm1989, %v3736, %v3740
        %v3742 = vrot.slane %v3718, 7
        %v3743 = vsel %vm1989, %v3738, %v3742
        %v3744 = vrot.slane %v3719, 7
        %v3745 = vsel %vm1989, %v3740, %v3744
        %v3746 = vrot.slane %v3720, 7
        %v3747 = vsel %vm1989, %v3742, %v3746
        %v3748 = vrot.slane %v3721, 7
        %v3749 = vsel %vm1989, %v3744, %v3748
        %v3760 = vsel %vm1989, 0.0, %v3732
        %v3761 = vsel %vm1989, 0.0, %v3733
        %v3762 = vrot.slane %v3712, 1
        %v3763 = vrot.slane %v3714, 1
        %v3764 = vsel %vm1875, %v3762, %v3763
        %v3765 = vrot.slane %v3713, 1
        %v3766 = vrot.slane %v3715, 1
        %v3767 = vsel %vm1875, %v3765, %v3766
        %v3768 = vrot.slane %v3716, 1
        %v3769 = vsel %vm1875, %v3763, %v3768
        %v3770 = vrot.slane %v3717, 1
        %v3771 = vsel %vm1875, %v3766, %v3770
        %v3772 = vrot.slane %v3718, 1
        %v3773 = vsel %vm1875, %v3768, %v3772
        %v3774 = vrot.slane %v3719, 1
        %v3775 = vsel %vm1875, %v3770, %v3774
        %v3776 = vrot.slane %v3720, 1
        %v3777 = vsel %vm1875, %v3772, %v3776
        %v3778 = vrot.slane %v3721, 1
        %v3779 = vsel %vm1875, %v3774, %v3778
        %v3790 = vsel %vm1875, %v3776, 0.0
        %v3791 = vsel %vm1875, %v3778, 0.0
        %v3792 = vpack.c.bf16 %v3735, %v3760
        %v3793 = vpack.c.bf16 %v3737, %v3761
        %v3794 = vpack.c.bf16 %v3714, %v3712
        %v3795 = vpack.c.bf16 %v3715, %v3713
        %v3796 = vpack.c.bf16 %v3769, %v3764
        %v3797 = vpack.c.bf16 %v3771, %v3767
        %v3798 = vpack.c.bf16 %v3743, %v3739
        %v3799 = vpack.c.bf16 %v3745, %v3741
        %v3800 = vpack.c.bf16 %v3718, %v3716
        %v3801 = vpack.c.bf16 %v3719, %v3717
        %v3802 = vpack.c.bf16 %v3777, %v3773
        %v3803 = vpack.c.bf16 %v3779, %v3775
        %v3804 = vpack.c.bf16 %v3747, %v3747
        %v3805 = vpack.c.bf16 %v3749, %v3749
        %v3806 = vpack.c.bf16 %v3720, %v3720
        %v3807 = vpack.c.bf16 %v3721, %v3721
        %v3808 = vpack.c.bf16 %v3790, %v3790
        %v3809 = vpack.c.bf16 %v3791, %v3791
        %v3810 = vlaneseq
        %v3811 = vshrl.u32 %v3810, 7
        %v3812 = vsub.s32 1, %v3811
        %v3813 = vrot.slane %v2663, %v3812
        %v3814 = vlaneseq
        %v3815 = vshrl.u32 %v3814, 7
        %v3816 = vsub.s32 1, %v3815
        %v3817 = vrot.slane %v2664, %v3816
        %v3914 = vunpack.c.l.b16 %v2761
        %v3915 = vunpack.c.h.b16 %v2761
        %v3916 = vunpack.c.l.b16 %v2762
        %v3917 = vunpack.c.h.b16 %v2762
        %v3918 = vunpack.c.l.b16 %v2763
        %v3919 = vunpack.c.h.b16 %v2763
        %v3920 = vunpack.c.l.b16 %v2764
        %v3921 = vunpack.c.h.b16 %v2764
        %v3922 = vunpack.c.l.b16 %v2765
        %v3923 = vunpack.c.h.b16 %v2765
        %v3924 = vunpack.c.l.b16 %v2766
        %v3925 = vunpack.c.h.b16 %v2766
        %v3926 = vunpack.c.l.b16 %v2767
        %v3927 = vunpack.c.h.b16 %v2767
        %v3928 = vunpack.c.l.b16 %v2768
        %v3929 = vunpack.c.h.b16 %v2768
        %v3930 = vunpack.c.l.b16 %v2769
        %v3931 = vunpack.c.h.b16 %v2769
        %v3932 = vunpack.c.l.b16 %v2770
        %v3933 = vunpack.c.h.b16 %v2770
        %v3934 = vunpack.c.l.b16 %v2771
        %v3935 = vunpack.c.h.b16 %v2771
        %v3936 = vunpack.c.l.b16 %v2772
        %v3937 = vunpack.c.h.b16 %v2772
        %v3938 = vunpack.c.l.b16 %v2773
        %v3939 = vunpack.c.h.b16 %v2773
        %v3940 = vunpack.c.l.b16 %v2774
        %v3941 = vunpack.c.h.b16 %v2774
        %v3942 = vunpack.c.l.b16 %v2775
        %v3943 = vunpack.c.h.b16 %v2775
        %v3944 = vunpack.c.l.b16 %v2776
        %v3945 = vunpack.c.h.b16 %v2776
        %v3946 = vunpack.c.l.b16 %v2777
        %v3947 = vunpack.c.h.b16 %v2777
        %v3948 = vunpack.c.l.b16 %v2778
        %v3949 = vunpack.c.h.b16 %v2778
        %v3950 = vunpack.c.l.b16 %v2779
        %v3951 = vunpack.c.h.b16 %v2779
        %v3952 = vunpack.c.l.b16 %v2780
        %v3953 = vunpack.c.h.b16 %v2780
        %v3954 = vunpack.c.l.b16 %v2781
        %v3955 = vunpack.c.h.b16 %v2781
        %v3956 = vunpack.c.l.b16 %v2782
        %v3957 = vunpack.c.h.b16 %v2782
        %v3958 = vunpack.c.l.b16 %v2783
        %v3959 = vunpack.c.h.b16 %v2783
        %v3960 = vunpack.c.l.b16 %v2784
        %v3961 = vunpack.c.h.b16 %v2784
        %v3962 = vunpack.c.l.b16 %v2785
        %v3963 = vunpack.c.h.b16 %v2785
        %v3964 = vunpack.c.l.b16 %v2786
        %v3965 = vunpack.c.h.b16 %v2786
        %v3966 = vunpack.c.l.b16 %v2787
        %v3967 = vunpack.c.h.b16 %v2787
        %v3968 = vunpack.c.l.b16 %v2788
        %v3969 = vunpack.c.h.b16 %v2788
        %v3970 = vunpack.c.l.b16 %v2789
        %v3971 = vunpack.c.h.b16 %v2789
        %v3972 = vunpack.c.l.b16 %v2790
        %v3973 = vunpack.c.h.b16 %v2790
        %v3974 = vunpack.c.l.b16 %v2791
        %v3975 = vunpack.c.h.b16 %v2791
        %v3976 = vunpack.c.l.b16 %v2792
        %v3977 = vunpack.c.h.b16 %v2792
        %v3978 = vunpack.c.l.b16 %v2793
        %v3979 = vunpack.c.h.b16 %v2793
        %v3980 = vunpack.c.l.b16 %v2794
        %v3981 = vunpack.c.h.b16 %v2794
        %v3982 = vunpack.c.l.b16 %v2795
        %v3983 = vunpack.c.h.b16 %v2795
        %v3984 = vunpack.c.l.b16 %v2796
        %v3985 = vunpack.c.h.b16 %v2796
        %v3986 = vunpack.c.l.b16 %v2797
        %v3987 = vunpack.c.h.b16 %v2797
        %v3988 = vunpack.c.l.b16 %v2798
        %v3989 = vunpack.c.h.b16 %v2798
        %v3990 = vunpack.c.l.b16 %v2799
        %v3991 = vunpack.c.h.b16 %v2799
        %v3992 = vunpack.c.l.b16 %v2800
        %v3993 = vunpack.c.h.b16 %v2800
        %v3994 = vunpack.c.l.b16 %v2801
        %v3995 = vunpack.c.h.b16 %v2801
        %v3996 = vunpack.c.l.b16 %v2802
        %v3997 = vunpack.c.h.b16 %v2802
        %v3998 = vunpack.c.l.b16 %v2803
        %v3999 = vunpack.c.h.b16 %v2803
        %v4000 = vunpack.c.l.b16 %v2804
        %v4001 = vunpack.c.h.b16 %v2804
        %v4002 = vunpack.c.l.b16 %v2805
        %v4003 = vunpack.c.h.b16 %v2805
        %v4004 = vunpack.c.l.b16 %v2806
        %v4005 = vunpack.c.h.b16 %v2806
        %v4006 = vunpack.c.l.b16 %v2807
        %v4007 = vunpack.c.h.b16 %v2807
        %v4008 = vunpack.c.l.b16 %v2808
        %v4009 = vunpack.c.h.b16 %v2808
        %v4010 = vunpack.c.l.b16 %v2809
        %v4011 = vunpack.c.h.b16 %v2809
        %v4012 = vunpack.c.l.b16 %v2810
        %v4013 = vunpack.c.h.b16 %v2810
        %v4014 = vunpack.c.l.b16 %v2811
        %v4015 = vunpack.c.h.b16 %v2811
        %v4016 = vunpack.c.l.b16 %v2812
        %v4017 = vunpack.c.h.b16 %v2812
        %v4018 = vunpack.c.l.b16 %v2813
        %v4019 = vunpack.c.h.b16 %v2813
        %v4020 = vunpack.c.l.b16 %v2814
        %v4021 = vunpack.c.h.b16 %v2814
        %v4022 = vunpack.c.l.b16 %v2815
        %v4023 = vunpack.c.h.b16 %v2815
        %v4024 = vunpack.c.l.b16 %v2816
        %v4025 = vunpack.c.h.b16 %v2816
        %v4026 = vunpack.c.l.b16 %v2817
        %v4027 = vunpack.c.h.b16 %v2817
        %v4028 = vunpack.c.l.b16 %v2818
        %v4029 = vunpack.c.h.b16 %v2818
        %v4030 = vunpack.c.l.b16 %v2819
        %v4031 = vunpack.c.h.b16 %v2819
        %v4032 = vunpack.c.l.b16 %v2820
        %v4033 = vunpack.c.h.b16 %v2820
        %v4034 = vunpack.c.l.b16 %v2821
        %v4035 = vunpack.c.h.b16 %v2821
        %v4036 = vunpack.c.l.b16 %v2822
        %v4037 = vunpack.c.h.b16 %v2822
        %v4038 = vunpack.c.l.b16 %v2823
        %v4039 = vunpack.c.h.b16 %v2823
        %v4040 = vunpack.c.l.b16 %v2824
        %v4041 = vunpack.c.h.b16 %v2824
        %v4042 = vunpack.c.l.b16 %v2825
        %v4043 = vunpack.c.h.b16 %v2825
        %v4044 = vunpack.c.l.b16 %v2826
        %v4045 = vunpack.c.h.b16 %v2826
        %v4046 = vunpack.c.l.b16 %v2827
        %v4047 = vunpack.c.h.b16 %v2827
        %v4048 = vunpack.c.l.b16 %v2828
        %v4049 = vunpack.c.h.b16 %v2828
        %v4050 = vunpack.c.l.b16 %v2829
        %v4051 = vunpack.c.h.b16 %v2829
        %v4052 = vunpack.c.l.b16 %v2830
        %v4053 = vunpack.c.h.b16 %v2830
        %v4054 = vunpack.c.l.b16 %v2831
        %v4055 = vunpack.c.h.b16 %v2831
        %v4056 = vunpack.c.l.b16 %v2832
        %v4057 = vunpack.c.h.b16 %v2832
        %v4058 = vunpack.c.l.b16 %v2833
        %v4059 = vunpack.c.h.b16 %v2833
        %v4060 = vunpack.c.l.b16 %v2834
        %v4061 = vunpack.c.h.b16 %v2834
        %v4062 = vunpack.c.l.b16 %v2835
        %v4063 = vunpack.c.h.b16 %v2835
        %v4064 = vunpack.c.l.b16 %v2836
        %v4065 = vunpack.c.h.b16 %v2836
        %v4066 = vunpack.c.l.b16 %v2837
        %v4067 = vunpack.c.h.b16 %v2837
        %v4068 = vunpack.c.l.b16 %v2838
        %v4069 = vunpack.c.h.b16 %v2838
        %v4070 = vunpack.c.l.b16 %v2839
        %v4071 = vunpack.c.h.b16 %v2839
        %v4072 = vunpack.c.l.b16 %v2840
        %v4073 = vunpack.c.h.b16 %v2840
        %v4074 = vunpack.c.l.b16 %v2841
        %v4075 = vunpack.c.h.b16 %v2841
        %v4076 = vunpack.c.l.b16 %v2842
        %v4077 = vunpack.c.h.b16 %v2842
        %v4078 = vunpack.c.l.b16 %v2843
        %v4079 = vunpack.c.h.b16 %v2843
        %v4080 = vunpack.c.l.b16 %v2844
        %v4081 = vunpack.c.h.b16 %v2844
        %v4082 = vunpack.c.l.b16 %v2845
        %v4083 = vunpack.c.h.b16 %v2845
        %v4084 = vunpack.c.l.b16 %v2846
        %v4085 = vunpack.c.h.b16 %v2846
        %v4086 = vunpack.c.l.b16 %v2847
        %v4087 = vunpack.c.h.b16 %v2847
        %v4088 = vunpack.c.l.b16 %v2848
        %v4089 = vunpack.c.h.b16 %v2848
        %v4090 = vunpack.c.l.b16 %v2849
        %v4091 = vunpack.c.h.b16 %v2849
        %v4092 = vunpack.c.l.b16 %v2850
        %v4093 = vunpack.c.h.b16 %v2850
        %v4094 = vunpack.c.l.b16 %v2851
        %v4095 = vunpack.c.h.b16 %v2851
        %v4096 = vunpack.c.l.b16 %v2852
        %v4097 = vunpack.c.h.b16 %v2852
        %v4098 = vunpack.c.l.b16 %v2853
        %v4099 = vunpack.c.h.b16 %v2853
        %v4100 = vunpack.c.l.b16 %v2854
        %v4101 = vunpack.c.h.b16 %v2854
        %v4102 = vunpack.c.l.b16 %v2855
        %v4103 = vunpack.c.h.b16 %v2855
        %v4104 = vunpack.c.l.b16 %v2856
        %v4105 = vunpack.c.h.b16 %v2856
        %v4106 = vpack.c.b16 %v3916, %v3914
        %v4107 = vpack.c.b16 %v3917, %v3915
        %v4108 = vpack.c.b16 %v3920, %v3918
        %v4109 = vpack.c.b16 %v3921, %v3919
        %v4110 = vpack.c.b16 %v3924, %v3922
        %v4111 = vpack.c.b16 %v3925, %v3923
        %v4112 = vpack.c.b16 %v3928, %v3926
        %v4113 = vpack.c.b16 %v3929, %v3927
        %v4114 = vpack.c.b16 %v3932, %v3930
        %v4115 = vpack.c.b16 %v3933, %v3931
        %v4116 = vpack.c.b16 %v3936, %v3934
        %v4117 = vpack.c.b16 %v3937, %v3935
        %v4118 = vpack.c.b16 %v3940, %v3938
        %v4119 = vpack.c.b16 %v3941, %v3939
        %v4120 = vpack.c.b16 %v3944, %v3942
        %v4121 = vpack.c.b16 %v3945, %v3943
        %v4122 = vpack.c.b16 %v3948, %v3946
        %v4123 = vpack.c.b16 %v3949, %v3947
        %v4124 = vpack.c.b16 %v3952, %v3950
        %v4125 = vpack.c.b16 %v3953, %v3951
        %v4126 = vpack.c.b16 %v3956, %v3954
        %v4127 = vpack.c.b16 %v3957, %v3955
        %v4128 = vpack.c.b16 %v3960, %v3958
        %v4129 = vpack.c.b16 %v3961, %v3959
        %v4130 = vpack.c.b16 %v3964, %v3962
        %v4131 = vpack.c.b16 %v3965, %v3963
        %v4132 = vpack.c.b16 %v3968, %v3966
        %v4133 = vpack.c.b16 %v3969, %v3967
        %v4134 = vpack.c.b16 %v3972, %v3970
        %v4135 = vpack.c.b16 %v3973, %v3971
        %v4136 = vpack.c.b16 %v3976, %v3974
        %v4137 = vpack.c.b16 %v3977, %v3975
        %v4138 = vpack.c.b16 %v3980, %v3978
        %v4139 = vpack.c.b16 %v3981, %v3979
        %v4140 = vpack.c.b16 %v3984, %v3982
        %v4141 = vpack.c.b16 %v3985, %v3983
        %v4142 = vpack.c.b16 %v3988, %v3986
        %v4143 = vpack.c.b16 %v3989, %v3987
        %v4144 = vpack.c.b16 %v3992, %v3990
        %v4145 = vpack.c.b16 %v3993, %v3991
        %v4146 = vpack.c.b16 %v3996, %v3994
        %v4147 = vpack.c.b16 %v3997, %v3995
        %v4148 = vpack.c.b16 %v4000, %v3998
        %v4149 = vpack.c.b16 %v4001, %v3999
        %v4150 = vpack.c.b16 %v4004, %v4002
        %v4151 = vpack.c.b16 %v4005, %v4003
        %v4152 = vpack.c.b16 %v4008, %v4006
        %v4153 = vpack.c.b16 %v4009, %v4007
        %v4154 = vpack.c.b16 %v4012, %v4010
        %v4155 = vpack.c.b16 %v4013, %v4011
        %v4156 = vpack.c.b16 %v4016, %v4014
        %v4157 = vpack.c.b16 %v4017, %v4015
        %v4158 = vpack.c.b16 %v4020, %v4018
        %v4159 = vpack.c.b16 %v4021, %v4019
        %v4160 = vpack.c.b16 %v4024, %v4022
        %v4161 = vpack.c.b16 %v4025, %v4023
        %v4162 = vpack.c.b16 %v4028, %v4026
        %v4163 = vpack.c.b16 %v4029, %v4027
        %v4164 = vpack.c.b16 %v4032, %v4030
        %v4165 = vpack.c.b16 %v4033, %v4031
        %v4166 = vpack.c.b16 %v4036, %v4034
        %v4167 = vpack.c.b16 %v4037, %v4035
        %v4168 = vpack.c.b16 %v4040, %v4038
        %v4169 = vpack.c.b16 %v4041, %v4039
        %v4170 = vpack.c.b16 %v4044, %v4042
        %v4171 = vpack.c.b16 %v4045, %v4043
        %v4172 = vpack.c.b16 %v4048, %v4046
        %v4173 = vpack.c.b16 %v4049, %v4047
        %v4174 = vpack.c.b16 %v4052, %v4050
        %v4175 = vpack.c.b16 %v4053, %v4051
        %v4176 = vpack.c.b16 %v4056, %v4054
        %v4177 = vpack.c.b16 %v4057, %v4055
        %v4178 = vpack.c.b16 %v4060, %v4058
        %v4179 = vpack.c.b16 %v4061, %v4059
        %v4180 = vpack.c.b16 %v4064, %v4062
        %v4181 = vpack.c.b16 %v4065, %v4063
        %v4182 = vpack.c.b16 %v4068, %v4066
        %v4183 = vpack.c.b16 %v4069, %v4067
        %v4184 = vpack.c.b16 %v4072, %v4070
        %v4185 = vpack.c.b16 %v4073, %v4071
        %v4186 = vpack.c.b16 %v4076, %v4074
        %v4187 = vpack.c.b16 %v4077, %v4075
        %v4188 = vpack.c.b16 %v4080, %v4078
        %v4189 = vpack.c.b16 %v4081, %v4079
        %v4190 = vpack.c.b16 %v4084, %v4082
        %v4191 = vpack.c.b16 %v4085, %v4083
        %v4192 = vpack.c.b16 %v4088, %v4086
        %v4193 = vpack.c.b16 %v4089, %v4087
        %v4194 = vpack.c.b16 %v4092, %v4090
        %v4195 = vpack.c.b16 %v4093, %v4091
        %v4196 = vpack.c.b16 %v4096, %v4094
        %v4197 = vpack.c.b16 %v4097, %v4095
        %v4198 = vpack.c.b16 %v4100, %v4098
        %v4199 = vpack.c.b16 %v4101, %v4099
        %v4200 = vpack.c.b16 %v4104, %v4102
        %v4201 = vpack.c.b16 %v4105, %v4103
        %4298 = vmatprep.subr.bf16.mxu0 %v4107
        %4299 = vmatpush1.bf16.msra.mxu0 %v4106
        %4300 = vmatprep.subr.bf16.mxu0 %v4109
        %4301 = vmatpush1.bf16.msra.mxu0 %v4108
        %4302 = vmatprep.subr.bf16.mxu0 %v4111
        %4303 = vmatpush1.bf16.msra.mxu0 %v4110
        %4304 = vmatprep.subr.bf16.mxu0 %v4113
        %4305 = vmatpush1.bf16.msra.mxu0 %v4112
        %4306 = vmatprep.subr.bf16.mxu0 %v4115
        %4307 = vmatpush1.bf16.msra.mxu0 %v4114
        %4308 = vmatprep.subr.bf16.mxu0 %v4117
        %4309 = vmatpush1.bf16.msra.mxu0 %v4116
        %4310 = vmatprep.subr.bf16.mxu0 %v4119
        %4311 = vmatpush1.bf16.msra.mxu0 %v4118
        %4312 = vmatprep.subr.bf16.mxu0 %v4121
        %4313 = vmatpush1.bf16.msra.mxu0 %v4120
        %4314 = vmatprep.subr.bf16.mxu0 %v4123
        %4315 = vmatpush1.bf16.msra.mxu0 %v4122
        %4316 = vmatprep.subr.bf16.mxu0 %v4125
        %4317 = vmatpush1.bf16.msra.mxu0 %v4124
        %4318 = vmatprep.subr.bf16.mxu0 %v4127
        %4319 = vmatpush1.bf16.msra.mxu0 %v4126
        %4320 = vmatprep.subr.bf16.mxu0 %v4129
        %4321 = vmatpush1.bf16.msra.mxu0 %v4128
        %4322 = vmatprep.subr.bf16.mxu0 %v4131
        %4323 = vmatpush1.bf16.msra.mxu0 %v4130
        %4324 = vmatprep.subr.bf16.mxu0 %v4133
        %4325 = vmatpush1.bf16.msra.mxu0 %v4132
        %4326 = vmatprep.subr.bf16.mxu0 %v4135
        %4327 = vmatpush1.bf16.msra.mxu0 %v4134
        %4328 = vmatprep.subr.bf16.mxu0 %v4137
        %4329 = vmatpush1.bf16.msra.mxu0 %v4136
        %4330 = vmatprep.mubr.bf16.mxu0 %v3793
        %4331 = vmatmul.mubr.bf16.gmra.mrb[0].mxu0 %v3792
        %v4332 = vpop.f32.mrb[0].mxu0
        %v4333 = vadd.f32 %v3813, %v4332
        %v4334 = vpop.f32.mrb[0].mxu0
        %v4335 = vadd.f32 %v3817, %v4334
        %v4336 = vpop.f32.mrb[0].mxu0
        %v4337 = vadd.f32 %v3813, %v4336
        %v4338 = vpop.f32.mrb[0].mxu0
        %v4339 = vadd.f32 %v3817, %v4338
        %4340 = vmatprep.mubr.bf16.mxu0 %v3799
        %4341 = vmatmul.mubr.bf16.gmra.mrb[0].mxu0 %v3798
        %v4342 = vpop.f32.mrb[0].mxu0
        %v4343 = vadd.f32 %v3813, %v4342
        %v4344 = vpop.f32.mrb[0].mxu0
        %v4345 = vadd.f32 %v3817, %v4344
        %v4346 = vpop.f32.mrb[0].mxu0
        %v4347 = vadd.f32 %v3813, %v4346
        %v4348 = vpop.f32.mrb[0].mxu0
        %v4349 = vadd.f32 %v3817, %v4348
        %4350 = vmatprep.mubr.bf16.mxu0 %v3805
        %4351 = vmatmul.mubr.bf16.gmra.mrb[0].mxu0 %v3804
        %v4352 = vpop.f32.mrb[0].mxu0
        %v4353 = vadd.f32 %v3813, %v4352
        %v4354 = vpop.f32.mrb[0].mxu0
        %v4355 = vadd.f32 %v3817, %v4354
        %v4356 = vpop.f32.mrb[0].mxu0
        %v4357 = vpop.f32.mrb[0].mxu0
        %4358 = vdwg.mxu0
        %4359 = vmatprep.subr.bf16.mxu0 %v4139
        %4360 = vmatpush1.bf16.msra.mxu0 %v4138
        %4361 = vmatprep.subr.bf16.mxu0 %v4141
        %4362 = vmatpush1.bf16.msra.mxu0 %v4140
        %4363 = vmatprep.subr.bf16.mxu0 %v4143
        %4364 = vmatpush1.bf16.msra.mxu0 %v4142
        %4365 = vmatprep.subr.bf16.mxu0 %v4145
        %4366 = vmatpush1.bf16.msra.mxu0 %v4144
        %4367 = vmatprep.subr.bf16.mxu0 %v4147
        %4368 = vmatpush1.bf16.msra.mxu0 %v4146
        %4369 = vmatprep.subr.bf16.mxu0 %v4149
        %4370 = vmatpush1.bf16.msra.mxu0 %v4148
        %4371 = vmatprep.subr.bf16.mxu0 %v4151
        %4372 = vmatpush1.bf16.msra.mxu0 %v4150
        %4373 = vmatprep.subr.bf16.mxu0 %v4153
        %4374 = vmatpush1.bf16.msra.mxu0 %v4152
        %4375 = vmatprep.subr.bf16.mxu0 %v4155
        %4376 = vmatpush1.bf16.msra.mxu0 %v4154
        %4377 = vmatprep.subr.bf16.mxu0 %v4157
        %4378 = vmatpush1.bf16.msra.mxu0 %v4156
        %4379 = vmatprep.subr.bf16.mxu0 %v4159
        %4380 = vmatpush1.bf16.msra.mxu0 %v4158
        %4381 = vmatprep.subr.bf16.mxu0 %v4161
        %4382 = vmatpush1.bf16.msra.mxu0 %v4160
        %4383 = vmatprep.subr.bf16.mxu0 %v4163
        %4384 = vmatpush1.bf16.msra.mxu0 %v4162
        %4385 = vmatprep.subr.bf16.mxu0 %v4165
        %4386 = vmatpush1.bf16.msra.mxu0 %v4164
        %4387 = vmatprep.subr.bf16.mxu0 %v4167
        %4388 = vmatpush1.bf16.msra.mxu0 %v4166
        %4389 = vmatprep.subr.bf16.mxu0 %v4169
        %4390 = vmatpush1.bf16.msra.mxu0 %v4168
        %4391 = vmatprep.mubr.bf16.mxu0 %v3795
        %4392 = vmatmul.mubr.bf16.gmra.mrb[0].mxu0 %v3794
        %v4393 = vpop.f32.mrb[0].mxu0
        %v4394 = vadd.f32 %v4333, %v4393
        %v4395 = vpop.f32.mrb[0].mxu0
        %v4396 = vadd.f32 %v4335, %v4395
        %v4397 = vpop.f32.mrb[0].mxu0
        %v4398 = vadd.f32 %v4337, %v4397
        %v4399 = vpop.f32.mrb[0].mxu0
        %v4400 = vadd.f32 %v4339, %v4399
        %4401 = vmatprep.mubr.bf16.mxu0 %v3801
        %4402 = vmatmul.mubr.bf16.gmra.mrb[0].mxu0 %v3800
        %v4403 = vpop.f32.mrb[0].mxu0
        %v4404 = vadd.f32 %v4343, %v4403
        %v4405 = vpop.f32.mrb[0].mxu0
        %v4406 = vadd.f32 %v4345, %v4405
        %v4407 = vpop.f32.mrb[0].mxu0
        %v4408 = vadd.f32 %v4347, %v4407
        %v4409 = vpop.f32.mrb[0].mxu0
        %v4410 = vadd.f32 %v4349, %v4409
        %4411 = vmatprep.mubr.bf16.mxu0 %v3807
        %4412 = vmatmul.mubr.bf16.gmra.mrb[0].mxu0 %v3806
        %v4413 = vpop.f32.mrb[0].mxu0
        %v4414 = vadd.f32 %v4353, %v4413
        %v4415 = vpop.f32.mrb[0].mxu0
        %v4416 = vadd.f32 %v4355, %v4415
        %v4417 = vpop.f32.mrb[0].mxu0
        %v4418 = vpop.f32.mrb[0].mxu0
        %4419 = vdwg.mxu0
        %4420 = vmatprep.subr.bf16.mxu0 %v4171
        %4421 = vmatpush1.bf16.msra.mxu0 %v4170
        %4422 = vmatprep.subr.bf16.mxu0 %v4173
        %4423 = vmatpush1.bf16.msra.mxu0 %v4172
        %4424 = vmatprep.subr.bf16.mxu0 %v4175
        %4425 = vmatpush1.bf16.msra.mxu0 %v4174
        %4426 = vmatprep.subr.bf16.mxu0 %v4177
        %4427 = vmatpush1.bf16.msra.mxu0 %v4176
        %4428 = vmatprep.subr.bf16.mxu0 %v4179
        %4429 = vmatpush1.bf16.msra.mxu0 %v4178
        %4430 = vmatprep.subr.bf16.mxu0 %v4181
        %4431 = vmatpush1.bf16.msra.mxu0 %v4180
        %4432 = vmatprep.subr.bf16.mxu0 %v4183
        %4433 = vmatpush1.bf16.msra.mxu0 %v4182
        %4434 = vmatprep.subr.bf16.mxu0 %v4185
        %4435 = vmatpush1.bf16.msra.mxu0 %v4184
        %4436 = vmatprep.subr.bf16.mxu0 %v4187
        %4437 = vmatpush1.bf16.msra.mxu0 %v4186
        %4438 = vmatprep.subr.bf16.mxu0 %v4189
        %4439 = vmatpush1.bf16.msra.mxu0 %v4188
        %4440 = vmatprep.subr.bf16.mxu0 %v4191
        %4441 = vmatpush1.bf16.msra.mxu0 %v4190
        %4442 = vmatprep.subr.bf16.mxu0 %v4193
        %4443 = vmatpush1.bf16.msra.mxu0 %v4192
        %4444 = vmatprep.subr.bf16.mxu0 %v4195
        %4445 = vmatpush1.bf16.msra.mxu0 %v4194
        %4446 = vmatprep.subr.bf16.mxu0 %v4197
        %4447 = vmatpush1.bf16.msra.mxu0 %v4196
        %4448 = vmatprep.subr.bf16.mxu0 %v4199
        %4449 = vmatpush1.bf16.msra.mxu0 %v4198
        %4450 = vmatprep.subr.bf16.mxu0 %v4201
        %4451 = vmatpush1.bf16.msra.mxu0 %v4200
        %4452 = vmatprep.mubr.bf16.mxu0 %v3797
        %4453 = vmatmul.mubr.bf16.gmra.mrb[0].mxu0 %v3796
        %v4454 = vpop.f32.mrb[0].mxu0
        %v4455 = vadd.f32 %v4394, %v4454
        %v4456 = vpop.f32.mrb[0].mxu0
        %v4457 = vadd.f32 %v4396, %v4456
        %v4458 = vpop.f32.mrb[0].mxu0
        %v4459 = vadd.f32 %v4398, %v4458
        %v4460 = vpop.f32.mrb[0].mxu0
        %v4461 = vadd.f32 %v4400, %v4460
        %4462 = vmatprep.mubr.bf16.mxu0 %v3803
        %4463 = vmatmul.mubr.bf16.gmra.mrb[0].mxu0 %v3802
        %v4464 = vpop.f32.mrb[0].mxu0
        %v4465 = vadd.f32 %v4404, %v4464
        %v4466 = vpop.f32.mrb[0].mxu0
        %v4467 = vadd.f32 %v4406, %v4466
        %v4468 = vpop.f32.mrb[0].mxu0
        %v4469 = vadd.f32 %v4408, %v4468
        %v4470 = vpop.f32.mrb[0].mxu0
        %v4471 = vadd.f32 %v4410, %v4470
        %4472 = vmatprep.mubr.bf16.mxu0 %v3809
        %4473 = vmatmul.mubr.bf16.gmra.mrb[0].mxu0 %v3808
        %v4474 = vpop.f32.mrb[0].mxu0
        %v4475 = vadd.f32 %v4414, %v4474
        %v4476 = vpop.f32.mrb[0].mxu0
        %v4477 = vadd.f32 %v4416, %v4476
        %v4478 = vpop.f32.mrb[0].mxu0
        %v4479 = vpop.f32.mrb[0].mxu0
        %4480 = vdwg.mxu0
        %v4481 = vlaneseq
        %v4482 = vshrl.u32 %v4481, 7
        %v4483 = vsub.s32 2, %v4482
        %v4484 = vrot.slane %v2663, %v4483
        %v4485 = vlaneseq
        %v4486 = vshrl.u32 %v4485, 7
        %v4487 = vsub.s32 2, %v4486
        %v4488 = vrot.slane %v2664, %v4487
        %v4521 = vunpack.c.l.b16 %v2857
        %v4522 = vunpack.c.h.b16 %v2857
        %v4523 = vunpack.c.l.b16 %v2858
        %v4524 = vunpack.c.h.b16 %v2858
        %v4525 = vunpack.c.l.b16 %v2859
        %v4526 = vunpack.c.h.b16 %v2859
        %v4527 = vunpack.c.l.b16 %v2860
        %v4528 = vunpack.c.h.b16 %v2860
        %v4529 = vunpack.c.l.b16 %v2861
        %v4530 = vunpack.c.h.b16 %v2861
        %v4531 = vunpack.c.l.b16 %v2862
        %v4532 = vunpack.c.h.b16 %v2862
        %v4533 = vunpack.c.l.b16 %v2863
        %v4534 = vunpack.c.h.b16 %v2863
        %v4535 = vunpack.c.l.b16 %v2864
        %v4536 = vunpack.c.h.b16 %v2864
        %v4537 = vunpack.c.l.b16 %v2865
        %v4538 = vunpack.c.h.b16 %v2865
        %v4539 = vunpack.c.l.b16 %v2866
        %v4540 = vunpack.c.h.b16 %v2866
        %v4541 = vunpack.c.l.b16 %v2867
        %v4542 = vunpack.c.h.b16 %v2867
        %v4543 = vunpack.c.l.b16 %v2868
        %v4544 = vunpack.c.h.b16 %v2868
        %v4545 = vunpack.c.l.b16 %v2869
        %v4546 = vunpack.c.h.b16 %v2869
        %v4547 = vunpack.c.l.b16 %v2870
        %v4548 = vunpack.c.h.b16 %v2870
        %v4549 = vunpack.c.l.b16 %v2871
        %v4550 = vunpack.c.h.b16 %v2871
        %v4551 = vunpack.c.l.b16 %v2872
        %v4552 = vunpack.c.h.b16 %v2872
        %v4553 = vunpack.c.l.b16 %v2873
        %v4554 = vunpack.c.h.b16 %v2873
        %v4555 = vunpack.c.l.b16 %v2874
        %v4556 = vunpack.c.h.b16 %v2874
        %v4557 = vunpack.c.l.b16 %v2875
        %v4558 = vunpack.c.h.b16 %v2875
        %v4559 = vunpack.c.l.b16 %v2876
        %v4560 = vunpack.c.h.b16 %v2876
        %v4561 = vunpack.c.l.b16 %v2877
        %v4562 = vunpack.c.h.b16 %v2877
        %v4563 = vunpack.c.l.b16 %v2878
        %v4564 = vunpack.c.h.b16 %v2878
        %v4565 = vunpack.c.l.b16 %v2879
        %v4566 = vunpack.c.h.b16 %v2879
        %v4567 = vunpack.c.l.b16 %v2880
        %v4568 = vunpack.c.h.b16 %v2880
        %v4569 = vunpack.c.l.b16 %v2881
        %v4570 = vunpack.c.h.b16 %v2881
        %v4571 = vunpack.c.l.b16 %v2882
        %v4572 = vunpack.c.h.b16 %v2882
        %v4573 = vunpack.c.l.b16 %v2883
        %v4574 = vunpack.c.h.b16 %v2883
        %v4575 = vunpack.c.l.b16 %v2884
        %v4576 = vunpack.c.h.b16 %v2884
        %v4577 = vunpack.c.l.b16 %v2885
        %v4578 = vunpack.c.h.b16 %v2885
        %v4579 = vunpack.c.l.b16 %v2886
        %v4580 = vunpack.c.h.b16 %v2886
        %v4581 = vunpack.c.l.b16 %v2887
        %v4582 = vunpack.c.h.b16 %v2887
        %v4583 = vunpack.c.l.b16 %v2888
        %v4584 = vunpack.c.h.b16 %v2888
        %v4585 = vpack.c.b16 %v4523, %v4521
        %v4586 = vpack.c.b16 %v4524, %v4522
        %v4587 = vpack.c.b16 %v4527, %v4525
        %v4588 = vpack.c.b16 %v4528, %v4526
        %v4589 = vpack.c.b16 %v4531, %v4529
        %v4590 = vpack.c.b16 %v4532, %v4530
        %v4591 = vpack.c.b16 %v4535, %v4533
        %v4592 = vpack.c.b16 %v4536, %v4534
        %v4593 = vpack.c.b16 %v4539, %v4537
        %v4594 = vpack.c.b16 %v4540, %v4538
        %v4595 = vpack.c.b16 %v4543, %v4541
        %v4596 = vpack.c.b16 %v4544, %v4542
        %v4597 = vpack.c.b16 %v4547, %v4545
        %v4598 = vpack.c.b16 %v4548, %v4546
        %v4599 = vpack.c.b16 %v4551, %v4549
        %v4600 = vpack.c.b16 %v4552, %v4550
        %v4601 = vpack.c.b16 %v4555, %v4553
        %v4602 = vpack.c.b16 %v4556, %v4554
        %v4603 = vpack.c.b16 %v4559, %v4557
        %v4604 = vpack.c.b16 %v4560, %v4558
        %v4605 = vpack.c.b16 %v4563, %v4561
        %v4606 = vpack.c.b16 %v4564, %v4562
        %v4607 = vpack.c.b16 %v4567, %v4565
        %v4608 = vpack.c.b16 %v4568, %v4566
        %v4609 = vpack.c.b16 %v4571, %v4569
        %v4610 = vpack.c.b16 %v4572, %v4570
        %v4611 = vpack.c.b16 %v4575, %v4573
        %v4612 = vpack.c.b16 %v4576, %v4574
        %v4613 = vpack.c.b16 %v4579, %v4577
        %v4614 = vpack.c.b16 %v4580, %v4578
        %v4615 = vpack.c.b16 %v4583, %v4581
        %v4616 = vpack.c.b16 %v4584, %v4582
        %4649 = vmatprep.subr.bf16.mxu0 %v4586
        %4650 = vmatpush1.bf16.msra.mxu0 %v4585
        %4651 = vmatprep.subr.bf16.mxu0 %v4588
        %4652 = vmatpush1.bf16.msra.mxu0 %v4587
        %4653 = vmatprep.subr.bf16.mxu0 %v4590
        %4654 = vmatpush1.bf16.msra.mxu0 %v4589
        %4655 = vmatprep.subr.bf16.mxu0 %v4592
        %4656 = vmatpush1.bf16.msra.mxu0 %v4591
        %4657 = vmatprep.subr.bf16.mxu0 %v4594
        %4658 = vmatpush1.bf16.msra.mxu0 %v4593
        %4659 = vmatprep.subr.bf16.mxu0 %v4596
        %4660 = vmatpush1.bf16.msra.mxu0 %v4595
        %4661 = vmatprep.subr.bf16.mxu0 %v4598
        %4662 = vmatpush1.bf16.msra.mxu0 %v4597
        %4663 = vmatprep.subr.bf16.mxu0 %v4600
        %4664 = vmatpush1.bf16.msra.mxu0 %v4599
        %4665 = vmatprep.subr.bf16.mxu0 %v4602
        %4666 = vmatpush1.bf16.msra.mxu0 %v4601
        %4667 = vmatprep.subr.bf16.mxu0 %v4604
        %4668 = vmatpush1.bf16.msra.mxu0 %v4603
        %4669 = vmatprep.subr.bf16.mxu0 %v4606
        %4670 = vmatpush1.bf16.msra.mxu0 %v4605
        %4671 = vmatprep.subr.bf16.mxu0 %v4608
        %4672 = vmatpush1.bf16.msra.mxu0 %v4607
        %4673 = vmatprep.subr.bf16.mxu0 %v4610
        %4674 = vmatpush1.bf16.msra.mxu0 %v4609
        %4675 = vmatprep.subr.bf16.mxu0 %v4612
        %4676 = vmatpush1.bf16.msra.mxu0 %v4611
        %4677 = vmatprep.subr.bf16.mxu0 %v4614
        %4678 = vmatpush1.bf16.msra.mxu0 %v4613
        %4679 = vmatprep.subr.bf16.mxu0 %v4616
        %4680 = vmatpush1.bf16.msra.mxu0 %v4615
        %4681 = vmatprep.mubr.bf16.mxu0 %v3026
        %4682 = vmatmul.mubr.bf16.gmra.mrb[0].mxu0 %v3025
        %v4683 = vpop.f32.mrb[0].mxu0
        %v4684 = vadd.f32 %v4484, %v4683
        %v4685 = vpop.f32.mrb[0].mxu0
        %v4686 = vadd.f32 %v4488, %v4685
        %v4687 = vpop.f32.mrb[0].mxu0
        %v4688 = vadd.f32 %v4484, %v4687
        %v4689 = vpop.f32.mrb[0].mxu0
        %v4690 = vadd.f32 %v4488, %v4689
        %4691 = vmatprep.mubr.bf16.mxu0 %v3032
        %4692 = vmatmul.mubr.bf16.gmra.mrb[0].mxu0 %v3031
        %v4693 = vpop.f32.mrb[0].mxu0
        %v4694 = vadd.f32 %v4484, %v4693
        %v4695 = vpop.f32.mrb[0].mxu0
        %v4696 = vadd.f32 %v4488, %v4695
        %v4697 = vpop.f32.mrb[0].mxu0
        %v4698 = vadd.f32 %v4484, %v4697
        %v4699 = vpop.f32.mrb[0].mxu0
        %v4700 = vadd.f32 %v4488, %v4699
        %4701 = vmatprep.mubr.bf16.mxu0 %v3038
        %4702 = vmatmul.mubr.bf16.gmra.mrb[0].mxu0 %v3037
        %v4703 = vpop.f32.mrb[0].mxu0
        %v4704 = vadd.f32 %v4484, %v4703
        %v4705 = vpop.f32.mrb[0].mxu0
        %v4706 = vadd.f32 %v4488, %v4705
        %v4707 = vpop.f32.mrb[0].mxu0
        %v4708 = vpop.f32.mrb[0].mxu0
        %4709 = vdwg.mxu0
        %v4710 = vadd.f32 %v4455, %v4459
        %v4711 = vadd.f32 %v4710, %v4465
        %v4712 = vadd.f32 %v4711, %v4469
        %v4713 = vadd.f32 %v4712, %v4475
        %v4714 = vrot.slane %v4713, 4
        %v4715 = vadd.f32 %v4713, %v4714
        %v4716 = vrot.slane %v4715, 2
        %v4717 = vadd.f32 %v4715, %v4716
        %v4718 = vrot.slane %v4717, 1
        %v4719 = vadd.f32 %v4717, %v4718
        %v4720 = vadd.f32 %v4457, %v4461
        %v4721 = vadd.f32 %v4720, %v4467
        %v4722 = vadd.f32 %v4721, %v4471
        %v4723 = vadd.f32 %v4722, %v4477
        %v4724 = vrot.slane %v4723, 4
        %v4725 = vadd.f32 %v4723, %v4724
        %v4726 = vrot.slane %v4725, 2
        %v4727 = vadd.f32 %v4725, %v4726
        %v4728 = vrot.slane %v4727, 1
        %v4729 = vadd.f32 %v4727, %v4728
        %v4730 = vrcp.pop 40.0
        %v4731 = vmul.f32 %v4719, %v4730
        %v4732 = vmul.f32 %v4729, %v4730
        %v4733 = vpack.c.bf16 %v4731, %v4731
        %v4734 = vpack.c.bf16 %v4732, %v4732
        %v4767 = vunpack.c.l.b16 %v2889
        %v4768 = vunpack.c.h.b16 %v2889
        %v4769 = vunpack.c.l.b16 %v2890
        %v4770 = vunpack.c.h.b16 %v2890
        %v4771 = vunpack.c.l.b16 %v2891
        %v4772 = vunpack.c.h.b16 %v2891
        %v4773 = vunpack.c.l.b16 %v2892
        %v4774 = vunpack.c.h.b16 %v2892
        %v4775 = vunpack.c.l.b16 %v2893
        %v4776 = vunpack.c.h.b16 %v2893
        %v4777 = vunpack.c.l.b16 %v2894
        %v4778 = vunpack.c.h.b16 %v2894
        %v4779 = vunpack.c.l.b16 %v2895
        %v4780 = vunpack.c.h.b16 %v2895
        %v4781 = vunpack.c.l.b16 %v2896
        %v4782 = vunpack.c.h.b16 %v2896
        %v4783 = vunpack.c.l.b16 %v2897
        %v4784 = vunpack.c.h.b16 %v2897
        %v4785 = vunpack.c.l.b16 %v2898
        %v4786 = vunpack.c.h.b16 %v2898
        %v4787 = vunpack.c.l.b16 %v2899
        %v4788 = vunpack.c.h.b16 %v2899
        %v4789 = vunpack.c.l.b16 %v2900
        %v4790 = vunpack.c.h.b16 %v2900
        %v4791 = vunpack.c.l.b16 %v2901
        %v4792 = vunpack.c.h.b16 %v2901
        %v4793 = vunpack.c.l.b16 %v2902
        %v4794 = vunpack.c.h.b16 %v2902
        %v4795 = vunpack.c.l.b16 %v2903
        %v4796 = vunpack.c.h.b16 %v2903
        %v4797 = vunpack.c.l.b16 %v2904
        %v4798 = vunpack.c.h.b16 %v2904
        %v4799 = vunpack.c.l.b16 %v2905
        %v4800 = vunpack.c.h.b16 %v2905
        %v4801 = vunpack.c.l.b16 %v2906
        %v4802 = vunpack.c.h.b16 %v2906
        %v4803 = vunpack.c.l.b16 %v2907
        %v4804 = vunpack.c.h.b16 %v2907
        %v4805 = vunpack.c.l.b16 %v2908
        %v4806 = vunpack.c.h.b16 %v2908
        %v4807 = vunpack.c.l.b16 %v2909
        %v4808 = vunpack.c.h.b16 %v2909
        %v4809 = vunpack.c.l.b16 %v2910
        %v4810 = vunpack.c.h.b16 %v2910
        %v4811 = vunpack.c.l.b16 %v2911
        %v4812 = vunpack.c.h.b16 %v2911
        %v4813 = vunpack.c.l.b16 %v2912
        %v4814 = vunpack.c.h.b16 %v2912
        %v4815 = vunpack.c.l.b16 %v2913
        %v4816 = vunpack.c.h.b16 %v2913
        %v4817 = vunpack.c.l.b16 %v2914
        %v4818 = vunpack.c.h.b16 %v2914
        %v4819 = vunpack.c.l.b16 %v2915
        %v4820 = vunpack.c.h.b16 %v2915
        %v4821 = vunpack.c.l.b16 %v2916
        %v4822 = vunpack.c.h.b16 %v2916
        %v4823 = vunpack.c.l.b16 %v2917
        %v4824 = vunpack.c.h.b16 %v2917
        %v4825 = vunpack.c.l.b16 %v2918
        %v4826 = vunpack.c.h.b16 %v2918
        %v4827 = vunpack.c.l.b16 %v2919
        %v4828 = vunpack.c.h.b16 %v2919
        %v4829 = vunpack.c.l.b16 %v2920
        %v4830 = vunpack.c.h.b16 %v2920
        %v4831 = vpack.c.b16 %v4769, %v4767
        %v4832 = vpack.c.b16 %v4770, %v4768
        %v4833 = vpack.c.b16 %v4773, %v4771
        %v4834 = vpack.c.b16 %v4774, %v4772
        %v4835 = vpack.c.b16 %v4777, %v4775
        %v4836 = vpack.c.b16 %v4778, %v4776
        %v4837 = vpack.c.b16 %v4781, %v4779
        %v4838 = vpack.c.b16 %v4782, %v4780
        %v4839 = vpack.c.b16 %v4785, %v4783
        %v4840 = vpack.c.b16 %v4786, %v4784
        %v4841 = vpack.c.b16 %v4789, %v4787
        %v4842 = vpack.c.b16 %v4790, %v4788
        %v4843 = vpack.c.b16 %v4793, %v4791
        %v4844 = vpack.c.b16 %v4794, %v4792
        %v4845 = vpack.c.b16 %v4797, %v4795
        %v4846 = vpack.c.b16 %v4798, %v4796
        %v4847 = vpack.c.b16 %v4801, %v4799
        %v4848 = vpack.c.b16 %v4802, %v4800
        %v4849 = vpack.c.b16 %v4805, %v4803
        %v4850 = vpack.c.b16 %v4806, %v4804
        %v4851 = vpack.c.b16 %v4809, %v4807
        %v4852 = vpack.c.b16 %v4810, %v4808
        %v4853 = vpack.c.b16 %v4813, %v4811
        %v4854 = vpack.c.b16 %v4814, %v4812
        %v4855 = vpack.c.b16 %v4817, %v4815
        %v4856 = vpack.c.b16 %v4818, %v4816
        %v4857 = vpack.c.b16 %v4821, %v4819
        %v4858 = vpack.c.b16 %v4822, %v4820
        %v4859 = vpack.c.b16 %v4825, %v4823
        %v4860 = vpack.c.b16 %v4826, %v4824
        %v4861 = vpack.c.b16 %v4829, %v4827
        %v4862 = vpack.c.b16 %v4830, %v4828
        %v4897 = vrot.slane %v2663, 3
        %v4898 = vrot.slane %v2664, 3
        %4901 = vmatprep.subr.bf16.mxu0 %v4832
        %4902 = vmatpush1.bf16.msra.mxu0 %v4831
        %4903 = vmatprep.subr.bf16.mxu0 %v4834
        %4904 = vmatpush1.bf16.msra.mxu0 %v4833
        %4905 = vmatprep.subr.bf16.mxu0 %v4836
        %4906 = vmatpush1.bf16.msra.mxu0 %v4835
        %4907 = vmatprep.subr.bf16.mxu0 %v4838
        %4908 = vmatpush1.bf16.msra.mxu0 %v4837
        %4909 = vmatprep.subr.bf16.mxu0 %v4840
        %4910 = vmatpush1.bf16.msra.mxu0 %v4839
        %4911 = vmatprep.subr.bf16.mxu0 %v4842
        %4912 = vmatpush1.bf16.msra.mxu0 %v4841
        %4913 = vmatprep.subr.bf16.mxu0 %v4844
        %4914 = vmatpush1.bf16.msra.mxu0 %v4843
        %4915 = vmatprep.subr.bf16.mxu0 %v4846
        %4916 = vmatpush1.bf16.msra.mxu0 %v4845
        %4917 = vmatprep.subr.bf16.mxu0 %v4848
        %4918 = vmatpush1.bf16.msra.mxu0 %v4847
        %4919 = vmatprep.subr.bf16.mxu0 %v4850
        %4920 = vmatpush1.bf16.msra.mxu0 %v4849
        %4921 = vmatprep.subr.bf16.mxu0 %v4852
        %4922 = vmatpush1.bf16.msra.mxu0 %v4851
        %4923 = vmatprep.subr.bf16.mxu0 %v4854
        %4924 = vmatpush1.bf16.msra.mxu0 %v4853
        %4925 = vmatprep.subr.bf16.mxu0 %v4856
        %4926 = vmatpush1.bf16.msra.mxu0 %v4855
        %4927 = vmatprep.subr.bf16.mxu0 %v4858
        %4928 = vmatpush1.bf16.msra.mxu0 %v4857
        %4929 = vmatprep.subr.bf16.mxu0 %v4860
        %4930 = vmatpush1.bf16.msra.mxu0 %v4859
        %4931 = vmatprep.subr.bf16.mxu0 %v4862
        %4932 = vmatpush1.bf16.msra.mxu0 %v4861
        %4933 = vmatprep.mubr.bf16.mxu0 %v4734
        %4934 = vmatmul.mubr.bf16.gmra.mrb[0].mxu0 %v4733
        %v4935 = vpop.f32.mrb[0].mxu0
        %v4936 = vadd.f32 %v4897, %v4935
        %v4937 = vpop.f32.mrb[0].mxu0
        %v4938 = vadd.f32 %v4898, %v4937
        %v4939 = vpop.f32.mrb[0].mxu0
        %v4940 = vpop.f32.mrb[0].mxu0
        %4941 = vdwg.mxu0
        %v4942 = vmax.f32 %v4936, 0.0
        %v4943 = vmax.f32 %v4938, 0.0
        %v4944 = vmin.f32 %v4936, 0.0
        %v4945 = vmin.f32 %v4938, 0.0
        %v4948 = vrot.slane %v4944, 3
        %v4949 = vrot.slane %v4945, 3
        %v4952 = vmul.f32 %v2663, %v4948
        %v4953 = vmul.f32 %v2664, %v4949
        %v4956 = vrot.slane %v4952, 5
        %v4957 = vrot.slane %v4953, 5
        %v4960 = vadd.f32 %v4942, %v4956
        %v4961 = vadd.f32 %v4943, %v4957
        %v4962 = vpack.c.bf16 %v4960, %v4960
        %v4963 = vpack.c.bf16 %v4961, %v4961
        %v4996 = vunpack.c.l.b16 %v2921
        %v4997 = vunpack.c.h.b16 %v2921
        %v4998 = vunpack.c.l.b16 %v2922
        %v4999 = vunpack.c.h.b16 %v2922
        %v5000 = vunpack.c.l.b16 %v2923
        %v5001 = vunpack.c.h.b16 %v2923
        %v5002 = vunpack.c.l.b16 %v2924
        %v5003 = vunpack.c.h.b16 %v2924
        %v5004 = vunpack.c.l.b16 %v2925
        %v5005 = vunpack.c.h.b16 %v2925
        %v5006 = vunpack.c.l.b16 %v2926
        %v5007 = vunpack.c.h.b16 %v2926
        %v5008 = vunpack.c.l.b16 %v2927
        %v5009 = vunpack.c.h.b16 %v2927
        %v5010 = vunpack.c.l.b16 %v2928
        %v5011 = vunpack.c.h.b16 %v2928
        %v5012 = vunpack.c.l.b16 %v2929
        %v5013 = vunpack.c.h.b16 %v2929
        %v5014 = vunpack.c.l.b16 %v2930
        %v5015 = vunpack.c.h.b16 %v2930
        %v5016 = vunpack.c.l.b16 %v2931
        %v5017 = vunpack.c.h.b16 %v2931
        %v5018 = vunpack.c.l.b16 %v2932
        %v5019 = vunpack.c.h.b16 %v2932
        %v5020 = vunpack.c.l.b16 %v2933
        %v5021 = vunpack.c.h.b16 %v2933
        %v5022 = vunpack.c.l.b16 %v2934
        %v5023 = vunpack.c.h.b16 %v2934
        %v5024 = vunpack.c.l.b16 %v2935
        %v5025 = vunpack.c.h.b16 %v2935
        %v5026 = vunpack.c.l.b16 %v2936
        %v5027 = vunpack.c.h.b16 %v2936
        %v5028 = vunpack.c.l.b16 %v2937
        %v5029 = vunpack.c.h.b16 %v2937
        %v5030 = vunpack.c.l.b16 %v2938
        %v5031 = vunpack.c.h.b16 %v2938
        %v5032 = vunpack.c.l.b16 %v2939
        %v5033 = vunpack.c.h.b16 %v2939
        %v5034 = vunpack.c.l.b16 %v2940
        %v5035 = vunpack.c.h.b16 %v2940
        %v5036 = vunpack.c.l.b16 %v2941
        %v5037 = vunpack.c.h.b16 %v2941
        %v5038 = vunpack.c.l.b16 %v2942
        %v5039 = vunpack.c.h.b16 %v2942
        %v5040 = vunpack.c.l.b16 %v2943
        %v5041 = vunpack.c.h.b16 %v2943
        %v5042 = vunpack.c.l.b16 %v2944
        %v5043 = vunpack.c.h.b16 %v2944
        %v5044 = vunpack.c.l.b16 %v2945
        %v5045 = vunpack.c.h.b16 %v2945
        %v5046 = vunpack.c.l.b16 %v2946
        %v5047 = vunpack.c.h.b16 %v2946
        %v5048 = vunpack.c.l.b16 %v2947
        %v5049 = vunpack.c.h.b16 %v2947
        %v5050 = vunpack.c.l.b16 %v2948
        %v5051 = vunpack.c.h.b16 %v2948
        %v5052 = vunpack.c.l.b16 %v2949
        %v5053 = vunpack.c.h.b16 %v2949
        %v5054 = vunpack.c.l.b16 %v2950
        %v5055 = vunpack.c.h.b16 %v2950
        %v5056 = vunpack.c.l.b16 %v2951
        %v5057 = vunpack.c.h.b16 %v2951
        %v5058 = vunpack.c.l.b16 %v2952
        %v5059 = vunpack.c.h.b16 %v2952
        %v5060 = vpack.c.b16 %v4998, %v4996
        %v5061 = vpack.c.b16 %v4999, %v4997
        %v5062 = vpack.c.b16 %v5002, %v5000
        %v5063 = vpack.c.b16 %v5003, %v5001
        %v5064 = vpack.c.b16 %v5006, %v5004
        %v5065 = vpack.c.b16 %v5007, %v5005
        %v5066 = vpack.c.b16 %v5010, %v5008
        %v5067 = vpack.c.b16 %v5011, %v5009
        %v5068 = vpack.c.b16 %v5014, %v5012
        %v5069 = vpack.c.b16 %v5015, %v5013
        %v5070 = vpack.c.b16 %v5018, %v5016
        %v5071 = vpack.c.b16 %v5019, %v5017
        %v5072 = vpack.c.b16 %v5022, %v5020
        %v5073 = vpack.c.b16 %v5023, %v5021
        %v5074 = vpack.c.b16 %v5026, %v5024
        %v5075 = vpack.c.b16 %v5027, %v5025
        %v5076 = vpack.c.b16 %v5030, %v5028
        %v5077 = vpack.c.b16 %v5031, %v5029
        %v5078 = vpack.c.b16 %v5034, %v5032
        %v5079 = vpack.c.b16 %v5035, %v5033
        %v5080 = vpack.c.b16 %v5038, %v5036
        %v5081 = vpack.c.b16 %v5039, %v5037
        %v5082 = vpack.c.b16 %v5042, %v5040
        %v5083 = vpack.c.b16 %v5043, %v5041
        %v5084 = vpack.c.b16 %v5046, %v5044
        %v5085 = vpack.c.b16 %v5047, %v5045
        %v5086 = vpack.c.b16 %v5050, %v5048
        %v5087 = vpack.c.b16 %v5051, %v5049
        %v5088 = vpack.c.b16 %v5054, %v5052
        %v5089 = vpack.c.b16 %v5055, %v5053
        %v5090 = vpack.c.b16 %v5058, %v5056
        %v5091 = vpack.c.b16 %v5059, %v5057
        %v5124 = vrot.slane %v2663, 4
        %v5125 = vrot.slane %v2664, 4
        %5128 = vmatprep.subr.bf16.mxu0 %v5061
        %5129 = vmatpush1.bf16.msra.mxu0 %v5060
        %5130 = vmatprep.subr.bf16.mxu0 %v5063
        %5131 = vmatpush1.bf16.msra.mxu0 %v5062
        %5132 = vmatprep.subr.bf16.mxu0 %v5065
        %5133 = vmatpush1.bf16.msra.mxu0 %v5064
        %5134 = vmatprep.subr.bf16.mxu0 %v5067
        %5135 = vmatpush1.bf16.msra.mxu0 %v5066
        %5136 = vmatprep.subr.bf16.mxu0 %v5069
        %5137 = vmatpush1.bf16.msra.mxu0 %v5068
        %5138 = vmatprep.subr.bf16.mxu0 %v5071
        %5139 = vmatpush1.bf16.msra.mxu0 %v5070
        %5140 = vmatprep.subr.bf16.mxu0 %v5073
        %5141 = vmatpush1.bf16.msra.mxu0 %v5072
        %5142 = vmatprep.subr.bf16.mxu0 %v5075
        %5143 = vmatpush1.bf16.msra.mxu0 %v5074
        %5144 = vmatprep.subr.bf16.mxu0 %v5077
        %5145 = vmatpush1.bf16.msra.mxu0 %v5076
        %5146 = vmatprep.subr.bf16.mxu0 %v5079
        %5147 = vmatpush1.bf16.msra.mxu0 %v5078
        %5148 = vmatprep.subr.bf16.mxu0 %v5081
        %5149 = vmatpush1.bf16.msra.mxu0 %v5080
        %5150 = vmatprep.subr.bf16.mxu0 %v5083
        %5151 = vmatpush1.bf16.msra.mxu0 %v5082
        %5152 = vmatprep.subr.bf16.mxu0 %v5085
        %5153 = vmatpush1.bf16.msra.mxu0 %v5084
        %5154 = vmatprep.subr.bf16.mxu0 %v5087
        %5155 = vmatpush1.bf16.msra.mxu0 %v5086
        %5156 = vmatprep.subr.bf16.mxu0 %v5089
        %5157 = vmatpush1.bf16.msra.mxu0 %v5088
        %5158 = vmatprep.subr.bf16.mxu0 %v5091
        %5159 = vmatpush1.bf16.msra.mxu0 %v5090
        %5160 = vmatprep.mubr.bf16.mxu0 %v4963
        %5161 = vmatmul.mubr.bf16.gmra.mrb[0].mxu0 %v4962
        %v5162 = vpop.f32.mrb[0].mxu0
        %v5163 = vadd.f32 %v5124, %v5162
        %v5164 = vpop.f32.mrb[0].mxu0
        %v5165 = vadd.f32 %v5125, %v5164
        %v5166 = vpop.f32.mrb[0].mxu0
        %v5167 = vpop.f32.mrb[0].mxu0
        %5168 = vdwg.mxu0
        %v5169 = vsub.f32 0.0, %v5163
        %v5170 = vsub.f32 0.0, %v5165
        %v5171 = vmul.f32 %v5169, 1.442695
        %v5172 = vpow.pop %v5171
        %v5173 = vmul.f32 %v5170, 1.442695
        %v5174 = vpow.pop %v5173
        %v5175 = vadd.f32 %v5172, 1.0
        %v5176 = vadd.f32 %v5174, 1.0
        %v5177 = vrcp.pop %v5175
        %v5178 = vmul.f32 1.0, %v5177
        %v5179 = vrcp.pop %v5176
        %v5180 = vmul.f32 1.0, %v5179
        %v5181 = vlaneseq
        %v5182 = vshrl.u32 %v5181, 7
        %v5183 = vsub.s32 0, %v5182
        %v5184 = vrot.slane %v5178, %v5183
        %v5185 = vlaneseq
        %v5186 = vshrl.u32 %v5185, 7
        %v5187 = vsub.s32 0, %v5186
        %v5188 = vrot.slane %v5180, %v5187
        %v5189 = vmul.f32 %v4455, %v5184
        %v5190 = vmul.f32 %v4457, %v5188
        %v5191 = vmul.f32 %v4459, %v5184
        %v5192 = vmul.f32 %v4461, %v5188
        %v5193 = vmul.f32 %v4465, %v5184
        %v5194 = vmul.f32 %v4467, %v5188
        %v5195 = vmul.f32 %v4469, %v5184
        %v5196 = vmul.f32 %v4471, %v5188
        %v5197 = vmul.f32 %v4475, %v5184
        %v5198 = vmul.f32 %v4477, %v5188
        %v5199 = vadd.f32 %v5189, %v4684
        %v5200 = vadd.f32 %v5190, %v4686
        %v5201 = vadd.f32 %v5191, %v4688
        %v5202 = vadd.f32 %v5192, %v4690
        %v5203 = vadd.f32 %v5193, %v4694
        %v5204 = vadd.f32 %v5194, %v4696
        %v5205 = vadd.f32 %v5195, %v4698
        %v5206 = vadd.f32 %v5196, %v4700
        %v5207 = vadd.f32 %v5197, %v4704
        %v5208 = vadd.f32 %v5198, %v4706
        %v5209 = vmax.f32 %v5199, 0.0
        %v5210 = vmax.f32 %v5200, 0.0
        %v5211 = vmax.f32 %v5201, 0.0
        %v5212 = vmax.f32 %v5202, 0.0
        %v5213 = vmax.f32 %v5203, 0.0
        %v5214 = vmax.f32 %v5204, 0.0
        %v5215 = vmax.f32 %v5205, 0.0
        %v5216 = vmax.f32 %v5206, 0.0
        %v5217 = vmax.f32 %v5207, 0.0
        %v5218 = vmax.f32 %v5208, 0.0
        %v5229 = vrot.slane %v5209, 1
        %v5230 = vrot.slane %v5211, 1
        %v5231 = vsel %vm1875, %v5229, %v5230
        %v5232 = vrot.slane %v5210, 1
        %v5233 = vrot.slane %v5212, 1
        %v5234 = vsel %vm1875, %v5232, %v5233
        %v5235 = vrot.slane %v5213, 1
        %v5236 = vsel %vm1875, %v5230, %v5235
        %v5237 = vrot.slane %v5214, 1
        %v5238 = vsel %vm1875, %v5233, %v5237
        %v5239 = vrot.slane %v5215, 1
        %v5240 = vsel %vm1875, %v5235, %v5239
        %v5241 = vrot.slane %v5216, 1
        %v5242 = vsel %vm1875, %v5237, %v5241
        %v5243 = vrot.slane %v5217, 1
        %v5244 = vsel %vm1875, %v5239, %v5243
        %v5245 = vrot.slane %v5218, 1
        %v5246 = vsel %vm1875, %v5241, %v5245
        %v5257 = vsel %vm1875, %v5243, 0.0
        %v5258 = vsel %vm1875, %v5245, 0.0
        %v5259 = vld [vmem:[%s3] sm:$0xf]
        %v5260 = vld [vmem:[%s3 + $0x4] sm:$0xf]
        %v5261 = vld [vmem:[%s3 + $0x8] sm:$0x3]
        %v5262 = vpack.c.bf16 %v5211, %v5209
        %v5263 = vpack.c.bf16 %v5212, %v5210
        %v5264 = vpack.c.bf16 %v5236, %v5231
        %v5265 = vpack.c.bf16 %v5238, %v5234
        %v5266 = vpack.c.bf16 %v5215, %v5213
        %v5267 = vpack.c.bf16 %v5216, %v5214
        %v5268 = vpack.c.bf16 %v5244, %v5240
        %v5269 = vpack.c.bf16 %v5246, %v5242
        %v5270 = vpack.c.bf16 %v5217, %v5217
        %v5271 = vpack.c.bf16 %v5218, %v5218
        %v5272 = vpack.c.bf16 %v5257, %v5257
        %v5273 = vpack.c.bf16 %v5258, %v5258
        %v5277 = vunpack.c.l.b16 %v5259
        %v5278 = vunpack.c.l.b16 %v5260
        %v5279 = vunpack.c.l.b16 %v5261
        %v5280 = vpack.c.b16 %v5278, %v5277
        %v5281 = vpack.c.b16 %v5279, %v5279
        %vm5282 = vcmask 326656
        %v5284 = vsel %vm5282, %v5280, 0
        %v5287 = vsel %vm5282, %v5281, 0
        %vm5289 = vcmask 1043456
        %v5291 = vsel %vm5289, %v5270, 0
        %v5294 = vsel %vm5289, %v5271, 0
        %v5297 = vsel %vm5289, %v5272, 0
        %v5300 = vsel %vm5289, %v5273, 0
        %5302 = vmatprep.subr.bf16.mxu0 %v5263
        %5303 = vmatpush1.bf16.msra.mxu0 %v5262
        %5304 = vmatprep.subr.bf16.mxu0 %v5267
        %5305 = vmatpush1.bf16.msra.mxu0 %v5266
        %5306 = vmatprep.subr.bf16.mxu0 %v5294
        %5307 = vmatpush1.bf16.msra.mxu0 %v5291
        %5308 = vmatprep.subr.bf16.mxu0 0
        %5309 = vmatpush1.bf16.msra.mxu0 0
        %5310 = vmatprep.subr.bf16.mxu0 0
        %5311 = vmatpush1.bf16.msra.mxu0 0
        %5312 = vmatprep.subr.bf16.mxu0 0
        %5313 = vmatpush1.bf16.msra.mxu0 0
        %5314 = vmatprep.subr.bf16.mxu0 0
        %5315 = vmatpush1.bf16.msra.mxu0 0
        %5316 = vmatprep.subr.bf16.mxu0 0
        %5317 = vmatpush1.bf16.msra.mxu0 0
        %5318 = vmatprep.subr.bf16.mxu0 0
        %5319 = vmatpush1.bf16.msra.mxu0 0
        %5320 = vmatprep.subr.bf16.mxu0 0
        %5321 = vmatpush1.bf16.msra.mxu0 0
        %5322 = vmatprep.subr.bf16.mxu0 0
        %5323 = vmatpush1.bf16.msra.mxu0 0
        %5324 = vmatprep.subr.bf16.mxu0 0
        %5325 = vmatpush1.bf16.msra.mxu0 0
        %5326 = vmatprep.subr.bf16.mxu0 0
        %5327 = vmatpush1.bf16.msra.mxu0 0
        %5328 = vmatprep.subr.bf16.mxu0 0
        %5329 = vmatpush1.bf16.msra.mxu0 0
        %5330 = vmatprep.subr.bf16.mxu0 0
        %5331 = vmatpush1.bf16.msra.mxu0 0
        %5332 = vmatprep.subr.bf16.mxu0 0
        %5333 = vmatpush1.bf16.msra.mxu0 0
        %5334 = vmatprep.mubr.bf16.mxu0 0
        %5335 = vmatmul.mubr.bf16.gmra.mrb[0].mxu0 %v5284
        %v5336 = vpop.f32.mrb[0].mxu0
        %v5337 = vadd.f32 0.0, %v5336
        %v5338 = vpop.f32.mrb[0].mxu0
        %v5339 = vadd.f32 0.0, %v5338
        %v5340 = vpop.f32.mrb[0].mxu0
        %v5341 = vadd.f32 0.0, %v5340
        %v5342 = vpop.f32.mrb[0].mxu0
        %v5343 = vadd.f32 0.0, %v5342
        %5344 = vmatprep.mubr.bf16.mxu0 0
        %5345 = vmatmul.mubr.bf16.gmra.mrb[0].mxu0 %v5287
        %v5346 = vpop.f32.mrb[0].mxu0
        %v5347 = vadd.f32 0.0, %v5346
        %v5348 = vpop.f32.mrb[0].mxu0
        %v5349 = vadd.f32 0.0, %v5348
        %v5350 = vpop.f32.mrb[0].mxu0
        %v5351 = vpop.f32.mrb[0].mxu0
        %5352 = vdwg.mxu0
        %5353 = vmatprep.subr.bf16.mxu0 %v5265
        %5354 = vmatpush1.bf16.msra.mxu0 %v5264
        %5355 = vmatprep.subr.bf16.mxu0 %v5269
        %5356 = vmatpush1.bf16.msra.mxu0 %v5268
        %5357 = vmatprep.subr.bf16.mxu0 %v5300
        %5358 = vmatpush1.bf16.msra.mxu0 %v5297
        %5359 = vmatprep.subr.bf16.mxu0 0
        %5360 = vmatpush1.bf16.msra.mxu0 0
        %5361 = vmatprep.subr.bf16.mxu0 0
        %5362 = vmatpush1.bf16.msra.mxu0 0
        %5363 = vmatprep.subr.bf16.mxu0 0
        %5364 = vmatpush1.bf16.msra.mxu0 0
        %5365 = vmatprep.subr.bf16.mxu0 0
        %5366 = vmatpush1.bf16.msra.mxu0 0
        %5367 = vmatprep.subr.bf16.mxu0 0
        %5368 = vmatpush1.bf16.msra.mxu0 0
        %5369 = vmatprep.subr.bf16.mxu0 0
        %5370 = vmatpush1.bf16.msra.mxu0 0
        %5371 = vmatprep.subr.bf16.mxu0 0
        %5372 = vmatpush1.bf16.msra.mxu0 0
        %5373 = vmatprep.subr.bf16.mxu0 0
        %5374 = vmatpush1.bf16.msra.mxu0 0
        %5375 = vmatprep.subr.bf16.mxu0 0
        %5376 = vmatpush1.bf16.msra.mxu0 0
        %5377 = vmatprep.subr.bf16.mxu0 0
        %5378 = vmatpush1.bf16.msra.mxu0 0
        %5379 = vmatprep.subr.bf16.mxu0 0
        %5380 = vmatpush1.bf16.msra.mxu0 0
        %5381 = vmatprep.subr.bf16.mxu0 0
        %5382 = vmatpush1.bf16.msra.mxu0 0
        %5383 = vmatprep.subr.bf16.mxu0 0
        %5384 = vmatpush1.bf16.msra.mxu0 0
        %5385 = vmatprep.mubr.bf16.mxu0 0
        %5386 = vmatmul.mubr.bf16.gmra.mrb[0].mxu0 %v5284
        %v5387 = vpop.f32.mrb[0].mxu0
        %v5388 = vadd.f32 0.0, %v5387
        %v5389 = vpop.f32.mrb[0].mxu0
        %v5390 = vadd.f32 0.0, %v5389
        %v5391 = vpop.f32.mrb[0].mxu0
        %v5392 = vadd.f32 0.0, %v5391
        %v5393 = vpop.f32.mrb[0].mxu0
        %v5394 = vadd.f32 0.0, %v5393
        %5395 = vmatprep.mubr.bf16.mxu0 0
        %5396 = vmatmul.mubr.bf16.gmra.mrb[0].mxu0 %v5287
        %v5397 = vpop.f32.mrb[0].mxu0
        %v5398 = vadd.f32 0.0, %v5397
        %v5399 = vpop.f32.mrb[0].mxu0
        %v5400 = vadd.f32 0.0, %v5399
        %v5401 = vpop.f32.mrb[0].mxu0
        %v5402 = vpop.f32.mrb[0].mxu0
        %5403 = vdwg.mxu0
        %v5404 = vld [vmem:[%s10] sm:$0xff]
        %v5405 = vld [vmem:[%s10 + $0x8] sm:$0xff]
        %v5406 = vld [vmem:[%s10 + $0x10] sm:$0xff]
        %v5407 = vld [vmem:[%s10 + $0x18] sm:$0xff]
        %v5408 = vld [vmem:[%s10 + $0x20] sm:$0xff]
        %v5409 = vld [vmem:[%s10 + $0x28] sm:$0xff]
        %v5410 = vld [vmem:[%s10 + $0x30] sm:$0xff]
        %v5411 = vld [vmem:[%s10 + $0x38] sm:$0xff]
        %v5412 = vld [vmem:[%s10 + $0x40] sm:$0xff]
        %v5413 = vld [vmem:[%s10 + $0x48] sm:$0xff]
        %v5414 = vld [vmem:[%s10 + $0x50] sm:$0xff]
        %v5415 = vld [vmem:[%s10 + $0x58] sm:$0xff]
        %v5416 = vld [vmem:[%s10 + $0x60] sm:$0xff]
        %v5417 = vld [vmem:[%s10 + $0x68] sm:$0xff]
        %v5418 = vld [vmem:[%s10 + $0x70] sm:$0xff]
        %v5419 = vld [vmem:[%s10 + $0x78] sm:$0xff]
        %v5420 = vld [vmem:[%s10 + $0x80] sm:$0xff]
        %v5421 = vld [vmem:[%s10 + $0x88] sm:$0xff]
        %v5422 = vld [vmem:[%s10 + $0x90] sm:$0xff]
        %v5423 = vld [vmem:[%s10 + $0x98] sm:$0xff]
        %v5424 = vld [vmem:[%s10 + $0xa0] sm:$0xff]
        %v5425 = vld [vmem:[%s10 + $0xa8] sm:$0xff]
        %v5426 = vld [vmem:[%s10 + $0xb0] sm:$0xff]
        %v5427 = vld [vmem:[%s10 + $0xb8] sm:$0xff]
        %v5428 = vld [vmem:[%s10 + $0xc0] sm:$0xff]
        %v5429 = vld [vmem:[%s10 + $0xc8] sm:$0xff]
        %v5430 = vld [vmem:[%s10 + $0xd0] sm:$0xff]
        %v5431 = vld [vmem:[%s10 + $0xd8] sm:$0xff]
        %v5432 = vld [vmem:[%s10 + $0xe0] sm:$0xff]
        %v5433 = vld [vmem:[%s10 + $0xe8] sm:$0xff]
        %v5434 = vld [vmem:[%s10 + $0xf0] sm:$0xff]
        %v5435 = vld [vmem:[%s10 + $0xf8] sm:$0xff]
        %v5436 = vld [vmem:[%s10 + $0x100] sm:$0xff]
        %v5437 = vld [vmem:[%s10 + $0x108] sm:$0xff]
        %v5438 = vld [vmem:[%s10 + $0x110] sm:$0xff]
        %v5439 = vld [vmem:[%s10 + $0x118] sm:$0xff]
        %v5440 = vld [vmem:[%s10 + $0x120] sm:$0xff]
        %v5441 = vld [vmem:[%s10 + $0x128] sm:$0xff]
        %v5442 = vld [vmem:[%s10 + $0x130] sm:$0xff]
        %v5443 = vld [vmem:[%s10 + $0x138] sm:$0xff]
        %v5444 = vld [vmem:[%s10 + $0x140] sm:$0xff]
        %v5445 = vld [vmem:[%s10 + $0x148] sm:$0xff]
        %v5446 = vld [vmem:[%s10 + $0x150] sm:$0xff]
        %v5447 = vld [vmem:[%s10 + $0x158] sm:$0xff]
        %v5448 = vld [vmem:[%s10 + $0x160] sm:$0xff]
        %v5449 = vld [vmem:[%s10 + $0x168] sm:$0xff]
        %v5450 = vld [vmem:[%s10 + $0x170] sm:$0xff]
        %v5451 = vld [vmem:[%s10 + $0x178] sm:$0xff]
        %v5452 = vld [vmem:[%s10 + $0x180] sm:$0xff]
        %v5453 = vld [vmem:[%s10 + $0x188] sm:$0xff]
        %v5454 = vld [vmem:[%s10 + $0x190] sm:$0xff]
        %v5455 = vld [vmem:[%s10 + $0x198] sm:$0xff]
        %v5456 = vld [vmem:[%s10 + $0x1a0] sm:$0xff]
        %v5457 = vld [vmem:[%s10 + $0x1a8] sm:$0xff]
        %v5458 = vld [vmem:[%s10 + $0x1b0] sm:$0xff]
        %v5459 = vld [vmem:[%s10 + $0x1b8] sm:$0xff]
        %v5460 = vld [vmem:[%s10 + $0x1c0] sm:$0xff]
        %v5461 = vld [vmem:[%s10 + $0x1c8] sm:$0xff]
        %v5462 = vld [vmem:[%s10 + $0x1d0] sm:$0xff]
        %v5463 = vld [vmem:[%s10 + $0x1d8] sm:$0xff]
        %v5464 = vld [vmem:[%s10 + $0x1e0] sm:$0xff]
        %v5465 = vld [vmem:[%s10 + $0x1e8] sm:$0xff]
        %v5466 = vld [vmem:[%s10 + $0x1f0] sm:$0xff]
        %v5467 = vld [vmem:[%s10 + $0x1f8] sm:$0xff]
        %v5468 = vpack.c.bf16 %v5341, %v5337
        %v5469 = vpack.c.bf16 %v5343, %v5339
        %v5470 = vpack.c.bf16 %v5392, %v5388
        %v5471 = vpack.c.bf16 %v5394, %v5390
        %v5472 = vpack.c.bf16 %v5347, %v5347
        %v5473 = vpack.c.bf16 %v5349, %v5349
        %v5474 = vpack.c.bf16 %v5398, %v5398
        %v5475 = vpack.c.bf16 %v5400, %v5400
        %v5476 = vld [vmem:[%s11] sm:$0x3]
        %v5478 = vlaneseq
        %v5479 = vshrl.u32 %v5478, 7
        %v5480 = vsub.s32 0, %v5479
        %v5481 = vrot.slane %v5476, %v5480
        %v5482 = vlaneseq
        %v5483 = vshrl.u32 %v5482, 7
        %v5484 = vsub.s32 1, %v5483
        %v5485 = vrot.slane %v5476, %v5484
        %v5552 = vunpack.c.l.b16 %v5404
        %v5553 = vunpack.c.h.b16 %v5404
        %v5554 = vunpack.c.l.b16 %v5405
        %v5555 = vunpack.c.h.b16 %v5405
        %v5556 = vunpack.c.l.b16 %v5406
        %v5557 = vunpack.c.h.b16 %v5406
        %v5558 = vunpack.c.l.b16 %v5407
        %v5559 = vunpack.c.h.b16 %v5407
        %v5560 = vunpack.c.l.b16 %v5408
        %v5561 = vunpack.c.h.b16 %v5408
        %v5562 = vunpack.c.l.b16 %v5409
        %v5563 = vunpack.c.h.b16 %v5409
        %v5564 = vunpack.c.l.b16 %v5410
        %v5565 = vunpack.c.h.b16 %v5410
        %v5566 = vunpack.c.l.b16 %v5411
        %v5567 = vunpack.c.h.b16 %v5411
        %v5568 = vunpack.c.l.b16 %v5412
        %v5569 = vunpack.c.h.b16 %v5412
        %v5570 = vunpack.c.l.b16 %v5413
        %v5571 = vunpack.c.h.b16 %v5413
        %v5572 = vunpack.c.l.b16 %v5414
        %v5573 = vunpack.c.h.b16 %v5414
        %v5574 = vunpack.c.l.b16 %v5415
        %v5575 = vunpack.c.h.b16 %v5415
        %v5576 = vunpack.c.l.b16 %v5416
        %v5577 = vunpack.c.h.b16 %v5416
        %v5578 = vunpack.c.l.b16 %v5417
        %v5579 = vunpack.c.h.b16 %v5417
        %v5580 = vunpack.c.l.b16 %v5418
        %v5581 = vunpack.c.h.b16 %v5418
        %v5582 = vunpack.c.l.b16 %v5419
        %v5583 = vunpack.c.h.b16 %v5419
        %v5584 = vunpack.c.l.b16 %v5420
        %v5585 = vunpack.c.h.b16 %v5420
        %v5586 = vunpack.c.l.b16 %v5421
        %v5587 = vunpack.c.h.b16 %v5421
        %v5588 = vunpack.c.l.b16 %v5422
        %v5589 = vunpack.c.h.b16 %v5422
        %v5590 = vunpack.c.l.b16 %v5423
        %v5591 = vunpack.c.h.b16 %v5423
        %v5592 = vunpack.c.l.b16 %v5424
        %v5593 = vunpack.c.h.b16 %v5424
        %v5594 = vunpack.c.l.b16 %v5425
        %v5595 = vunpack.c.h.b16 %v5425
        %v5596 = vunpack.c.l.b16 %v5426
        %v5597 = vunpack.c.h.b16 %v5426
        %v5598 = vunpack.c.l.b16 %v5427
        %v5599 = vunpack.c.h.b16 %v5427
        %v5600 = vunpack.c.l.b16 %v5428
        %v5601 = vunpack.c.h.b16 %v5428
        %v5602 = vunpack.c.l.b16 %v5429
        %v5603 = vunpack.c.h.b16 %v5429
        %v5604 = vunpack.c.l.b16 %v5430
        %v5605 = vunpack.c.h.b16 %v5430
        %v5606 = vunpack.c.l.b16 %v5431
        %v5607 = vunpack.c.h.b16 %v5431
        %v5608 = vunpack.c.l.b16 %v5432
        %v5609 = vunpack.c.h.b16 %v5432
        %v5610 = vunpack.c.l.b16 %v5433
        %v5611 = vunpack.c.h.b16 %v5433
        %v5612 = vunpack.c.l.b16 %v5434
        %v5613 = vunpack.c.h.b16 %v5434
        %v5614 = vunpack.c.l.b16 %v5435
        %v5615 = vunpack.c.h.b16 %v5435
        %v5616 = vunpack.c.l.b16 %v5436
        %v5617 = vunpack.c.h.b16 %v5436
        %v5618 = vunpack.c.l.b16 %v5437
        %v5619 = vunpack.c.h.b16 %v5437
        %v5620 = vunpack.c.l.b16 %v5438
        %v5621 = vunpack.c.h.b16 %v5438
        %v5622 = vunpack.c.l.b16 %v5439
        %v5623 = vunpack.c.h.b16 %v5439
        %v5624 = vunpack.c.l.b16 %v5440
        %v5625 = vunpack.c.h.b16 %v5440
        %v5626 = vunpack.c.l.b16 %v5441
        %v5627 = vunpack.c.h.b16 %v5441
        %v5628 = vunpack.c.l.b16 %v5442
        %v5629 = vunpack.c.h.b16 %v5442
        %v5630 = vunpack.c.l.b16 %v5443
        %v5631 = vunpack.c.h.b16 %v5443
        %v5632 = vunpack.c.l.b16 %v5444
        %v5633 = vunpack.c.h.b16 %v5444
        %v5634 = vunpack.c.l.b16 %v5445
        %v5635 = vunpack.c.h.b16 %v5445
        %v5636 = vunpack.c.l.b16 %v5446
        %v5637 = vunpack.c.h.b16 %v5446
        %v5638 = vunpack.c.l.b16 %v5447
        %v5639 = vunpack.c.h.b16 %v5447
        %v5640 = vunpack.c.l.b16 %v5448
        %v5641 = vunpack.c.h.b16 %v5448
        %v5642 = vunpack.c.l.b16 %v5449
        %v5643 = vunpack.c.h.b16 %v5449
        %v5644 = vunpack.c.l.b16 %v5450
        %v5645 = vunpack.c.h.b16 %v5450
        %v5646 = vunpack.c.l.b16 %v5451
        %v5647 = vunpack.c.h.b16 %v5451
        %v5648 = vunpack.c.l.b16 %v5452
        %v5649 = vunpack.c.h.b16 %v5452
        %v5650 = vunpack.c.l.b16 %v5453
        %v5651 = vunpack.c.h.b16 %v5453
        %v5652 = vunpack.c.l.b16 %v5454
        %v5653 = vunpack.c.h.b16 %v5454
        %v5654 = vunpack.c.l.b16 %v5455
        %v5655 = vunpack.c.h.b16 %v5455
        %v5656 = vunpack.c.l.b16 %v5456
        %v5657 = vunpack.c.h.b16 %v5456
        %v5658 = vunpack.c.l.b16 %v5457
        %v5659 = vunpack.c.h.b16 %v5457
        %v5660 = vunpack.c.l.b16 %v5458
        %v5661 = vunpack.c.h.b16 %v5458
        %v5662 = vunpack.c.l.b16 %v5459
        %v5663 = vunpack.c.h.b16 %v5459
        %v5664 = vunpack.c.l.b16 %v5460
        %v5665 = vunpack.c.h.b16 %v5460
        %v5666 = vunpack.c.l.b16 %v5461
        %v5667 = vunpack.c.h.b16 %v5461
        %v5668 = vunpack.c.l.b16 %v5462
        %v5669 = vunpack.c.h.b16 %v5462
        %v5670 = vunpack.c.l.b16 %v5463
        %v5671 = vunpack.c.h.b16 %v5463
        %v5672 = vunpack.c.l.b16 %v5464
        %v5673 = vunpack.c.h.b16 %v5464
        %v5674 = vunpack.c.l.b16 %v5465
        %v5675 = vunpack.c.h.b16 %v5465
        %v5676 = vunpack.c.l.b16 %v5466
        %v5677 = vunpack.c.h.b16 %v5466
        %v5678 = vunpack.c.l.b16 %v5467
        %v5679 = vunpack.c.h.b16 %v5467
        %v5680 = vpack.c.b16 %v5554, %v5552
        %v5681 = vpack.c.b16 %v5555, %v5553
        %v5682 = vpack.c.b16 %v5558, %v5556
        %v5683 = vpack.c.b16 %v5559, %v5557
        %v5684 = vpack.c.b16 %v5562, %v5560
        %v5685 = vpack.c.b16 %v5563, %v5561
        %v5686 = vpack.c.b16 %v5566, %v5564
        %v5687 = vpack.c.b16 %v5567, %v5565
        %v5688 = vpack.c.b16 %v5570, %v5568
        %v5689 = vpack.c.b16 %v5571, %v5569
        %v5690 = vpack.c.b16 %v5574, %v5572
        %v5691 = vpack.c.b16 %v5575, %v5573
        %v5692 = vpack.c.b16 %v5578, %v5576
        %v5693 = vpack.c.b16 %v5579, %v5577
        %v5694 = vpack.c.b16 %v5582, %v5580
        %v5695 = vpack.c.b16 %v5583, %v5581
        %v5696 = vpack.c.b16 %v5586, %v5584
        %v5697 = vpack.c.b16 %v5587, %v5585
        %v5698 = vpack.c.b16 %v5590, %v5588
        %v5699 = vpack.c.b16 %v5591, %v5589
        %v5700 = vpack.c.b16 %v5594, %v5592
        %v5701 = vpack.c.b16 %v5595, %v5593
        %v5702 = vpack.c.b16 %v5598, %v5596
        %v5703 = vpack.c.b16 %v5599, %v5597
        %v5704 = vpack.c.b16 %v5602, %v5600
        %v5705 = vpack.c.b16 %v5603, %v5601
        %v5706 = vpack.c.b16 %v5606, %v5604
        %v5707 = vpack.c.b16 %v5607, %v5605
        %v5708 = vpack.c.b16 %v5610, %v5608
        %v5709 = vpack.c.b16 %v5611, %v5609
        %v5710 = vpack.c.b16 %v5614, %v5612
        %v5711 = vpack.c.b16 %v5615, %v5613
        %v5712 = vpack.c.b16 %v5618, %v5616
        %v5713 = vpack.c.b16 %v5619, %v5617
        %v5714 = vpack.c.b16 %v5622, %v5620
        %v5715 = vpack.c.b16 %v5623, %v5621
        %v5716 = vpack.c.b16 %v5626, %v5624
        %v5717 = vpack.c.b16 %v5627, %v5625
        %v5718 = vpack.c.b16 %v5630, %v5628
        %v5719 = vpack.c.b16 %v5631, %v5629
        %v5720 = vpack.c.b16 %v5634, %v5632
        %v5721 = vpack.c.b16 %v5635, %v5633
        %v5722 = vpack.c.b16 %v5638, %v5636
        %v5723 = vpack.c.b16 %v5639, %v5637
        %v5724 = vpack.c.b16 %v5642, %v5640
        %v5725 = vpack.c.b16 %v5643, %v5641
        %v5726 = vpack.c.b16 %v5646, %v5644
        %v5727 = vpack.c.b16 %v5647, %v5645
        %v5728 = vpack.c.b16 %v5650, %v5648
        %v5729 = vpack.c.b16 %v5651, %v5649
        %v5730 = vpack.c.b16 %v5654, %v5652
        %v5731 = vpack.c.b16 %v5655, %v5653
        %v5732 = vpack.c.b16 %v5658, %v5656
        %v5733 = vpack.c.b16 %v5659, %v5657
        %v5734 = vpack.c.b16 %v5662, %v5660
        %v5735 = vpack.c.b16 %v5663, %v5661
        %v5736 = vpack.c.b16 %v5666, %v5664
        %v5737 = vpack.c.b16 %v5667, %v5665
        %v5738 = vpack.c.b16 %v5670, %v5668
        %v5739 = vpack.c.b16 %v5671, %v5669
        %v5740 = vpack.c.b16 %v5674, %v5672
        %v5741 = vpack.c.b16 %v5675, %v5673
        %v5742 = vpack.c.b16 %v5678, %v5676
        %v5743 = vpack.c.b16 %v5679, %v5677
        %5808 = vmatprep.subr.bf16.mxu0 %v5681
        %5809 = vmatpush1.bf16.msra.mxu0 %v5680
        %5810 = vmatprep.subr.bf16.mxu0 %v5683
        %5811 = vmatpush1.bf16.msra.mxu0 %v5682
        %5812 = vmatprep.subr.bf16.mxu0 %v5685
        %5813 = vmatpush1.bf16.msra.mxu0 %v5684
        %5814 = vmatprep.subr.bf16.mxu0 %v5687
        %5815 = vmatpush1.bf16.msra.mxu0 %v5686
        %5816 = vmatprep.subr.bf16.mxu0 %v5689
        %5817 = vmatpush1.bf16.msra.mxu0 %v5688
        %5818 = vmatprep.subr.bf16.mxu0 %v5691
        %5819 = vmatpush1.bf16.msra.mxu0 %v5690
        %5820 = vmatprep.subr.bf16.mxu0 %v5693
        %5821 = vmatpush1.bf16.msra.mxu0 %v5692
        %5822 = vmatprep.subr.bf16.mxu0 %v5695
        %5823 = vmatpush1.bf16.msra.mxu0 %v5694
        %5824 = vmatprep.subr.bf16.mxu0 %v5697
        %5825 = vmatpush1.bf16.msra.mxu0 %v5696
        %5826 = vmatprep.subr.bf16.mxu0 %v5699
        %5827 = vmatpush1.bf16.msra.mxu0 %v5698
        %5828 = vmatprep.subr.bf16.mxu0 %v5701
        %5829 = vmatpush1.bf16.msra.mxu0 %v5700
        %5830 = vmatprep.subr.bf16.mxu0 %v5703
        %5831 = vmatpush1.bf16.msra.mxu0 %v5702
        %5832 = vmatprep.subr.bf16.mxu0 %v5705
        %5833 = vmatpush1.bf16.msra.mxu0 %v5704
        %5834 = vmatprep.subr.bf16.mxu0 %v5707
        %5835 = vmatpush1.bf16.msra.mxu0 %v5706
        %5836 = vmatprep.subr.bf16.mxu0 %v5709
        %5837 = vmatpush1.bf16.msra.mxu0 %v5708
        %5838 = vmatprep.subr.bf16.mxu0 %v5711
        %5839 = vmatpush1.bf16.msra.mxu0 %v5710
        %5840 = vmatprep.mubr.bf16.mxu0 %v5469
        %5841 = vmatmul.mubr.bf16.gmra.mrb[0].mxu0 %v5468
        %v5842 = vpop.f32.mrb[0].mxu0
        %v5843 = vadd.f32 %v5481, %v5842
        %v5844 = vpop.f32.mrb[0].mxu0
        %v5845 = vadd.f32 %v5485, %v5844
        %v5846 = vpop.f32.mrb[0].mxu0
        %v5847 = vadd.f32 %v5481, %v5846
        %v5848 = vpop.f32.mrb[0].mxu0
        %v5849 = vadd.f32 %v5485, %v5848
        %5850 = vmatprep.mubr.bf16.mxu0 %v5473
        %5851 = vmatmul.mubr.bf16.gmra.mrb[0].mxu0 %v5472
        %v5852 = vpop.f32.mrb[0].mxu0
        %v5853 = vadd.f32 %v5481, %v5852
        %v5854 = vpop.f32.mrb[0].mxu0
        %v5855 = vadd.f32 %v5485, %v5854
        %v5856 = vpop.f32.mrb[0].mxu0
        %v5857 = vpop.f32.mrb[0].mxu0
        %5858 = vdwg.mxu0
        %5859 = vmatprep.subr.bf16.mxu0 %v5713
        %5860 = vmatpush1.bf16.msra.mxu0 %v5712
        %5861 = vmatprep.subr.bf16.mxu0 %v5715
        %5862 = vmatpush1.bf16.msra.mxu0 %v5714
        %5863 = vmatprep.subr.bf16.mxu0 %v5717
        %5864 = vmatpush1.bf16.msra.mxu0 %v5716
        %5865 = vmatprep.subr.bf16.mxu0 %v5719
        %5866 = vmatpush1.bf16.msra.mxu0 %v5718
        %5867 = vmatprep.subr.bf16.mxu0 %v5721
        %5868 = vmatpush1.bf16.msra.mxu0 %v5720
        %5869 = vmatprep.subr.bf16.mxu0 %v5723
        %5870 = vmatpush1.bf16.msra.mxu0 %v5722
        %5871 = vmatprep.subr.bf16.mxu0 %v5725
        %5872 = vmatpush1.bf16.msra.mxu0 %v5724
        %5873 = vmatprep.subr.bf16.mxu0 %v5727
        %5874 = vmatpush1.bf16.msra.mxu0 %v5726
        %5875 = vmatprep.subr.bf16.mxu0 %v5729
        %5876 = vmatpush1.bf16.msra.mxu0 %v5728
        %5877 = vmatprep.subr.bf16.mxu0 %v5731
        %5878 = vmatpush1.bf16.msra.mxu0 %v5730
        %5879 = vmatprep.subr.bf16.mxu0 %v5733
        %5880 = vmatpush1.bf16.msra.mxu0 %v5732
        %5881 = vmatprep.subr.bf16.mxu0 %v5735
        %5882 = vmatpush1.bf16.msra.mxu0 %v5734
        %5883 = vmatprep.subr.bf16.mxu0 %v5737
        %5884 = vmatpush1.bf16.msra.mxu0 %v5736
        %5885 = vmatprep.subr.bf16.mxu0 %v5739
        %5886 = vmatpush1.bf16.msra.mxu0 %v5738
        %5887 = vmatprep.subr.bf16.mxu0 %v5741
        %5888 = vmatpush1.bf16.msra.mxu0 %v5740
        %5889 = vmatprep.subr.bf16.mxu0 %v5743
        %5890 = vmatpush1.bf16.msra.mxu0 %v5742
        %5891 = vmatprep.mubr.bf16.mxu0 %v5471
        %5892 = vmatmul.mubr.bf16.gmra.mrb[0].mxu0 %v5470
        %v5893 = vpop.f32.mrb[0].mxu0
        %v5894 = vadd.f32 %v5843, %v5893
        %v5895 = vpop.f32.mrb[0].mxu0
        %v5896 = vadd.f32 %v5845, %v5895
        %v5897 = vpop.f32.mrb[0].mxu0
        %v5898 = vadd.f32 %v5847, %v5897
        %v5899 = vpop.f32.mrb[0].mxu0
        %v5900 = vadd.f32 %v5849, %v5899
        %5901 = vmatprep.mubr.bf16.mxu0 %v5475
        %5902 = vmatmul.mubr.bf16.gmra.mrb[0].mxu0 %v5474
        %v5903 = vpop.f32.mrb[0].mxu0
        %v5904 = vadd.f32 %v5853, %v5903
        %v5905 = vpop.f32.mrb[0].mxu0
        %v5906 = vadd.f32 %v5855, %v5905
        %v5907 = vpop.f32.mrb[0].mxu0
        %v5908 = vpop.f32.mrb[0].mxu0
        %5909 = vdwg.mxu0
        %v5910 = vmax.f32 %v5894, 0.0
        %v5911 = vmax.f32 %v5896, 0.0
        %v5912 = vmax.f32 %v5898, 0.0
        %v5913 = vmax.f32 %v5900, 0.0
        %v5914 = vmax.f32 %v5904, 0.0
        %v5915 = vmax.f32 %v5906, 0.0
        %v5916 = vld [vmem:[%s13] sm:$0xff]
        %v5917 = vld [vmem:[%s13 + $0x8] sm:$0xff]
        %v5918 = vld [vmem:[%s12] sm:$0xff]
        %v5919 = vld [vmem:[%s12 + $0x8] sm:$0xff]
        %v5920 = vld [vmem:[%s12 + $0x10] sm:$0xff]
        %v5921 = vld [vmem:[%s12 + $0x18] sm:$0xff]
        %v5922 = vld [vmem:[%s12 + $0x20] sm:$0xff]
        %v5923 = vld [vmem:[%s12 + $0x28] sm:$0xff]
        %v5924 = vld [vmem:[%s12 + $0x30] sm:$0xff]
        %v5925 = vld [vmem:[%s12 + $0x38] sm:$0xff]
        %v5926 = vld [vmem:[%s12 + $0x40] sm:$0xff]
        %v5927 = vld [vmem:[%s12 + $0x48] sm:$0xff]
        %v5928 = vld [vmem:[%s12 + $0x50] sm:$0xff]
        %v5929 = vld [vmem:[%s12 + $0x58] sm:$0xff]
        %v5930 = vld [vmem:[%s12 + $0x60] sm:$0xff]
        %v5931 = vld [vmem:[%s12 + $0x68] sm:$0xff]
        %v5932 = vld [vmem:[%s12 + $0x70] sm:$0xff]
        %v5933 = vld [vmem:[%s12 + $0x78] sm:$0xff]
        %v5934 = vld [vmem:[%s12 + $0x80] sm:$0xff]
        %v5935 = vld [vmem:[%s12 + $0x88] sm:$0xff]
        %v5936 = vld [vmem:[%s12 + $0x90] sm:$0xff]
        %v5937 = vld [vmem:[%s12 + $0x98] sm:$0xff]
        %v5938 = vld [vmem:[%s12 + $0xa0] sm:$0xff]
        %v5939 = vld [vmem:[%s12 + $0xa8] sm:$0xff]
        %v5940 = vld [vmem:[%s12 + $0xb0] sm:$0xff]
        %v5941 = vld [vmem:[%s12 + $0xb8] sm:$0xff]
        %v5942 = vld [vmem:[%s12 + $0xc0] sm:$0xff]
        %v5943 = vld [vmem:[%s12 + $0xc8] sm:$0xff]
        %v5944 = vld [vmem:[%s12 + $0xd0] sm:$0xff]
        %v5945 = vld [vmem:[%s12 + $0xd8] sm:$0xff]
        %v5946 = vld [vmem:[%s12 + $0xe0] sm:$0xff]
        %v5947 = vld [vmem:[%s12 + $0xe8] sm:$0xff]
        %v5948 = vld [vmem:[%s12 + $0xf0] sm:$0xff]
        %v5949 = vld [vmem:[%s12 + $0xf8] sm:$0xff]
        %v5950 = vld [vmem:[%s12 + $0x100] sm:$0xff]
        %v5951 = vld [vmem:[%s12 + $0x108] sm:$0xff]
        %v5952 = vld [vmem:[%s12 + $0x110] sm:$0xff]
        %v5953 = vld [vmem:[%s12 + $0x118] sm:$0xff]
        %v5954 = vld [vmem:[%s12 + $0x120] sm:$0xff]
        %v5955 = vld [vmem:[%s12 + $0x128] sm:$0xff]
        %v5956 = vld [vmem:[%s12 + $0x130] sm:$0xff]
        %v5957 = vld [vmem:[%s12 + $0x138] sm:$0xff]
        %v5958 = vld [vmem:[%s12 + $0x140] sm:$0xff]
        %v5959 = vld [vmem:[%s12 + $0x148] sm:$0xff]
        %v5960 = vld [vmem:[%s12 + $0x150] sm:$0xff]
        %v5961 = vld [vmem:[%s12 + $0x158] sm:$0xff]
        %v5962 = vld [vmem:[%s12 + $0x160] sm:$0xff]
        %v5963 = vld [vmem:[%s12 + $0x168] sm:$0xff]
        %v5964 = vld [vmem:[%s12 + $0x170] sm:$0xff]
        %v5965 = vld [vmem:[%s12 + $0x178] sm:$0xff]
        %v5966 = vld [vmem:[%s12 + $0x180] sm:$0xff]
        %v5967 = vld [vmem:[%s12 + $0x188] sm:$0xff]
        %v5968 = vld [vmem:[%s12 + $0x190] sm:$0xff]
        %v5969 = vld [vmem:[%s12 + $0x198] sm:$0xff]
        %v5970 = vld [vmem:[%s12 + $0x1a0] sm:$0xff]
        %v5971 = vld [vmem:[%s12 + $0x1a8] sm:$0xff]
        %v5972 = vld [vmem:[%s12 + $0x1b0] sm:$0xff]
        %v5973 = vld [vmem:[%s12 + $0x1b8] sm:$0xff]
        %v5974 = vld [vmem:[%s12 + $0x1c0] sm:$0xff]
        %v5975 = vld [vmem:[%s12 + $0x1c8] sm:$0xff]
        %v5976 = vld [vmem:[%s12 + $0x1d0] sm:$0xff]
        %v5977 = vld [vmem:[%s12 + $0x1d8] sm:$0xff]
        %v5978 = vld [vmem:[%s12 + $0x1e0] sm:$0xff]
        %v5979 = vld [vmem:[%s12 + $0x1e8] sm:$0xff]
        %v5980 = vld [vmem:[%s12 + $0x1f0] sm:$0xff]
        %v5981 = vld [vmem:[%s12 + $0x1f8] sm:$0xff]
        %v5982 = vld [vmem:[%s12 + $0x200] sm:$0xff]
        %v5983 = vld [vmem:[%s12 + $0x208] sm:$0xff]
        %v5984 = vld [vmem:[%s12 + $0x210] sm:$0xff]
        %v5985 = vld [vmem:[%s12 + $0x218] sm:$0xff]
        %v5986 = vld [vmem:[%s12 + $0x220] sm:$0xff]
        %v5987 = vld [vmem:[%s12 + $0x228] sm:$0xff]
        %v5988 = vld [vmem:[%s12 + $0x230] sm:$0xff]
        %v5989 = vld [vmem:[%s12 + $0x238] sm:$0xff]
        %v5990 = vld [vmem:[%s12 + $0x240] sm:$0xff]
        %v5991 = vld [vmem:[%s12 + $0x248] sm:$0xff]
        %v5992 = vld [vmem:[%s12 + $0x250] sm:$0xff]
        %v5993 = vld [vmem:[%s12 + $0x258] sm:$0xff]
        %v5994 = vld [vmem:[%s12 + $0x260] sm:$0xff]
        %v5995 = vld [vmem:[%s12 + $0x268] sm:$0xff]
        %v5996 = vld [vmem:[%s12 + $0x270] sm:$0xff]
        %v5997 = vld [vmem:[%s12 + $0x278] sm:$0xff]
        %v5998 = vld [vmem:[%s12 + $0x280] sm:$0xff]
        %v5999 = vld [vmem:[%s12 + $0x288] sm:$0xff]
        %v6000 = vld [vmem:[%s12 + $0x290] sm:$0xff]
        %v6001 = vld [vmem:[%s12 + $0x298] sm:$0xff]
        %v6002 = vld [vmem:[%s12 + $0x2a0] sm:$0xff]
        %v6003 = vld [vmem:[%s12 + $0x2a8] sm:$0xff]
        %v6004 = vld [vmem:[%s12 + $0x2b0] sm:$0xff]
        %v6005 = vld [vmem:[%s12 + $0x2b8] sm:$0xff]
        %v6006 = vld [vmem:[%s12 + $0x2c0] sm:$0xff]
        %v6007 = vld [vmem:[%s12 + $0x2c8] sm:$0xff]
        %v6008 = vld [vmem:[%s12 + $0x2d0] sm:$0xff]
        %v6009 = vld [vmem:[%s12 + $0x2d8] sm:$0xff]
        %v6010 = vld [vmem:[%s12 + $0x2e0] sm:$0xff]
        %v6011 = vld [vmem:[%s12 + $0x2e8] sm:$0xff]
        %v6012 = vld [vmem:[%s12 + $0x2f0] sm:$0xff]
        %v6013 = vld [vmem:[%s12 + $0x2f8] sm:$0xff]
        %v6014 = vld [vmem:[%s12 + $0x300] sm:$0xff]
        %v6015 = vld [vmem:[%s12 + $0x308] sm:$0xff]
        %v6016 = vld [vmem:[%s12 + $0x310] sm:$0xff]
        %v6017 = vld [vmem:[%s12 + $0x318] sm:$0xff]
        %v6018 = vld [vmem:[%s12 + $0x320] sm:$0xff]
        %v6019 = vld [vmem:[%s12 + $0x328] sm:$0xff]
        %v6020 = vld [vmem:[%s12 + $0x330] sm:$0xff]
        %v6021 = vld [vmem:[%s12 + $0x338] sm:$0xff]
        %v6022 = vld [vmem:[%s12 + $0x340] sm:$0xff]
        %v6023 = vld [vmem:[%s12 + $0x348] sm:$0xff]
        %v6024 = vld [vmem:[%s12 + $0x350] sm:$0xff]
        %v6025 = vld [vmem:[%s12 + $0x358] sm:$0xff]
        %v6026 = vld [vmem:[%s12 + $0x360] sm:$0xff]
        %v6027 = vld [vmem:[%s12 + $0x368] sm:$0xff]
        %v6028 = vld [vmem:[%s12 + $0x370] sm:$0xff]
        %v6029 = vld [vmem:[%s12 + $0x378] sm:$0xff]
        %v6030 = vld [vmem:[%s12 + $0x380] sm:$0xff]
        %v6031 = vld [vmem:[%s12 + $0x388] sm:$0xff]
        %v6032 = vld [vmem:[%s12 + $0x390] sm:$0xff]
        %v6033 = vld [vmem:[%s12 + $0x398] sm:$0xff]
        %v6034 = vld [vmem:[%s12 + $0x3a0] sm:$0xff]
        %v6035 = vld [vmem:[%s12 + $0x3a8] sm:$0xff]
        %v6036 = vld [vmem:[%s12 + $0x3b0] sm:$0xff]
        %v6037 = vld [vmem:[%s12 + $0x3b8] sm:$0xff]
        %v6038 = vld [vmem:[%s12 + $0x3c0] sm:$0xff]
        %v6039 = vld [vmem:[%s12 + $0x3c8] sm:$0xff]
        %v6040 = vld [vmem:[%s12 + $0x3d0] sm:$0xff]
        %v6041 = vld [vmem:[%s12 + $0x3d8] sm:$0xff]
        %v6042 = vld [vmem:[%s12 + $0x3e0] sm:$0xff]
        %v6043 = vld [vmem:[%s12 + $0x3e8] sm:$0xff]
        %v6044 = vld [vmem:[%s12 + $0x3f0] sm:$0xff]
        %v6045 = vld [vmem:[%s12 + $0x3f8] sm:$0xff]
        %v6046 = vld [vmem:[%s12 + $0x400] sm:$0xff]
        %v6047 = vld [vmem:[%s12 + $0x408] sm:$0xff]
        %v6048 = vld [vmem:[%s12 + $0x410] sm:$0xff]
        %v6049 = vld [vmem:[%s12 + $0x418] sm:$0xff]
        %v6050 = vld [vmem:[%s12 + $0x420] sm:$0xff]
        %v6051 = vld [vmem:[%s12 + $0x428] sm:$0xff]
        %v6052 = vld [vmem:[%s12 + $0x430] sm:$0xff]
        %v6053 = vld [vmem:[%s12 + $0x438] sm:$0xff]
        %v6054 = vld [vmem:[%s12 + $0x440] sm:$0xff]
        %v6055 = vld [vmem:[%s12 + $0x448] sm:$0xff]
        %v6056 = vld [vmem:[%s12 + $0x450] sm:$0xff]
        %v6057 = vld [vmem:[%s12 + $0x458] sm:$0xff]
        %v6058 = vld [vmem:[%s12 + $0x460] sm:$0xff]
        %v6059 = vld [vmem:[%s12 + $0x468] sm:$0xff]
        %v6060 = vld [vmem:[%s12 + $0x470] sm:$0xff]
        %v6061 = vld [vmem:[%s12 + $0x478] sm:$0xff]
        %v6062 = vld [vmem:[%s12 + $0x480] sm:$0xff]
        %v6063 = vld [vmem:[%s12 + $0x488] sm:$0xff]
        %v6064 = vld [vmem:[%s12 + $0x490] sm:$0xff]
        %v6065 = vld [vmem:[%s12 + $0x498] sm:$0xff]
        %v6066 = vld [vmem:[%s12 + $0x4a0] sm:$0xff]
        %v6067 = vld [vmem:[%s12 + $0x4a8] sm:$0xff]
        %v6068 = vld [vmem:[%s12 + $0x4b0] sm:$0xff]
        %v6069 = vld [vmem:[%s12 + $0x4b8] sm:$0xff]
        %v6070 = vld [vmem:[%s12 + $0x4c0] sm:$0xff]
        %v6071 = vld [vmem:[%s12 + $0x4c8] sm:$0xff]
        %v6072 = vld [vmem:[%s12 + $0x4d0] sm:$0xff]
        %v6073 = vld [vmem:[%s12 + $0x4d8] sm:$0xff]
        %v6074 = vld [vmem:[%s12 + $0x4e0] sm:$0xff]
        %v6075 = vld [vmem:[%s12 + $0x4e8] sm:$0xff]
        %v6076 = vld [vmem:[%s12 + $0x4f0] sm:$0xff]
        %v6077 = vld [vmem:[%s12 + $0x4f8] sm:$0xff]
        %v6078 = vld [vmem:[%s12 + $0x500] sm:$0xff]
        %v6079 = vld [vmem:[%s12 + $0x508] sm:$0xff]
        %v6080 = vld [vmem:[%s12 + $0x510] sm:$0xff]
        %v6081 = vld [vmem:[%s12 + $0x518] sm:$0xff]
        %v6082 = vld [vmem:[%s12 + $0x520] sm:$0xff]
        %v6083 = vld [vmem:[%s12 + $0x528] sm:$0xff]
        %v6084 = vld [vmem:[%s12 + $0x530] sm:$0xff]
        %v6085 = vld [vmem:[%s12 + $0x538] sm:$0xff]
        %v6086 = vld [vmem:[%s12 + $0x540] sm:$0xff]
        %v6087 = vld [vmem:[%s12 + $0x548] sm:$0xff]
        %v6088 = vld [vmem:[%s12 + $0x550] sm:$0xff]
        %v6089 = vld [vmem:[%s12 + $0x558] sm:$0xff]
        %v6090 = vld [vmem:[%s12 + $0x560] sm:$0xff]
        %v6091 = vld [vmem:[%s12 + $0x568] sm:$0xff]
        %v6092 = vld [vmem:[%s12 + $0x570] sm:$0xff]
        %v6093 = vld [vmem:[%s12 + $0x578] sm:$0xff]
        %v6094 = vld [vmem:[%s12 + $0x580] sm:$0xff]
        %v6095 = vld [vmem:[%s12 + $0x588] sm:$0xff]
        %v6096 = vld [vmem:[%s12 + $0x590] sm:$0xff]
        %v6097 = vld [vmem:[%s12 + $0x598] sm:$0xff]
        %v6098 = vld [vmem:[%s12 + $0x5a0] sm:$0xff]
        %v6099 = vld [vmem:[%s12 + $0x5a8] sm:$0xff]
        %v6100 = vld [vmem:[%s12 + $0x5b0] sm:$0xff]
        %v6101 = vld [vmem:[%s12 + $0x5b8] sm:$0xff]
        %v6102 = vld [vmem:[%s12 + $0x5c0] sm:$0xff]
        %v6103 = vld [vmem:[%s12 + $0x5c8] sm:$0xff]
        %v6104 = vld [vmem:[%s12 + $0x5d0] sm:$0xff]
        %v6105 = vld [vmem:[%s12 + $0x5d8] sm:$0xff]
        %v6106 = vld [vmem:[%s12 + $0x5e0] sm:$0xff]
        %v6107 = vld [vmem:[%s12 + $0x5e8] sm:$0xff]
        %v6108 = vld [vmem:[%s12 + $0x5f0] sm:$0xff]
        %v6109 = vld [vmem:[%s12 + $0x5f8] sm:$0xff]
        %v6110 = vld [vmem:[%s12 + $0x600] sm:$0xff]
        %v6111 = vld [vmem:[%s12 + $0x608] sm:$0xff]
        %v6112 = vld [vmem:[%s12 + $0x610] sm:$0xff]
        %v6113 = vld [vmem:[%s12 + $0x618] sm:$0xff]
        %v6114 = vld [vmem:[%s12 + $0x620] sm:$0xff]
        %v6115 = vld [vmem:[%s12 + $0x628] sm:$0xff]
        %v6116 = vld [vmem:[%s12 + $0x630] sm:$0xff]
        %v6117 = vld [vmem:[%s12 + $0x638] sm:$0xff]
        %v6118 = vld [vmem:[%s12 + $0x640] sm:$0xff]
        %v6119 = vld [vmem:[%s12 + $0x648] sm:$0xff]
        %v6120 = vld [vmem:[%s12 + $0x650] sm:$0xff]
        %v6121 = vld [vmem:[%s12 + $0x658] sm:$0xff]
        %v6122 = vld [vmem:[%s12 + $0x660] sm:$0xff]
        %v6123 = vld [vmem:[%s12 + $0x668] sm:$0xff]
        %v6124 = vld [vmem:[%s12 + $0x670] sm:$0xff]
        %v6125 = vld [vmem:[%s12 + $0x678] sm:$0xff]
        %v6126 = vld [vmem:[%s12 + $0x680] sm:$0xff]
        %v6127 = vld [vmem:[%s12 + $0x688] sm:$0xff]
        %v6128 = vld [vmem:[%s12 + $0x690] sm:$0xff]
        %v6129 = vld [vmem:[%s12 + $0x698] sm:$0xff]
        %v6130 = vld [vmem:[%s12 + $0x6a0] sm:$0xff]
        %v6131 = vld [vmem:[%s12 + $0x6a8] sm:$0xff]
        %v6132 = vld [vmem:[%s12 + $0x6b0] sm:$0xff]
        %v6133 = vld [vmem:[%s12 + $0x6b8] sm:$0xff]
        %v6134 = vld [vmem:[%s12 + $0x6c0] sm:$0xff]
        %v6135 = vld [vmem:[%s12 + $0x6c8] sm:$0xff]
        %v6136 = vld [vmem:[%s12 + $0x6d0] sm:$0xff]
        %v6137 = vld [vmem:[%s12 + $0x6d8] sm:$0xff]
        %v6138 = vld [vmem:[%s12 + $0x6e0] sm:$0xff]
        %v6139 = vld [vmem:[%s12 + $0x6e8] sm:$0xff]
        %v6140 = vld [vmem:[%s12 + $0x6f0] sm:$0xff]
        %v6141 = vld [vmem:[%s12 + $0x6f8] sm:$0xff]
        %v6142 = vld [vmem:[%s12 + $0x700] sm:$0xff]
        %v6143 = vld [vmem:[%s12 + $0x708] sm:$0xff]
        %v6144 = vld [vmem:[%s12 + $0x710] sm:$0xff]
        %v6145 = vld [vmem:[%s12 + $0x718] sm:$0xff]
        %v6146 = vld [vmem:[%s12 + $0x720] sm:$0xff]
        %v6147 = vld [vmem:[%s12 + $0x728] sm:$0xff]
        %v6148 = vld [vmem:[%s12 + $0x730] sm:$0xff]
        %v6149 = vld [vmem:[%s12 + $0x738] sm:$0xff]
        %v6150 = vld [vmem:[%s12 + $0x740] sm:$0xff]
        %v6151 = vld [vmem:[%s12 + $0x748] sm:$0xff]
        %v6152 = vld [vmem:[%s12 + $0x750] sm:$0xff]
        %v6153 = vld [vmem:[%s12 + $0x758] sm:$0xff]
        %v6154 = vld [vmem:[%s12 + $0x760] sm:$0xff]
        %v6155 = vld [vmem:[%s12 + $0x768] sm:$0xff]
        %v6156 = vld [vmem:[%s12 + $0x770] sm:$0xff]
        %v6157 = vld [vmem:[%s12 + $0x778] sm:$0xff]
        %v6158 = vld [vmem:[%s12 + $0x780] sm:$0xff]
        %v6159 = vld [vmem:[%s12 + $0x788] sm:$0xff]
        %v6160 = vld [vmem:[%s12 + $0x790] sm:$0xff]
        %v6161 = vld [vmem:[%s12 + $0x798] sm:$0xff]
        %v6162 = vld [vmem:[%s12 + $0x7a0] sm:$0xff]
        %v6163 = vld [vmem:[%s12 + $0x7a8] sm:$0xff]
        %v6164 = vld [vmem:[%s12 + $0x7b0] sm:$0xff]
        %v6165 = vld [vmem:[%s12 + $0x7b8] sm:$0xff]
        %v6166 = vld [vmem:[%s12 + $0x7c0] sm:$0xff]
        %v6167 = vld [vmem:[%s12 + $0x7c8] sm:$0xff]
        %v6168 = vld [vmem:[%s12 + $0x7d0] sm:$0xff]
        %v6169 = vld [vmem:[%s12 + $0x7d8] sm:$0xff]
        %v6170 = vld [vmem:[%s12 + $0x7e0] sm:$0xff]
        %v6171 = vld [vmem:[%s12 + $0x7e8] sm:$0xff]
        %v6172 = vld [vmem:[%s12 + $0x7f0] sm:$0xff]
        %v6173 = vld [vmem:[%s12 + $0x7f8] sm:$0xff]
        %v6174 = vld [vmem:[%s12 + $0x800] sm:$0xff]
        %v6175 = vld [vmem:[%s12 + $0x808] sm:$0xff]
        %v6176 = vld [vmem:[%s12 + $0x810] sm:$0xff]
        %v6177 = vld [vmem:[%s12 + $0x818] sm:$0xff]
        %v6178 = vld [vmem:[%s12 + $0x820] sm:$0xff]
        %v6179 = vld [vmem:[%s12 + $0x828] sm:$0xff]
        %v6180 = vld [vmem:[%s12 + $0x830] sm:$0xff]
        %v6181 = vld [vmem:[%s12 + $0x838] sm:$0xff]
        %v6182 = vld [vmem:[%s12 + $0x840] sm:$0xff]
        %v6183 = vld [vmem:[%s12 + $0x848] sm:$0xff]
        %v6184 = vld [vmem:[%s12 + $0x850] sm:$0xff]
        %v6185 = vld [vmem:[%s12 + $0x858] sm:$0xff]
        %v6186 = vld [vmem:[%s12 + $0x860] sm:$0xff]
        %v6187 = vld [vmem:[%s12 + $0x868] sm:$0xff]
        %v6188 = vld [vmem:[%s12 + $0x870] sm:$0xff]
        %v6189 = vld [vmem:[%s12 + $0x878] sm:$0xff]
        %v6190 = vld [vmem:[%s12 + $0x880] sm:$0xff]
        %v6191 = vld [vmem:[%s12 + $0x888] sm:$0xff]
        %v6192 = vld [vmem:[%s12 + $0x890] sm:$0xff]
        %v6193 = vld [vmem:[%s12 + $0x898] sm:$0xff]
        %v6194 = vld [vmem:[%s12 + $0x8a0] sm:$0xff]
        %v6195 = vld [vmem:[%s12 + $0x8a8] sm:$0xff]
        %v6196 = vld [vmem:[%s12 + $0x8b0] sm:$0xff]
        %v6197 = vld [vmem:[%s12 + $0x8b8] sm:$0xff]
        %v6198 = vld [vmem:[%s12 + $0x8c0] sm:$0xff]
        %v6199 = vld [vmem:[%s12 + $0x8c8] sm:$0xff]
        %v6200 = vld [vmem:[%s12 + $0x8d0] sm:$0xff]
        %v6201 = vld [vmem:[%s12 + $0x8d8] sm:$0xff]
        %v6202 = vld [vmem:[%s12 + $0x8e0] sm:$0xff]
        %v6203 = vld [vmem:[%s12 + $0x8e8] sm:$0xff]
        %v6204 = vld [vmem:[%s12 + $0x8f0] sm:$0xff]
        %v6205 = vld [vmem:[%s12 + $0x8f8] sm:$0xff]
        %v6212 = vrot.slane %v5910, 7
        %v6213 = vrot.slane %v5911, 7
        %v6214 = vrot.slane %v5912, 7
        %v6215 = vsel %vm1989, %v6212, %v6214
        %v6216 = vrot.slane %v5913, 7
        %v6217 = vsel %vm1989, %v6213, %v6216
        %v6218 = vrot.slane %v5914, 7
        %v6219 = vsel %vm1989, %v6214, %v6218
        %v6220 = vrot.slane %v5915, 7
        %v6221 = vsel %vm1989, %v6216, %v6220
        %v6228 = vsel %vm1989, 0.0, %v6212
        %v6229 = vsel %vm1989, 0.0, %v6213
        %v6230 = vrot.slane %v5910, 1
        %v6231 = vrot.slane %v5912, 1
        %v6232 = vsel %vm1875, %v6230, %v6231
        %v6233 = vrot.slane %v5911, 1
        %v6234 = vrot.slane %v5913, 1
        %v6235 = vsel %vm1875, %v6233, %v6234
        %v6236 = vrot.slane %v5914, 1
        %v6237 = vsel %vm1875, %v6231, %v6236
        %v6238 = vrot.slane %v5915, 1
        %v6239 = vsel %vm1875, %v6234, %v6238
        %vm6246 = vcmask 1042432
        %v6247 = vsel %vm6246, %v6236, 0.0
        %v6248 = vsel %vm6246, %v6238, 0.0
        %v6249 = vpack.c.bf16 %v6215, %v6228
        %v6250 = vpack.c.bf16 %v6217, %v6229
        %v6251 = vpack.c.bf16 %v5912, %v5910
        %v6252 = vpack.c.bf16 %v5913, %v5911
        %v6253 = vpack.c.bf16 %v6237, %v6232
        %v6254 = vpack.c.bf16 %v6239, %v6235
        %v6255 = vpack.c.bf16 %v6219, %v6219
        %v6256 = vpack.c.bf16 %v6221, %v6221
        %v6257 = vpack.c.bf16 %v5914, %v5914
        %v6258 = vpack.c.bf16 %v5915, %v5915
        %v6259 = vpack.c.bf16 %v6247, %v6247
        %v6260 = vpack.c.bf16 %v6248, %v6248
        %v6261 = vlaneseq
        %v6262 = vshrl.u32 %v6261, 7
        %v6263 = vsub.s32 0, %v6262
        %v6264 = vrot.slane %v5916, %v6263
        %v6265 = vlaneseq
        %v6266 = vshrl.u32 %v6265, 7
        %v6267 = vsub.s32 0, %v6266
        %v6268 = vrot.slane %v5917, %v6267
        %v6365 = vunpack.c.l.b16 %v5918
        %v6366 = vunpack.c.h.b16 %v5918
        %v6367 = vunpack.c.l.b16 %v5919
        %v6368 = vunpack.c.h.b16 %v5919
        %v6369 = vunpack.c.l.b16 %v5920
        %v6370 = vunpack.c.h.b16 %v5920
        %v6371 = vunpack.c.l.b16 %v5921
        %v6372 = vunpack.c.h.b16 %v5921
        %v6373 = vunpack.c.l.b16 %v5922
        %v6374 = vunpack.c.h.b16 %v5922
        %v6375 = vunpack.c.l.b16 %v5923
        %v6376 = vunpack.c.h.b16 %v5923
        %v6377 = vunpack.c.l.b16 %v5924
        %v6378 = vunpack.c.h.b16 %v5924
        %v6379 = vunpack.c.l.b16 %v5925
        %v6380 = vunpack.c.h.b16 %v5925
        %v6381 = vunpack.c.l.b16 %v5926
        %v6382 = vunpack.c.h.b16 %v5926
        %v6383 = vunpack.c.l.b16 %v5927
        %v6384 = vunpack.c.h.b16 %v5927
        %v6385 = vunpack.c.l.b16 %v5928
        %v6386 = vunpack.c.h.b16 %v5928
        %v6387 = vunpack.c.l.b16 %v5929
        %v6388 = vunpack.c.h.b16 %v5929
        %v6389 = vunpack.c.l.b16 %v5930
        %v6390 = vunpack.c.h.b16 %v5930
        %v6391 = vunpack.c.l.b16 %v5931
        %v6392 = vunpack.c.h.b16 %v5931
        %v6393 = vunpack.c.l.b16 %v5932
        %v6394 = vunpack.c.h.b16 %v5932
        %v6395 = vunpack.c.l.b16 %v5933
        %v6396 = vunpack.c.h.b16 %v5933
        %v6397 = vunpack.c.l.b16 %v5934
        %v6398 = vunpack.c.h.b16 %v5934
        %v6399 = vunpack.c.l.b16 %v5935
        %v6400 = vunpack.c.h.b16 %v5935
        %v6401 = vunpack.c.l.b16 %v5936
        %v6402 = vunpack.c.h.b16 %v5936
        %v6403 = vunpack.c.l.b16 %v5937
        %v6404 = vunpack.c.h.b16 %v5937
        %v6405 = vunpack.c.l.b16 %v5938
        %v6406 = vunpack.c.h.b16 %v5938
        %v6407 = vunpack.c.l.b16 %v5939
        %v6408 = vunpack.c.h.b16 %v5939
        %v6409 = vunpack.c.l.b16 %v5940
        %v6410 = vunpack.c.h.b16 %v5940
        %v6411 = vunpack.c.l.b16 %v5941
        %v6412 = vunpack.c.h.b16 %v5941
        %v6413 = vunpack.c.l.b16 %v5942
        %v6414 = vunpack.c.h.b16 %v5942
        %v6415 = vunpack.c.l.b16 %v5943
        %v6416 = vunpack.c.h.b16 %v5943
        %v6417 = vunpack.c.l.b16 %v5944
        %v6418 = vunpack.c.h.b16 %v5944
        %v6419 = vunpack.c.l.b16 %v5945
        %v6420 = vunpack.c.h.b16 %v5945
        %v6421 = vunpack.c.l.b16 %v5946
        %v6422 = vunpack.c.h.b16 %v5946
        %v6423 = vunpack.c.l.b16 %v5947
        %v6424 = vunpack.c.h.b16 %v5947
        %v6425 = vunpack.c.l.b16 %v5948
        %v6426 = vunpack.c.h.b16 %v5948
        %v6427 = vunpack.c.l.b16 %v5949
        %v6428 = vunpack.c.h.b16 %v5949
        %v6429 = vunpack.c.l.b16 %v5950
        %v6430 = vunpack.c.h.b16 %v5950
        %v6431 = vunpack.c.l.b16 %v5951
        %v6432 = vunpack.c.h.b16 %v5951
        %v6433 = vunpack.c.l.b16 %v5952
        %v6434 = vunpack.c.h.b16 %v5952
        %v6435 = vunpack.c.l.b16 %v5953
        %v6436 = vunpack.c.h.b16 %v5953
        %v6437 = vunpack.c.l.b16 %v5954
        %v6438 = vunpack.c.h.b16 %v5954
        %v6439 = vunpack.c.l.b16 %v5955
        %v6440 = vunpack.c.h.b16 %v5955
        %v6441 = vunpack.c.l.b16 %v5956
        %v6442 = vunpack.c.h.b16 %v5956
        %v6443 = vunpack.c.l.b16 %v5957
        %v6444 = vunpack.c.h.b16 %v5957
        %v6445 = vunpack.c.l.b16 %v5958
        %v6446 = vunpack.c.h.b16 %v5958
        %v6447 = vunpack.c.l.b16 %v5959
        %v6448 = vunpack.c.h.b16 %v5959
        %v6449 = vunpack.c.l.b16 %v5960
        %v6450 = vunpack.c.h.b16 %v5960
        %v6451 = vunpack.c.l.b16 %v5961
        %v6452 = vunpack.c.h.b16 %v5961
        %v6453 = vunpack.c.l.b16 %v5962
        %v6454 = vunpack.c.h.b16 %v5962
        %v6455 = vunpack.c.l.b16 %v5963
        %v6456 = vunpack.c.h.b16 %v5963
        %v6457 = vunpack.c.l.b16 %v5964
        %v6458 = vunpack.c.h.b16 %v5964
        %v6459 = vunpack.c.l.b16 %v5965
        %v6460 = vunpack.c.h.b16 %v5965
        %v6461 = vunpack.c.l.b16 %v5966
        %v6462 = vunpack.c.h.b16 %v5966
        %v6463 = vunpack.c.l.b16 %v5967
        %v6464 = vunpack.c.h.b16 %v5967
        %v6465 = vunpack.c.l.b16 %v5968
        %v6466 = vunpack.c.h.b16 %v5968
        %v6467 = vunpack.c.l.b16 %v5969
        %v6468 = vunpack.c.h.b16 %v5969
        %v6469 = vunpack.c.l.b16 %v5970
        %v6470 = vunpack.c.h.b16 %v5970
        %v6471 = vunpack.c.l.b16 %v5971
        %v6472 = vunpack.c.h.b16 %v5971
        %v6473 = vunpack.c.l.b16 %v5972
        %v6474 = vunpack.c.h.b16 %v5972
        %v6475 = vunpack.c.l.b16 %v5973
        %v6476 = vunpack.c.h.b16 %v5973
        %v6477 = vunpack.c.l.b16 %v5974
        %v6478 = vunpack.c.h.b16 %v5974
        %v6479 = vunpack.c.l.b16 %v5975
        %v6480 = vunpack.c.h.b16 %v5975
        %v6481 = vunpack.c.l.b16 %v5976
        %v6482 = vunpack.c.h.b16 %v5976
        %v6483 = vunpack.c.l.b16 %v5977
        %v6484 = vunpack.c.h.b16 %v5977
        %v6485 = vunpack.c.l.b16 %v5978
        %v6486 = vunpack.c.h.b16 %v5978
        %v6487 = vunpack.c.l.b16 %v5979
        %v6488 = vunpack.c.h.b16 %v5979
        %v6489 = vunpack.c.l.b16 %v5980
        %v6490 = vunpack.c.h.b16 %v5980
        %v6491 = vunpack.c.l.b16 %v5981
        %v6492 = vunpack.c.h.b16 %v5981
        %v6493 = vunpack.c.l.b16 %v5982
        %v6494 = vunpack.c.h.b16 %v5982
        %v6495 = vunpack.c.l.b16 %v5983
        %v6496 = vunpack.c.h.b16 %v5983
        %v6497 = vunpack.c.l.b16 %v5984
        %v6498 = vunpack.c.h.b16 %v5984
        %v6499 = vunpack.c.l.b16 %v5985
        %v6500 = vunpack.c.h.b16 %v5985
        %v6501 = vunpack.c.l.b16 %v5986
        %v6502 = vunpack.c.h.b16 %v5986
        %v6503 = vunpack.c.l.b16 %v5987
        %v6504 = vunpack.c.h.b16 %v5987
        %v6505 = vunpack.c.l.b16 %v5988
        %v6506 = vunpack.c.h.b16 %v5988
        %v6507 = vunpack.c.l.b16 %v5989
        %v6508 = vunpack.c.h.b16 %v5989
        %v6509 = vunpack.c.l.b16 %v5990
        %v6510 = vunpack.c.h.b16 %v5990
        %v6511 = vunpack.c.l.b16 %v5991
        %v6512 = vunpack.c.h.b16 %v5991
        %v6513 = vunpack.c.l.b16 %v5992
        %v6514 = vunpack.c.h.b16 %v5992
        %v6515 = vunpack.c.l.b16 %v5993
        %v6516 = vunpack.c.h.b16 %v5993
        %v6517 = vunpack.c.l.b16 %v5994
        %v6518 = vunpack.c.h.b16 %v5994
        %v6519 = vunpack.c.l.b16 %v5995
        %v6520 = vunpack.c.h.b16 %v5995
        %v6521 = vunpack.c.l.b16 %v5996
        %v6522 = vunpack.c.h.b16 %v5996
        %v6523 = vunpack.c.l.b16 %v5997
        %v6524 = vunpack.c.h.b16 %v5997
        %v6525 = vunpack.c.l.b16 %v5998
        %v6526 = vunpack.c.h.b16 %v5998
        %v6527 = vunpack.c.l.b16 %v5999
        %v6528 = vunpack.c.h.b16 %v5999
        %v6529 = vunpack.c.l.b16 %v6000
        %v6530 = vunpack.c.h.b16 %v6000
        %v6531 = vunpack.c.l.b16 %v6001
        %v6532 = vunpack.c.h.b16 %v6001
        %v6533 = vunpack.c.l.b16 %v6002
        %v6534 = vunpack.c.h.b16 %v6002
        %v6535 = vunpack.c.l.b16 %v6003
        %v6536 = vunpack.c.h.b16 %v6003
        %v6537 = vunpack.c.l.b16 %v6004
        %v6538 = vunpack.c.h.b16 %v6004
        %v6539 = vunpack.c.l.b16 %v6005
        %v6540 = vunpack.c.h.b16 %v6005
        %v6541 = vunpack.c.l.b16 %v6006
        %v6542 = vunpack.c.h.b16 %v6006
        %v6543 = vunpack.c.l.b16 %v6007
        %v6544 = vunpack.c.h.b16 %v6007
        %v6545 = vunpack.c.l.b16 %v6008
        %v6546 = vunpack.c.h.b16 %v6008
        %v6547 = vunpack.c.l.b16 %v6009
        %v6548 = vunpack.c.h.b16 %v6009
        %v6549 = vunpack.c.l.b16 %v6010
        %v6550 = vunpack.c.h.b16 %v6010
        %v6551 = vunpack.c.l.b16 %v6011
        %v6552 = vunpack.c.h.b16 %v6011
        %v6553 = vunpack.c.l.b16 %v6012
        %v6554 = vunpack.c.h.b16 %v6012
        %v6555 = vunpack.c.l.b16 %v6013
        %v6556 = vunpack.c.h.b16 %v6013
        %v6557 = vpack.c.b16 %v6367, %v6365
        %v6558 = vpack.c.b16 %v6368, %v6366
        %v6559 = vpack.c.b16 %v6371, %v6369
        %v6560 = vpack.c.b16 %v6372, %v6370
        %v6561 = vpack.c.b16 %v6375, %v6373
        %v6562 = vpack.c.b16 %v6376, %v6374
        %v6563 = vpack.c.b16 %v6379, %v6377
        %v6564 = vpack.c.b16 %v6380, %v6378
        %v6565 = vpack.c.b16 %v6383, %v6381
        %v6566 = vpack.c.b16 %v6384, %v6382
        %v6567 = vpack.c.b16 %v6387, %v6385
        %v6568 = vpack.c.b16 %v6388, %v6386
        %v6569 = vpack.c.b16 %v6391, %v6389
        %v6570 = vpack.c.b16 %v6392, %v6390
        %v6571 = vpack.c.b16 %v6395, %v6393
        %v6572 = vpack.c.b16 %v6396, %v6394
        %v6573 = vpack.c.b16 %v6399, %v6397
        %v6574 = vpack.c.b16 %v6400, %v6398
        %v6575 = vpack.c.b16 %v6403, %v6401
        %v6576 = vpack.c.b16 %v6404, %v6402
        %v6577 = vpack.c.b16 %v6407, %v6405
        %v6578 = vpack.c.b16 %v6408, %v6406
        %v6579 = vpack.c.b16 %v6411, %v6409
        %v6580 = vpack.c.b16 %v6412, %v6410
        %v6581 = vpack.c.b16 %v6415, %v6413
        %v6582 = vpack.c.b16 %v6416, %v6414
        %v6583 = vpack.c.b16 %v6419, %v6417
        %v6584 = vpack.c.b16 %v6420, %v6418
        %v6585 = vpack.c.b16 %v6423, %v6421
        %v6586 = vpack.c.b16 %v6424, %v6422
        %v6587 = vpack.c.b16 %v6427, %v6425
        %v6588 = vpack.c.b16 %v6428, %v6426
        %v6589 = vpack.c.b16 %v6431, %v6429
        %v6590 = vpack.c.b16 %v6432, %v6430
        %v6591 = vpack.c.b16 %v6435, %v6433
        %v6592 = vpack.c.b16 %v6436, %v6434
        %v6593 = vpack.c.b16 %v6439, %v6437
        %v6594 = vpack.c.b16 %v6440, %v6438
        %v6595 = vpack.c.b16 %v6443, %v6441
        %v6596 = vpack.c.b16 %v6444, %v6442
        %v6597 = vpack.c.b16 %v6447, %v6445
        %v6598 = vpack.c.b16 %v6448, %v6446
        %v6599 = vpack.c.b16 %v6451, %v6449
        %v6600 = vpack.c.b16 %v6452, %v6450
        %v6601 = vpack.c.b16 %v6455, %v6453
        %v6602 = vpack.c.b16 %v6456, %v6454
        %v6603 = vpack.c.b16 %v6459, %v6457
        %v6604 = vpack.c.b16 %v6460, %v6458
        %v6605 = vpack.c.b16 %v6463, %v6461
        %v6606 = vpack.c.b16 %v6464, %v6462
        %v6607 = vpack.c.b16 %v6467, %v6465
        %v6608 = vpack.c.b16 %v6468, %v6466
        %v6609 = vpack.c.b16 %v6471, %v6469
        %v6610 = vpack.c.b16 %v6472, %v6470
        %v6611 = vpack.c.b16 %v6475, %v6473
        %v6612 = vpack.c.b16 %v6476, %v6474
        %v6613 = vpack.c.b16 %v6479, %v6477
        %v6614 = vpack.c.b16 %v6480, %v6478
        %v6615 = vpack.c.b16 %v6483, %v6481
        %v6616 = vpack.c.b16 %v6484, %v6482
        %v6617 = vpack.c.b16 %v6487, %v6485
        %v6618 = vpack.c.b16 %v6488, %v6486
        %v6619 = vpack.c.b16 %v6491, %v6489
        %v6620 = vpack.c.b16 %v6492, %v6490
        %v6621 = vpack.c.b16 %v6495, %v6493
        %v6622 = vpack.c.b16 %v6496, %v6494
        %v6623 = vpack.c.b16 %v6499, %v6497
        %v6624 = vpack.c.b16 %v6500, %v6498
        %v6625 = vpack.c.b16 %v6503, %v6501
        %v6626 = vpack.c.b16 %v6504, %v6502
        %v6627 = vpack.c.b16 %v6507, %v6505
        %v6628 = vpack.c.b16 %v6508, %v6506
        %v6629 = vpack.c.b16 %v6511, %v6509
        %v6630 = vpack.c.b16 %v6512, %v6510
        %v6631 = vpack.c.b16 %v6515, %v6513
        %v6632 = vpack.c.b16 %v6516, %v6514
        %v6633 = vpack.c.b16 %v6519, %v6517
        %v6634 = vpack.c.b16 %v6520, %v6518
        %v6635 = vpack.c.b16 %v6523, %v6521
        %v6636 = vpack.c.b16 %v6524, %v6522
        %v6637 = vpack.c.b16 %v6527, %v6525
        %v6638 = vpack.c.b16 %v6528, %v6526
        %v6639 = vpack.c.b16 %v6531, %v6529
        %v6640 = vpack.c.b16 %v6532, %v6530
        %v6641 = vpack.c.b16 %v6535, %v6533
        %v6642 = vpack.c.b16 %v6536, %v6534
        %v6643 = vpack.c.b16 %v6539, %v6537
        %v6644 = vpack.c.b16 %v6540, %v6538
        %v6645 = vpack.c.b16 %v6543, %v6541
        %v6646 = vpack.c.b16 %v6544, %v6542
        %v6647 = vpack.c.b16 %v6547, %v6545
        %v6648 = vpack.c.b16 %v6548, %v6546
        %v6649 = vpack.c.b16 %v6551, %v6549
        %v6650 = vpack.c.b16 %v6552, %v6550
        %v6651 = vpack.c.b16 %v6555, %v6553
        %v6652 = vpack.c.b16 %v6556, %v6554
        %6749 = vmatprep.subr.bf16.mxu0 %v6558
        %6750 = vmatpush1.bf16.msra.mxu0 %v6557
        %6751 = vmatprep.subr.bf16.mxu0 %v6560
        %6752 = vmatpush1.bf16.msra.mxu0 %v6559
        %6753 = vmatprep.subr.bf16.mxu0 %v6562
        %6754 = vmatpush1.bf16.msra.mxu0 %v6561
        %6755 = vmatprep.subr.bf16.mxu0 %v6564
        %6756 = vmatpush1.bf16.msra.mxu0 %v6563
        %6757 = vmatprep.subr.bf16.mxu0 %v6566
        %6758 = vmatpush1.bf16.msra.mxu0 %v6565
        %6759 = vmatprep.subr.bf16.mxu0 %v6568
        %6760 = vmatpush1.bf16.msra.mxu0 %v6567
        %6761 = vmatprep.subr.bf16.mxu0 %v6570
        %6762 = vmatpush1.bf16.msra.mxu0 %v6569
        %6763 = vmatprep.subr.bf16.mxu0 %v6572
        %6764 = vmatpush1.bf16.msra.mxu0 %v6571
        %6765 = vmatprep.subr.bf16.mxu0 %v6574
        %6766 = vmatpush1.bf16.msra.mxu0 %v6573
        %6767 = vmatprep.subr.bf16.mxu0 %v6576
        %6768 = vmatpush1.bf16.msra.mxu0 %v6575
        %6769 = vmatprep.subr.bf16.mxu0 %v6578
        %6770 = vmatpush1.bf16.msra.mxu0 %v6577
        %6771 = vmatprep.subr.bf16.mxu0 %v6580
        %6772 = vmatpush1.bf16.msra.mxu0 %v6579
        %6773 = vmatprep.subr.bf16.mxu0 %v6582
        %6774 = vmatpush1.bf16.msra.mxu0 %v6581
        %6775 = vmatprep.subr.bf16.mxu0 %v6584
        %6776 = vmatpush1.bf16.msra.mxu0 %v6583
        %6777 = vmatprep.subr.bf16.mxu0 %v6586
        %6778 = vmatpush1.bf16.msra.mxu0 %v6585
        %6779 = vmatprep.subr.bf16.mxu0 %v6588
        %6780 = vmatpush1.bf16.msra.mxu0 %v6587
        %6781 = vmatprep.mubr.bf16.mxu0 %v6250
        %6782 = vmatmul.mubr.bf16.gmra.mrb[0].mxu0 %v6249
        %v6783 = vpop.f32.mrb[0].mxu0
        %v6784 = vadd.f32 %v6264, %v6783
        %v6785 = vpop.f32.mrb[0].mxu0
        %v6786 = vadd.f32 %v6268, %v6785
        %v6787 = vpop.f32.mrb[0].mxu0
        %v6788 = vadd.f32 %v6264, %v6787
        %v6789 = vpop.f32.mrb[0].mxu0
        %v6790 = vadd.f32 %v6268, %v6789
        %6791 = vmatprep.mubr.bf16.mxu0 %v6256
        %6792 = vmatmul.mubr.bf16.gmra.mrb[0].mxu0 %v6255
        %v6793 = vpop.f32.mrb[0].mxu0
        %v6794 = vadd.f32 %v6264, %v6793
        %v6795 = vpop.f32.mrb[0].mxu0
        %v6796 = vadd.f32 %v6268, %v6795
        %v6797 = vpop.f32.mrb[0].mxu0
        %v6798 = vpop.f32.mrb[0].mxu0
        %6799 = vdwg.mxu0
        %6800 = vmatprep.subr.bf16.mxu0 %v6590
        %6801 = vmatpush1.bf16.msra.mxu0 %v6589
        %6802 = vmatprep.subr.bf16.mxu0 %v6592
        %6803 = vmatpush1.bf16.msra.mxu0 %v6591
        %6804 = vmatprep.subr.bf16.mxu0 %v6594
        %6805 = vmatpush1.bf16.msra.mxu0 %v6593
        %6806 = vmatprep.subr.bf16.mxu0 %v6596
        %6807 = vmatpush1.bf16.msra.mxu0 %v6595
        %6808 = vmatprep.subr.bf16.mxu0 %v6598
        %6809 = vmatpush1.bf16.msra.mxu0 %v6597
        %6810 = vmatprep.subr.bf16.mxu0 %v6600
        %6811 = vmatpush1.bf16.msra.mxu0 %v6599
        %6812 = vmatprep.subr.bf16.mxu0 %v6602
        %6813 = vmatpush1.bf16.msra.mxu0 %v6601
        %6814 = vmatprep.subr.bf16.mxu0 %v6604
        %6815 = vmatpush1.bf16.msra.mxu0 %v6603
        %6816 = vmatprep.subr.bf16.mxu0 %v6606
        %6817 = vmatpush1.bf16.msra.mxu0 %v6605
        %6818 = vmatprep.subr.bf16.mxu0 %v6608
        %6819 = vmatpush1.bf16.msra.mxu0 %v6607
        %6820 = vmatprep.subr.bf16.mxu0 %v6610
        %6821 = vmatpush1.bf16.msra.mxu0 %v6609
        %6822 = vmatprep.subr.bf16.mxu0 %v6612
        %6823 = vmatpush1.bf16.msra.mxu0 %v6611
        %6824 = vmatprep.subr.bf16.mxu0 %v6614
        %6825 = vmatpush1.bf16.msra.mxu0 %v6613
        %6826 = vmatprep.subr.bf16.mxu0 %v6616
        %6827 = vmatpush1.bf16.msra.mxu0 %v6615
        %6828 = vmatprep.subr.bf16.mxu0 %v6618
        %6829 = vmatpush1.bf16.msra.mxu0 %v6617
        %6830 = vmatprep.subr.bf16.mxu0 %v6620
        %6831 = vmatpush1.bf16.msra.mxu0 %v6619
        %6832 = vmatprep.mubr.bf16.mxu0 %v6252
        %6833 = vmatmul.mubr.bf16.gmra.mrb[0].mxu0 %v6251
        %v6834 = vpop.f32.mrb[0].mxu0
        %v6835 = vadd.f32 %v6784, %v6834
        %v6836 = vpop.f32.mrb[0].mxu0
        %v6837 = vadd.f32 %v6786, %v6836
        %v6838 = vpop.f32.mrb[0].mxu0
        %v6839 = vadd.f32 %v6788, %v6838
        %v6840 = vpop.f32.mrb[0].mxu0
        %v6841 = vadd.f32 %v6790, %v6840
        %6842 = vmatprep.mubr.bf16.mxu0 %v6258
        %6843 = vmatmul.mubr.bf16.gmra.mrb[0].mxu0 %v6257
        %v6844 = vpop.f32.mrb[0].mxu0
        %v6845 = vadd.f32 %v6794, %v6844
        %v6846 = vpop.f32.mrb[0].mxu0
        %v6847 = vadd.f32 %v6796, %v6846
        %v6848 = vpop.f32.mrb[0].mxu0
        %v6849 = vpop.f32.mrb[0].mxu0
        %6850 = vdwg.mxu0
        %6851 = vmatprep.subr.bf16.mxu0 %v6622
        %6852 = vmatpush1.bf16.msra.mxu0 %v6621
        %6853 = vmatprep.subr.bf16.mxu0 %v6624
        %6854 = vmatpush1.bf16.msra.mxu0 %v6623
        %6855 = vmatprep.subr.bf16.mxu0 %v6626
        %6856 = vmatpush1.bf16.msra.mxu0 %v6625
        %6857 = vmatprep.subr.bf16.mxu0 %v6628
        %6858 = vmatpush1.bf16.msra.mxu0 %v6627
        %6859 = vmatprep.subr.bf16.mxu0 %v6630
        %6860 = vmatpush1.bf16.msra.mxu0 %v6629
        %6861 = vmatprep.subr.bf16.mxu0 %v6632
        %6862 = vmatpush1.bf16.msra.mxu0 %v6631
        %6863 = vmatprep.subr.bf16.mxu0 %v6634
        %6864 = vmatpush1.bf16.msra.mxu0 %v6633
        %6865 = vmatprep.subr.bf16.mxu0 %v6636
        %6866 = vmatpush1.bf16.msra.mxu0 %v6635
        %6867 = vmatprep.subr.bf16.mxu0 %v6638
        %6868 = vmatpush1.bf16.msra.mxu0 %v6637
        %6869 = vmatprep.subr.bf16.mxu0 %v6640
        %6870 = vmatpush1.bf16.msra.mxu0 %v6639
        %6871 = vmatprep.subr.bf16.mxu0 %v6642
        %6872 = vmatpush1.bf16.msra.mxu0 %v6641
        %6873 = vmatprep.subr.bf16.mxu0 %v6644
        %6874 = vmatpush1.bf16.msra.mxu0 %v6643
        %6875 = vmatprep.subr.bf16.mxu0 %v6646
        %6876 = vmatpush1.bf16.msra.mxu0 %v6645
        %6877 = vmatprep.subr.bf16.mxu0 %v6648
        %6878 = vmatpush1.bf16.msra.mxu0 %v6647
        %6879 = vmatprep.subr.bf16.mxu0 %v6650
        %6880 = vmatpush1.bf16.msra.mxu0 %v6649
        %6881 = vmatprep.subr.bf16.mxu0 %v6652
        %6882 = vmatpush1.bf16.msra.mxu0 %v6651
        %6883 = vmatprep.mubr.bf16.mxu0 %v6254
        %6884 = vmatmul.mubr.bf16.gmra.mrb[0].mxu0 %v6253
        %v6885 = vpop.f32.mrb[0].mxu0
        %v6886 = vadd.f32 %v6835, %v6885
        %v6887 = vpop.f32.mrb[0].mxu0
        %v6888 = vadd.f32 %v6837, %v6887
        %v6889 = vpop.f32.mrb[0].mxu0
        %v6890 = vadd.f32 %v6839, %v6889
        %v6891 = vpop.f32.mrb[0].mxu0
        %v6892 = vadd.f32 %v6841, %v6891
        %6893 = vmatprep.mubr.bf16.mxu0 %v6260
        %6894 = vmatmul.mubr.bf16.gmra.mrb[0].mxu0 %v6259
        %v6895 = vpop.f32.mrb[0].mxu0
        %v6896 = vadd.f32 %v6845, %v6895
        %v6897 = vpop.f32.mrb[0].mxu0
        %v6898 = vadd.f32 %v6847, %v6897
        %v6899 = vpop.f32.mrb[0].mxu0
        %v6900 = vpop.f32.mrb[0].mxu0
        %6901 = vdwg.mxu0
        %v6902 = vmax.f32 %v6886, 0.0
        %v6903 = vmax.f32 %v6888, 0.0
        %v6904 = vmax.f32 %v6890, 0.0
        %v6905 = vmax.f32 %v6892, 0.0
        %v6906 = vmax.f32 %v6896, 0.0
        %v6907 = vmax.f32 %v6898, 0.0
        %v6914 = vrot.slane %v6902, 7
        %v6915 = vrot.slane %v6903, 7
        %v6916 = vrot.slane %v6904, 7
        %v6917 = vsel %vm1989, %v6914, %v6916
        %v6918 = vrot.slane %v6905, 7
        %v6919 = vsel %vm1989, %v6915, %v6918
        %v6920 = vrot.slane %v6906, 7
        %v6921 = vsel %vm1989, %v6916, %v6920
        %v6922 = vrot.slane %v6907, 7
        %v6923 = vsel %vm1989, %v6918, %v6922
        %v6930 = vsel %vm1989, 0.0, %v6914
        %v6931 = vsel %vm1989, 0.0, %v6915
        %v6932 = vrot.slane %v6902, 1
        %v6933 = vrot.slane %v6904, 1
        %v6934 = vsel %vm1875, %v6932, %v6933
        %v6935 = vrot.slane %v6903, 1
        %v6936 = vrot.slane %v6905, 1
        %v6937 = vsel %vm1875, %v6935, %v6936
        %v6938 = vrot.slane %v6906, 1
        %v6939 = vsel %vm1875, %v6933, %v6938
        %v6940 = vrot.slane %v6907, 1
        %v6941 = vsel %vm1875, %v6936, %v6940
        %v6948 = vsel %vm6246, %v6938, 0.0
        %v6949 = vsel %vm6246, %v6940, 0.0
        %v6950 = vpack.c.bf16 %v6917, %v6930
        %v6951 = vpack.c.bf16 %v6919, %v6931
        %v6952 = vpack.c.bf16 %v6904, %v6902
        %v6953 = vpack.c.bf16 %v6905, %v6903
        %v6954 = vpack.c.bf16 %v6939, %v6934
        %v6955 = vpack.c.bf16 %v6941, %v6937
        %v6956 = vpack.c.bf16 %v6921, %v6921
        %v6957 = vpack.c.bf16 %v6923, %v6923
        %v6958 = vpack.c.bf16 %v6906, %v6906
        %v6959 = vpack.c.bf16 %v6907, %v6907
        %v6960 = vpack.c.bf16 %v6948, %v6948
        %v6961 = vpack.c.bf16 %v6949, %v6949
        %v6962 = vlaneseq
        %v6963 = vshrl.u32 %v6962, 7
        %v6964 = vsub.s32 1, %v6963
        %v6965 = vrot.slane %v5916, %v6964
        %v6966 = vlaneseq
        %v6967 = vshrl.u32 %v6966, 7
        %v6968 = vsub.s32 1, %v6967
        %v6969 = vrot.slane %v5917, %v6968
        %v7066 = vunpack.c.l.b16 %v6014
        %v7067 = vunpack.c.h.b16 %v6014
        %v7068 = vunpack.c.l.b16 %v6015
        %v7069 = vunpack.c.h.b16 %v6015
        %v7070 = vunpack.c.l.b16 %v6016
        %v7071 = vunpack.c.h.b16 %v6016
        %v7072 = vunpack.c.l.b16 %v6017
        %v7073 = vunpack.c.h.b16 %v6017
        %v7074 = vunpack.c.l.b16 %v6018
        %v7075 = vunpack.c.h.b16 %v6018
        %v7076 = vunpack.c.l.b16 %v6019
        %v7077 = vunpack.c.h.b16 %v6019
        %v7078 = vunpack.c.l.b16 %v6020
        %v7079 = vunpack.c.h.b16 %v6020
        %v7080 = vunpack.c.l.b16 %v6021
        %v7081 = vunpack.c.h.b16 %v6021
        %v7082 = vunpack.c.l.b16 %v6022
        %v7083 = vunpack.c.h.b16 %v6022
        %v7084 = vunpack.c.l.b16 %v6023
        %v7085 = vunpack.c.h.b16 %v6023
        %v7086 = vunpack.c.l.b16 %v6024
        %v7087 = vunpack.c.h.b16 %v6024
        %v7088 = vunpack.c.l.b16 %v6025
        %v7089 = vunpack.c.h.b16 %v6025
        %v7090 = vunpack.c.l.b16 %v6026
        %v7091 = vunpack.c.h.b16 %v6026
        %v7092 = vunpack.c.l.b16 %v6027
        %v7093 = vunpack.c.h.b16 %v6027
        %v7094 = vunpack.c.l.b16 %v6028
        %v7095 = vunpack.c.h.b16 %v6028
        %v7096 = vunpack.c.l.b16 %v6029
        %v7097 = vunpack.c.h.b16 %v6029
        %v7098 = vunpack.c.l.b16 %v6030
        %v7099 = vunpack.c.h.b16 %v6030
        %v7100 = vunpack.c.l.b16 %v6031
        %v7101 = vunpack.c.h.b16 %v6031
        %v7102 = vunpack.c.l.b16 %v6032
        %v7103 = vunpack.c.h.b16 %v6032
        %v7104 = vunpack.c.l.b16 %v6033
        %v7105 = vunpack.c.h.b16 %v6033
        %v7106 = vunpack.c.l.b16 %v6034
        %v7107 = vunpack.c.h.b16 %v6034
        %v7108 = vunpack.c.l.b16 %v6035
        %v7109 = vunpack.c.h.b16 %v6035
        %v7110 = vunpack.c.l.b16 %v6036
        %v7111 = vunpack.c.h.b16 %v6036
        %v7112 = vunpack.c.l.b16 %v6037
        %v7113 = vunpack.c.h.b16 %v6037
        %v7114 = vunpack.c.l.b16 %v6038
        %v7115 = vunpack.c.h.b16 %v6038
        %v7116 = vunpack.c.l.b16 %v6039
        %v7117 = vunpack.c.h.b16 %v6039
        %v7118 = vunpack.c.l.b16 %v6040
        %v7119 = vunpack.c.h.b16 %v6040
        %v7120 = vunpack.c.l.b16 %v6041
        %v7121 = vunpack.c.h.b16 %v6041
        %v7122 = vunpack.c.l.b16 %v6042
        %v7123 = vunpack.c.h.b16 %v6042
        %v7124 = vunpack.c.l.b16 %v6043
        %v7125 = vunpack.c.h.b16 %v6043
        %v7126 = vunpack.c.l.b16 %v6044
        %v7127 = vunpack.c.h.b16 %v6044
        %v7128 = vunpack.c.l.b16 %v6045
        %v7129 = vunpack.c.h.b16 %v6045
        %v7130 = vunpack.c.l.b16 %v6046
        %v7131 = vunpack.c.h.b16 %v6046
        %v7132 = vunpack.c.l.b16 %v6047
        %v7133 = vunpack.c.h.b16 %v6047
        %v7134 = vunpack.c.l.b16 %v6048
        %v7135 = vunpack.c.h.b16 %v6048
        %v7136 = vunpack.c.l.b16 %v6049
        %v7137 = vunpack.c.h.b16 %v6049
        %v7138 = vunpack.c.l.b16 %v6050
        %v7139 = vunpack.c.h.b16 %v6050
        %v7140 = vunpack.c.l.b16 %v6051
        %v7141 = vunpack.c.h.b16 %v6051
        %v7142 = vunpack.c.l.b16 %v6052
        %v7143 = vunpack.c.h.b16 %v6052
        %v7144 = vunpack.c.l.b16 %v6053
        %v7145 = vunpack.c.h.b16 %v6053
        %v7146 = vunpack.c.l.b16 %v6054
        %v7147 = vunpack.c.h.b16 %v6054
        %v7148 = vunpack.c.l.b16 %v6055
        %v7149 = vunpack.c.h.b16 %v6055
        %v7150 = vunpack.c.l.b16 %v6056
        %v7151 = vunpack.c.h.b16 %v6056
        %v7152 = vunpack.c.l.b16 %v6057
        %v7153 = vunpack.c.h.b16 %v6057
        %v7154 = vunpack.c.l.b16 %v6058
        %v7155 = vunpack.c.h.b16 %v6058
        %v7156 = vunpack.c.l.b16 %v6059
        %v7157 = vunpack.c.h.b16 %v6059
        %v7158 = vunpack.c.l.b16 %v6060
        %v7159 = vunpack.c.h.b16 %v6060
        %v7160 = vunpack.c.l.b16 %v6061
        %v7161 = vunpack.c.h.b16 %v6061
        %v7162 = vunpack.c.l.b16 %v6062
        %v7163 = vunpack.c.h.b16 %v6062
        %v7164 = vunpack.c.l.b16 %v6063
        %v7165 = vunpack.c.h.b16 %v6063
        %v7166 = vunpack.c.l.b16 %v6064
        %v7167 = vunpack.c.h.b16 %v6064
        %v7168 = vunpack.c.l.b16 %v6065
        %v7169 = vunpack.c.h.b16 %v6065
        %v7170 = vunpack.c.l.b16 %v6066
        %v7171 = vunpack.c.h.b16 %v6066
        %v7172 = vunpack.c.l.b16 %v6067
        %v7173 = vunpack.c.h.b16 %v6067
        %v7174 = vunpack.c.l.b16 %v6068
        %v7175 = vunpack.c.h.b16 %v6068
        %v7176 = vunpack.c.l.b16 %v6069
        %v7177 = vunpack.c.h.b16 %v6069
        %v7178 = vunpack.c.l.b16 %v6070
        %v7179 = vunpack.c.h.b16 %v6070
        %v7180 = vunpack.c.l.b16 %v6071
        %v7181 = vunpack.c.h.b16 %v6071
        %v7182 = vunpack.c.l.b16 %v6072
        %v7183 = vunpack.c.h.b16 %v6072
        %v7184 = vunpack.c.l.b16 %v6073
        %v7185 = vunpack.c.h.b16 %v6073
        %v7186 = vunpack.c.l.b16 %v6074
        %v7187 = vunpack.c.h.b16 %v6074
        %v7188 = vunpack.c.l.b16 %v6075
        %v7189 = vunpack.c.h.b16 %v6075
        %v7190 = vunpack.c.l.b16 %v6076
        %v7191 = vunpack.c.h.b16 %v6076
        %v7192 = vunpack.c.l.b16 %v6077
        %v7193 = vunpack.c.h.b16 %v6077
        %v7194 = vunpack.c.l.b16 %v6078
        %v7195 = vunpack.c.h.b16 %v6078
        %v7196 = vunpack.c.l.b16 %v6079
        %v7197 = vunpack.c.h.b16 %v6079
        %v7198 = vunpack.c.l.b16 %v6080
        %v7199 = vunpack.c.h.b16 %v6080
        %v7200 = vunpack.c.l.b16 %v6081
        %v7201 = vunpack.c.h.b16 %v6081
        %v7202 = vunpack.c.l.b16 %v6082
        %v7203 = vunpack.c.h.b16 %v6082
        %v7204 = vunpack.c.l.b16 %v6083
        %v7205 = vunpack.c.h.b16 %v6083
        %v7206 = vunpack.c.l.b16 %v6084
        %v7207 = vunpack.c.h.b16 %v6084
        %v7208 = vunpack.c.l.b16 %v6085
        %v7209 = vunpack.c.h.b16 %v6085
        %v7210 = vunpack.c.l.b16 %v6086
        %v7211 = vunpack.c.h.b16 %v6086
        %v7212 = vunpack.c.l.b16 %v6087
        %v7213 = vunpack.c.h.b16 %v6087
        %v7214 = vunpack.c.l.b16 %v6088
        %v7215 = vunpack.c.h.b16 %v6088
        %v7216 = vunpack.c.l.b16 %v6089
        %v7217 = vunpack.c.h.b16 %v6089
        %v7218 = vunpack.c.l.b16 %v6090
        %v7219 = vunpack.c.h.b16 %v6090
        %v7220 = vunpack.c.l.b16 %v6091
        %v7221 = vunpack.c.h.b16 %v6091
        %v7222 = vunpack.c.l.b16 %v6092
        %v7223 = vunpack.c.h.b16 %v6092
        %v7224 = vunpack.c.l.b16 %v6093
        %v7225 = vunpack.c.h.b16 %v6093
        %v7226 = vunpack.c.l.b16 %v6094
        %v7227 = vunpack.c.h.b16 %v6094
        %v7228 = vunpack.c.l.b16 %v6095
        %v7229 = vunpack.c.h.b16 %v6095
        %v7230 = vunpack.c.l.b16 %v6096
        %v7231 = vunpack.c.h.b16 %v6096
        %v7232 = vunpack.c.l.b16 %v6097
        %v7233 = vunpack.c.h.b16 %v6097
        %v7234 = vunpack.c.l.b16 %v6098
        %v7235 = vunpack.c.h.b16 %v6098
        %v7236 = vunpack.c.l.b16 %v6099
        %v7237 = vunpack.c.h.b16 %v6099
        %v7238 = vunpack.c.l.b16 %v6100
        %v7239 = vunpack.c.h.b16 %v6100
        %v7240 = vunpack.c.l.b16 %v6101
        %v7241 = vunpack.c.h.b16 %v6101
        %v7242 = vunpack.c.l.b16 %v6102
        %v7243 = vunpack.c.h.b16 %v6102
        %v7244 = vunpack.c.l.b16 %v6103
        %v7245 = vunpack.c.h.b16 %v6103
        %v7246 = vunpack.c.l.b16 %v6104
        %v7247 = vunpack.c.h.b16 %v6104
        %v7248 = vunpack.c.l.b16 %v6105
        %v7249 = vunpack.c.h.b16 %v6105
        %v7250 = vunpack.c.l.b16 %v6106
        %v7251 = vunpack.c.h.b16 %v6106
        %v7252 = vunpack.c.l.b16 %v6107
        %v7253 = vunpack.c.h.b16 %v6107
        %v7254 = vunpack.c.l.b16 %v6108
        %v7255 = vunpack.c.h.b16 %v6108
        %v7256 = vunpack.c.l.b16 %v6109
        %v7257 = vunpack.c.h.b16 %v6109
        %v7258 = vpack.c.b16 %v7068, %v7066
        %v7259 = vpack.c.b16 %v7069, %v7067
        %v7260 = vpack.c.b16 %v7072, %v7070
        %v7261 = vpack.c.b16 %v7073, %v7071
        %v7262 = vpack.c.b16 %v7076, %v7074
        %v7263 = vpack.c.b16 %v7077, %v7075
        %v7264 = vpack.c.b16 %v7080, %v7078
        %v7265 = vpack.c.b16 %v7081, %v7079
        %v7266 = vpack.c.b16 %v7084, %v7082
        %v7267 = vpack.c.b16 %v7085, %v7083
        %v7268 = vpack.c.b16 %v7088, %v7086
        %v7269 = vpack.c.b16 %v7089, %v7087
        %v7270 = vpack.c.b16 %v7092, %v7090
        %v7271 = vpack.c.b16 %v7093, %v7091
        %v7272 = vpack.c.b16 %v7096, %v7094
        %v7273 = vpack.c.b16 %v7097, %v7095
        %v7274 = vpack.c.b16 %v7100, %v7098
        %v7275 = vpack.c.b16 %v7101, %v7099
        %v7276 = vpack.c.b16 %v7104, %v7102
        %v7277 = vpack.c.b16 %v7105, %v7103
        %v7278 = vpack.c.b16 %v7108, %v7106
        %v7279 = vpack.c.b16 %v7109, %v7107
        %v7280 = vpack.c.b16 %v7112, %v7110
        %v7281 = vpack.c.b16 %v7113, %v7111
        %v7282 = vpack.c.b16 %v7116, %v7114
        %v7283 = vpack.c.b16 %v7117, %v7115
        %v7284 = vpack.c.b16 %v7120, %v7118
        %v7285 = vpack.c.b16 %v7121, %v7119
        %v7286 = vpack.c.b16 %v7124, %v7122
        %v7287 = vpack.c.b16 %v7125, %v7123
        %v7288 = vpack.c.b16 %v7128, %v7126
        %v7289 = vpack.c.b16 %v7129, %v7127
        %v7290 = vpack.c.b16 %v7132, %v7130
        %v7291 = vpack.c.b16 %v7133, %v7131
        %v7292 = vpack.c.b16 %v7136, %v7134
        %v7293 = vpack.c.b16 %v7137, %v7135
        %v7294 = vpack.c.b16 %v7140, %v7138
        %v7295 = vpack.c.b16 %v7141, %v7139
        %v7296 = vpack.c.b16 %v7144, %v7142
        %v7297 = vpack.c.b16 %v7145, %v7143
        %v7298 = vpack.c.b16 %v7148, %v7146
        %v7299 = vpack.c.b16 %v7149, %v7147
        %v7300 = vpack.c.b16 %v7152, %v7150
        %v7301 = vpack.c.b16 %v7153, %v7151
        %v7302 = vpack.c.b16 %v7156, %v7154
        %v7303 = vpack.c.b16 %v7157, %v7155
        %v7304 = vpack.c.b16 %v7160, %v7158
        %v7305 = vpack.c.b16 %v7161, %v7159
        %v7306 = vpack.c.b16 %v7164, %v7162
        %v7307 = vpack.c.b16 %v7165, %v7163
        %v7308 = vpack.c.b16 %v7168, %v7166
        %v7309 = vpack.c.b16 %v7169, %v7167
        %v7310 = vpack.c.b16 %v7172, %v7170
        %v7311 = vpack.c.b16 %v7173, %v7171
        %v7312 = vpack.c.b16 %v7176, %v7174
        %v7313 = vpack.c.b16 %v7177, %v7175
        %v7314 = vpack.c.b16 %v7180, %v7178
        %v7315 = vpack.c.b16 %v7181, %v7179
        %v7316 = vpack.c.b16 %v7184, %v7182
        %v7317 = vpack.c.b16 %v7185, %v7183
        %v7318 = vpack.c.b16 %v7188, %v7186
        %v7319 = vpack.c.b16 %v7189, %v7187
        %v7320 = vpack.c.b16 %v7192, %v7190
        %v7321 = vpack.c.b16 %v7193, %v7191
        %v7322 = vpack.c.b16 %v7196, %v7194
        %v7323 = vpack.c.b16 %v7197, %v7195
        %v7324 = vpack.c.b16 %v7200, %v7198
        %v7325 = vpack.c.b16 %v7201, %v7199
        %v7326 = vpack.c.b16 %v7204, %v7202
        %v7327 = vpack.c.b16 %v7205, %v7203
        %v7328 = vpack.c.b16 %v7208, %v7206
        %v7329 = vpack.c.b16 %v7209, %v7207
        %v7330 = vpack.c.b16 %v7212, %v7210
        %v7331 = vpack.c.b16 %v7213, %v7211
        %v7332 = vpack.c.b16 %v7216, %v7214
        %v7333 = vpack.c.b16 %v7217, %v7215
        %v7334 = vpack.c.b16 %v7220, %v7218
        %v7335 = vpack.c.b16 %v7221, %v7219
        %v7336 = vpack.c.b16 %v7224, %v7222
        %v7337 = vpack.c.b16 %v7225, %v7223
        %v7338 = vpack.c.b16 %v7228, %v7226
        %v7339 = vpack.c.b16 %v7229, %v7227
        %v7340 = vpack.c.b16 %v7232, %v7230
        %v7341 = vpack.c.b16 %v7233, %v7231
        %v7342 = vpack.c.b16 %v7236, %v7234
        %v7343 = vpack.c.b16 %v7237, %v7235
        %v7344 = vpack.c.b16 %v7240, %v7238
        %v7345 = vpack.c.b16 %v7241, %v7239
        %v7346 = vpack.c.b16 %v7244, %v7242
        %v7347 = vpack.c.b16 %v7245, %v7243
        %v7348 = vpack.c.b16 %v7248, %v7246
        %v7349 = vpack.c.b16 %v7249, %v7247
        %v7350 = vpack.c.b16 %v7252, %v7250
        %v7351 = vpack.c.b16 %v7253, %v7251
        %v7352 = vpack.c.b16 %v7256, %v7254
        %v7353 = vpack.c.b16 %v7257, %v7255
        %7450 = vmatprep.subr.bf16.mxu0 %v7259
        %7451 = vmatpush1.bf16.msra.mxu0 %v7258
        %7452 = vmatprep.subr.bf16.mxu0 %v7261
        %7453 = vmatpush1.bf16.msra.mxu0 %v7260
        %7454 = vmatprep.subr.bf16.mxu0 %v7263
        %7455 = vmatpush1.bf16.msra.mxu0 %v7262
        %7456 = vmatprep.subr.bf16.mxu0 %v7265
        %7457 = vmatpush1.bf16.msra.mxu0 %v7264
        %7458 = vmatprep.subr.bf16.mxu0 %v7267
        %7459 = vmatpush1.bf16.msra.mxu0 %v7266
        %7460 = vmatprep.subr.bf16.mxu0 %v7269
        %7461 = vmatpush1.bf16.msra.mxu0 %v7268
        %7462 = vmatprep.subr.bf16.mxu0 %v7271
        %7463 = vmatpush1.bf16.msra.mxu0 %v7270
        %7464 = vmatprep.subr.bf16.mxu0 %v7273
        %7465 = vmatpush1.bf16.msra.mxu0 %v7272
        %7466 = vmatprep.subr.bf16.mxu0 %v7275
        %7467 = vmatpush1.bf16.msra.mxu0 %v7274
        %7468 = vmatprep.subr.bf16.mxu0 %v7277
        %7469 = vmatpush1.bf16.msra.mxu0 %v7276
        %7470 = vmatprep.subr.bf16.mxu0 %v7279
        %7471 = vmatpush1.bf16.msra.mxu0 %v7278
        %7472 = vmatprep.subr.bf16.mxu0 %v7281
        %7473 = vmatpush1.bf16.msra.mxu0 %v7280
        %7474 = vmatprep.subr.bf16.mxu0 %v7283
        %7475 = vmatpush1.bf16.msra.mxu0 %v7282
        %7476 = vmatprep.subr.bf16.mxu0 %v7285
        %7477 = vmatpush1.bf16.msra.mxu0 %v7284
        %7478 = vmatprep.subr.bf16.mxu0 %v7287
        %7479 = vmatpush1.bf16.msra.mxu0 %v7286
        %7480 = vmatprep.subr.bf16.mxu0 %v7289
        %7481 = vmatpush1.bf16.msra.mxu0 %v7288
        %7482 = vmatprep.mubr.bf16.mxu0 %v6951
        %7483 = vmatmul.mubr.bf16.gmra.mrb[0].mxu0 %v6950
        %v7484 = vpop.f32.mrb[0].mxu0
        %v7485 = vadd.f32 %v6965, %v7484
        %v7486 = vpop.f32.mrb[0].mxu0
        %v7487 = vadd.f32 %v6969, %v7486
        %v7488 = vpop.f32.mrb[0].mxu0
        %v7489 = vadd.f32 %v6965, %v7488
        %v7490 = vpop.f32.mrb[0].mxu0
        %v7491 = vadd.f32 %v6969, %v7490
        %7492 = vmatprep.mubr.bf16.mxu0 %v6957
        %7493 = vmatmul.mubr.bf16.gmra.mrb[0].mxu0 %v6956
        %v7494 = vpop.f32.mrb[0].mxu0
        %v7495 = vadd.f32 %v6965, %v7494
        %v7496 = vpop.f32.mrb[0].mxu0
        %v7497 = vadd.f32 %v6969, %v7496
        %v7498 = vpop.f32.mrb[0].mxu0
        %v7499 = vpop.f32.mrb[0].mxu0
        %7500 = vdwg.mxu0
        %7501 = vmatprep.subr.bf16.mxu0 %v7291
        %7502 = vmatpush1.bf16.msra.mxu0 %v7290
        %7503 = vmatprep.subr.bf16.mxu0 %v7293
        %7504 = vmatpush1.bf16.msra.mxu0 %v7292
        %7505 = vmatprep.subr.bf16.mxu0 %v7295
        %7506 = vmatpush1.bf16.msra.mxu0 %v7294
        %7507 = vmatprep.subr.bf16.mxu0 %v7297
        %7508 = vmatpush1.bf16.msra.mxu0 %v7296
        %7509 = vmatprep.subr.bf16.mxu0 %v7299
        %7510 = vmatpush1.bf16.msra.mxu0 %v7298
        %7511 = vmatprep.subr.bf16.mxu0 %v7301
        %7512 = vmatpush1.bf16.msra.mxu0 %v7300
        %7513 = vmatprep.subr.bf16.mxu0 %v7303
        %7514 = vmatpush1.bf16.msra.mxu0 %v7302
        %7515 = vmatprep.subr.bf16.mxu0 %v7305
        %7516 = vmatpush1.bf16.msra.mxu0 %v7304
        %7517 = vmatprep.subr.bf16.mxu0 %v7307
        %7518 = vmatpush1.bf16.msra.mxu0 %v7306
        %7519 = vmatprep.subr.bf16.mxu0 %v7309
        %7520 = vmatpush1.bf16.msra.mxu0 %v7308
        %7521 = vmatprep.subr.bf16.mxu0 %v7311
        %7522 = vmatpush1.bf16.msra.mxu0 %v7310
        %7523 = vmatprep.subr.bf16.mxu0 %v7313
        %7524 = vmatpush1.bf16.msra.mxu0 %v7312
        %7525 = vmatprep.subr.bf16.mxu0 %v7315
        %7526 = vmatpush1.bf16.msra.mxu0 %v7314
        %7527 = vmatprep.subr.bf16.mxu0 %v7317
        %7528 = vmatpush1.bf16.msra.mxu0 %v7316
        %7529 = vmatprep.subr.bf16.mxu0 %v7319
        %7530 = vmatpush1.bf16.msra.mxu0 %v7318
        %7531 = vmatprep.subr.bf16.mxu0 %v7321
        %7532 = vmatpush1.bf16.msra.mxu0 %v7320
        %7533 = vmatprep.mubr.bf16.mxu0 %v6953
        %7534 = vmatmul.mubr.bf16.gmra.mrb[0].mxu0 %v6952
        %v7535 = vpop.f32.mrb[0].mxu0
        %v7536 = vadd.f32 %v7485, %v7535
        %v7537 = vpop.f32.mrb[0].mxu0
        %v7538 = vadd.f32 %v7487, %v7537
        %v7539 = vpop.f32.mrb[0].mxu0
        %v7540 = vadd.f32 %v7489, %v7539
        %v7541 = vpop.f32.mrb[0].mxu0
        %v7542 = vadd.f32 %v7491, %v7541
        %7543 = vmatprep.mubr.bf16.mxu0 %v6959
        %7544 = vmatmul.mubr.bf16.gmra.mrb[0].mxu0 %v6958
        %v7545 = vpop.f32.mrb[0].mxu0
        %v7546 = vadd.f32 %v7495, %v7545
        %v7547 = vpop.f32.mrb[0].mxu0
        %v7548 = vadd.f32 %v7497, %v7547
        %v7549 = vpop.f32.mrb[0].mxu0
        %v7550 = vpop.f32.mrb[0].mxu0
        %7551 = vdwg.mxu0
        %7552 = vmatprep.subr.bf16.mxu0 %v7323
        %7553 = vmatpush1.bf16.msra.mxu0 %v7322
        %7554 = vmatprep.subr.bf16.mxu0 %v7325
        %7555 = vmatpush1.bf16.msra.mxu0 %v7324
        %7556 = vmatprep.subr.bf16.mxu0 %v7327
        %7557 = vmatpush1.bf16.msra.mxu0 %v7326
        %7558 = vmatprep.subr.bf16.mxu0 %v7329
        %7559 = vmatpush1.bf16.msra.mxu0 %v7328
        %7560 = vmatprep.subr.bf16.mxu0 %v7331
        %7561 = vmatpush1.bf16.msra.mxu0 %v7330
        %7562 = vmatprep.subr.bf16.mxu0 %v7333
        %7563 = vmatpush1.bf16.msra.mxu0 %v7332
        %7564 = vmatprep.subr.bf16.mxu0 %v7335
        %7565 = vmatpush1.bf16.msra.mxu0 %v7334
        %7566 = vmatprep.subr.bf16.mxu0 %v7337
        %7567 = vmatpush1.bf16.msra.mxu0 %v7336
        %7568 = vmatprep.subr.bf16.mxu0 %v7339
        %7569 = vmatpush1.bf16.msra.mxu0 %v7338
        %7570 = vmatprep.subr.bf16.mxu0 %v7341
        %7571 = vmatpush1.bf16.msra.mxu0 %v7340
        %7572 = vmatprep.subr.bf16.mxu0 %v7343
        %7573 = vmatpush1.bf16.msra.mxu0 %v7342
        %7574 = vmatprep.subr.bf16.mxu0 %v7345
        %7575 = vmatpush1.bf16.msra.mxu0 %v7344
        %7576 = vmatprep.subr.bf16.mxu0 %v7347
        %7577 = vmatpush1.bf16.msra.mxu0 %v7346
        %7578 = vmatprep.subr.bf16.mxu0 %v7349
        %7579 = vmatpush1.bf16.msra.mxu0 %v7348
        %7580 = vmatprep.subr.bf16.mxu0 %v7351
        %7581 = vmatpush1.bf16.msra.mxu0 %v7350
        %7582 = vmatprep.subr.bf16.mxu0 %v7353
        %7583 = vmatpush1.bf16.msra.mxu0 %v7352
        %7584 = vmatprep.mubr.bf16.mxu0 %v6955
        %7585 = vmatmul.mubr.bf16.gmra.mrb[0].mxu0 %v6954
        %v7586 = vpop.f32.mrb[0].mxu0
        %v7587 = vadd.f32 %v7536, %v7586
        %v7588 = vpop.f32.mrb[0].mxu0
        %v7589 = vadd.f32 %v7538, %v7588
        %v7590 = vpop.f32.mrb[0].mxu0
        %v7591 = vadd.f32 %v7540, %v7590
        %v7592 = vpop.f32.mrb[0].mxu0
        %v7593 = vadd.f32 %v7542, %v7592
        %7594 = vmatprep.mubr.bf16.mxu0 %v6961
        %7595 = vmatmul.mubr.bf16.gmra.mrb[0].mxu0 %v6960
        %v7596 = vpop.f32.mrb[0].mxu0
        %v7597 = vadd.f32 %v7546, %v7596
        %v7598 = vpop.f32.mrb[0].mxu0
        %v7599 = vadd.f32 %v7548, %v7598
        %v7600 = vpop.f32.mrb[0].mxu0
        %v7601 = vpop.f32.mrb[0].mxu0
        %7602 = vdwg.mxu0
        %v7603 = vlaneseq
        %v7604 = vshrl.u32 %v7603, 7
        %v7605 = vsub.s32 2, %v7604
        %v7606 = vrot.slane %v5916, %v7605
        %v7607 = vlaneseq
        %v7608 = vshrl.u32 %v7607, 7
        %v7609 = vsub.s32 2, %v7608
        %v7610 = vrot.slane %v5917, %v7609
        %v7643 = vunpack.c.l.b16 %v6110
        %v7644 = vunpack.c.h.b16 %v6110
        %v7645 = vunpack.c.l.b16 %v6111
        %v7646 = vunpack.c.h.b16 %v6111
        %v7647 = vunpack.c.l.b16 %v6112
        %v7648 = vunpack.c.h.b16 %v6112
        %v7649 = vunpack.c.l.b16 %v6113
        %v7650 = vunpack.c.h.b16 %v6113
        %v7651 = vunpack.c.l.b16 %v6114
        %v7652 = vunpack.c.h.b16 %v6114
        %v7653 = vunpack.c.l.b16 %v6115
        %v7654 = vunpack.c.h.b16 %v6115
        %v7655 = vunpack.c.l.b16 %v6116
        %v7656 = vunpack.c.h.b16 %v6116
        %v7657 = vunpack.c.l.b16 %v6117
        %v7658 = vunpack.c.h.b16 %v6117
        %v7659 = vunpack.c.l.b16 %v6118
        %v7660 = vunpack.c.h.b16 %v6118
        %v7661 = vunpack.c.l.b16 %v6119
        %v7662 = vunpack.c.h.b16 %v6119
        %v7663 = vunpack.c.l.b16 %v6120
        %v7664 = vunpack.c.h.b16 %v6120
        %v7665 = vunpack.c.l.b16 %v6121
        %v7666 = vunpack.c.h.b16 %v6121
        %v7667 = vunpack.c.l.b16 %v6122
        %v7668 = vunpack.c.h.b16 %v6122
        %v7669 = vunpack.c.l.b16 %v6123
        %v7670 = vunpack.c.h.b16 %v6123
        %v7671 = vunpack.c.l.b16 %v6124
        %v7672 = vunpack.c.h.b16 %v6124
        %v7673 = vunpack.c.l.b16 %v6125
        %v7674 = vunpack.c.h.b16 %v6125
        %v7675 = vunpack.c.l.b16 %v6126
        %v7676 = vunpack.c.h.b16 %v6126
        %v7677 = vunpack.c.l.b16 %v6127
        %v7678 = vunpack.c.h.b16 %v6127
        %v7679 = vunpack.c.l.b16 %v6128
        %v7680 = vunpack.c.h.b16 %v6128
        %v7681 = vunpack.c.l.b16 %v6129
        %v7682 = vunpack.c.h.b16 %v6129
        %v7683 = vunpack.c.l.b16 %v6130
        %v7684 = vunpack.c.h.b16 %v6130
        %v7685 = vunpack.c.l.b16 %v6131
        %v7686 = vunpack.c.h.b16 %v6131
        %v7687 = vunpack.c.l.b16 %v6132
        %v7688 = vunpack.c.h.b16 %v6132
        %v7689 = vunpack.c.l.b16 %v6133
        %v7690 = vunpack.c.h.b16 %v6133
        %v7691 = vunpack.c.l.b16 %v6134
        %v7692 = vunpack.c.h.b16 %v6134
        %v7693 = vunpack.c.l.b16 %v6135
        %v7694 = vunpack.c.h.b16 %v6135
        %v7695 = vunpack.c.l.b16 %v6136
        %v7696 = vunpack.c.h.b16 %v6136
        %v7697 = vunpack.c.l.b16 %v6137
        %v7698 = vunpack.c.h.b16 %v6137
        %v7699 = vunpack.c.l.b16 %v6138
        %v7700 = vunpack.c.h.b16 %v6138
        %v7701 = vunpack.c.l.b16 %v6139
        %v7702 = vunpack.c.h.b16 %v6139
        %v7703 = vunpack.c.l.b16 %v6140
        %v7704 = vunpack.c.h.b16 %v6140
        %v7705 = vunpack.c.l.b16 %v6141
        %v7706 = vunpack.c.h.b16 %v6141
        %v7707 = vpack.c.b16 %v7645, %v7643
        %v7708 = vpack.c.b16 %v7646, %v7644
        %v7709 = vpack.c.b16 %v7649, %v7647
        %v7710 = vpack.c.b16 %v7650, %v7648
        %v7711 = vpack.c.b16 %v7653, %v7651
        %v7712 = vpack.c.b16 %v7654, %v7652
        %v7713 = vpack.c.b16 %v7657, %v7655
        %v7714 = vpack.c.b16 %v7658, %v7656
        %v7715 = vpack.c.b16 %v7661, %v7659
        %v7716 = vpack.c.b16 %v7662, %v7660
        %v7717 = vpack.c.b16 %v7665, %v7663
        %v7718 = vpack.c.b16 %v7666, %v7664
        %v7719 = vpack.c.b16 %v7669, %v7667
        %v7720 = vpack.c.b16 %v7670, %v7668
        %v7721 = vpack.c.b16 %v7673, %v7671
        %v7722 = vpack.c.b16 %v7674, %v7672
        %v7723 = vpack.c.b16 %v7677, %v7675
        %v7724 = vpack.c.b16 %v7678, %v7676
        %v7725 = vpack.c.b16 %v7681, %v7679
        %v7726 = vpack.c.b16 %v7682, %v7680
        %v7727 = vpack.c.b16 %v7685, %v7683
        %v7728 = vpack.c.b16 %v7686, %v7684
        %v7729 = vpack.c.b16 %v7689, %v7687
        %v7730 = vpack.c.b16 %v7690, %v7688
        %v7731 = vpack.c.b16 %v7693, %v7691
        %v7732 = vpack.c.b16 %v7694, %v7692
        %v7733 = vpack.c.b16 %v7697, %v7695
        %v7734 = vpack.c.b16 %v7698, %v7696
        %v7735 = vpack.c.b16 %v7701, %v7699
        %v7736 = vpack.c.b16 %v7702, %v7700
        %v7737 = vpack.c.b16 %v7705, %v7703
        %v7738 = vpack.c.b16 %v7706, %v7704
        %7771 = vmatprep.subr.bf16.mxu0 %v7708
        %7772 = vmatpush1.bf16.msra.mxu0 %v7707
        %7773 = vmatprep.subr.bf16.mxu0 %v7710
        %7774 = vmatpush1.bf16.msra.mxu0 %v7709
        %7775 = vmatprep.subr.bf16.mxu0 %v7712
        %7776 = vmatpush1.bf16.msra.mxu0 %v7711
        %7777 = vmatprep.subr.bf16.mxu0 %v7714
        %7778 = vmatpush1.bf16.msra.mxu0 %v7713
        %7779 = vmatprep.subr.bf16.mxu0 %v7716
        %7780 = vmatpush1.bf16.msra.mxu0 %v7715
        %7781 = vmatprep.subr.bf16.mxu0 %v7718
        %7782 = vmatpush1.bf16.msra.mxu0 %v7717
        %7783 = vmatprep.subr.bf16.mxu0 %v7720
        %7784 = vmatpush1.bf16.msra.mxu0 %v7719
        %7785 = vmatprep.subr.bf16.mxu0 %v7722
        %7786 = vmatpush1.bf16.msra.mxu0 %v7721
        %7787 = vmatprep.subr.bf16.mxu0 %v7724
        %7788 = vmatpush1.bf16.msra.mxu0 %v7723
        %7789 = vmatprep.subr.bf16.mxu0 %v7726
        %7790 = vmatpush1.bf16.msra.mxu0 %v7725
        %7791 = vmatprep.subr.bf16.mxu0 %v7728
        %7792 = vmatpush1.bf16.msra.mxu0 %v7727
        %7793 = vmatprep.subr.bf16.mxu0 %v7730
        %7794 = vmatpush1.bf16.msra.mxu0 %v7729
        %7795 = vmatprep.subr.bf16.mxu0 %v7732
        %7796 = vmatpush1.bf16.msra.mxu0 %v7731
        %7797 = vmatprep.subr.bf16.mxu0 %v7734
        %7798 = vmatpush1.bf16.msra.mxu0 %v7733
        %7799 = vmatprep.subr.bf16.mxu0 %v7736
        %7800 = vmatpush1.bf16.msra.mxu0 %v7735
        %7801 = vmatprep.subr.bf16.mxu0 %v7738
        %7802 = vmatpush1.bf16.msra.mxu0 %v7737
        %7803 = vmatprep.mubr.bf16.mxu0 %v6252
        %7804 = vmatmul.mubr.bf16.gmra.mrb[0].mxu0 %v6251
        %v7805 = vpop.f32.mrb[0].mxu0
        %v7806 = vadd.f32 %v7606, %v7805
        %v7807 = vpop.f32.mrb[0].mxu0
        %v7808 = vadd.f32 %v7610, %v7807
        %v7809 = vpop.f32.mrb[0].mxu0
        %v7810 = vadd.f32 %v7606, %v7809
        %v7811 = vpop.f32.mrb[0].mxu0
        %v7812 = vadd.f32 %v7610, %v7811
        %7813 = vmatprep.mubr.bf16.mxu0 %v6258
        %7814 = vmatmul.mubr.bf16.gmra.mrb[0].mxu0 %v6257
        %v7815 = vpop.f32.mrb[0].mxu0
        %v7816 = vadd.f32 %v7606, %v7815
        %v7817 = vpop.f32.mrb[0].mxu0
        %v7818 = vadd.f32 %v7610, %v7817
        %v7819 = vpop.f32.mrb[0].mxu0
        %v7820 = vpop.f32.mrb[0].mxu0
        %7821 = vdwg.mxu0
        %v7822 = vadd.f32 %v7587, %v7591
        %v7823 = vsel %vm5289, %v7597, 0.0
        %v7824 = vadd.f32 %v7822, %v7823
        %v7825 = vrot.slane %v7824, 4
        %v7826 = vadd.f32 %v7824, %v7825
        %v7827 = vrot.slane %v7826, 2
        %v7828 = vadd.f32 %v7826, %v7827
        %v7829 = vrot.slane %v7828, 1
        %v7830 = vadd.f32 %v7828, %v7829
        %v7831 = vadd.f32 %v7589, %v7593
        %v7832 = vsel %vm5289, %v7599, 0.0
        %v7833 = vadd.f32 %v7831, %v7832
        %v7834 = vrot.slane %v7833, 4
        %v7835 = vadd.f32 %v7833, %v7834
        %v7836 = vrot.slane %v7835, 2
        %v7837 = vadd.f32 %v7835, %v7836
        %v7838 = vrot.slane %v7837, 1
        %v7839 = vadd.f32 %v7837, %v7838
        %v7840 = vrcp.pop 20.0
        %v7841 = vmul.f32 %v7830, %v7840
        %v7842 = vmul.f32 %v7839, %v7840
        %v7843 = vpack.c.bf16 %v7841, %v7841
        %v7844 = vpack.c.bf16 %v7842, %v7842
        %v7877 = vunpack.c.l.b16 %v6142
        %v7878 = vunpack.c.h.b16 %v6142
        %v7879 = vunpack.c.l.b16 %v6143
        %v7880 = vunpack.c.h.b16 %v6143
        %v7881 = vunpack.c.l.b16 %v6144
        %v7882 = vunpack.c.h.b16 %v6144
        %v7883 = vunpack.c.l.b16 %v6145
        %v7884 = vunpack.c.h.b16 %v6145
        %v7885 = vunpack.c.l.b16 %v6146
        %v7886 = vunpack.c.h.b16 %v6146
        %v7887 = vunpack.c.l.b16 %v6147
        %v7888 = vunpack.c.h.b16 %v6147
        %v7889 = vunpack.c.l.b16 %v6148
        %v7890 = vunpack.c.h.b16 %v6148
        %v7891 = vunpack.c.l.b16 %v6149
        %v7892 = vunpack.c.h.b16 %v6149
        %v7893 = vunpack.c.l.b16 %v6150
        %v7894 = vunpack.c.h.b16 %v6150
        %v7895 = vunpack.c.l.b16 %v6151
        %v7896 = vunpack.c.h.b16 %v6151
        %v7897 = vunpack.c.l.b16 %v6152
        %v7898 = vunpack.c.h.b16 %v6152
        %v7899 = vunpack.c.l.b16 %v6153
        %v7900 = vunpack.c.h.b16 %v6153
        %v7901 = vunpack.c.l.b16 %v6154
        %v7902 = vunpack.c.h.b16 %v6154
        %v7903 = vunpack.c.l.b16 %v6155
        %v7904 = vunpack.c.h.b16 %v6155
        %v7905 = vunpack.c.l.b16 %v6156
        %v7906 = vunpack.c.h.b16 %v6156
        %v7907 = vunpack.c.l.b16 %v6157
        %v7908 = vunpack.c.h.b16 %v6157
        %v7909 = vunpack.c.l.b16 %v6158
        %v7910 = vunpack.c.h.b16 %v6158
        %v7911 = vunpack.c.l.b16 %v6159
        %v7912 = vunpack.c.h.b16 %v6159
        %v7913 = vunpack.c.l.b16 %v6160
        %v7914 = vunpack.c.h.b16 %v6160
        %v7915 = vunpack.c.l.b16 %v6161
        %v7916 = vunpack.c.h.b16 %v6161
        %v7917 = vunpack.c.l.b16 %v6162
        %v7918 = vunpack.c.h.b16 %v6162
        %v7919 = vunpack.c.l.b16 %v6163
        %v7920 = vunpack.c.h.b16 %v6163
        %v7921 = vunpack.c.l.b16 %v6164
        %v7922 = vunpack.c.h.b16 %v6164
        %v7923 = vunpack.c.l.b16 %v6165
        %v7924 = vunpack.c.h.b16 %v6165
        %v7925 = vunpack.c.l.b16 %v6166
        %v7926 = vunpack.c.h.b16 %v6166
        %v7927 = vunpack.c.l.b16 %v6167
        %v7928 = vunpack.c.h.b16 %v6167
        %v7929 = vunpack.c.l.b16 %v6168
        %v7930 = vunpack.c.h.b16 %v6168
        %v7931 = vunpack.c.l.b16 %v6169
        %v7932 = vunpack.c.h.b16 %v6169
        %v7933 = vunpack.c.l.b16 %v6170
        %v7934 = vunpack.c.h.b16 %v6170
        %v7935 = vunpack.c.l.b16 %v6171
        %v7936 = vunpack.c.h.b16 %v6171
        %v7937 = vunpack.c.l.b16 %v6172
        %v7938 = vunpack.c.h.b16 %v6172
        %v7939 = vunpack.c.l.b16 %v6173
        %v7940 = vunpack.c.h.b16 %v6173
        %v7941 = vpack.c.b16 %v7879, %v7877
        %v7942 = vpack.c.b16 %v7880, %v7878
        %v7943 = vpack.c.b16 %v7883, %v7881
        %v7944 = vpack.c.b16 %v7884, %v7882
        %v7945 = vpack.c.b16 %v7887, %v7885
        %v7946 = vpack.c.b16 %v7888, %v7886
        %v7947 = vpack.c.b16 %v7891, %v7889
        %v7948 = vpack.c.b16 %v7892, %v7890
        %v7949 = vpack.c.b16 %v7895, %v7893
        %v7950 = vpack.c.b16 %v7896, %v7894
        %v7951 = vpack.c.b16 %v7899, %v7897
        %v7952 = vpack.c.b16 %v7900, %v7898
        %v7953 = vpack.c.b16 %v7903, %v7901
        %v7954 = vpack.c.b16 %v7904, %v7902
        %v7955 = vpack.c.b16 %v7907, %v7905
        %v7956 = vpack.c.b16 %v7908, %v7906
        %v7957 = vpack.c.b16 %v7911, %v7909
        %v7958 = vpack.c.b16 %v7912, %v7910
        %v7959 = vpack.c.b16 %v7915, %v7913
        %v7960 = vpack.c.b16 %v7916, %v7914
        %v7961 = vpack.c.b16 %v7919, %v7917
        %v7962 = vpack.c.b16 %v7920, %v7918
        %v7963 = vpack.c.b16 %v7923, %v7921
        %v7964 = vpack.c.b16 %v7924, %v7922
        %v7965 = vpack.c.b16 %v7927, %v7925
        %v7966 = vpack.c.b16 %v7928, %v7926
        %v7967 = vpack.c.b16 %v7931, %v7929
        %v7968 = vpack.c.b16 %v7932, %v7930
        %v7969 = vpack.c.b16 %v7935, %v7933
        %v7970 = vpack.c.b16 %v7936, %v7934
        %v7971 = vpack.c.b16 %v7939, %v7937
        %v7972 = vpack.c.b16 %v7940, %v7938
        %v8007 = vrot.slane %v5916, 3
        %v8008 = vrot.slane %v5917, 3
        %8011 = vmatprep.subr.bf16.mxu0 %v7942
        %8012 = vmatpush1.bf16.msra.mxu0 %v7941
        %8013 = vmatprep.subr.bf16.mxu0 %v7944
        %8014 = vmatpush1.bf16.msra.mxu0 %v7943
        %8015 = vmatprep.subr.bf16.mxu0 %v7946
        %8016 = vmatpush1.bf16.msra.mxu0 %v7945
        %8017 = vmatprep.subr.bf16.mxu0 %v7948
        %8018 = vmatpush1.bf16.msra.mxu0 %v7947
        %8019 = vmatprep.subr.bf16.mxu0 %v7950
        %8020 = vmatpush1.bf16.msra.mxu0 %v7949
        %8021 = vmatprep.subr.bf16.mxu0 %v7952
        %8022 = vmatpush1.bf16.msra.mxu0 %v7951
        %8023 = vmatprep.subr.bf16.mxu0 %v7954
        %8024 = vmatpush1.bf16.msra.mxu0 %v7953
        %8025 = vmatprep.subr.bf16.mxu0 %v7956
        %8026 = vmatpush1.bf16.msra.mxu0 %v7955
        %8027 = vmatprep.subr.bf16.mxu0 %v7958
        %8028 = vmatpush1.bf16.msra.mxu0 %v7957
        %8029 = vmatprep.subr.bf16.mxu0 %v7960
        %8030 = vmatpush1.bf16.msra.mxu0 %v7959
        %8031 = vmatprep.subr.bf16.mxu0 %v7962
        %8032 = vmatpush1.bf16.msra.mxu0 %v7961
        %8033 = vmatprep.subr.bf16.mxu0 %v7964
        %8034 = vmatpush1.bf16.msra.mxu0 %v7963
        %8035 = vmatprep.subr.bf16.mxu0 %v7966
        %8036 = vmatpush1.bf16.msra.mxu0 %v7965
        %8037 = vmatprep.subr.bf16.mxu0 %v7968
        %8038 = vmatpush1.bf16.msra.mxu0 %v7967
        %8039 = vmatprep.subr.bf16.mxu0 %v7970
        %8040 = vmatpush1.bf16.msra.mxu0 %v7969
        %8041 = vmatprep.subr.bf16.mxu0 %v7972
        %8042 = vmatpush1.bf16.msra.mxu0 %v7971
        %8043 = vmatprep.mubr.bf16.mxu0 %v7844
        %8044 = vmatmul.mubr.bf16.gmra.mrb[0].mxu0 %v7843
        %v8045 = vpop.f32.mrb[0].mxu0
        %v8046 = vadd.f32 %v8007, %v8045
        %v8047 = vpop.f32.mrb[0].mxu0
        %v8048 = vadd.f32 %v8008, %v8047
        %v8049 = vpop.f32.mrb[0].mxu0
        %v8050 = vpop.f32.mrb[0].mxu0
        %8051 = vdwg.mxu0
        %v8052 = vmax.f32 %v8046, 0.0
        %v8053 = vmax.f32 %v8048, 0.0
        %v8054 = vmin.f32 %v8046, 0.0
        %v8055 = vmin.f32 %v8048, 0.0
        %v8058 = vrot.slane %v8054, 3
        %v8059 = vrot.slane %v8055, 3
        %v8062 = vmul.f32 %v5916, %v8058
        %v8063 = vmul.f32 %v5917, %v8059
        %v8066 = vrot.slane %v8062, 5
        %v8067 = vrot.slane %v8063, 5
        %v8070 = vadd.f32 %v8052, %v8066
        %v8071 = vadd.f32 %v8053, %v8067
        %v8072 = vpack.c.bf16 %v8070, %v8070
        %v8073 = vpack.c.bf16 %v8071, %v8071
        %v8106 = vunpack.c.l.b16 %v6174
        %v8107 = vunpack.c.h.b16 %v6174
        %v8108 = vunpack.c.l.b16 %v6175
        %v8109 = vunpack.c.h.b16 %v6175
        %v8110 = vunpack.c.l.b16 %v6176
        %v8111 = vunpack.c.h.b16 %v6176
        %v8112 = vunpack.c.l.b16 %v6177
        %v8113 = vunpack.c.h.b16 %v6177
        %v8114 = vunpack.c.l.b16 %v6178
        %v8115 = vunpack.c.h.b16 %v6178
        %v8116 = vunpack.c.l.b16 %v6179
        %v8117 = vunpack.c.h.b16 %v6179
        %v8118 = vunpack.c.l.b16 %v6180
        %v8119 = vunpack.c.h.b16 %v6180
        %v8120 = vunpack.c.l.b16 %v6181
        %v8121 = vunpack.c.h.b16 %v6181
        %v8122 = vunpack.c.l.b16 %v6182
        %v8123 = vunpack.c.h.b16 %v6182
        %v8124 = vunpack.c.l.b16 %v6183
        %v8125 = vunpack.c.h.b16 %v6183
        %v8126 = vunpack.c.l.b16 %v6184
        %v8127 = vunpack.c.h.b16 %v6184
        %v8128 = vunpack.c.l.b16 %v6185
        %v8129 = vunpack.c.h.b16 %v6185
        %v8130 = vunpack.c.l.b16 %v6186
        %v8131 = vunpack.c.h.b16 %v6186
        %v8132 = vunpack.c.l.b16 %v6187
        %v8133 = vunpack.c.h.b16 %v6187
        %v8134 = vunpack.c.l.b16 %v6188
        %v8135 = vunpack.c.h.b16 %v6188
        %v8136 = vunpack.c.l.b16 %v6189
        %v8137 = vunpack.c.h.b16 %v6189
        %v8138 = vunpack.c.l.b16 %v6190
        %v8139 = vunpack.c.h.b16 %v6190
        %v8140 = vunpack.c.l.b16 %v6191
        %v8141 = vunpack.c.h.b16 %v6191
        %v8142 = vunpack.c.l.b16 %v6192
        %v8143 = vunpack.c.h.b16 %v6192
        %v8144 = vunpack.c.l.b16 %v6193
        %v8145 = vunpack.c.h.b16 %v6193
        %v8146 = vunpack.c.l.b16 %v6194
        %v8147 = vunpack.c.h.b16 %v6194
        %v8148 = vunpack.c.l.b16 %v6195
        %v8149 = vunpack.c.h.b16 %v6195
        %v8150 = vunpack.c.l.b16 %v6196
        %v8151 = vunpack.c.h.b16 %v6196
        %v8152 = vunpack.c.l.b16 %v6197
        %v8153 = vunpack.c.h.b16 %v6197
        %v8154 = vunpack.c.l.b16 %v6198
        %v8155 = vunpack.c.h.b16 %v6198
        %v8156 = vunpack.c.l.b16 %v6199
        %v8157 = vunpack.c.h.b16 %v6199
        %v8158 = vunpack.c.l.b16 %v6200
        %v8159 = vunpack.c.h.b16 %v6200
        %v8160 = vunpack.c.l.b16 %v6201
        %v8161 = vunpack.c.h.b16 %v6201
        %v8162 = vunpack.c.l.b16 %v6202
        %v8163 = vunpack.c.h.b16 %v6202
        %v8164 = vunpack.c.l.b16 %v6203
        %v8165 = vunpack.c.h.b16 %v6203
        %v8166 = vunpack.c.l.b16 %v6204
        %v8167 = vunpack.c.h.b16 %v6204
        %v8168 = vunpack.c.l.b16 %v6205
        %v8169 = vunpack.c.h.b16 %v6205
        %v8170 = vpack.c.b16 %v8108, %v8106
        %v8171 = vpack.c.b16 %v8109, %v8107
        %v8172 = vpack.c.b16 %v8112, %v8110
        %v8173 = vpack.c.b16 %v8113, %v8111
        %v8174 = vpack.c.b16 %v8116, %v8114
        %v8175 = vpack.c.b16 %v8117, %v8115
        %v8176 = vpack.c.b16 %v8120, %v8118
        %v8177 = vpack.c.b16 %v8121, %v8119
        %v8178 = vpack.c.b16 %v8124, %v8122
        %v8179 = vpack.c.b16 %v8125, %v8123
        %v8180 = vpack.c.b16 %v8128, %v8126
        %v8181 = vpack.c.b16 %v8129, %v8127
        %v8182 = vpack.c.b16 %v8132, %v8130
        %v8183 = vpack.c.b16 %v8133, %v8131
        %v8184 = vpack.c.b16 %v8136, %v8134
        %v8185 = vpack.c.b16 %v8137, %v8135
        %v8186 = vpack.c.b16 %v8140, %v8138
        %v8187 = vpack.c.b16 %v8141, %v8139
        %v8188 = vpack.c.b16 %v8144, %v8142
        %v8189 = vpack.c.b16 %v8145, %v8143
        %v8190 = vpack.c.b16 %v8148, %v8146
        %v8191 = vpack.c.b16 %v8149, %v8147
        %v8192 = vpack.c.b16 %v8152, %v8150
        %v8193 = vpack.c.b16 %v8153, %v8151
        %v8194 = vpack.c.b16 %v8156, %v8154
        %v8195 = vpack.c.b16 %v8157, %v8155
        %v8196 = vpack.c.b16 %v8160, %v8158
        %v8197 = vpack.c.b16 %v8161, %v8159
        %v8198 = vpack.c.b16 %v8164, %v8162
        %v8199 = vpack.c.b16 %v8165, %v8163
        %v8200 = vpack.c.b16 %v8168, %v8166
        %v8201 = vpack.c.b16 %v8169, %v8167
        %v8234 = vrot.slane %v5916, 4
        %v8235 = vrot.slane %v5917, 4
        %8238 = vmatprep.subr.bf16.mxu0 %v8171
        %8239 = vmatpush1.bf16.msra.mxu0 %v8170
        %8240 = vmatprep.subr.bf16.mxu0 %v8173
        %8241 = vmatpush1.bf16.msra.mxu0 %v8172
        %8242 = vmatprep.subr.bf16.mxu0 %v8175
        %8243 = vmatpush1.bf16.msra.mxu0 %v8174
        %8244 = vmatprep.subr.bf16.mxu0 %v8177
        %8245 = vmatpush1.bf16.msra.mxu0 %v8176
        %8246 = vmatprep.subr.bf16.mxu0 %v8179
        %8247 = vmatpush1.bf16.msra.mxu0 %v8178
        %8248 = vmatprep.subr.bf16.mxu0 %v8181
        %8249 = vmatpush1.bf16.msra.mxu0 %v8180
        %8250 = vmatprep.subr.bf16.mxu0 %v8183
        %8251 = vmatpush1.bf16.msra.mxu0 %v8182
        %8252 = vmatprep.subr.bf16.mxu0 %v8185
        %8253 = vmatpush1.bf16.msra.mxu0 %v8184
        %8254 = vmatprep.subr.bf16.mxu0 %v8187
        %8255 = vmatpush1.bf16.msra.mxu0 %v8186
        %8256 = vmatprep.subr.bf16.mxu0 %v8189
        %8257 = vmatpush1.bf16.msra.mxu0 %v8188
        %8258 = vmatprep.subr.bf16.mxu0 %v8191
        %8259 = vmatpush1.bf16.msra.mxu0 %v8190
        %8260 = vmatprep.subr.bf16.mxu0 %v8193
        %8261 = vmatpush1.bf16.msra.mxu0 %v8192
        %8262 = vmatprep.subr.bf16.mxu0 %v8195
        %8263 = vmatpush1.bf16.msra.mxu0 %v8194
        %8264 = vmatprep.subr.bf16.mxu0 %v8197
        %8265 = vmatpush1.bf16.msra.mxu0 %v8196
        %8266 = vmatprep.subr.bf16.mxu0 %v8199
        %8267 = vmatpush1.bf16.msra.mxu0 %v8198
        %8268 = vmatprep.subr.bf16.mxu0 %v8201
        %8269 = vmatpush1.bf16.msra.mxu0 %v8200
        %8270 = vmatprep.mubr.bf16.mxu0 %v8073
        %8271 = vmatmul.mubr.bf16.gmra.mrb[0].mxu0 %v8072
        %v8272 = vpop.f32.mrb[0].mxu0
        %v8273 = vadd.f32 %v8234, %v8272
        %v8274 = vpop.f32.mrb[0].mxu0
        %v8275 = vadd.f32 %v8235, %v8274
        %v8276 = vpop.f32.mrb[0].mxu0
        %v8277 = vpop.f32.mrb[0].mxu0
        %8278 = vdwg.mxu0
        %v8279 = vsub.f32 0.0, %v8273
        %v8280 = vsub.f32 0.0, %v8275
        %v8281 = vmul.f32 %v8279, 1.442695
        %v8282 = vpow.pop %v8281
        %v8283 = vmul.f32 %v8280, 1.442695
        %v8284 = vpow.pop %v8283
        %v8285 = vadd.f32 %v8282, 1.0
        %v8286 = vadd.f32 %v8284, 1.0
        %v8287 = vrcp.pop %v8285
        %v8288 = vmul.f32 1.0, %v8287
        %v8289 = vrcp.pop %v8286
        %v8290 = vmul.f32 1.0, %v8289
        %v8291 = vlaneseq
        %v8292 = vshrl.u32 %v8291, 7
        %v8293 = vsub.s32 0, %v8292
        %v8294 = vrot.slane %v8288, %v8293
        %v8295 = vlaneseq
        %v8296 = vshrl.u32 %v8295, 7
        %v8297 = vsub.s32 0, %v8296
        %v8298 = vrot.slane %v8290, %v8297
        %v8299 = vmul.f32 %v7587, %v8294
        %v8300 = vmul.f32 %v7589, %v8298
        %v8301 = vmul.f32 %v7591, %v8294
        %v8302 = vmul.f32 %v7593, %v8298
        %v8303 = vmul.f32 %v7597, %v8294
        %v8304 = vmul.f32 %v7599, %v8298
        %v8305 = vadd.f32 %v8299, %v7806
        %v8306 = vadd.f32 %v8300, %v7808
        %v8307 = vadd.f32 %v8301, %v7810
        %v8308 = vadd.f32 %v8302, %v7812
        %v8309 = vadd.f32 %v8303, %v7816
        %v8310 = vadd.f32 %v8304, %v7818
        %v8311 = vmax.f32 %v8305, 0.0
        %v8312 = vmax.f32 %v8306, 0.0
        %v8313 = vmax.f32 %v8307, 0.0
        %v8314 = vmax.f32 %v8308, 0.0
        %v8315 = vmax.f32 %v8309, 0.0
        %v8316 = vmax.f32 %v8310, 0.0
        %v8323 = vrot.slane %v8311, 1
        %v8324 = vrot.slane %v8313, 1
        %v8325 = vsel %vm1875, %v8323, %v8324
        %v8326 = vrot.slane %v8312, 1
        %v8327 = vrot.slane %v8314, 1
        %v8328 = vsel %vm1875, %v8326, %v8327
        %v8329 = vrot.slane %v8315, 1
        %v8330 = vsel %vm1875, %v8324, %v8329
        %v8331 = vrot.slane %v8316, 1
        %v8332 = vsel %vm1875, %v8327, %v8331
        %v8339 = vsel %vm6246, %v8329, 0.0
        %v8340 = vsel %vm6246, %v8331, 0.0
        %v8341 = vld [vmem:[%s4] sm:$0xf]
        %v8342 = vld [vmem:[%s4 + $0x4] sm:$0x1]
        %v8343 = vpack.c.bf16 %v8313, %v8311
        %v8344 = vpack.c.bf16 %v8314, %v8312
        %v8345 = vpack.c.bf16 %v8330, %v8325
        %v8346 = vpack.c.bf16 %v8332, %v8328
        %v8347 = vpack.c.bf16 %v8315, %v8315
        %v8348 = vpack.c.bf16 %v8316, %v8316
        %v8349 = vpack.c.bf16 %v8339, %v8339
        %v8350 = vpack.c.bf16 %v8340, %v8340
        %v8353 = vunpack.c.l.b16 %v8341
        %v8354 = vunpack.c.l.b16 %v8342
        %v8355 = vpack.c.b16 %v8354, %v8353
        %vm8356 = vcmask 162816
        %v8358 = vsel %vm8356, %v8355, 0
        %vm8360 = vcmask 1041408
        %v8362 = vsel %vm8360, %v8347, 0
        %v8365 = vsel %vm8360, %v8348, 0
        %v8368 = vsel %vm8360, %v8349, 0
        %v8371 = vsel %vm8360, %v8350, 0
        %8373 = vmatprep.subr.bf16.mxu0 %v8344
        %8374 = vmatpush1.bf16.msra.mxu0 %v8343
        %8375 = vmatprep.subr.bf16.mxu0 %v8365
        %8376 = vmatpush1.bf16.msra.mxu0 %v8362
        %8377 = vmatprep.subr.bf16.mxu0 0
        %8378 = vmatpush1.bf16.msra.mxu0 0
        %8379 = vmatprep.subr.bf16.mxu0 0
        %8380 = vmatpush1.bf16.msra.mxu0 0
        %8381 = vmatprep.subr.bf16.mxu0 0
        %8382 = vmatpush1.bf16.msra.mxu0 0
        %8383 = vmatprep.subr.bf16.mxu0 0
        %8384 = vmatpush1.bf16.msra.mxu0 0
        %8385 = vmatprep.subr.bf16.mxu0 0
        %8386 = vmatpush1.bf16.msra.mxu0 0
        %8387 = vmatprep.subr.bf16.mxu0 0
        %8388 = vmatpush1.bf16.msra.mxu0 0
        %8389 = vmatprep.subr.bf16.mxu0 0
        %8390 = vmatpush1.bf16.msra.mxu0 0
        %8391 = vmatprep.subr.bf16.mxu0 0
        %8392 = vmatpush1.bf16.msra.mxu0 0
        %8393 = vmatprep.subr.bf16.mxu0 0
        %8394 = vmatpush1.bf16.msra.mxu0 0
        %8395 = vmatprep.subr.bf16.mxu0 0
        %8396 = vmatpush1.bf16.msra.mxu0 0
        %8397 = vmatprep.subr.bf16.mxu0 0
        %8398 = vmatpush1.bf16.msra.mxu0 0
        %8399 = vmatprep.subr.bf16.mxu0 0
        %8400 = vmatpush1.bf16.msra.mxu0 0
        %8401 = vmatprep.subr.bf16.mxu0 0
        %8402 = vmatpush1.bf16.msra.mxu0 0
        %8403 = vmatprep.subr.bf16.mxu0 0
        %8404 = vmatpush1.bf16.msra.mxu0 0
        %8405 = vmatprep.mubr.bf16.mxu0 0
        %8406 = vmatmul.mubr.bf16.gmra.mrb[0].mxu0 %v8358
        %v8407 = vpop.f32.mrb[0].mxu0
        %v8408 = vadd.f32 0.0, %v8407
        %v8409 = vpop.f32.mrb[0].mxu0
        %v8410 = vadd.f32 0.0, %v8409
        %v8411 = vpop.f32.mrb[0].mxu0
        %v8412 = vadd.f32 0.0, %v8411
        %v8413 = vpop.f32.mrb[0].mxu0
        %v8414 = vadd.f32 0.0, %v8413
        %8415 = vdwg.mxu0
        %8416 = vmatprep.subr.bf16.mxu0 %v8346
        %8417 = vmatpush1.bf16.msra.mxu0 %v8345
        %8418 = vmatprep.subr.bf16.mxu0 %v8371
        %8419 = vmatpush1.bf16.msra.mxu0 %v8368
        %8420 = vmatprep.subr.bf16.mxu0 0
        %8421 = vmatpush1.bf16.msra.mxu0 0
        %8422 = vmatprep.subr.bf16.mxu0 0
        %8423 = vmatpush1.bf16.msra.mxu0 0
        %8424 = vmatprep.subr.bf16.mxu0 0
        %8425 = vmatpush1.bf16.msra.mxu0 0
        %8426 = vmatprep.subr.bf16.mxu0 0
        %8427 = vmatpush1.bf16.msra.mxu0 0
        %8428 = vmatprep.subr.bf16.mxu0 0
        %8429 = vmatpush1.bf16.msra.mxu0 0
        %8430 = vmatprep.subr.bf16.mxu0 0
        %8431 = vmatpush1.bf16.msra.mxu0 0
        %8432 = vmatprep.subr.bf16.mxu0 0
        %8433 = vmatpush1.bf16.msra.mxu0 0
        %8434 = vmatprep.subr.bf16.mxu0 0
        %8435 = vmatpush1.bf16.msra.mxu0 0
        %8436 = vmatprep.subr.bf16.mxu0 0
        %8437 = vmatpush1.bf16.msra.mxu0 0
        %8438 = vmatprep.subr.bf16.mxu0 0
        %8439 = vmatpush1.bf16.msra.mxu0 0
        %8440 = vmatprep.subr.bf16.mxu0 0
        %8441 = vmatpush1.bf16.msra.mxu0 0
        %8442 = vmatprep.subr.bf16.mxu0 0
        %8443 = vmatpush1.bf16.msra.mxu0 0
        %8444 = vmatprep.subr.bf16.mxu0 0
        %8445 = vmatpush1.bf16.msra.mxu0 0
        %8446 = vmatprep.subr.bf16.mxu0 0
        %8447 = vmatpush1.bf16.msra.mxu0 0
        %8448 = vmatprep.mubr.bf16.mxu0 0
        %8449 = vmatmul.mubr.bf16.gmra.mrb[0].mxu0 %v8358
        %v8450 = vpop.f32.mrb[0].mxu0
        %v8451 = vadd.f32 0.0, %v8450
        %v8452 = vpop.f32.mrb[0].mxu0
        %v8453 = vadd.f32 0.0, %v8452
        %v8454 = vpop.f32.mrb[0].mxu0
        %v8455 = vadd.f32 0.0, %v8454
        %v8456 = vpop.f32.mrb[0].mxu0
        %v8457 = vadd.f32 0.0, %v8456
        %8458 = vdwg.mxu0
        %v8459 = vld [vmem:[%s14] sm:$0xf]
        %v8460 = vld [vmem:[%s14 + $0x4] sm:$0xf]
        %v8461 = vld [vmem:[%s14 + $0x8] sm:$0xf]
        %v8462 = vld [vmem:[%s14 + $0xc] sm:$0xf]
        %v8463 = vld [vmem:[%s14 + $0x10] sm:$0xf]
        %v8464 = vld [vmem:[%s14 + $0x14] sm:$0xf]
        %v8465 = vld [vmem:[%s14 + $0x18] sm:$0xf]
        %v8466 = vld [vmem:[%s14 + $0x1c] sm:$0xf]
        %v8467 = vld [vmem:[%s14 + $0x20] sm:$0xf]
        %v8468 = vld [vmem:[%s14 + $0x24] sm:$0xf]
        %v8469 = vld [vmem:[%s14 + $0x28] sm:$0xf]
        %v8470 = vld [vmem:[%s14 + $0x2c] sm:$0xf]
        %v8471 = vld [vmem:[%s14 + $0x30] sm:$0xf]
        %v8472 = vld [vmem:[%s14 + $0x34] sm:$0xf]
        %v8473 = vld [vmem:[%s14 + $0x38] sm:$0xf]
        %v8474 = vld [vmem:[%s14 + $0x3c] sm:$0xf]
        %v8475 = vld [vmem:[%s14 + $0x40] sm:$0xf]
        %v8476 = vld [vmem:[%s14 + $0x44] sm:$0xf]
        %v8477 = vld [vmem:[%s14 + $0x48] sm:$0xf]
        %v8478 = vld [vmem:[%s14 + $0x4c] sm:$0xf]
        %v8479 = vld [vmem:[%s14 + $0x50] sm:$0xf]
        %v8480 = vld [vmem:[%s14 + $0x54] sm:$0xf]
        %v8481 = vld [vmem:[%s14 + $0x58] sm:$0xf]
        %v8482 = vld [vmem:[%s14 + $0x5c] sm:$0xf]
        %v8483 = vld [vmem:[%s14 + $0x60] sm:$0xf]
        %v8484 = vld [vmem:[%s14 + $0x64] sm:$0xf]
        %v8485 = vld [vmem:[%s14 + $0x68] sm:$0xf]
        %v8486 = vld [vmem:[%s14 + $0x6c] sm:$0xf]
        %v8487 = vld [vmem:[%s14 + $0x70] sm:$0xf]
        %v8488 = vld [vmem:[%s14 + $0x74] sm:$0xf]
        %v8489 = vld [vmem:[%s14 + $0x78] sm:$0xf]
        %v8490 = vld [vmem:[%s14 + $0x7c] sm:$0xf]
        %v8491 = vld [vmem:[%s14 + $0x80] sm:$0xf]
        %v8492 = vld [vmem:[%s14 + $0x84] sm:$0xf]
        %v8493 = vld [vmem:[%s14 + $0x88] sm:$0xf]
        %v8494 = vld [vmem:[%s14 + $0x8c] sm:$0xf]
        %v8495 = vld [vmem:[%s14 + $0x90] sm:$0xf]
        %v8496 = vld [vmem:[%s14 + $0x94] sm:$0xf]
        %v8497 = vld [vmem:[%s14 + $0x98] sm:$0xf]
        %v8498 = vld [vmem:[%s14 + $0x9c] sm:$0xf]
        %v8499 = vld [vmem:[%s14 + $0xa0] sm:$0xf]
        %v8500 = vld [vmem:[%s14 + $0xa4] sm:$0xf]
        %v8501 = vld [vmem:[%s14 + $0xa8] sm:$0xf]
        %v8502 = vld [vmem:[%s14 + $0xac] sm:$0xf]
        %v8503 = vld [vmem:[%s14 + $0xb0] sm:$0xf]
        %v8504 = vld [vmem:[%s14 + $0xb4] sm:$0xf]
        %v8505 = vld [vmem:[%s14 + $0xb8] sm:$0xf]
        %v8506 = vld [vmem:[%s14 + $0xbc] sm:$0xf]
        %v8507 = vld [vmem:[%s14 + $0xc0] sm:$0xf]
        %v8508 = vld [vmem:[%s14 + $0xc4] sm:$0xf]
        %v8509 = vld [vmem:[%s14 + $0xc8] sm:$0xf]
        %v8510 = vld [vmem:[%s14 + $0xcc] sm:$0xf]
        %v8511 = vld [vmem:[%s14 + $0xd0] sm:$0xf]
        %v8512 = vld [vmem:[%s14 + $0xd4] sm:$0xf]
        %v8513 = vld [vmem:[%s14 + $0xd8] sm:$0xf]
        %v8514 = vld [vmem:[%s14 + $0xdc] sm:$0xf]
        %v8515 = vld [vmem:[%s14 + $0xe0] sm:$0xf]
        %v8516 = vld [vmem:[%s14 + $0xe4] sm:$0xf]
        %v8517 = vld [vmem:[%s14 + $0xe8] sm:$0xf]
        %v8518 = vld [vmem:[%s14 + $0xec] sm:$0xf]
        %v8519 = vld [vmem:[%s14 + $0xf0] sm:$0xf]
        %v8520 = vld [vmem:[%s14 + $0xf4] sm:$0xf]
        %v8521 = vld [vmem:[%s14 + $0xf8] sm:$0xf]
        %v8522 = vld [vmem:[%s14 + $0xfc] sm:$0xf]
        %v8523 = vpack.c.bf16 %v8412, %v8408
        %v8524 = vpack.c.bf16 %v8414, %v8410
        %v8525 = vpack.c.bf16 %v8455, %v8451
        %v8526 = vpack.c.bf16 %v8457, %v8453
        %v8527 = vld [vmem:[%s15] sm:$0x1]
        %v8529 = vlaneseq
        %v8530 = vshrl.u32 %v8529, 7
        %v8531 = vsub.s32 0, %v8530
        %v8532 = vrot.slane %v8527, %v8531
        %v8598 = vunpack.c.l.b16 %v8459
        %v8599 = vunpack.c.l.b16 %v8460
        %v8600 = vunpack.c.l.b16 %v8461
        %v8601 = vunpack.c.l.b16 %v8462
        %v8602 = vunpack.c.l.b16 %v8463
        %v8603 = vunpack.c.l.b16 %v8464
        %v8604 = vunpack.c.l.b16 %v8465
        %v8605 = vunpack.c.l.b16 %v8466
        %v8606 = vunpack.c.l.b16 %v8467
        %v8607 = vunpack.c.l.b16 %v8468
        %v8608 = vunpack.c.l.b16 %v8469
        %v8609 = vunpack.c.l.b16 %v8470
        %v8610 = vunpack.c.l.b16 %v8471
        %v8611 = vunpack.c.l.b16 %v8472
        %v8612 = vunpack.c.l.b16 %v8473
        %v8613 = vunpack.c.l.b16 %v8474
        %v8614 = vunpack.c.l.b16 %v8475
        %v8615 = vunpack.c.l.b16 %v8476
        %v8616 = vunpack.c.l.b16 %v8477
        %v8617 = vunpack.c.l.b16 %v8478
        %v8618 = vunpack.c.l.b16 %v8479
        %v8619 = vunpack.c.l.b16 %v8480
        %v8620 = vunpack.c.l.b16 %v8481
        %v8621 = vunpack.c.l.b16 %v8482
        %v8622 = vunpack.c.l.b16 %v8483
        %v8623 = vunpack.c.l.b16 %v8484
        %v8624 = vunpack.c.l.b16 %v8485
        %v8625 = vunpack.c.l.b16 %v8486
        %v8626 = vunpack.c.l.b16 %v8487
        %v8627 = vunpack.c.l.b16 %v8488
        %v8628 = vunpack.c.l.b16 %v8489
        %v8629 = vunpack.c.l.b16 %v8490
        %v8630 = vunpack.c.l.b16 %v8491
        %v8631 = vunpack.c.l.b16 %v8492
        %v8632 = vunpack.c.l.b16 %v8493
        %v8633 = vunpack.c.l.b16 %v8494
        %v8634 = vunpack.c.l.b16 %v8495
        %v8635 = vunpack.c.l.b16 %v8496
        %v8636 = vunpack.c.l.b16 %v8497
        %v8637 = vunpack.c.l.b16 %v8498
        %v8638 = vunpack.c.l.b16 %v8499
        %v8639 = vunpack.c.l.b16 %v8500
        %v8640 = vunpack.c.l.b16 %v8501
        %v8641 = vunpack.c.l.b16 %v8502
        %v8642 = vunpack.c.l.b16 %v8503
        %v8643 = vunpack.c.l.b16 %v8504
        %v8644 = vunpack.c.l.b16 %v8505
        %v8645 = vunpack.c.l.b16 %v8506
        %v8646 = vunpack.c.l.b16 %v8507
        %v8647 = vunpack.c.l.b16 %v8508
        %v8648 = vunpack.c.l.b16 %v8509
        %v8649 = vunpack.c.l.b16 %v8510
        %v8650 = vunpack.c.l.b16 %v8511
        %v8651 = vunpack.c.l.b16 %v8512
        %v8652 = vunpack.c.l.b16 %v8513
        %v8653 = vunpack.c.l.b16 %v8514
        %v8654 = vunpack.c.l.b16 %v8515
        %v8655 = vunpack.c.l.b16 %v8516
        %v8656 = vunpack.c.l.b16 %v8517
        %v8657 = vunpack.c.l.b16 %v8518
        %v8658 = vunpack.c.l.b16 %v8519
        %v8659 = vunpack.c.l.b16 %v8520
        %v8660 = vunpack.c.l.b16 %v8521
        %v8661 = vunpack.c.l.b16 %v8522
        %v8662 = vpack.c.b16 %v8599, %v8598
        %v8663 = vpack.c.b16 %v8601, %v8600
        %v8664 = vpack.c.b16 %v8603, %v8602
        %v8665 = vpack.c.b16 %v8605, %v8604
        %v8666 = vpack.c.b16 %v8607, %v8606
        %v8667 = vpack.c.b16 %v8609, %v8608
        %v8668 = vpack.c.b16 %v8611, %v8610
        %v8669 = vpack.c.b16 %v8613, %v8612
        %v8670 = vpack.c.b16 %v8615, %v8614
        %v8671 = vpack.c.b16 %v8617, %v8616
        %v8672 = vpack.c.b16 %v8619, %v8618
        %v8673 = vpack.c.b16 %v8621, %v8620
        %v8674 = vpack.c.b16 %v8623, %v8622
        %v8675 = vpack.c.b16 %v8625, %v8624
        %v8676 = vpack.c.b16 %v8627, %v8626
        %v8677 = vpack.c.b16 %v8629, %v8628
        %v8678 = vpack.c.b16 %v8631, %v8630
        %v8679 = vpack.c.b16 %v8633, %v8632
        %v8680 = vpack.c.b16 %v8635, %v8634
        %v8681 = vpack.c.b16 %v8637, %v8636
        %v8682 = vpack.c.b16 %v8639, %v8638
        %v8683 = vpack.c.b16 %v8641, %v8640
        %v8684 = vpack.c.b16 %v8643, %v8642
        %v8685 = vpack.c.b16 %v8645, %v8644
        %v8686 = vpack.c.b16 %v8647, %v8646
        %v8687 = vpack.c.b16 %v8649, %v8648
        %v8688 = vpack.c.b16 %v8651, %v8650
        %v8689 = vpack.c.b16 %v8653, %v8652
        %v8690 = vpack.c.b16 %v8655, %v8654
        %v8691 = vpack.c.b16 %v8657, %v8656
        %v8692 = vpack.c.b16 %v8659, %v8658
        %v8693 = vpack.c.b16 %v8661, %v8660
        %8726 = vmatprep.subr.bf16.mxu0 0
        %8727 = vmatpush1.bf16.msra.mxu0 %v8662
        %8728 = vmatprep.subr.bf16.mxu0 0
        %8729 = vmatpush1.bf16.msra.mxu0 %v8663
        %8730 = vmatprep.subr.bf16.mxu0 0
        %8731 = vmatpush1.bf16.msra.mxu0 %v8664
        %8732 = vmatprep.subr.bf16.mxu0 0
        %8733 = vmatpush1.bf16.msra.mxu0 %v8665
        %8734 = vmatprep.subr.bf16.mxu0 0
        %8735 = vmatpush1.bf16.msra.mxu0 %v8666
        %8736 = vmatprep.subr.bf16.mxu0 0
        %8737 = vmatpush1.bf16.msra.mxu0 %v8667
        %8738 = vmatprep.subr.bf16.mxu0 0
        %8739 = vmatpush1.bf16.msra.mxu0 %v8668
        %8740 = vmatprep.subr.bf16.mxu0 0
        %8741 = vmatpush1.bf16.msra.mxu0 %v8669
        %8742 = vmatprep.subr.bf16.mxu0 0
        %8743 = vmatpush1.bf16.msra.mxu0 %v8670
        %8744 = vmatprep.subr.bf16.mxu0 0
        %8745 = vmatpush1.bf16.msra.mxu0 %v8671
        %8746 = vmatprep.subr.bf16.mxu0 0
        %8747 = vmatpush1.bf16.msra.mxu0 %v8672
        %8748 = vmatprep.subr.bf16.mxu0 0
        %8749 = vmatpush1.bf16.msra.mxu0 %v8673
        %8750 = vmatprep.subr.bf16.mxu0 0
        %8751 = vmatpush1.bf16.msra.mxu0 %v8674
        %8752 = vmatprep.subr.bf16.mxu0 0
        %8753 = vmatpush1.bf16.msra.mxu0 %v8675
        %8754 = vmatprep.subr.bf16.mxu0 0
        %8755 = vmatpush1.bf16.msra.mxu0 %v8676
        %8756 = vmatprep.subr.bf16.mxu0 0
        %8757 = vmatpush1.bf16.msra.mxu0 %v8677
        %8758 = vmatprep.mubr.bf16.mxu0 %v8524
        %8759 = vmatmul.mubr.bf16.gmra.mrb[0].mxu0 %v8523
        %v8760 = vpop.f32.mrb[0].mxu0
        %v8761 = vadd.f32 %v8532, %v8760
        %v8762 = vpop.f32.mrb[0].mxu0
        %v8763 = vpop.f32.mrb[0].mxu0
        %v8764 = vadd.f32 %v8532, %v8763
        %v8765 = vpop.f32.mrb[0].mxu0
        %8766 = vdwg.mxu0
        %8767 = vmatprep.subr.bf16.mxu0 0
        %8768 = vmatpush1.bf16.msra.mxu0 %v8678
        %8769 = vmatprep.subr.bf16.mxu0 0
        %8770 = vmatpush1.bf16.msra.mxu0 %v8679
        %8771 = vmatprep.subr.bf16.mxu0 0
        %8772 = vmatpush1.bf16.msra.mxu0 %v8680
        %8773 = vmatprep.subr.bf16.mxu0 0
        %8774 = vmatpush1.bf16.msra.mxu0 %v8681
        %8775 = vmatprep.subr.bf16.mxu0 0
        %8776 = vmatpush1.bf16.msra.mxu0 %v8682
        %8777 = vmatprep.subr.bf16.mxu0 0
        %8778 = vmatpush1.bf16.msra.mxu0 %v8683
        %8779 = vmatprep.subr.bf16.mxu0 0
        %8780 = vmatpush1.bf16.msra.mxu0 %v8684
        %8781 = vmatprep.subr.bf16.mxu0 0
        %8782 = vmatpush1.bf16.msra.mxu0 %v8685
        %8783 = vmatprep.subr.bf16.mxu0 0
        %8784 = vmatpush1.bf16.msra.mxu0 %v8686
        %8785 = vmatprep.subr.bf16.mxu0 0
        %8786 = vmatpush1.bf16.msra.mxu0 %v8687
        %8787 = vmatprep.subr.bf16.mxu0 0
        %8788 = vmatpush1.bf16.msra.mxu0 %v8688
        %8789 = vmatprep.subr.bf16.mxu0 0
        %8790 = vmatpush1.bf16.msra.mxu0 %v8689
        %8791 = vmatprep.subr.bf16.mxu0 0
        %8792 = vmatpush1.bf16.msra.mxu0 %v8690
        %8793 = vmatprep.subr.bf16.mxu0 0
        %8794 = vmatpush1.bf16.msra.mxu0 %v8691
        %8795 = vmatprep.subr.bf16.mxu0 0
        %8796 = vmatpush1.bf16.msra.mxu0 %v8692
        %8797 = vmatprep.subr.bf16.mxu0 0
        %8798 = vmatpush1.bf16.msra.mxu0 %v8693
        %8799 = vmatprep.mubr.bf16.mxu0 %v8526
        %8800 = vmatmul.mubr.bf16.gmra.mrb[0].mxu0 %v8525
        %v8801 = vpop.f32.mrb[0].mxu0
        %v8802 = vadd.f32 %v8761, %v8801
        %v8803 = vpop.f32.mrb[0].mxu0
        %v8804 = vpop.f32.mrb[0].mxu0
        %v8805 = vadd.f32 %v8764, %v8804
        %v8806 = vpop.f32.mrb[0].mxu0
        %8807 = vdwg.mxu0
        %v8808 = vmax.f32 %v8802, 0.0
        %v8809 = vmax.f32 %v8805, 0.0
        %v8810 = vld [vmem:[%s17] sm:$0xff]
        %v8811 = vld [vmem:[%s16] sm:$0xf]
        %v8812 = vld [vmem:[%s16 + $0x4] sm:$0xf]
        %v8813 = vld [vmem:[%s16 + $0x8] sm:$0xf]
        %v8814 = vld [vmem:[%s16 + $0xc] sm:$0xf]
        %v8815 = vld [vmem:[%s16 + $0x10] sm:$0xf]
        %v8816 = vld [vmem:[%s16 + $0x14] sm:$0xf]
        %v8817 = vld [vmem:[%s16 + $0x18] sm:$0xf]
        %v8818 = vld [vmem:[%s16 + $0x1c] sm:$0xf]
        %v8819 = vld [vmem:[%s16 + $0x20] sm:$0xf]
        %v8820 = vld [vmem:[%s16 + $0x24] sm:$0xf]
        %v8821 = vld [vmem:[%s16 + $0x28] sm:$0xf]
        %v8822 = vld [vmem:[%s16 + $0x2c] sm:$0xf]
        %v8823 = vld [vmem:[%s16 + $0x30] sm:$0xf]
        %v8824 = vld [vmem:[%s16 + $0x34] sm:$0xf]
        %v8825 = vld [vmem:[%s16 + $0x38] sm:$0xf]
        %v8826 = vld [vmem:[%s16 + $0x3c] sm:$0xf]
        %v8827 = vld [vmem:[%s16 + $0x40] sm:$0xf]
        %v8828 = vld [vmem:[%s16 + $0x44] sm:$0xf]
        %v8829 = vld [vmem:[%s16 + $0x48] sm:$0xf]
        %v8830 = vld [vmem:[%s16 + $0x4c] sm:$0xf]
        %v8831 = vld [vmem:[%s16 + $0x50] sm:$0xf]
        %v8832 = vld [vmem:[%s16 + $0x54] sm:$0xf]
        %v8833 = vld [vmem:[%s16 + $0x58] sm:$0xf]
        %v8834 = vld [vmem:[%s16 + $0x5c] sm:$0xf]
        %v8835 = vld [vmem:[%s16 + $0x60] sm:$0xf]
        %v8836 = vld [vmem:[%s16 + $0x64] sm:$0xf]
        %v8837 = vld [vmem:[%s16 + $0x68] sm:$0xf]
        %v8838 = vld [vmem:[%s16 + $0x6c] sm:$0xf]
        %v8839 = vld [vmem:[%s16 + $0x70] sm:$0xf]
        %v8840 = vld [vmem:[%s16 + $0x74] sm:$0xf]
        %v8841 = vld [vmem:[%s16 + $0x78] sm:$0xf]
        %v8842 = vld [vmem:[%s16 + $0x7c] sm:$0xf]
        %v8843 = vld [vmem:[%s16 + $0x80] sm:$0xf]
        %v8844 = vld [vmem:[%s16 + $0x84] sm:$0xf]
        %v8845 = vld [vmem:[%s16 + $0x88] sm:$0xf]
        %v8846 = vld [vmem:[%s16 + $0x8c] sm:$0xf]
        %v8847 = vld [vmem:[%s16 + $0x90] sm:$0xf]
        %v8848 = vld [vmem:[%s16 + $0x94] sm:$0xf]
        %v8849 = vld [vmem:[%s16 + $0x98] sm:$0xf]
        %v8850 = vld [vmem:[%s16 + $0x9c] sm:$0xf]
        %v8851 = vld [vmem:[%s16 + $0xa0] sm:$0xf]
        %v8852 = vld [vmem:[%s16 + $0xa4] sm:$0xf]
        %v8853 = vld [vmem:[%s16 + $0xa8] sm:$0xf]
        %v8854 = vld [vmem:[%s16 + $0xac] sm:$0xf]
        %v8855 = vld [vmem:[%s16 + $0xb0] sm:$0xf]
        %v8856 = vld [vmem:[%s16 + $0xb4] sm:$0xf]
        %v8857 = vld [vmem:[%s16 + $0xb8] sm:$0xf]
        %v8858 = vld [vmem:[%s16 + $0xbc] sm:$0xf]
        %v8859 = vld [vmem:[%s16 + $0xc0] sm:$0xf]
        %v8860 = vld [vmem:[%s16 + $0xc4] sm:$0xf]
        %v8861 = vld [vmem:[%s16 + $0xc8] sm:$0xf]
        %v8862 = vld [vmem:[%s16 + $0xcc] sm:$0xf]
        %v8863 = vld [vmem:[%s16 + $0xd0] sm:$0xf]
        %v8864 = vld [vmem:[%s16 + $0xd4] sm:$0xf]
        %v8865 = vld [vmem:[%s16 + $0xd8] sm:$0xf]
        %v8866 = vld [vmem:[%s16 + $0xdc] sm:$0xf]
        %v8867 = vld [vmem:[%s16 + $0xe0] sm:$0xf]
        %v8868 = vld [vmem:[%s16 + $0xe4] sm:$0xf]
        %v8869 = vld [vmem:[%s16 + $0xe8] sm:$0xf]
        %v8870 = vld [vmem:[%s16 + $0xec] sm:$0xf]
        %v8871 = vld [vmem:[%s16 + $0xf0] sm:$0xf]
        %v8872 = vld [vmem:[%s16 + $0xf4] sm:$0xf]
        %v8873 = vld [vmem:[%s16 + $0xf8] sm:$0xf]
        %v8874 = vld [vmem:[%s16 + $0xfc] sm:$0xf]
        %v8875 = vld [vmem:[%s16 + $0x100] sm:$0xf]
        %v8876 = vld [vmem:[%s16 + $0x104] sm:$0xf]
        %v8877 = vld [vmem:[%s16 + $0x108] sm:$0xf]
        %v8878 = vld [vmem:[%s16 + $0x10c] sm:$0xf]
        %v8879 = vld [vmem:[%s16 + $0x110] sm:$0xf]
        %v8880 = vld [vmem:[%s16 + $0x114] sm:$0xf]
        %v8881 = vld [vmem:[%s16 + $0x118] sm:$0xf]
        %v8882 = vld [vmem:[%s16 + $0x11c] sm:$0xf]
        %v8883 = vld [vmem:[%s16 + $0x120] sm:$0xf]
        %v8884 = vld [vmem:[%s16 + $0x124] sm:$0xf]
        %v8885 = vld [vmem:[%s16 + $0x128] sm:$0xf]
        %v8886 = vld [vmem:[%s16 + $0x12c] sm:$0xf]
        %v8887 = vld [vmem:[%s16 + $0x130] sm:$0xf]
        %v8888 = vld [vmem:[%s16 + $0x134] sm:$0xf]
        %v8889 = vld [vmem:[%s16 + $0x138] sm:$0xf]
        %v8890 = vld [vmem:[%s16 + $0x13c] sm:$0xf]
        %v8891 = vld [vmem:[%s16 + $0x140] sm:$0xf]
        %v8892 = vld [vmem:[%s16 + $0x144] sm:$0xf]
        %v8893 = vld [vmem:[%s16 + $0x148] sm:$0xf]
        %v8894 = vld [vmem:[%s16 + $0x14c] sm:$0xf]
        %v8895 = vld [vmem:[%s16 + $0x150] sm:$0xf]
        %v8896 = vld [vmem:[%s16 + $0x154] sm:$0xf]
        %v8897 = vld [vmem:[%s16 + $0x158] sm:$0xf]
        %v8898 = vld [vmem:[%s16 + $0x15c] sm:$0xf]
        %v8899 = vld [vmem:[%s16 + $0x160] sm:$0xf]
        %v8900 = vld [vmem:[%s16 + $0x164] sm:$0xf]
        %v8901 = vld [vmem:[%s16 + $0x168] sm:$0xf]
        %v8902 = vld [vmem:[%s16 + $0x16c] sm:$0xf]
        %v8903 = vld [vmem:[%s16 + $0x170] sm:$0xf]
        %v8904 = vld [vmem:[%s16 + $0x174] sm:$0xf]
        %v8905 = vld [vmem:[%s16 + $0x178] sm:$0xf]
        %v8906 = vld [vmem:[%s16 + $0x17c] sm:$0xf]
        %v8907 = vld [vmem:[%s16 + $0x180] sm:$0xf]
        %v8908 = vld [vmem:[%s16 + $0x184] sm:$0xf]
        %v8909 = vld [vmem:[%s16 + $0x188] sm:$0xf]
        %v8910 = vld [vmem:[%s16 + $0x18c] sm:$0xf]
        %v8911 = vld [vmem:[%s16 + $0x190] sm:$0xf]
        %v8912 = vld [vmem:[%s16 + $0x194] sm:$0xf]
        %v8913 = vld [vmem:[%s16 + $0x198] sm:$0xf]
        %v8914 = vld [vmem:[%s16 + $0x19c] sm:$0xf]
        %v8915 = vld [vmem:[%s16 + $0x1a0] sm:$0xf]
        %v8916 = vld [vmem:[%s16 + $0x1a4] sm:$0xf]
        %v8917 = vld [vmem:[%s16 + $0x1a8] sm:$0xf]
        %v8918 = vld [vmem:[%s16 + $0x1ac] sm:$0xf]
        %v8919 = vld [vmem:[%s16 + $0x1b0] sm:$0xf]
        %v8920 = vld [vmem:[%s16 + $0x1b4] sm:$0xf]
        %v8921 = vld [vmem:[%s16 + $0x1b8] sm:$0xf]
        %v8922 = vld [vmem:[%s16 + $0x1bc] sm:$0xf]
        %v8923 = vld [vmem:[%s16 + $0x1c0] sm:$0xf]
        %v8924 = vld [vmem:[%s16 + $0x1c4] sm:$0xf]
        %v8925 = vld [vmem:[%s16 + $0x1c8] sm:$0xf]
        %v8926 = vld [vmem:[%s16 + $0x1cc] sm:$0xf]
        %v8927 = vld [vmem:[%s16 + $0x1d0] sm:$0xf]
        %v8928 = vld [vmem:[%s16 + $0x1d4] sm:$0xf]
        %v8929 = vld [vmem:[%s16 + $0x1d8] sm:$0xf]
        %v8930 = vld [vmem:[%s16 + $0x1dc] sm:$0xf]
        %v8931 = vld [vmem:[%s16 + $0x1e0] sm:$0xf]
        %v8932 = vld [vmem:[%s16 + $0x1e4] sm:$0xf]
        %v8933 = vld [vmem:[%s16 + $0x1e8] sm:$0xf]
        %v8934 = vld [vmem:[%s16 + $0x1ec] sm:$0xf]
        %v8935 = vld [vmem:[%s16 + $0x1f0] sm:$0xf]
        %v8936 = vld [vmem:[%s16 + $0x1f4] sm:$0xf]
        %v8937 = vld [vmem:[%s16 + $0x1f8] sm:$0xf]
        %v8938 = vld [vmem:[%s16 + $0x1fc] sm:$0xf]
        %v8939 = vld [vmem:[%s16 + $0x200] sm:$0xf]
        %v8940 = vld [vmem:[%s16 + $0x204] sm:$0xf]
        %v8941 = vld [vmem:[%s16 + $0x208] sm:$0xf]
        %v8942 = vld [vmem:[%s16 + $0x20c] sm:$0xf]
        %v8943 = vld [vmem:[%s16 + $0x210] sm:$0xf]
        %v8944 = vld [vmem:[%s16 + $0x214] sm:$0xf]
        %v8945 = vld [vmem:[%s16 + $0x218] sm:$0xf]
        %v8946 = vld [vmem:[%s16 + $0x21c] sm:$0xf]
        %v8947 = vld [vmem:[%s16 + $0x220] sm:$0xf]
        %v8948 = vld [vmem:[%s16 + $0x224] sm:$0xf]
        %v8949 = vld [vmem:[%s16 + $0x228] sm:$0xf]
        %v8950 = vld [vmem:[%s16 + $0x22c] sm:$0xf]
        %v8951 = vld [vmem:[%s16 + $0x230] sm:$0xf]
        %v8952 = vld [vmem:[%s16 + $0x234] sm:$0xf]
        %v8953 = vld [vmem:[%s16 + $0x238] sm:$0xf]
        %v8954 = vld [vmem:[%s16 + $0x23c] sm:$0xf]
        %v8957 = vrot.slane %v8808, 7
        %v8958 = vrot.slane %v8809, 7
        %v8959 = vsel %vm1989, %v8957, %v8958
        %v8962 = vsel %vm1989, 0.0, %v8957
        %v8963 = vrot.slane %v8808, 1
        %v8964 = vrot.slane %v8809, 1
        %v8965 = vsel %vm1875, %v8963, %v8964
        %v8968 = vsel %vm1989, %v8964, 0.0
        %v8969 = vpack.c.bf16 %v8959, %v8962
        %v8970 = vpack.c.bf16 %v8809, %v8808
        %v8971 = vpack.c.bf16 %v8968, %v8965
        %v8972 = vlaneseq
        %v8973 = vshrl.u32 %v8972, 7
        %v8974 = vsub.s32 0, %v8973
        %v8975 = vrot.slane %v8810, %v8974
        %v9024 = vunpack.c.l.b16 %v8811
        %v9025 = vunpack.c.l.b16 %v8812
        %v9026 = vunpack.c.l.b16 %v8813
        %v9027 = vunpack.c.l.b16 %v8814
        %v9028 = vunpack.c.l.b16 %v8815
        %v9029 = vunpack.c.l.b16 %v8816
        %v9030 = vunpack.c.l.b16 %v8817
        %v9031 = vunpack.c.l.b16 %v8818
        %v9032 = vunpack.c.l.b16 %v8819
        %v9033 = vunpack.c.l.b16 %v8820
        %v9034 = vunpack.c.l.b16 %v8821
        %v9035 = vunpack.c.l.b16 %v8822
        %v9036 = vunpack.c.l.b16 %v8823
        %v9037 = vunpack.c.l.b16 %v8824
        %v9038 = vunpack.c.l.b16 %v8825
        %v9039 = vunpack.c.l.b16 %v8826
        %v9040 = vunpack.c.l.b16 %v8827
        %v9041 = vunpack.c.l.b16 %v8828
        %v9042 = vunpack.c.l.b16 %v8829
        %v9043 = vunpack.c.l.b16 %v8830
        %v9044 = vunpack.c.l.b16 %v8831
        %v9045 = vunpack.c.l.b16 %v8832
        %v9046 = vunpack.c.l.b16 %v8833
        %v9047 = vunpack.c.l.b16 %v8834
        %v9048 = vunpack.c.l.b16 %v8835
        %v9049 = vunpack.c.l.b16 %v8836
        %v9050 = vunpack.c.l.b16 %v8837
        %v9051 = vunpack.c.l.b16 %v8838
        %v9052 = vunpack.c.l.b16 %v8839
        %v9053 = vunpack.c.l.b16 %v8840
        %v9054 = vunpack.c.l.b16 %v8841
        %v9055 = vunpack.c.l.b16 %v8842
        %v9056 = vunpack.c.l.b16 %v8843
        %v9057 = vunpack.c.l.b16 %v8844
        %v9058 = vunpack.c.l.b16 %v8845
        %v9059 = vunpack.c.l.b16 %v8846
        %v9060 = vunpack.c.l.b16 %v8847
        %v9061 = vunpack.c.l.b16 %v8848
        %v9062 = vunpack.c.l.b16 %v8849
        %v9063 = vunpack.c.l.b16 %v8850
        %v9064 = vunpack.c.l.b16 %v8851
        %v9065 = vunpack.c.l.b16 %v8852
        %v9066 = vunpack.c.l.b16 %v8853
        %v9067 = vunpack.c.l.b16 %v8854
        %v9068 = vunpack.c.l.b16 %v8855
        %v9069 = vunpack.c.l.b16 %v8856
        %v9070 = vunpack.c.l.b16 %v8857
        %v9071 = vunpack.c.l.b16 %v8858
        %v9072 = vpack.c.b16 %v9025, %v9024
        %v9073 = vpack.c.b16 %v9027, %v9026
        %v9074 = vpack.c.b16 %v9029, %v9028
        %v9075 = vpack.c.b16 %v9031, %v9030
        %v9076 = vpack.c.b16 %v9033, %v9032
        %v9077 = vpack.c.b16 %v9035, %v9034
        %v9078 = vpack.c.b16 %v9037, %v9036
        %v9079 = vpack.c.b16 %v9039, %v9038
        %v9080 = vpack.c.b16 %v9041, %v9040
        %v9081 = vpack.c.b16 %v9043, %v9042
        %v9082 = vpack.c.b16 %v9045, %v9044
        %v9083 = vpack.c.b16 %v9047, %v9046
        %v9084 = vpack.c.b16 %v9049, %v9048
        %v9085 = vpack.c.b16 %v9051, %v9050
        %v9086 = vpack.c.b16 %v9053, %v9052
        %v9087 = vpack.c.b16 %v9055, %v9054
        %v9088 = vpack.c.b16 %v9057, %v9056
        %v9089 = vpack.c.b16 %v9059, %v9058
        %v9090 = vpack.c.b16 %v9061, %v9060
        %v9091 = vpack.c.b16 %v9063, %v9062
        %v9092 = vpack.c.b16 %v9065, %v9064
        %v9093 = vpack.c.b16 %v9067, %v9066
        %v9094 = vpack.c.b16 %v9069, %v9068
        %v9095 = vpack.c.b16 %v9071, %v9070
        %9120 = vmatprep.subr.bf16.mxu0 0
        %9121 = vmatpush1.bf16.msra.mxu0 %v9072
        %9122 = vmatprep.subr.bf16.mxu0 0
        %9123 = vmatpush1.bf16.msra.mxu0 %v9073
        %9124 = vmatprep.subr.bf16.mxu0 0
        %9125 = vmatpush1.bf16.msra.mxu0 %v9074
        %9126 = vmatprep.subr.bf16.mxu0 0
        %9127 = vmatpush1.bf16.msra.mxu0 %v9075
        %9128 = vmatprep.subr.bf16.mxu0 0
        %9129 = vmatpush1.bf16.msra.mxu0 %v9076
        %9130 = vmatprep.subr.bf16.mxu0 0
        %9131 = vmatpush1.bf16.msra.mxu0 %v9077
        %9132 = vmatprep.subr.bf16.mxu0 0
        %9133 = vmatpush1.bf16.msra.mxu0 %v9078
        %9134 = vmatprep.subr.bf16.mxu0 0
        %9135 = vmatpush1.bf16.msra.mxu0 %v9079
        %9136 = vmatprep.subr.bf16.mxu0 0
        %9137 = vmatpush1.bf16.msra.mxu0 %v9080
        %9138 = vmatprep.subr.bf16.mxu0 0
        %9139 = vmatpush1.bf16.msra.mxu0 %v9081
        %9140 = vmatprep.subr.bf16.mxu0 0
        %9141 = vmatpush1.bf16.msra.mxu0 %v9082
        %9142 = vmatprep.subr.bf16.mxu0 0
        %9143 = vmatpush1.bf16.msra.mxu0 %v9083
        %9144 = vmatprep.subr.bf16.mxu0 0
        %9145 = vmatpush1.bf16.msra.mxu0 %v9084
        %9146 = vmatprep.subr.bf16.mxu0 0
        %9147 = vmatpush1.bf16.msra.mxu0 %v9085
        %9148 = vmatprep.subr.bf16.mxu0 0
        %9149 = vmatpush1.bf16.msra.mxu0 %v9086
        %9150 = vmatprep.subr.bf16.mxu0 0
        %9151 = vmatpush1.bf16.msra.mxu0 %v9087
        %9152 = vmatprep.mubr.bf16.mxu0 %v8970
        %9153 = vmatmul.mubr.bf16.gmra.mrb[0].mxu0 %v8969
        %v9154 = vpop.f32.mrb[0].mxu0
        %v9155 = vadd.f32 %v8975, %v9154
        %v9156 = vpop.f32.mrb[0].mxu0
        %v9157 = vpop.f32.mrb[0].mxu0
        %v9158 = vadd.f32 %v8975, %v9157
        %v9159 = vpop.f32.mrb[0].mxu0
        %9160 = vdwg.mxu0
        %9161 = vmatprep.subr.bf16.mxu0 0
        %9162 = vmatpush1.bf16.msra.mxu0 %v9088
        %9163 = vmatprep.subr.bf16.mxu0 0
        %9164 = vmatpush1.bf16.msra.mxu0 %v9089
        %9165 = vmatprep.subr.bf16.mxu0 0
        %9166 = vmatpush1.bf16.msra.mxu0 %v9090
        %9167 = vmatprep.subr.bf16.mxu0 0
        %9168 = vmatpush1.bf16.msra.mxu0 %v9091
        %9169 = vmatprep.subr.bf16.mxu0 0
        %9170 = vmatpush1.bf16.msra.mxu0 %v9092
        %9171 = vmatprep.subr.bf16.mxu0 0
        %9172 = vmatpush1.bf16.msra.mxu0 %v9093
        %9173 = vmatprep.subr.bf16.mxu0 0
        %9174 = vmatpush1.bf16.msra.mxu0 %v9094
        %9175 = vmatprep.subr.bf16.mxu0 0
        %9176 = vmatpush1.bf16.msra.mxu0 %v9095
        %9177 = vmatprep.subr.bf16.mxu0 0
        %9178 = vmatpush1.bf16.msra.mxu0 0
        %9179 = vmatprep.subr.bf16.mxu0 0
        %9180 = vmatpush1.bf16.msra.mxu0 0
        %9181 = vmatprep.subr.bf16.mxu0 0
        %9182 = vmatpush1.bf16.msra.mxu0 0
        %9183 = vmatprep.subr.bf16.mxu0 0
        %9184 = vmatpush1.bf16.msra.mxu0 0
        %9185 = vmatprep.subr.bf16.mxu0 0
        %9186 = vmatpush1.bf16.msra.mxu0 0
        %9187 = vmatprep.subr.bf16.mxu0 0
        %9188 = vmatpush1.bf16.msra.mxu0 0
        %9189 = vmatprep.subr.bf16.mxu0 0
        %9190 = vmatpush1.bf16.msra.mxu0 0
        %9191 = vmatprep.subr.bf16.mxu0 0
        %9192 = vmatpush1.bf16.msra.mxu0 0
        %9193 = vmatprep.mubr.bf16.mxu0 0
        %9194 = vmatmul.mubr.bf16.gmra.mrb[0].mxu0 %v8971
        %v9195 = vpop.f32.mrb[0].mxu0
        %v9196 = vadd.f32 %v9155, %v9195
        %v9197 = vpop.f32.mrb[0].mxu0
        %v9198 = vpop.f32.mrb[0].mxu0
        %v9199 = vadd.f32 %v9158, %v9198
        %v9200 = vpop.f32.mrb[0].mxu0
        %9201 = vdwg.mxu0
        %v9202 = vmax.f32 %v9196, 0.0
        %v9203 = vmax.f32 %v9199, 0.0
        %v9206 = vrot.slane %v9202, 7
        %v9207 = vrot.slane %v9203, 7
        %v9208 = vsel %vm1989, %v9206, %v9207
        %v9211 = vsel %vm1989, 0.0, %v9206
        %v9212 = vrot.slane %v9202, 1
        %v9213 = vrot.slane %v9203, 1
        %v9214 = vsel %vm1875, %v9212, %v9213
        %v9217 = vsel %vm1989, %v9213, 0.0
        %v9218 = vpack.c.bf16 %v9208, %v9211
        %v9219 = vpack.c.bf16 %v9203, %v9202
        %v9220 = vpack.c.bf16 %v9217, %v9214
        %v9221 = vlaneseq
        %v9222 = vshrl.u32 %v9221, 7
        %v9223 = vsub.s32 1, %v9222
        %v9224 = vrot.slane %v8810, %v9223
        %v9273 = vunpack.c.l.b16 %v8859
        %v9274 = vunpack.c.l.b16 %v8860
        %v9275 = vunpack.c.l.b16 %v8861
        %v9276 = vunpack.c.l.b16 %v8862
        %v9277 = vunpack.c.l.b16 %v8863
        %v9278 = vunpack.c.l.b16 %v8864
        %v9279 = vunpack.c.l.b16 %v8865
        %v9280 = vunpack.c.l.b16 %v8866
        %v9281 = vunpack.c.l.b16 %v8867
        %v9282 = vunpack.c.l.b16 %v8868
        %v9283 = vunpack.c.l.b16 %v8869
        %v9284 = vunpack.c.l.b16 %v8870
        %v9285 = vunpack.c.l.b16 %v8871
        %v9286 = vunpack.c.l.b16 %v8872
        %v9287 = vunpack.c.l.b16 %v8873
        %v9288 = vunpack.c.l.b16 %v8874
        %v9289 = vunpack.c.l.b16 %v8875
        %v9290 = vunpack.c.l.b16 %v8876
        %v9291 = vunpack.c.l.b16 %v8877
        %v9292 = vunpack.c.l.b16 %v8878
        %v9293 = vunpack.c.l.b16 %v8879
        %v9294 = vunpack.c.l.b16 %v8880
        %v9295 = vunpack.c.l.b16 %v8881
        %v9296 = vunpack.c.l.b16 %v8882
        %v9297 = vunpack.c.l.b16 %v8883
        %v9298 = vunpack.c.l.b16 %v8884
        %v9299 = vunpack.c.l.b16 %v8885
        %v9300 = vunpack.c.l.b16 %v8886
        %v9301 = vunpack.c.l.b16 %v8887
        %v9302 = vunpack.c.l.b16 %v8888
        %v9303 = vunpack.c.l.b16 %v8889
        %v9304 = vunpack.c.l.b16 %v8890
        %v9305 = vunpack.c.l.b16 %v8891
        %v9306 = vunpack.c.l.b16 %v8892
        %v9307 = vunpack.c.l.b16 %v8893
        %v9308 = vunpack.c.l.b16 %v8894
        %v9309 = vunpack.c.l.b16 %v8895
        %v9310 = vunpack.c.l.b16 %v8896
        %v9311 = vunpack.c.l.b16 %v8897
        %v9312 = vunpack.c.l.b16 %v8898
        %v9313 = vunpack.c.l.b16 %v8899
        %v9314 = vunpack.c.l.b16 %v8900
        %v9315 = vunpack.c.l.b16 %v8901
        %v9316 = vunpack.c.l.b16 %v8902
        %v9317 = vunpack.c.l.b16 %v8903
        %v9318 = vunpack.c.l.b16 %v8904
        %v9319 = vunpack.c.l.b16 %v8905
        %v9320 = vunpack.c.l.b16 %v8906
        %v9321 = vpack.c.b16 %v9274, %v9273
        %v9322 = vpack.c.b16 %v9276, %v9275
        %v9323 = vpack.c.b16 %v9278, %v9277
        %v9324 = vpack.c.b16 %v9280, %v9279
        %v9325 = vpack.c.b16 %v9282, %v9281
        %v9326 = vpack.c.b16 %v9284, %v9283
        %v9327 = vpack.c.b16 %v9286, %v9285
        %v9328 = vpack.c.b16 %v9288, %v9287
        %v9329 = vpack.c.b16 %v9290, %v9289
        %v9330 = vpack.c.b16 %v9292, %v9291
        %v9331 = vpack.c.b16 %v9294, %v9293
        %v9332 = vpack.c.b16 %v9296, %v9295
        %v9333 = vpack.c.b16 %v9298, %v9297
        %v9334 = vpack.c.b16 %v9300, %v9299
        %v9335 = vpack.c.b16 %v9302, %v9301
        %v9336 = vpack.c.b16 %v9304, %v9303
        %v9337 = vpack.c.b16 %v9306, %v9305
        %v9338 = vpack.c.b16 %v9308, %v9307
        %v9339 = vpack.c.b16 %v9310, %v9309
        %v9340 = vpack.c.b16 %v9312, %v9311
        %v9341 = vpack.c.b16 %v9314, %v9313
        %v9342 = vpack.c.b16 %v9316, %v9315
        %v9343 = vpack.c.b16 %v9318, %v9317
        %v9344 = vpack.c.b16 %v9320, %v9319
        %9369 = vmatprep.subr.bf16.mxu0 0
        %9370 = vmatpush1.bf16.msra.mxu0 %v9321
        %9371 = vmatprep.subr.bf16.mxu0 0
        %9372 = vmatpush1.bf16.msra.mxu0 %v9322
        %9373 = vmatprep.subr.bf16.mxu0 0
        %9374 = vmatpush1.bf16.msra.mxu0 %v9323
        %9375 = vmatprep.subr.bf16.mxu0 0
        %9376 = vmatpush1.bf16.msra.mxu0 %v9324
        %9377 = vmatprep.subr.bf16.mxu0 0
        %9378 = vmatpush1.bf16.msra.mxu0 %v9325
        %9379 = vmatprep.subr.bf16.mxu0 0
        %9380 = vmatpush1.bf16.msra.mxu0 %v9326
        %9381 = vmatprep.subr.bf16.mxu0 0
        %9382 = vmatpush1.bf16.msra.mxu0 %v9327
        %9383 = vmatprep.subr.bf16.mxu0 0
        %9384 = vmatpush1.bf16.msra.mxu0 %v9328
        %9385 = vmatprep.subr.bf16.mxu0 0
        %9386 = vmatpush1.bf16.msra.mxu0 %v9329
        %9387 = vmatprep.subr.bf16.mxu0 0
        %9388 = vmatpush1.bf16.msra.mxu0 %v9330
        %9389 = vmatprep.subr.bf16.mxu0 0
        %9390 = vmatpush1.bf16.msra.mxu0 %v9331
        %9391 = vmatprep.subr.bf16.mxu0 0
        %9392 = vmatpush1.bf16.msra.mxu0 %v9332
        %9393 = vmatprep.subr.bf16.mxu0 0
        %9394 = vmatpush1.bf16.msra.mxu0 %v9333
        %9395 = vmatprep.subr.bf16.mxu0 0
        %9396 = vmatpush1.bf16.msra.mxu0 %v9334
        %9397 = vmatprep.subr.bf16.mxu0 0
        %9398 = vmatpush1.bf16.msra.mxu0 %v9335
        %9399 = vmatprep.subr.bf16.mxu0 0
        %9400 = vmatpush1.bf16.msra.mxu0 %v9336
        %9401 = vmatprep.mubr.bf16.mxu0 %v9219
        %9402 = vmatmul.mubr.bf16.gmra.mrb[0].mxu0 %v9218
        %v9403 = vpop.f32.mrb[0].mxu0
        %v9404 = vadd.f32 %v9224, %v9403
        %v9405 = vpop.f32.mrb[0].mxu0
        %v9406 = vpop.f32.mrb[0].mxu0
        %v9407 = vadd.f32 %v9224, %v9406
        %v9408 = vpop.f32.mrb[0].mxu0
        %9409 = vdwg.mxu0
        %9410 = vmatprep.subr.bf16.mxu0 0
        %9411 = vmatpush1.bf16.msra.mxu0 %v9337
        %9412 = vmatprep.subr.bf16.mxu0 0
        %9413 = vmatpush1.bf16.msra.mxu0 %v9338
        %9414 = vmatprep.subr.bf16.mxu0 0
        %9415 = vmatpush1.bf16.msra.mxu0 %v9339
        %9416 = vmatprep.subr.bf16.mxu0 0
        %9417 = vmatpush1.bf16.msra.mxu0 %v9340
        %9418 = vmatprep.subr.bf16.mxu0 0
        %9419 = vmatpush1.bf16.msra.mxu0 %v9341
        %9420 = vmatprep.subr.bf16.mxu0 0
        %9421 = vmatpush1.bf16.msra.mxu0 %v9342
        %9422 = vmatprep.subr.bf16.mxu0 0
        %9423 = vmatpush1.bf16.msra.mxu0 %v9343
        %9424 = vmatprep.subr.bf16.mxu0 0
        %9425 = vmatpush1.bf16.msra.mxu0 %v9344
        %9426 = vmatprep.subr.bf16.mxu0 0
        %9427 = vmatpush1.bf16.msra.mxu0 0
        %9428 = vmatprep.subr.bf16.mxu0 0
        %9429 = vmatpush1.bf16.msra.mxu0 0
        %9430 = vmatprep.subr.bf16.mxu0 0
        %9431 = vmatpush1.bf16.msra.mxu0 0
        %9432 = vmatprep.subr.bf16.mxu0 0
        %9433 = vmatpush1.bf16.msra.mxu0 0
        %9434 = vmatprep.subr.bf16.mxu0 0
        %9435 = vmatpush1.bf16.msra.mxu0 0
        %9436 = vmatprep.subr.bf16.mxu0 0
        %9437 = vmatpush1.bf16.msra.mxu0 0
        %9438 = vmatprep.subr.bf16.mxu0 0
        %9439 = vmatpush1.bf16.msra.mxu0 0
        %9440 = vmatprep.subr.bf16.mxu0 0
        %9441 = vmatpush1.bf16.msra.mxu0 0
        %9442 = vmatprep.mubr.bf16.mxu0 0
        %9443 = vmatmul.mubr.bf16.gmra.mrb[0].mxu0 %v9220
        %v9444 = vpop.f32.mrb[0].mxu0
        %v9445 = vadd.f32 %v9404, %v9444
        %v9446 = vpop.f32.mrb[0].mxu0
        %v9447 = vpop.f32.mrb[0].mxu0
        %v9448 = vadd.f32 %v9407, %v9447
        %v9449 = vpop.f32.mrb[0].mxu0
        %9450 = vdwg.mxu0
        %v9451 = vlaneseq
        %v9452 = vshrl.u32 %v9451, 7
        %v9453 = vsub.s32 2, %v9452
        %v9454 = vrot.slane %v8810, %v9453
        %v9471 = vunpack.c.l.b16 %v8907
        %v9472 = vunpack.c.l.b16 %v8908
        %v9473 = vunpack.c.l.b16 %v8909
        %v9474 = vunpack.c.l.b16 %v8910
        %v9475 = vunpack.c.l.b16 %v8911
        %v9476 = vunpack.c.l.b16 %v8912
        %v9477 = vunpack.c.l.b16 %v8913
        %v9478 = vunpack.c.l.b16 %v8914
        %v9479 = vunpack.c.l.b16 %v8915
        %v9480 = vunpack.c.l.b16 %v8916
        %v9481 = vunpack.c.l.b16 %v8917
        %v9482 = vunpack.c.l.b16 %v8918
        %v9483 = vunpack.c.l.b16 %v8919
        %v9484 = vunpack.c.l.b16 %v8920
        %v9485 = vunpack.c.l.b16 %v8921
        %v9486 = vunpack.c.l.b16 %v8922
        %v9487 = vpack.c.b16 %v9472, %v9471
        %v9488 = vpack.c.b16 %v9474, %v9473
        %v9489 = vpack.c.b16 %v9476, %v9475
        %v9490 = vpack.c.b16 %v9478, %v9477
        %v9491 = vpack.c.b16 %v9480, %v9479
        %v9492 = vpack.c.b16 %v9482, %v9481
        %v9493 = vpack.c.b16 %v9484, %v9483
        %v9494 = vpack.c.b16 %v9486, %v9485
        %9503 = vmatprep.subr.bf16.mxu0 0
        %9504 = vmatpush1.bf16.msra.mxu0 %v9487
        %9505 = vmatprep.subr.bf16.mxu0 0
        %9506 = vmatpush1.bf16.msra.mxu0 %v9488
        %9507 = vmatprep.subr.bf16.mxu0 0
        %9508 = vmatpush1.bf16.msra.mxu0 %v9489
        %9509 = vmatprep.subr.bf16.mxu0 0
        %9510 = vmatpush1.bf16.msra.mxu0 %v9490
        %9511 = vmatprep.subr.bf16.mxu0 0
        %9512 = vmatpush1.bf16.msra.mxu0 %v9491
        %9513 = vmatprep.subr.bf16.mxu0 0
        %9514 = vmatpush1.bf16.msra.mxu0 %v9492
        %9515 = vmatprep.subr.bf16.mxu0 0
        %9516 = vmatpush1.bf16.msra.mxu0 %v9493
        %9517 = vmatprep.subr.bf16.mxu0 0
        %9518 = vmatpush1.bf16.msra.mxu0 %v9494
        %9519 = vmatprep.subr.bf16.mxu0 0
        %9520 = vmatpush1.bf16.msra.mxu0 0
        %9521 = vmatprep.subr.bf16.mxu0 0
        %9522 = vmatpush1.bf16.msra.mxu0 0
        %9523 = vmatprep.subr.bf16.mxu0 0
        %9524 = vmatpush1.bf16.msra.mxu0 0
        %9525 = vmatprep.subr.bf16.mxu0 0
        %9526 = vmatpush1.bf16.msra.mxu0 0
        %9527 = vmatprep.subr.bf16.mxu0 0
        %9528 = vmatpush1.bf16.msra.mxu0 0
        %9529 = vmatprep.subr.bf16.mxu0 0
        %9530 = vmatpush1.bf16.msra.mxu0 0
        %9531 = vmatprep.subr.bf16.mxu0 0
        %9532 = vmatpush1.bf16.msra.mxu0 0
        %9533 = vmatprep.subr.bf16.mxu0 0
        %9534 = vmatpush1.bf16.msra.mxu0 0
        %9535 = vmatprep.mubr.bf16.mxu0 0
        %9536 = vmatmul.mubr.bf16.gmra.mrb[0].mxu0 %v8970
        %v9537 = vpop.f32.mrb[0].mxu0
        %v9538 = vadd.f32 %v9454, %v9537
        %v9539 = vpop.f32.mrb[0].mxu0
        %v9540 = vpop.f32.mrb[0].mxu0
        %v9541 = vadd.f32 %v9454, %v9540
        %v9542 = vpop.f32.mrb[0].mxu0
        %9543 = vdwg.mxu0
        %v9544 = vsel %vm8360, %v9448, 0.0
        %v9545 = vadd.f32 %v9445, %v9544
        %v9546 = vrot.slane %v9545, 4
        %v9547 = vadd.f32 %v9545, %v9546
        %v9548 = vrot.slane %v9547, 2
        %v9549 = vadd.f32 %v9547, %v9548
        %v9550 = vrot.slane %v9549, 1
        %v9551 = vadd.f32 %v9549, %v9550
        %v9552 = vrcp.pop 10.0
        %v9553 = vmul.f32 %v9551, %v9552
        %v9554 = vpack.c.bf16 %v9553, %v9553
        %v9571 = vunpack.c.l.b16 %v8923
        %v9572 = vunpack.c.l.b16 %v8924
        %v9573 = vunpack.c.l.b16 %v8925
        %v9574 = vunpack.c.l.b16 %v8926
        %v9575 = vunpack.c.l.b16 %v8927
        %v9576 = vunpack.c.l.b16 %v8928
        %v9577 = vunpack.c.l.b16 %v8929
        %v9578 = vunpack.c.l.b16 %v8930
        %v9579 = vunpack.c.l.b16 %v8931
        %v9580 = vunpack.c.l.b16 %v8932
        %v9581 = vunpack.c.l.b16 %v8933
        %v9582 = vunpack.c.l.b16 %v8934
        %v9583 = vunpack.c.l.b16 %v8935
        %v9584 = vunpack.c.l.b16 %v8936
        %v9585 = vunpack.c.l.b16 %v8937
        %v9586 = vunpack.c.l.b16 %v8938
        %v9587 = vpack.c.b16 %v9572, %v9571
        %v9588 = vpack.c.b16 %v9574, %v9573
        %v9589 = vpack.c.b16 %v9576, %v9575
        %v9590 = vpack.c.b16 %v9578, %v9577
        %v9591 = vpack.c.b16 %v9580, %v9579
        %v9592 = vpack.c.b16 %v9582, %v9581
        %v9593 = vpack.c.b16 %v9584, %v9583
        %v9594 = vpack.c.b16 %v9586, %v9585
        %v9604 = vrot.slane %v8810, 3
        %9606 = vmatprep.subr.bf16.mxu0 0
        %9607 = vmatpush1.bf16.msra.mxu0 %v9587
        %9608 = vmatprep.subr.bf16.mxu0 0
        %9609 = vmatpush1.bf16.msra.mxu0 %v9588
        %9610 = vmatprep.subr.bf16.mxu0 0
        %9611 = vmatpush1.bf16.msra.mxu0 %v9589
        %9612 = vmatprep.subr.bf16.mxu0 0
        %9613 = vmatpush1.bf16.msra.mxu0 %v9590
        %9614 = vmatprep.subr.bf16.mxu0 0
        %9615 = vmatpush1.bf16.msra.mxu0 %v9591
        %9616 = vmatprep.subr.bf16.mxu0 0
        %9617 = vmatpush1.bf16.msra.mxu0 %v9592
        %9618 = vmatprep.subr.bf16.mxu0 0
        %9619 = vmatpush1.bf16.msra.mxu0 %v9593
        %9620 = vmatprep.subr.bf16.mxu0 0
        %9621 = vmatpush1.bf16.msra.mxu0 %v9594
        %9622 = vmatprep.subr.bf16.mxu0 0
        %9623 = vmatpush1.bf16.msra.mxu0 0
        %9624 = vmatprep.subr.bf16.mxu0 0
        %9625 = vmatpush1.bf16.msra.mxu0 0
        %9626 = vmatprep.subr.bf16.mxu0 0
        %9627 = vmatpush1.bf16.msra.mxu0 0
        %9628 = vmatprep.subr.bf16.mxu0 0
        %9629 = vmatpush1.bf16.msra.mxu0 0
        %9630 = vmatprep.subr.bf16.mxu0 0
        %9631 = vmatpush1.bf16.msra.mxu0 0
        %9632 = vmatprep.subr.bf16.mxu0 0
        %9633 = vmatpush1.bf16.msra.mxu0 0
        %9634 = vmatprep.subr.bf16.mxu0 0
        %9635 = vmatpush1.bf16.msra.mxu0 0
        %9636 = vmatprep.subr.bf16.mxu0 0
        %9637 = vmatpush1.bf16.msra.mxu0 0
        %9638 = vmatprep.mubr.bf16.mxu0 0
        %9639 = vmatmul.mubr.bf16.gmra.mrb[0].mxu0 %v9554
        %v9640 = vpop.f32.mrb[0].mxu0
        %v9641 = vadd.f32 %v9604, %v9640
        %v9642 = vpop.f32.mrb[0].mxu0
        %v9643 = vpop.f32.mrb[0].mxu0
        %v9644 = vpop.f32.mrb[0].mxu0
        %9645 = vdwg.mxu0
        %v9646 = vmax.f32 %v9641, 0.0
        %v9647 = vmin.f32 %v9641, 0.0
        %v9649 = vrot.slane %v9647, 3
        %v9651 = vmul.f32 %v8810, %v9649
        %v9653 = vrot.slane %v9651, 5
        %v9655 = vadd.f32 %v9646, %v9653
        %v9656 = vpack.c.bf16 %v9655, %v9655
        %v9673 = vunpack.c.l.b16 %v8939
        %v9674 = vunpack.c.l.b16 %v8940
        %v9675 = vunpack.c.l.b16 %v8941
        %v9676 = vunpack.c.l.b16 %v8942
        %v9677 = vunpack.c.l.b16 %v8943
        %v9678 = vunpack.c.l.b16 %v8944
        %v9679 = vunpack.c.l.b16 %v8945
        %v9680 = vunpack.c.l.b16 %v8946
        %v9681 = vunpack.c.l.b16 %v8947
        %v9682 = vunpack.c.l.b16 %v8948
        %v9683 = vunpack.c.l.b16 %v8949
        %v9684 = vunpack.c.l.b16 %v8950
        %v9685 = vunpack.c.l.b16 %v8951
        %v9686 = vunpack.c.l.b16 %v8952
        %v9687 = vunpack.c.l.b16 %v8953
        %v9688 = vunpack.c.l.b16 %v8954
        %v9689 = vpack.c.b16 %v9674, %v9673
        %v9690 = vpack.c.b16 %v9676, %v9675
        %v9691 = vpack.c.b16 %v9678, %v9677
        %v9692 = vpack.c.b16 %v9680, %v9679
        %v9693 = vpack.c.b16 %v9682, %v9681
        %v9694 = vpack.c.b16 %v9684, %v9683
        %v9695 = vpack.c.b16 %v9686, %v9685
        %v9696 = vpack.c.b16 %v9688, %v9687
        %v9705 = vrot.slane %v8810, 4
        %9707 = vmatprep.subr.bf16.mxu0 0
        %9708 = vmatpush1.bf16.msra.mxu0 %v9689
        %9709 = vmatprep.subr.bf16.mxu0 0
        %9710 = vmatpush1.bf16.msra.mxu0 %v9690
        %9711 = vmatprep.subr.bf16.mxu0 0
        %9712 = vmatpush1.bf16.msra.mxu0 %v9691
        %9713 = vmatprep.subr.bf16.mxu0 0
        %9714 = vmatpush1.bf16.msra.mxu0 %v9692
        %9715 = vmatprep.subr.bf16.mxu0 0
        %9716 = vmatpush1.bf16.msra.mxu0 %v9693
        %9717 = vmatprep.subr.bf16.mxu0 0
        %9718 = vmatpush1.bf16.msra.mxu0 %v9694
        %9719 = vmatprep.subr.bf16.mxu0 0
        %9720 = vmatpush1.bf16.msra.mxu0 %v9695
        %9721 = vmatprep.subr.bf16.mxu0 0
        %9722 = vmatpush1.bf16.msra.mxu0 %v9696
        %9723 = vmatprep.subr.bf16.mxu0 0
        %9724 = vmatpush1.bf16.msra.mxu0 0
        %9725 = vmatprep.subr.bf16.mxu0 0
        %9726 = vmatpush1.bf16.msra.mxu0 0
        %9727 = vmatprep.subr.bf16.mxu0 0
        %9728 = vmatpush1.bf16.msra.mxu0 0
        %9729 = vmatprep.subr.bf16.mxu0 0
        %9730 = vmatpush1.bf16.msra.mxu0 0
        %9731 = vmatprep.subr.bf16.mxu0 0
        %9732 = vmatpush1.bf16.msra.mxu0 0
        %9733 = vmatprep.subr.bf16.mxu0 0
        %9734 = vmatpush1.bf16.msra.mxu0 0
        %9735 = vmatprep.subr.bf16.mxu0 0
        %9736 = vmatpush1.bf16.msra.mxu0 0
        %9737 = vmatprep.subr.bf16.mxu0 0
        %9738 = vmatpush1.bf16.msra.mxu0 0
        %9739 = vmatprep.mubr.bf16.mxu0 0
        %9740 = vmatmul.mubr.bf16.gmra.mrb[0].mxu0 %v9656
        %v9741 = vpop.f32.mrb[0].mxu0
        %v9742 = vadd.f32 %v9705, %v9741
        %v9743 = vpop.f32.mrb[0].mxu0
        %v9744 = vpop.f32.mrb[0].mxu0
        %v9745 = vpop.f32.mrb[0].mxu0
        %9746 = vdwg.mxu0
        %v9747 = vsub.f32 0.0, %v9742
        %v9748 = vmul.f32 %v9747, 1.442695
        %v9749 = vpow.pop %v9748
        %v9750 = vadd.f32 %v9749, 1.0
        %v9751 = vrcp.pop %v9750
        %v9752 = vmul.f32 1.0, %v9751
        %v9753 = vlaneseq
        %v9754 = vshrl.u32 %v9753, 7
        %v9755 = vsub.s32 0, %v9754
        %v9756 = vrot.slane %v9752, %v9755
        %v9757 = vmul.f32 %v9445, %v9756
        %v9758 = vmul.f32 %v9448, %v9756
        %v9759 = vadd.f32 %v9757, %v9538
        %v9760 = vadd.f32 %v9758, %v9541
        %v9761 = vmax.f32 %v9759, 0.0
        %v9762 = vmax.f32 %v9760, 0.0
        %v9765 = vrot.slane %v9761, 1
        %v9766 = vrot.slane %v9762, 1
        %v9767 = vsel %vm1875, %v9765, %v9766
        %v9770 = vsel %vm1989, %v9766, 0.0
        %v9771 = vld [vmem:[%s5] sm:$0x7]
        %v9772 = vpack.c.bf16 %v9762, %v9761
        %v9773 = vpack.c.bf16 %v9770, %v9767
        %vm9774 = vcmask 80896
        %v9776 = vsel %vm9774, %v9771, 0
        %vm9778 = vcmask 1044480
        %v9780 = vsel %vm9778, %v9772, 0
        %v9783 = vsel %vm9778, %v9773, 0
        %9785 = vmatprep.subr.bf16.mxu0 %v9783
        %9786 = vmatpush1.bf16.msra.mxu0 %v9780
        %9787 = vmatprep.subr.bf16.mxu0 0
        %9788 = vmatpush1.bf16.msra.mxu0 0
        %9789 = vmatprep.subr.bf16.mxu0 0
        %9790 = vmatpush1.bf16.msra.mxu0 0
        %9791 = vmatprep.subr.bf16.mxu0 0
        %9792 = vmatpush1.bf16.msra.mxu0 0
        %9793 = vmatprep.subr.bf16.mxu0 0
        %9794 = vmatpush1.bf16.msra.mxu0 0
        %9795 = vmatprep.subr.bf16.mxu0 0
        %9796 = vmatpush1.bf16.msra.mxu0 0
        %9797 = vmatprep.subr.bf16.mxu0 0
        %9798 = vmatpush1.bf16.msra.mxu0 0
        %9799 = vmatprep.subr.bf16.mxu0 0
        %9800 = vmatpush1.bf16.msra.mxu0 0
        %9801 = vmatprep.subr.bf16.mxu0 0
        %9802 = vmatpush1.bf16.msra.mxu0 0
        %9803 = vmatprep.subr.bf16.mxu0 0
        %9804 = vmatpush1.bf16.msra.mxu0 0
        %9805 = vmatprep.subr.bf16.mxu0 0
        %9806 = vmatpush1.bf16.msra.mxu0 0
        %9807 = vmatprep.subr.bf16.mxu0 0
        %9808 = vmatpush1.bf16.msra.mxu0 0
        %9809 = vmatprep.subr.bf16.mxu0 0
        %9810 = vmatpush1.bf16.msra.mxu0 0
        %9811 = vmatprep.subr.bf16.mxu0 0
        %9812 = vmatpush1.bf16.msra.mxu0 0
        %9813 = vmatprep.subr.bf16.mxu0 0
        %9814 = vmatpush1.bf16.msra.mxu0 0
        %9815 = vmatprep.subr.bf16.mxu0 0
        %9816 = vmatpush1.bf16.msra.mxu0 0
        %9817 = vmatprep.mubr.bf16.mxu0 0
        %9818 = vmatmul.mubr.bf16.gmra.mrb[0].mxu0 %v9776
        %v9819 = vpop.f32.mrb[0].mxu0
        %v9820 = vadd.f32 0.0, %v9819
        %v9821 = vpop.f32.mrb[0].mxu0
        %v9822 = vadd.f32 0.0, %v9821
        %v9823 = vpop.f32.mrb[0].mxu0
        %v9824 = vpop.f32.mrb[0].mxu0
        %9825 = vdwg.mxu0
        %v9826 = vld [vmem:[%s18] sm:$0xf]
        %v9827 = vld [vmem:[%s18 + $0x4] sm:$0xf]
        %v9828 = vld [vmem:[%s18 + $0x8] sm:$0xf]
        %v9829 = vld [vmem:[%s18 + $0xc] sm:$0xf]
        %v9830 = vld [vmem:[%s18 + $0x10] sm:$0xf]
        %v9831 = vld [vmem:[%s18 + $0x14] sm:$0xf]
        %v9832 = vld [vmem:[%s18 + $0x18] sm:$0xf]
        %v9833 = vld [vmem:[%s18 + $0x1c] sm:$0xf]
        %v9834 = vld [vmem:[%s18 + $0x20] sm:$0xf]
        %v9835 = vld [vmem:[%s18 + $0x24] sm:$0xf]
        %v9836 = vld [vmem:[%s18 + $0x28] sm:$0xf]
        %v9837 = vld [vmem:[%s18 + $0x2c] sm:$0xf]
        %v9838 = vld [vmem:[%s18 + $0x30] sm:$0xf]
        %v9839 = vld [vmem:[%s18 + $0x34] sm:$0xf]
        %v9840 = vld [vmem:[%s18 + $0x38] sm:$0xf]
        %v9841 = vld [vmem:[%s18 + $0x3c] sm:$0xf]
        %v9842 = vld [vmem:[%s18 + $0x40] sm:$0xf]
        %v9843 = vld [vmem:[%s18 + $0x44] sm:$0xf]
        %v9844 = vld [vmem:[%s18 + $0x48] sm:$0xf]
        %v9845 = vld [vmem:[%s18 + $0x4c] sm:$0xf]
        %v9846 = vld [vmem:[%s18 + $0x50] sm:$0xf]
        %v9847 = vld [vmem:[%s18 + $0x54] sm:$0xf]
        %v9848 = vld [vmem:[%s18 + $0x58] sm:$0xf]
        %v9849 = vld [vmem:[%s18 + $0x5c] sm:$0xf]
        %v9850 = vld [vmem:[%s18 + $0x60] sm:$0xf]
        %v9851 = vld [vmem:[%s18 + $0x64] sm:$0xf]
        %v9852 = vld [vmem:[%s18 + $0x68] sm:$0xf]
        %v9853 = vld [vmem:[%s18 + $0x6c] sm:$0xf]
        %v9854 = vld [vmem:[%s18 + $0x70] sm:$0xf]
        %v9855 = vld [vmem:[%s18 + $0x74] sm:$0xf]
        %v9856 = vld [vmem:[%s18 + $0x78] sm:$0xf]
        %v9857 = vld [vmem:[%s18 + $0x7c] sm:$0xf]
        %v9858 = vpack.c.bf16 %v9820, %v9820
        %v9859 = vpack.c.bf16 %v9822, %v9822
        %v9860 = vld [vmem:[%s19] sm:$0x1]
        %v9862 = vlaneseq
        %v9863 = vshrl.u32 %v9862, 7
        %v9864 = vsub.s32 0, %v9863
        %v9865 = vrot.slane %v9860, %v9864
        %v9899 = vunpack.c.l.b16 %v9826
        %v9900 = vunpack.c.l.b16 %v9827
        %v9901 = vunpack.c.l.b16 %v9828
        %v9902 = vunpack.c.l.b16 %v9829
        %v9903 = vunpack.c.l.b16 %v9830
        %v9904 = vunpack.c.l.b16 %v9831
        %v9905 = vunpack.c.l.b16 %v9832
        %v9906 = vunpack.c.l.b16 %v9833
        %v9907 = vunpack.c.l.b16 %v9834
        %v9908 = vunpack.c.l.b16 %v9835
        %v9909 = vunpack.c.l.b16 %v9836
        %v9910 = vunpack.c.l.b16 %v9837
        %v9911 = vunpack.c.l.b16 %v9838
        %v9912 = vunpack.c.l.b16 %v9839
        %v9913 = vunpack.c.l.b16 %v9840
        %v9914 = vunpack.c.l.b16 %v9841
        %v9915 = vunpack.c.l.b16 %v9842
        %v9916 = vunpack.c.l.b16 %v9843
        %v9917 = vunpack.c.l.b16 %v9844
        %v9918 = vunpack.c.l.b16 %v9845
        %v9919 = vunpack.c.l.b16 %v9846
        %v9920 = vunpack.c.l.b16 %v9847
        %v9921 = vunpack.c.l.b16 %v9848
        %v9922 = vunpack.c.l.b16 %v9849
        %v9923 = vunpack.c.l.b16 %v9850
        %v9924 = vunpack.c.l.b16 %v9851
        %v9925 = vunpack.c.l.b16 %v9852
        %v9926 = vunpack.c.l.b16 %v9853
        %v9927 = vunpack.c.l.b16 %v9854
        %v9928 = vunpack.c.l.b16 %v9855
        %v9929 = vunpack.c.l.b16 %v9856
        %v9930 = vunpack.c.l.b16 %v9857
        %v9931 = vpack.c.b16 %v9900, %v9899
        %v9932 = vpack.c.b16 %v9902, %v9901
        %v9933 = vpack.c.b16 %v9904, %v9903
        %v9934 = vpack.c.b16 %v9906, %v9905
        %v9935 = vpack.c.b16 %v9908, %v9907
        %v9936 = vpack.c.b16 %v9910, %v9909
        %v9937 = vpack.c.b16 %v9912, %v9911
        %v9938 = vpack.c.b16 %v9914, %v9913
        %v9939 = vpack.c.b16 %v9916, %v9915
        %v9940 = vpack.c.b16 %v9918, %v9917
        %v9941 = vpack.c.b16 %v9920, %v9919
        %v9942 = vpack.c.b16 %v9922, %v9921
        %v9943 = vpack.c.b16 %v9924, %v9923
        %v9944 = vpack.c.b16 %v9926, %v9925
        %v9945 = vpack.c.b16 %v9928, %v9927
        %v9946 = vpack.c.b16 %v9930, %v9929
        %9963 = vmatprep.subr.bf16.mxu0 0
        %9964 = vmatpush1.bf16.msra.mxu0 %v9931
        %9965 = vmatprep.subr.bf16.mxu0 0
        %9966 = vmatpush1.bf16.msra.mxu0 %v9932
        %9967 = vmatprep.subr.bf16.mxu0 0
        %9968 = vmatpush1.bf16.msra.mxu0 %v9933
        %9969 = vmatprep.subr.bf16.mxu0 0
        %9970 = vmatpush1.bf16.msra.mxu0 %v9934
        %9971 = vmatprep.subr.bf16.mxu0 0
        %9972 = vmatpush1.bf16.msra.mxu0 %v9935
        %9973 = vmatprep.subr.bf16.mxu0 0
        %9974 = vmatpush1.bf16.msra.mxu0 %v9936
        %9975 = vmatprep.subr.bf16.mxu0 0
        %9976 = vmatpush1.bf16.msra.mxu0 %v9937
        %9977 = vmatprep.subr.bf16.mxu0 0
        %9978 = vmatpush1.bf16.msra.mxu0 %v9938
        %9979 = vmatprep.subr.bf16.mxu0 0
        %9980 = vmatpush1.bf16.msra.mxu0 %v9939
        %9981 = vmatprep.subr.bf16.mxu0 0
        %9982 = vmatpush1.bf16.msra.mxu0 %v9940
        %9983 = vmatprep.subr.bf16.mxu0 0
        %9984 = vmatpush1.bf16.msra.mxu0 %v9941
        %9985 = vmatprep.subr.bf16.mxu0 0
        %9986 = vmatpush1.bf16.msra.mxu0 %v9942
        %9987 = vmatprep.subr.bf16.mxu0 0
        %9988 = vmatpush1.bf16.msra.mxu0 %v9943
        %9989 = vmatprep.subr.bf16.mxu0 0
        %9990 = vmatpush1.bf16.msra.mxu0 %v9944
        %9991 = vmatprep.subr.bf16.mxu0 0
        %9992 = vmatpush1.bf16.msra.mxu0 %v9945
        %9993 = vmatprep.subr.bf16.mxu0 0
        %9994 = vmatpush1.bf16.msra.mxu0 %v9946
        %9995 = vmatprep.mubr.bf16.mxu0 %v9859
        %9996 = vmatmul.mubr.bf16.gmra.mrb[0].mxu0 %v9858
        %v9997 = vpop.f32.mrb[0].mxu0
        %v9998 = vadd.f32 %v9865, %v9997
        %v9999 = vpop.f32.mrb[0].mxu0
        %v10000 = vpop.f32.mrb[0].mxu0
        %v10001 = vpop.f32.mrb[0].mxu0
        %10002 = vdwg.mxu0
        %v10003 = vmax.f32 %v9998, 0.0
        %v10004 = vld [vmem:[%s21] sm:$0xff]
        %v10005 = vld [vmem:[%s20] sm:$0xf]
        %v10006 = vld [vmem:[%s20 + $0x4] sm:$0xf]
        %v10007 = vld [vmem:[%s20 + $0x8] sm:$0xf]
        %v10008 = vld [vmem:[%s20 + $0xc] sm:$0xf]
        %v10009 = vld [vmem:[%s20 + $0x10] sm:$0xf]
        %v10010 = vld [vmem:[%s20 + $0x14] sm:$0xf]
        %v10011 = vld [vmem:[%s20 + $0x18] sm:$0xf]
        %v10012 = vld [vmem:[%s20 + $0x1c] sm:$0xf]
        %v10013 = vld [vmem:[%s20 + $0x20] sm:$0xf]
        %v10014 = vld [vmem:[%s20 + $0x24] sm:$0xf]
        %v10015 = vld [vmem:[%s20 + $0x28] sm:$0xf]
        %v10016 = vld [vmem:[%s20 + $0x2c] sm:$0xf]
        %v10017 = vld [vmem:[%s20 + $0x30] sm:$0xf]
        %v10018 = vld [vmem:[%s20 + $0x34] sm:$0xf]
        %v10019 = vld [vmem:[%s20 + $0x38] sm:$0xf]
        %v10020 = vld [vmem:[%s20 + $0x3c] sm:$0xf]
        %v10021 = vld [vmem:[%s20 + $0x40] sm:$0xf]
        %v10022 = vld [vmem:[%s20 + $0x44] sm:$0xf]
        %v10023 = vld [vmem:[%s20 + $0x48] sm:$0xf]
        %v10024 = vld [vmem:[%s20 + $0x4c] sm:$0xf]
        %v10025 = vld [vmem:[%s20 + $0x50] sm:$0xf]
        %v10026 = vld [vmem:[%s20 + $0x54] sm:$0xf]
        %v10027 = vld [vmem:[%s20 + $0x58] sm:$0xf]
        %v10028 = vld [vmem:[%s20 + $0x5c] sm:$0xf]
        %v10029 = vld [vmem:[%s20 + $0x60] sm:$0xf]
        %v10030 = vld [vmem:[%s20 + $0x64] sm:$0xf]
        %v10031 = vld [vmem:[%s20 + $0x68] sm:$0xf]
        %v10032 = vld [vmem:[%s20 + $0x6c] sm:$0xf]
        %v10033 = vld [vmem:[%s20 + $0x70] sm:$0xf]
        %v10034 = vld [vmem:[%s20 + $0x74] sm:$0xf]
        %v10035 = vld [vmem:[%s20 + $0x78] sm:$0xf]
        %v10036 = vld [vmem:[%s20 + $0x7c] sm:$0xf]
        %v10037 = vld [vmem:[%s20 + $0x80] sm:$0xf]
        %v10038 = vld [vmem:[%s20 + $0x84] sm:$0xf]
        %v10039 = vld [vmem:[%s20 + $0x88] sm:$0xf]
        %v10040 = vld [vmem:[%s20 + $0x8c] sm:$0xf]
        %v10041 = vld [vmem:[%s20 + $0x90] sm:$0xf]
        %v10042 = vld [vmem:[%s20 + $0x94] sm:$0xf]
        %v10043 = vld [vmem:[%s20 + $0x98] sm:$0xf]
        %v10044 = vld [vmem:[%s20 + $0x9c] sm:$0xf]
        %v10045 = vld [vmem:[%s20 + $0xa0] sm:$0xf]
        %v10046 = vld [vmem:[%s20 + $0xa4] sm:$0xf]
        %v10047 = vld [vmem:[%s20 + $0xa8] sm:$0xf]
        %v10048 = vld [vmem:[%s20 + $0xac] sm:$0xf]
        %v10049 = vld [vmem:[%s20 + $0xb0] sm:$0xf]
        %v10050 = vld [vmem:[%s20 + $0xb4] sm:$0xf]
        %v10051 = vld [vmem:[%s20 + $0xb8] sm:$0xf]
        %v10052 = vld [vmem:[%s20 + $0xbc] sm:$0xf]
        %v10053 = vld [vmem:[%s20 + $0xc0] sm:$0xf]
        %v10054 = vld [vmem:[%s20 + $0xc4] sm:$0xf]
        %v10055 = vld [vmem:[%s20 + $0xc8] sm:$0xf]
        %v10056 = vld [vmem:[%s20 + $0xcc] sm:$0xf]
        %v10057 = vld [vmem:[%s20 + $0xd0] sm:$0xf]
        %v10058 = vld [vmem:[%s20 + $0xd4] sm:$0xf]
        %v10059 = vld [vmem:[%s20 + $0xd8] sm:$0xf]
        %v10060 = vld [vmem:[%s20 + $0xdc] sm:$0xf]
        %v10061 = vld [vmem:[%s20 + $0xe0] sm:$0xf]
        %v10062 = vld [vmem:[%s20 + $0xe4] sm:$0xf]
        %v10063 = vld [vmem:[%s20 + $0xe8] sm:$0xf]
        %v10064 = vld [vmem:[%s20 + $0xec] sm:$0xf]
        %v10065 = vld [vmem:[%s20 + $0xf0] sm:$0xf]
        %v10066 = vld [vmem:[%s20 + $0xf4] sm:$0xf]
        %v10067 = vld [vmem:[%s20 + $0xf8] sm:$0xf]
        %v10068 = vld [vmem:[%s20 + $0xfc] sm:$0xf]
        %v10069 = vld [vmem:[%s20 + $0x100] sm:$0xf]
        %v10070 = vld [vmem:[%s20 + $0x104] sm:$0xf]
        %v10071 = vld [vmem:[%s20 + $0x108] sm:$0xf]
        %v10072 = vld [vmem:[%s20 + $0x10c] sm:$0xf]
        %v10073 = vld [vmem:[%s20 + $0x110] sm:$0xf]
        %v10074 = vld [vmem:[%s20 + $0x114] sm:$0xf]
        %v10075 = vld [vmem:[%s20 + $0x118] sm:$0xf]
        %v10076 = vld [vmem:[%s20 + $0x11c] sm:$0xf]
        %v10077 = vld [vmem:[%s20 + $0x120] sm:$0xf]
        %v10078 = vld [vmem:[%s20 + $0x124] sm:$0xf]
        %v10079 = vld [vmem:[%s20 + $0x128] sm:$0xf]
        %v10080 = vld [vmem:[%s20 + $0x12c] sm:$0xf]
        %v10081 = vld [vmem:[%s20 + $0x130] sm:$0xf]
        %v10082 = vld [vmem:[%s20 + $0x134] sm:$0xf]
        %v10083 = vld [vmem:[%s20 + $0x138] sm:$0xf]
        %v10084 = vld [vmem:[%s20 + $0x13c] sm:$0xf]
        %v10085 = vld [vmem:[%s20 + $0x140] sm:$0xf]
        %v10086 = vld [vmem:[%s20 + $0x144] sm:$0xf]
        %v10087 = vld [vmem:[%s20 + $0x148] sm:$0xf]
        %v10088 = vld [vmem:[%s20 + $0x14c] sm:$0xf]
        %v10089 = vld [vmem:[%s20 + $0x150] sm:$0xf]
        %v10090 = vld [vmem:[%s20 + $0x154] sm:$0xf]
        %v10091 = vld [vmem:[%s20 + $0x158] sm:$0xf]
        %v10092 = vld [vmem:[%s20 + $0x15c] sm:$0xf]
        %v10093 = vld [vmem:[%s20 + $0x160] sm:$0xf]
        %v10094 = vld [vmem:[%s20 + $0x164] sm:$0xf]
        %v10095 = vld [vmem:[%s20 + $0x168] sm:$0xf]
        %v10096 = vld [vmem:[%s20 + $0x16c] sm:$0xf]
        %v10097 = vld [vmem:[%s20 + $0x170] sm:$0xf]
        %v10098 = vld [vmem:[%s20 + $0x174] sm:$0xf]
        %v10099 = vld [vmem:[%s20 + $0x178] sm:$0xf]
        %v10100 = vld [vmem:[%s20 + $0x17c] sm:$0xf]
        %v10101 = vld [vmem:[%s20 + $0x180] sm:$0xf]
        %v10102 = vld [vmem:[%s20 + $0x184] sm:$0xf]
        %v10103 = vld [vmem:[%s20 + $0x188] sm:$0xf]
        %v10104 = vld [vmem:[%s20 + $0x18c] sm:$0xf]
        %v10105 = vld [vmem:[%s20 + $0x190] sm:$0xf]
        %v10106 = vld [vmem:[%s20 + $0x194] sm:$0xf]
        %v10107 = vld [vmem:[%s20 + $0x198] sm:$0xf]
        %v10108 = vld [vmem:[%s20 + $0x19c] sm:$0xf]
        %v10109 = vld [vmem:[%s20 + $0x1a0] sm:$0xf]
        %v10110 = vld [vmem:[%s20 + $0x1a4] sm:$0xf]
        %v10111 = vld [vmem:[%s20 + $0x1a8] sm:$0xf]
        %v10112 = vld [vmem:[%s20 + $0x1ac] sm:$0xf]
        %v10113 = vld [vmem:[%s20 + $0x1b0] sm:$0xf]
        %v10114 = vld [vmem:[%s20 + $0x1b4] sm:$0xf]
        %v10115 = vld [vmem:[%s20 + $0x1b8] sm:$0xf]
        %v10116 = vld [vmem:[%s20 + $0x1bc] sm:$0xf]
        %v10117 = vld [vmem:[%s20 + $0x1c0] sm:$0xf]
        %v10118 = vld [vmem:[%s20 + $0x1c4] sm:$0xf]
        %v10119 = vld [vmem:[%s20 + $0x1c8] sm:$0xf]
        %v10120 = vld [vmem:[%s20 + $0x1cc] sm:$0xf]
        %v10121 = vld [vmem:[%s20 + $0x1d0] sm:$0xf]
        %v10122 = vld [vmem:[%s20 + $0x1d4] sm:$0xf]
        %v10123 = vld [vmem:[%s20 + $0x1d8] sm:$0xf]
        %v10124 = vld [vmem:[%s20 + $0x1dc] sm:$0xf]
        %v10125 = vld [vmem:[%s20 + $0x1e0] sm:$0xf]
        %v10126 = vld [vmem:[%s20 + $0x1e4] sm:$0xf]
        %v10127 = vld [vmem:[%s20 + $0x1e8] sm:$0xf]
        %v10128 = vld [vmem:[%s20 + $0x1ec] sm:$0xf]
        %v10129 = vld [vmem:[%s20 + $0x1f0] sm:$0xf]
        %v10130 = vld [vmem:[%s20 + $0x1f4] sm:$0xf]
        %v10131 = vld [vmem:[%s20 + $0x1f8] sm:$0xf]
        %v10132 = vld [vmem:[%s20 + $0x1fc] sm:$0xf]
        %v10133 = vld [vmem:[%s20 + $0x200] sm:$0xf]
        %v10134 = vld [vmem:[%s20 + $0x204] sm:$0xf]
        %v10135 = vld [vmem:[%s20 + $0x208] sm:$0xf]
        %v10136 = vld [vmem:[%s20 + $0x20c] sm:$0xf]
        %v10137 = vld [vmem:[%s20 + $0x210] sm:$0xf]
        %v10138 = vld [vmem:[%s20 + $0x214] sm:$0xf]
        %v10139 = vld [vmem:[%s20 + $0x218] sm:$0xf]
        %v10140 = vld [vmem:[%s20 + $0x21c] sm:$0xf]
        %v10141 = vld [vmem:[%s20 + $0x220] sm:$0xf]
        %v10142 = vld [vmem:[%s20 + $0x224] sm:$0xf]
        %v10143 = vld [vmem:[%s20 + $0x228] sm:$0xf]
        %v10144 = vld [vmem:[%s20 + $0x22c] sm:$0xf]
        %v10145 = vld [vmem:[%s20 + $0x230] sm:$0xf]
        %v10146 = vld [vmem:[%s20 + $0x234] sm:$0xf]
        %v10147 = vld [vmem:[%s20 + $0x238] sm:$0xf]
        %v10148 = vld [vmem:[%s20 + $0x23c] sm:$0xf]
        %v10150 = vrot.slane %v10003, 7
        %v10152 = vsel %vm1989, 0.0, %v10150
        %v10153 = vrot.slane %v10003, 1
        %v10155 = vsel %vm5289, %v10153, 0.0
        %v10156 = vpack.c.bf16 %v10152, %v10152
        %v10157 = vpack.c.bf16 %v10003, %v10003
        %v10158 = vpack.c.bf16 %v10155, %v10155
        %v10159 = vlaneseq
        %v10160 = vshrl.u32 %v10159, 7
        %v10161 = vsub.s32 0, %v10160
        %v10162 = vrot.slane %v10004, %v10161
        %v10211 = vunpack.c.l.b16 %v10005
        %v10212 = vunpack.c.l.b16 %v10006
        %v10213 = vunpack.c.l.b16 %v10007
        %v10214 = vunpack.c.l.b16 %v10008
        %v10215 = vunpack.c.l.b16 %v10009
        %v10216 = vunpack.c.l.b16 %v10010
        %v10217 = vunpack.c.l.b16 %v10011
        %v10218 = vunpack.c.l.b16 %v10012
        %v10219 = vunpack.c.l.b16 %v10013
        %v10220 = vunpack.c.l.b16 %v10014
        %v10221 = vunpack.c.l.b16 %v10015
        %v10222 = vunpack.c.l.b16 %v10016
        %v10223 = vunpack.c.l.b16 %v10017
        %v10224 = vunpack.c.l.b16 %v10018
        %v10225 = vunpack.c.l.b16 %v10019
        %v10226 = vunpack.c.l.b16 %v10020
        %v10227 = vunpack.c.l.b16 %v10021
        %v10228 = vunpack.c.l.b16 %v10022
        %v10229 = vunpack.c.l.b16 %v10023
        %v10230 = vunpack.c.l.b16 %v10024
        %v10231 = vunpack.c.l.b16 %v10025
        %v10232 = vunpack.c.l.b16 %v10026
        %v10233 = vunpack.c.l.b16 %v10027
        %v10234 = vunpack.c.l.b16 %v10028
        %v10235 = vunpack.c.l.b16 %v10029
        %v10236 = vunpack.c.l.b16 %v10030
        %v10237 = vunpack.c.l.b16 %v10031
        %v10238 = vunpack.c.l.b16 %v10032
        %v10239 = vunpack.c.l.b16 %v10033
        %v10240 = vunpack.c.l.b16 %v10034
        %v10241 = vunpack.c.l.b16 %v10035
        %v10242 = vunpack.c.l.b16 %v10036
        %v10243 = vunpack.c.l.b16 %v10037
        %v10244 = vunpack.c.l.b16 %v10038
        %v10245 = vunpack.c.l.b16 %v10039
        %v10246 = vunpack.c.l.b16 %v10040
        %v10247 = vunpack.c.l.b16 %v10041
        %v10248 = vunpack.c.l.b16 %v10042
        %v10249 = vunpack.c.l.b16 %v10043
        %v10250 = vunpack.c.l.b16 %v10044
        %v10251 = vunpack.c.l.b16 %v10045
        %v10252 = vunpack.c.l.b16 %v10046
        %v10253 = vunpack.c.l.b16 %v10047
        %v10254 = vunpack.c.l.b16 %v10048
        %v10255 = vunpack.c.l.b16 %v10049
        %v10256 = vunpack.c.l.b16 %v10050
        %v10257 = vunpack.c.l.b16 %v10051
        %v10258 = vunpack.c.l.b16 %v10052
        %v10259 = vpack.c.b16 %v10212, %v10211
        %v10260 = vpack.c.b16 %v10214, %v10213
        %v10261 = vpack.c.b16 %v10216, %v10215
        %v10262 = vpack.c.b16 %v10218, %v10217
        %v10263 = vpack.c.b16 %v10220, %v10219
        %v10264 = vpack.c.b16 %v10222, %v10221
        %v10265 = vpack.c.b16 %v10224, %v10223
        %v10266 = vpack.c.b16 %v10226, %v10225
        %v10267 = vpack.c.b16 %v10228, %v10227
        %v10268 = vpack.c.b16 %v10230, %v10229
        %v10269 = vpack.c.b16 %v10232, %v10231
        %v10270 = vpack.c.b16 %v10234, %v10233
        %v10271 = vpack.c.b16 %v10236, %v10235
        %v10272 = vpack.c.b16 %v10238, %v10237
        %v10273 = vpack.c.b16 %v10240, %v10239
        %v10274 = vpack.c.b16 %v10242, %v10241
        %v10275 = vpack.c.b16 %v10244, %v10243
        %v10276 = vpack.c.b16 %v10246, %v10245
        %v10277 = vpack.c.b16 %v10248, %v10247
        %v10278 = vpack.c.b16 %v10250, %v10249
        %v10279 = vpack.c.b16 %v10252, %v10251
        %v10280 = vpack.c.b16 %v10254, %v10253
        %v10281 = vpack.c.b16 %v10256, %v10255
        %v10282 = vpack.c.b16 %v10258, %v10257
        %10307 = vmatprep.subr.bf16.mxu0 0
        %10308 = vmatpush1.bf16.msra.mxu0 %v10259
        %10309 = vmatprep.subr.bf16.mxu0 0
        %10310 = vmatpush1.bf16.msra.mxu0 %v10260
        %10311 = vmatprep.subr.bf16.mxu0 0
        %10312 = vmatpush1.bf16.msra.mxu0 %v10261
        %10313 = vmatprep.subr.bf16.mxu0 0
        %10314 = vmatpush1.bf16.msra.mxu0 %v10262
        %10315 = vmatprep.subr.bf16.mxu0 0
        %10316 = vmatpush1.bf16.msra.mxu0 %v10263
        %10317 = vmatprep.subr.bf16.mxu0 0
        %10318 = vmatpush1.bf16.msra.mxu0 %v10264
        %10319 = vmatprep.subr.bf16.mxu0 0
        %10320 = vmatpush1.bf16.msra.mxu0 %v10265
        %10321 = vmatprep.subr.bf16.mxu0 0
        %10322 = vmatpush1.bf16.msra.mxu0 %v10266
        %10323 = vmatprep.subr.bf16.mxu0 0
        %10324 = vmatpush1.bf16.msra.mxu0 %v10267
        %10325 = vmatprep.subr.bf16.mxu0 0
        %10326 = vmatpush1.bf16.msra.mxu0 %v10268
        %10327 = vmatprep.subr.bf16.mxu0 0
        %10328 = vmatpush1.bf16.msra.mxu0 %v10269
        %10329 = vmatprep.subr.bf16.mxu0 0
        %10330 = vmatpush1.bf16.msra.mxu0 %v10270
        %10331 = vmatprep.subr.bf16.mxu0 0
        %10332 = vmatpush1.bf16.msra.mxu0 %v10271
        %10333 = vmatprep.subr.bf16.mxu0 0
        %10334 = vmatpush1.bf16.msra.mxu0 %v10272
        %10335 = vmatprep.subr.bf16.mxu0 0
        %10336 = vmatpush1.bf16.msra.mxu0 %v10273
        %10337 = vmatprep.subr.bf16.mxu0 0
        %10338 = vmatpush1.bf16.msra.mxu0 %v10274
        %10339 = vmatprep.mubr.bf16.mxu0 %v10157
        %10340 = vmatmul.mubr.bf16.gmra.mrb[0].mxu0 %v10156
        %v10341 = vpop.f32.mrb[0].mxu0
        %v10342 = vadd.f32 %v10162, %v10341
        %v10343 = vpop.f32.mrb[0].mxu0
        %v10344 = vpop.f32.mrb[0].mxu0
        %v10345 = vpop.f32.mrb[0].mxu0
        %10346 = vdwg.mxu0
        %10347 = vmatprep.subr.bf16.mxu0 0
        %10348 = vmatpush1.bf16.msra.mxu0 %v10275
        %10349 = vmatprep.subr.bf16.mxu0 0
        %10350 = vmatpush1.bf16.msra.mxu0 %v10276
        %10351 = vmatprep.subr.bf16.mxu0 0
        %10352 = vmatpush1.bf16.msra.mxu0 %v10277
        %10353 = vmatprep.subr.bf16.mxu0 0
        %10354 = vmatpush1.bf16.msra.mxu0 %v10278
        %10355 = vmatprep.subr.bf16.mxu0 0
        %10356 = vmatpush1.bf16.msra.mxu0 %v10279
        %10357 = vmatprep.subr.bf16.mxu0 0
        %10358 = vmatpush1.bf16.msra.mxu0 %v10280
        %10359 = vmatprep.subr.bf16.mxu0 0
        %10360 = vmatpush1.bf16.msra.mxu0 %v10281
        %10361 = vmatprep.subr.bf16.mxu0 0
        %10362 = vmatpush1.bf16.msra.mxu0 %v10282
        %10363 = vmatprep.subr.bf16.mxu0 0
        %10364 = vmatpush1.bf16.msra.mxu0 0
        %10365 = vmatprep.subr.bf16.mxu0 0
        %10366 = vmatpush1.bf16.msra.mxu0 0
        %10367 = vmatprep.subr.bf16.mxu0 0
        %10368 = vmatpush1.bf16.msra.mxu0 0
        %10369 = vmatprep.subr.bf16.mxu0 0
        %10370 = vmatpush1.bf16.msra.mxu0 0
        %10371 = vmatprep.subr.bf16.mxu0 0
        %10372 = vmatpush1.bf16.msra.mxu0 0
        %10373 = vmatprep.subr.bf16.mxu0 0
        %10374 = vmatpush1.bf16.msra.mxu0 0
        %10375 = vmatprep.subr.bf16.mxu0 0
        %10376 = vmatpush1.bf16.msra.mxu0 0
        %10377 = vmatprep.subr.bf16.mxu0 0
        %10378 = vmatpush1.bf16.msra.mxu0 0
        %10379 = vmatprep.mubr.bf16.mxu0 0
        %10380 = vmatmul.mubr.bf16.gmra.mrb[0].mxu0 %v10158
        %v10381 = vpop.f32.mrb[0].mxu0
        %v10382 = vadd.f32 %v10342, %v10381
        %v10383 = vpop.f32.mrb[0].mxu0
        %v10384 = vpop.f32.mrb[0].mxu0
        %v10385 = vpop.f32.mrb[0].mxu0
        %10386 = vdwg.mxu0
        %v10387 = vmax.f32 %v10382, 0.0
        %v10389 = vrot.slane %v10387, 7
        %v10391 = vsel %vm1989, 0.0, %v10389
        %v10392 = vrot.slane %v10387, 1
        %v10394 = vsel %vm5289, %v10392, 0.0
        %v10395 = vpack.c.bf16 %v10391, %v10391
        %v10396 = vpack.c.bf16 %v10387, %v10387
        %v10397 = vpack.c.bf16 %v10394, %v10394
        %v10398 = vlaneseq
        %v10399 = vshrl.u32 %v10398, 7
        %v10400 = vsub.s32 1, %v10399
        %v10401 = vrot.slane %v10004, %v10400
        %v10450 = vunpack.c.l.b16 %v10053
        %v10451 = vunpack.c.l.b16 %v10054
        %v10452 = vunpack.c.l.b16 %v10055
        %v10453 = vunpack.c.l.b16 %v10056
        %v10454 = vunpack.c.l.b16 %v10057
        %v10455 = vunpack.c.l.b16 %v10058
        %v10456 = vunpack.c.l.b16 %v10059
        %v10457 = vunpack.c.l.b16 %v10060
        %v10458 = vunpack.c.l.b16 %v10061
        %v10459 = vunpack.c.l.b16 %v10062
        %v10460 = vunpack.c.l.b16 %v10063
        %v10461 = vunpack.c.l.b16 %v10064
        %v10462 = vunpack.c.l.b16 %v10065
        %v10463 = vunpack.c.l.b16 %v10066
        %v10464 = vunpack.c.l.b16 %v10067
        %v10465 = vunpack.c.l.b16 %v10068
        %v10466 = vunpack.c.l.b16 %v10069
        %v10467 = vunpack.c.l.b16 %v10070
        %v10468 = vunpack.c.l.b16 %v10071
        %v10469 = vunpack.c.l.b16 %v10072
        %v10470 = vunpack.c.l.b16 %v10073
        %v10471 = vunpack.c.l.b16 %v10074
        %v10472 = vunpack.c.l.b16 %v10075
        %v10473 = vunpack.c.l.b16 %v10076
        %v10474 = vunpack.c.l.b16 %v10077
        %v10475 = vunpack.c.l.b16 %v10078
        %v10476 = vunpack.c.l.b16 %v10079
        %v10477 = vunpack.c.l.b16 %v10080
        %v10478 = vunpack.c.l.b16 %v10081
        %v10479 = vunpack.c.l.b16 %v10082
        %v10480 = vunpack.c.l.b16 %v10083
        %v10481 = vunpack.c.l.b16 %v10084
        %v10482 = vunpack.c.l.b16 %v10085
        %v10483 = vunpack.c.l.b16 %v10086
        %v10484 = vunpack.c.l.b16 %v10087
        %v10485 = vunpack.c.l.b16 %v10088
        %v10486 = vunpack.c.l.b16 %v10089
        %v10487 = vunpack.c.l.b16 %v10090
        %v10488 = vunpack.c.l.b16 %v10091
        %v10489 = vunpack.c.l.b16 %v10092
        %v10490 = vunpack.c.l.b16 %v10093
        %v10491 = vunpack.c.l.b16 %v10094
        %v10492 = vunpack.c.l.b16 %v10095
        %v10493 = vunpack.c.l.b16 %v10096
        %v10494 = vunpack.c.l.b16 %v10097
        %v10495 = vunpack.c.l.b16 %v10098
        %v10496 = vunpack.c.l.b16 %v10099
        %v10497 = vunpack.c.l.b16 %v10100
        %v10498 = vpack.c.b16 %v10451, %v10450
        %v10499 = vpack.c.b16 %v10453, %v10452
        %v10500 = vpack.c.b16 %v10455, %v10454
        %v10501 = vpack.c.b16 %v10457, %v10456
        %v10502 = vpack.c.b16 %v10459, %v10458
        %v10503 = vpack.c.b16 %v10461, %v10460
        %v10504 = vpack.c.b16 %v10463, %v10462
        %v10505 = vpack.c.b16 %v10465, %v10464
        %v10506 = vpack.c.b16 %v10467, %v10466
        %v10507 = vpack.c.b16 %v10469, %v10468
        %v10508 = vpack.c.b16 %v10471, %v10470
        %v10509 = vpack.c.b16 %v10473, %v10472
        %v10510 = vpack.c.b16 %v10475, %v10474
        %v10511 = vpack.c.b16 %v10477, %v10476
        %v10512 = vpack.c.b16 %v10479, %v10478
        %v10513 = vpack.c.b16 %v10481, %v10480
        %v10514 = vpack.c.b16 %v10483, %v10482
        %v10515 = vpack.c.b16 %v10485, %v10484
        %v10516 = vpack.c.b16 %v10487, %v10486
        %v10517 = vpack.c.b16 %v10489, %v10488
        %v10518 = vpack.c.b16 %v10491, %v10490
        %v10519 = vpack.c.b16 %v10493, %v10492
        %v10520 = vpack.c.b16 %v10495, %v10494
        %v10521 = vpack.c.b16 %v10497, %v10496
        %10546 = vmatprep.subr.bf16.mxu0 0
        %10547 = vmatpush1.bf16.msra.mxu0 %v10498
        %10548 = vmatprep.subr.bf16.mxu0 0
        %10549 = vmatpush1.bf16.msra.mxu0 %v10499
        %10550 = vmatprep.subr.bf16.mxu0 0
        %10551 = vmatpush1.bf16.msra.mxu0 %v10500
        %10552 = vmatprep.subr.bf16.mxu0 0
        %10553 = vmatpush1.bf16.msra.mxu0 %v10501
        %10554 = vmatprep.subr.bf16.mxu0 0
        %10555 = vmatpush1.bf16.msra.mxu0 %v10502
        %10556 = vmatprep.subr.bf16.mxu0 0
        %10557 = vmatpush1.bf16.msra.mxu0 %v10503
        %10558 = vmatprep.subr.bf16.mxu0 0
        %10559 = vmatpush1.bf16.msra.mxu0 %v10504
        %10560 = vmatprep.subr.bf16.mxu0 0
        %10561 = vmatpush1.bf16.msra.mxu0 %v10505
        %10562 = vmatprep.subr.bf16.mxu0 0
        %10563 = vmatpush1.bf16.msra.mxu0 %v10506
        %10564 = vmatprep.subr.bf16.mxu0 0
        %10565 = vmatpush1.bf16.msra.mxu0 %v10507
        %10566 = vmatprep.subr.bf16.mxu0 0
        %10567 = vmatpush1.bf16.msra.mxu0 %v10508
        %10568 = vmatprep.subr.bf16.mxu0 0
        %10569 = vmatpush1.bf16.msra.mxu0 %v10509
        %10570 = vmatprep.subr.bf16.mxu0 0
        %10571 = vmatpush1.bf16.msra.mxu0 %v10510
        %10572 = vmatprep.subr.bf16.mxu0 0
        %10573 = vmatpush1.bf16.msra.mxu0 %v10511
        %10574 = vmatprep.subr.bf16.mxu0 0
        %10575 = vmatpush1.bf16.msra.mxu0 %v10512
        %10576 = vmatprep.subr.bf16.mxu0 0
        %10577 = vmatpush1.bf16.msra.mxu0 %v10513
        %10578 = vmatprep.mubr.bf16.mxu0 %v10396
        %10579 = vmatmul.mubr.bf16.gmra.mrb[0].mxu0 %v10395
        %v10580 = vpop.f32.mrb[0].mxu0
        %v10581 = vadd.f32 %v10401, %v10580
        %v10582 = vpop.f32.mrb[0].mxu0
        %v10583 = vpop.f32.mrb[0].mxu0
        %v10584 = vpop.f32.mrb[0].mxu0
        %10585 = vdwg.mxu0
        %10586 = vmatprep.subr.bf16.mxu0 0
        %10587 = vmatpush1.bf16.msra.mxu0 %v10514
        %10588 = vmatprep.subr.bf16.mxu0 0
        %10589 = vmatpush1.bf16.msra.mxu0 %v10515
        %10590 = vmatprep.subr.bf16.mxu0 0
        %10591 = vmatpush1.bf16.msra.mxu0 %v10516
        %10592 = vmatprep.subr.bf16.mxu0 0
        %10593 = vmatpush1.bf16.msra.mxu0 %v10517
        %10594 = vmatprep.subr.bf16.mxu0 0
        %10595 = vmatpush1.bf16.msra.mxu0 %v10518
        %10596 = vmatprep.subr.bf16.mxu0 0
        %10597 = vmatpush1.bf16.msra.mxu0 %v10519
        %10598 = vmatprep.subr.bf16.mxu0 0
        %10599 = vmatpush1.bf16.msra.mxu0 %v10520
        %10600 = vmatprep.subr.bf16.mxu0 0
        %10601 = vmatpush1.bf16.msra.mxu0 %v10521
        %10602 = vmatprep.subr.bf16.mxu0 0
        %10603 = vmatpush1.bf16.msra.mxu0 0
        %10604 = vmatprep.subr.bf16.mxu0 0
        %10605 = vmatpush1.bf16.msra.mxu0 0
        %10606 = vmatprep.subr.bf16.mxu0 0
        %10607 = vmatpush1.bf16.msra.mxu0 0
        %10608 = vmatprep.subr.bf16.mxu0 0
        %10609 = vmatpush1.bf16.msra.mxu0 0
        %10610 = vmatprep.subr.bf16.mxu0 0
        %10611 = vmatpush1.bf16.msra.mxu0 0
        %10612 = vmatprep.subr.bf16.mxu0 0
        %10613 = vmatpush1.bf16.msra.mxu0 0
        %10614 = vmatprep.subr.bf16.mxu0 0
        %10615 = vmatpush1.bf16.msra.mxu0 0
        %10616 = vmatprep.subr.bf16.mxu0 0
        %10617 = vmatpush1.bf16.msra.mxu0 0
        %10618 = vmatprep.mubr.bf16.mxu0 0
        %10619 = vmatmul.mubr.bf16.gmra.mrb[0].mxu0 %v10397
        %v10620 = vpop.f32.mrb[0].mxu0
        %v10621 = vadd.f32 %v10581, %v10620
        %v10622 = vpop.f32.mrb[0].mxu0
        %v10623 = vpop.f32.mrb[0].mxu0
        %v10624 = vpop.f32.mrb[0].mxu0
        %10625 = vdwg.mxu0
        %v10626 = vlaneseq
        %v10627 = vshrl.u32 %v10626, 7
        %v10628 = vsub.s32 2, %v10627
        %v10629 = vrot.slane %v10004, %v10628
        %v10646 = vunpack.c.l.b16 %v10101
        %v10647 = vunpack.c.l.b16 %v10102
        %v10648 = vunpack.c.l.b16 %v10103
        %v10649 = vunpack.c.l.b16 %v10104
        %v10650 = vunpack.c.l.b16 %v10105
        %v10651 = vunpack.c.l.b16 %v10106
        %v10652 = vunpack.c.l.b16 %v10107
        %v10653 = vunpack.c.l.b16 %v10108
        %v10654 = vunpack.c.l.b16 %v10109
        %v10655 = vunpack.c.l.b16 %v10110
        %v10656 = vunpack.c.l.b16 %v10111
        %v10657 = vunpack.c.l.b16 %v10112
        %v10658 = vunpack.c.l.b16 %v10113
        %v10659 = vunpack.c.l.b16 %v10114
        %v10660 = vunpack.c.l.b16 %v10115
        %v10661 = vunpack.c.l.b16 %v10116
        %v10662 = vpack.c.b16 %v10647, %v10646
        %v10663 = vpack.c.b16 %v10649, %v10648
        %v10664 = vpack.c.b16 %v10651, %v10650
        %v10665 = vpack.c.b16 %v10653, %v10652
        %v10666 = vpack.c.b16 %v10655, %v10654
        %v10667 = vpack.c.b16 %v10657, %v10656
        %v10668 = vpack.c.b16 %v10659, %v10658
        %v10669 = vpack.c.b16 %v10661, %v10660
        %10678 = vmatprep.subr.bf16.mxu0 0
        %10679 = vmatpush1.bf16.msra.mxu0 %v10662
        %10680 = vmatprep.subr.bf16.mxu0 0
        %10681 = vmatpush1.bf16.msra.mxu0 %v10663
        %10682 = vmatprep.subr.bf16.mxu0 0
        %10683 = vmatpush1.bf16.msra.mxu0 %v10664
        %10684 = vmatprep.subr.bf16.mxu0 0
        %10685 = vmatpush1.bf16.msra.mxu0 %v10665
        %10686 = vmatprep.subr.bf16.mxu0 0
        %10687 = vmatpush1.bf16.msra.mxu0 %v10666
        %10688 = vmatprep.subr.bf16.mxu0 0
        %10689 = vmatpush1.bf16.msra.mxu0 %v10667
        %10690 = vmatprep.subr.bf16.mxu0 0
        %10691 = vmatpush1.bf16.msra.mxu0 %v10668
        %10692 = vmatprep.subr.bf16.mxu0 0
        %10693 = vmatpush1.bf16.msra.mxu0 %v10669
        %10694 = vmatprep.subr.bf16.mxu0 0
        %10695 = vmatpush1.bf16.msra.mxu0 0
        %10696 = vmatprep.subr.bf16.mxu0 0
        %10697 = vmatpush1.bf16.msra.mxu0 0
        %10698 = vmatprep.subr.bf16.mxu0 0
        %10699 = vmatpush1.bf16.msra.mxu0 0
        %10700 = vmatprep.subr.bf16.mxu0 0
        %10701 = vmatpush1.bf16.msra.mxu0 0
        %10702 = vmatprep.subr.bf16.mxu0 0
        %10703 = vmatpush1.bf16.msra.mxu0 0
        %10704 = vmatprep.subr.bf16.mxu0 0
        %10705 = vmatpush1.bf16.msra.mxu0 0
        %10706 = vmatprep.subr.bf16.mxu0 0
        %10707 = vmatpush1.bf16.msra.mxu0 0
        %10708 = vmatprep.subr.bf16.mxu0 0
        %10709 = vmatpush1.bf16.msra.mxu0 0
        %10710 = vmatprep.mubr.bf16.mxu0 0
        %10711 = vmatmul.mubr.bf16.gmra.mrb[0].mxu0 %v10157
        %v10712 = vpop.f32.mrb[0].mxu0
        %v10713 = vadd.f32 %v10629, %v10712
        %v10714 = vpop.f32.mrb[0].mxu0
        %v10715 = vpop.f32.mrb[0].mxu0
        %v10716 = vpop.f32.mrb[0].mxu0
        %10717 = vdwg.mxu0
        %v10718 = vsel %vm9778, %v10621, 0.0
        %v10719 = vrot.slane %v10718, 4
        %v10720 = vadd.f32 %v10718, %v10719
        %v10721 = vrot.slane %v10720, 2
        %v10722 = vadd.f32 %v10720, %v10721
        %v10723 = vrot.slane %v10722, 1
        %v10724 = vadd.f32 %v10722, %v10723
        %v10725 = vrcp.pop 5.0
        %v10726 = vmul.f32 %v10724, %v10725
        %v10727 = vpack.c.bf16 %v10726, %v10726
        %v10744 = vunpack.c.l.b16 %v10117
        %v10745 = vunpack.c.l.b16 %v10118
        %v10746 = vunpack.c.l.b16 %v10119
        %v10747 = vunpack.c.l.b16 %v10120
        %v10748 = vunpack.c.l.b16 %v10121
        %v10749 = vunpack.c.l.b16 %v10122
        %v10750 = vunpack.c.l.b16 %v10123
        %v10751 = vunpack.c.l.b16 %v10124
        %v10752 = vunpack.c.l.b16 %v10125
        %v10753 = vunpack.c.l.b16 %v10126
        %v10754 = vunpack.c.l.b16 %v10127
        %v10755 = vunpack.c.l.b16 %v10128
        %v10756 = vunpack.c.l.b16 %v10129
        %v10757 = vunpack.c.l.b16 %v10130
        %v10758 = vunpack.c.l.b16 %v10131
        %v10759 = vunpack.c.l.b16 %v10132
        %v10760 = vpack.c.b16 %v10745, %v10744
        %v10761 = vpack.c.b16 %v10747, %v10746
        %v10762 = vpack.c.b16 %v10749, %v10748
        %v10763 = vpack.c.b16 %v10751, %v10750
        %v10764 = vpack.c.b16 %v10753, %v10752
        %v10765 = vpack.c.b16 %v10755, %v10754
        %v10766 = vpack.c.b16 %v10757, %v10756
        %v10767 = vpack.c.b16 %v10759, %v10758
        %v10777 = vrot.slane %v10004, 3
        %10779 = vmatprep.subr.bf16.mxu0 0
        %10780 = vmatpush1.bf16.msra.mxu0 %v10760
        %10781 = vmatprep.subr.bf16.mxu0 0
        %10782 = vmatpush1.bf16.msra.mxu0 %v10761
        %10783 = vmatprep.subr.bf16.mxu0 0
        %10784 = vmatpush1.bf16.msra.mxu0 %v10762
        %10785 = vmatprep.subr.bf16.mxu0 0
        %10786 = vmatpush1.bf16.msra.mxu0 %v10763
        %10787 = vmatprep.subr.bf16.mxu0 0
        %10788 = vmatpush1.bf16.msra.mxu0 %v10764
        %10789 = vmatprep.subr.bf16.mxu0 0
        %10790 = vmatpush1.bf16.msra.mxu0 %v10765
        %10791 = vmatprep.subr.bf16.mxu0 0
        %10792 = vmatpush1.bf16.msra.mxu0 %v10766
        %10793 = vmatprep.subr.bf16.mxu0 0
        %10794 = vmatpush1.bf16.msra.mxu0 %v10767
        %10795 = vmatprep.subr.bf16.mxu0 0
        %10796 = vmatpush1.bf16.msra.mxu0 0
        %10797 = vmatprep.subr.bf16.mxu0 0
        %10798 = vmatpush1.bf16.msra.mxu0 0
        %10799 = vmatprep.subr.bf16.mxu0 0
        %10800 = vmatpush1.bf16.msra.mxu0 0
        %10801 = vmatprep.subr.bf16.mxu0 0
        %10802 = vmatpush1.bf16.msra.mxu0 0
        %10803 = vmatprep.subr.bf16.mxu0 0
        %10804 = vmatpush1.bf16.msra.mxu0 0
        %10805 = vmatprep.subr.bf16.mxu0 0
        %10806 = vmatpush1.bf16.msra.mxu0 0
        %10807 = vmatprep.subr.bf16.mxu0 0
        %10808 = vmatpush1.bf16.msra.mxu0 0
        %10809 = vmatprep.subr.bf16.mxu0 0
        %10810 = vmatpush1.bf16.msra.mxu0 0
        %10811 = vmatprep.mubr.bf16.mxu0 0
        %10812 = vmatmul.mubr.bf16.gmra.mrb[0].mxu0 %v10727
        %v10813 = vpop.f32.mrb[0].mxu0
        %v10814 = vadd.f32 %v10777, %v10813
        %v10815 = vpop.f32.mrb[0].mxu0
        %v10816 = vpop.f32.mrb[0].mxu0
        %v10817 = vpop.f32.mrb[0].mxu0
        %10818 = vdwg.mxu0
        %v10819 = vmax.f32 %v10814, 0.0
        %v10820 = vmin.f32 %v10814, 0.0
        %v10822 = vrot.slane %v10820, 3
        %v10824 = vmul.f32 %v10004, %v10822
        %v10826 = vrot.slane %v10824, 5
        %v10828 = vadd.f32 %v10819, %v10826
        %v10829 = vpack.c.bf16 %v10828, %v10828
        %v10846 = vunpack.c.l.b16 %v10133
        %v10847 = vunpack.c.l.b16 %v10134
        %v10848 = vunpack.c.l.b16 %v10135
        %v10849 = vunpack.c.l.b16 %v10136
        %v10850 = vunpack.c.l.b16 %v10137
        %v10851 = vunpack.c.l.b16 %v10138
        %v10852 = vunpack.c.l.b16 %v10139
        %v10853 = vunpack.c.l.b16 %v10140
        %v10854 = vunpack.c.l.b16 %v10141
        %v10855 = vunpack.c.l.b16 %v10142
        %v10856 = vunpack.c.l.b16 %v10143
        %v10857 = vunpack.c.l.b16 %v10144
        %v10858 = vunpack.c.l.b16 %v10145
        %v10859 = vunpack.c.l.b16 %v10146
        %v10860 = vunpack.c.l.b16 %v10147
        %v10861 = vunpack.c.l.b16 %v10148
        %v10862 = vpack.c.b16 %v10847, %v10846
        %v10863 = vpack.c.b16 %v10849, %v10848
        %v10864 = vpack.c.b16 %v10851, %v10850
        %v10865 = vpack.c.b16 %v10853, %v10852
        %v10866 = vpack.c.b16 %v10855, %v10854
        %v10867 = vpack.c.b16 %v10857, %v10856
        %v10868 = vpack.c.b16 %v10859, %v10858
        %v10869 = vpack.c.b16 %v10861, %v10860
        %v10878 = vrot.slane %v10004, 4
        %10880 = vmatprep.subr.bf16.mxu0 0
        %10881 = vmatpush1.bf16.msra.mxu0 %v10862
        %10882 = vmatprep.subr.bf16.mxu0 0
        %10883 = vmatpush1.bf16.msra.mxu0 %v10863
        %10884 = vmatprep.subr.bf16.mxu0 0
        %10885 = vmatpush1.bf16.msra.mxu0 %v10864
        %10886 = vmatprep.subr.bf16.mxu0 0
        %10887 = vmatpush1.bf16.msra.mxu0 %v10865
        %10888 = vmatprep.subr.bf16.mxu0 0
        %10889 = vmatpush1.bf16.msra.mxu0 %v10866
        %10890 = vmatprep.subr.bf16.mxu0 0
        %10891 = vmatpush1.bf16.msra.mxu0 %v10867
        %10892 = vmatprep.subr.bf16.mxu0 0
        %10893 = vmatpush1.bf16.msra.mxu0 %v10868
        %10894 = vmatprep.subr.bf16.mxu0 0
        %10895 = vmatpush1.bf16.msra.mxu0 %v10869
        %10896 = vmatprep.subr.bf16.mxu0 0
        %10897 = vmatpush1.bf16.msra.mxu0 0
        %10898 = vmatprep.subr.bf16.mxu0 0
        %10899 = vmatpush1.bf16.msra.mxu0 0
        %10900 = vmatprep.subr.bf16.mxu0 0
        %10901 = vmatpush1.bf16.msra.mxu0 0
        %10902 = vmatprep.subr.bf16.mxu0 0
        %10903 = vmatpush1.bf16.msra.mxu0 0
        %10904 = vmatprep.subr.bf16.mxu0 0
        %10905 = vmatpush1.bf16.msra.mxu0 0
        %10906 = vmatprep.subr.bf16.mxu0 0
        %10907 = vmatpush1.bf16.msra.mxu0 0
        %10908 = vmatprep.subr.bf16.mxu0 0
        %10909 = vmatpush1.bf16.msra.mxu0 0
        %10910 = vmatprep.subr.bf16.mxu0 0
        %10911 = vmatpush1.bf16.msra.mxu0 0
        %10912 = vmatprep.mubr.bf16.mxu0 0
        %10913 = vmatmul.mubr.bf16.gmra.mrb[0].mxu0 %v10829
        %v10914 = vpop.f32.mrb[0].mxu0
        %v10915 = vadd.f32 %v10878, %v10914
        %v10916 = vpop.f32.mrb[0].mxu0
        %v10917 = vpop.f32.mrb[0].mxu0
        %v10918 = vpop.f32.mrb[0].mxu0
        %10919 = vdwg.mxu0
        %v10920 = vsub.f32 0.0, %v10915
        %v10921 = vmul.f32 %v10920, 1.442695
        %v10922 = vpow.pop %v10921
        %v10923 = vadd.f32 %v10922, 1.0
        %v10924 = vrcp.pop %v10923
        %v10925 = vmul.f32 1.0, %v10924
        %v10926 = vlaneseq
        %v10927 = vshrl.u32 %v10926, 7
        %v10928 = vsub.s32 0, %v10927
        %v10929 = vrot.slane %v10925, %v10928
        %v10930 = vmul.f32 %v10621, %v10929
        %v10931 = vadd.f32 %v10930, %v10713
        %v10932 = vmax.f32 %v10931, 0.0
        %v10934 = vrot.slane %v10932, 1
        %v10936 = vrot.slane %v10932, 2
        %v10938 = vrot.slane %v10932, 3
        %v10940 = vrot.slane %v10932, 4
        %v10942 = vld [vmem:[%s22] sm:$0xf]
        %v10943 = vld [vmem:[%s22 + $0x4] sm:$0xf]
        %v10944 = vld [vmem:[%s22 + $0x8] sm:$0xf]
        %v10945 = vld [vmem:[%s22 + $0xc] sm:$0xf]
        %v10946 = vld [vmem:[%s22 + $0x10] sm:$0xf]
        %v10947 = vld [vmem:[%s22 + $0x14] sm:$0xf]
        %v10948 = vld [vmem:[%s22 + $0x18] sm:$0xf]
        %v10949 = vld [vmem:[%s22 + $0x1c] sm:$0xf]
        %v10950 = vld [vmem:[%s22 + $0x20] sm:$0xf]
        %v10951 = vld [vmem:[%s22 + $0x24] sm:$0xf]
        %v10952 = vld [vmem:[%s22 + $0x28] sm:$0xf]
        %v10953 = vld [vmem:[%s22 + $0x2c] sm:$0xf]
        %v10954 = vld [vmem:[%s22 + $0x30] sm:$0xf]
        %v10955 = vld [vmem:[%s22 + $0x34] sm:$0xf]
        %v10956 = vld [vmem:[%s22 + $0x38] sm:$0xf]
        %v10957 = vld [vmem:[%s22 + $0x3c] sm:$0xf]
        %v10958 = vld [vmem:[%s22 + $0x40] sm:$0xf]
        %v10959 = vld [vmem:[%s22 + $0x44] sm:$0xf]
        %v10960 = vld [vmem:[%s22 + $0x48] sm:$0xf]
        %v10961 = vld [vmem:[%s22 + $0x4c] sm:$0xf]
        %v10962 = vld [vmem:[%s22 + $0x50] sm:$0xf]
        %v10963 = vld [vmem:[%s22 + $0x54] sm:$0xf]
        %v10964 = vld [vmem:[%s22 + $0x58] sm:$0xf]
        %v10965 = vld [vmem:[%s22 + $0x5c] sm:$0xf]
        %v10966 = vld [vmem:[%s22 + $0x60] sm:$0xf]
        %v10967 = vld [vmem:[%s22 + $0x64] sm:$0xf]
        %v10968 = vld [vmem:[%s22 + $0x68] sm:$0xf]
        %v10969 = vld [vmem:[%s22 + $0x6c] sm:$0xf]
        %v10970 = vld [vmem:[%s22 + $0x70] sm:$0xf]
        %v10971 = vld [vmem:[%s22 + $0x74] sm:$0xf]
        %v10972 = vld [vmem:[%s22 + $0x78] sm:$0xf]
        %v10973 = vld [vmem:[%s22 + $0x7c] sm:$0xf]
        %v10974 = vld [vmem:[%s22 + $0x80] sm:$0xf]
        %v10975 = vld [vmem:[%s22 + $0x84] sm:$0xf]
        %v10976 = vld [vmem:[%s22 + $0x88] sm:$0xf]
        %v10977 = vld [vmem:[%s22 + $0x8c] sm:$0xf]
        %v10978 = vld [vmem:[%s22 + $0x90] sm:$0xf]
        %v10979 = vld [vmem:[%s22 + $0x94] sm:$0xf]
        %v10980 = vld [vmem:[%s22 + $0x98] sm:$0xf]
        %v10981 = vld [vmem:[%s22 + $0x9c] sm:$0xf]
        %v10982 = vld [vmem:[%s22 + $0xa0] sm:$0xf]
        %v10983 = vld [vmem:[%s22 + $0xa4] sm:$0xf]
        %v10984 = vld [vmem:[%s22 + $0xa8] sm:$0xf]
        %v10985 = vld [vmem:[%s22 + $0xac] sm:$0xf]
        %v10986 = vld [vmem:[%s22 + $0xb0] sm:$0xf]
        %v10987 = vld [vmem:[%s22 + $0xb4] sm:$0xf]
        %v10988 = vld [vmem:[%s22 + $0xb8] sm:$0xf]
        %v10989 = vld [vmem:[%s22 + $0xbc] sm:$0xf]
        %v10990 = vld [vmem:[%s22 + $0xc0] sm:$0xf]
        %v10991 = vld [vmem:[%s22 + $0xc4] sm:$0xf]
        %v10992 = vld [vmem:[%s22 + $0xc8] sm:$0xf]
        %v10993 = vld [vmem:[%s22 + $0xcc] sm:$0xf]
        %v10994 = vld [vmem:[%s22 + $0xd0] sm:$0xf]
        %v10995 = vld [vmem:[%s22 + $0xd4] sm:$0xf]
        %v10996 = vld [vmem:[%s22 + $0xd8] sm:$0xf]
        %v10997 = vld [vmem:[%s22 + $0xdc] sm:$0xf]
        %v10998 = vld [vmem:[%s22 + $0xe0] sm:$0xf]
        %v10999 = vld [vmem:[%s22 + $0xe4] sm:$0xf]
        %v11000 = vld [vmem:[%s22 + $0xe8] sm:$0xf]
        %v11001 = vld [vmem:[%s22 + $0xec] sm:$0xf]
        %v11002 = vld [vmem:[%s22 + $0xf0] sm:$0xf]
        %v11003 = vld [vmem:[%s22 + $0xf4] sm:$0xf]
        %v11004 = vld [vmem:[%s22 + $0xf8] sm:$0xf]
        %v11005 = vld [vmem:[%s22 + $0xfc] sm:$0xf]
        %v11006 = vld [vmem:[%s22 + $0x100] sm:$0xf]
        %v11007 = vld [vmem:[%s22 + $0x104] sm:$0xf]
        %v11008 = vld [vmem:[%s22 + $0x108] sm:$0xf]
        %v11009 = vld [vmem:[%s22 + $0x10c] sm:$0xf]
        %v11010 = vld [vmem:[%s22 + $0x110] sm:$0xf]
        %v11011 = vld [vmem:[%s22 + $0x114] sm:$0xf]
        %v11012 = vld [vmem:[%s22 + $0x118] sm:$0xf]
        %v11013 = vld [vmem:[%s22 + $0x11c] sm:$0xf]
        %v11014 = vld [vmem:[%s22 + $0x120] sm:$0xf]
        %v11015 = vld [vmem:[%s22 + $0x124] sm:$0xf]
        %v11016 = vld [vmem:[%s22 + $0x128] sm:$0xf]
        %v11017 = vld [vmem:[%s22 + $0x12c] sm:$0xf]
        %v11018 = vld [vmem:[%s22 + $0x130] sm:$0xf]
        %v11019 = vld [vmem:[%s22 + $0x134] sm:$0xf]
        %v11020 = vld [vmem:[%s22 + $0x138] sm:$0xf]
        %v11021 = vld [vmem:[%s22 + $0x13c] sm:$0xf]
        %v11022 = vpack.c.bf16 %v10932, %v10932
        %v11023 = vpack.c.bf16 %v10934, %v10934
        %v11024 = vpack.c.bf16 %v10936, %v10936
        %v11025 = vpack.c.bf16 %v10938, %v10938
        %v11026 = vpack.c.bf16 %v10940, %v10940
        %v11027 = vld [vmem:[%s23] sm:$0x1]
        %v11108 = vunpack.c.l.b16 %v10942
        %v11109 = vunpack.c.l.b16 %v10943
        %v11110 = vunpack.c.l.b16 %v10944
        %v11111 = vunpack.c.l.b16 %v10945
        %v11112 = vunpack.c.l.b16 %v10946
        %v11113 = vunpack.c.l.b16 %v10947
        %v11114 = vunpack.c.l.b16 %v10948
        %v11115 = vunpack.c.l.b16 %v10949
        %v11116 = vunpack.c.l.b16 %v10950
        %v11117 = vunpack.c.l.b16 %v10951
        %v11118 = vunpack.c.l.b16 %v10952
        %v11119 = vunpack.c.l.b16 %v10953
        %v11120 = vunpack.c.l.b16 %v10954
        %v11121 = vunpack.c.l.b16 %v10955
        %v11122 = vunpack.c.l.b16 %v10956
        %v11123 = vunpack.c.l.b16 %v10957
        %v11124 = vunpack.c.l.b16 %v10958
        %v11125 = vunpack.c.l.b16 %v10959
        %v11126 = vunpack.c.l.b16 %v10960
        %v11127 = vunpack.c.l.b16 %v10961
        %v11128 = vunpack.c.l.b16 %v10962
        %v11129 = vunpack.c.l.b16 %v10963
        %v11130 = vunpack.c.l.b16 %v10964
        %v11131 = vunpack.c.l.b16 %v10965
        %v11132 = vunpack.c.l.b16 %v10966
        %v11133 = vunpack.c.l.b16 %v10967
        %v11134 = vunpack.c.l.b16 %v10968
        %v11135 = vunpack.c.l.b16 %v10969
        %v11136 = vunpack.c.l.b16 %v10970
        %v11137 = vunpack.c.l.b16 %v10971
        %v11138 = vunpack.c.l.b16 %v10972
        %v11139 = vunpack.c.l.b16 %v10973
        %v11140 = vunpack.c.l.b16 %v10974
        %v11141 = vunpack.c.l.b16 %v10975
        %v11142 = vunpack.c.l.b16 %v10976
        %v11143 = vunpack.c.l.b16 %v10977
        %v11144 = vunpack.c.l.b16 %v10978
        %v11145 = vunpack.c.l.b16 %v10979
        %v11146 = vunpack.c.l.b16 %v10980
        %v11147 = vunpack.c.l.b16 %v10981
        %v11148 = vunpack.c.l.b16 %v10982
        %v11149 = vunpack.c.l.b16 %v10983
        %v11150 = vunpack.c.l.b16 %v10984
        %v11151 = vunpack.c.l.b16 %v10985
        %v11152 = vunpack.c.l.b16 %v10986
        %v11153 = vunpack.c.l.b16 %v10987
        %v11154 = vunpack.c.l.b16 %v10988
        %v11155 = vunpack.c.l.b16 %v10989
        %v11156 = vunpack.c.l.b16 %v10990
        %v11157 = vunpack.c.l.b16 %v10991
        %v11158 = vunpack.c.l.b16 %v10992
        %v11159 = vunpack.c.l.b16 %v10993
        %v11160 = vunpack.c.l.b16 %v10994
        %v11161 = vunpack.c.l.b16 %v10995
        %v11162 = vunpack.c.l.b16 %v10996
        %v11163 = vunpack.c.l.b16 %v10997
        %v11164 = vunpack.c.l.b16 %v10998
        %v11165 = vunpack.c.l.b16 %v10999
        %v11166 = vunpack.c.l.b16 %v11000
        %v11167 = vunpack.c.l.b16 %v11001
        %v11168 = vunpack.c.l.b16 %v11002
        %v11169 = vunpack.c.l.b16 %v11003
        %v11170 = vunpack.c.l.b16 %v11004
        %v11171 = vunpack.c.l.b16 %v11005
        %v11172 = vunpack.c.l.b16 %v11006
        %v11173 = vunpack.c.l.b16 %v11007
        %v11174 = vunpack.c.l.b16 %v11008
        %v11175 = vunpack.c.l.b16 %v11009
        %v11176 = vunpack.c.l.b16 %v11010
        %v11177 = vunpack.c.l.b16 %v11011
        %v11178 = vunpack.c.l.b16 %v11012
        %v11179 = vunpack.c.l.b16 %v11013
        %v11180 = vunpack.c.l.b16 %v11014
        %v11181 = vunpack.c.l.b16 %v11015
        %v11182 = vunpack.c.l.b16 %v11016
        %v11183 = vunpack.c.l.b16 %v11017
        %v11184 = vunpack.c.l.b16 %v11018
        %v11185 = vunpack.c.l.b16 %v11019
        %v11186 = vunpack.c.l.b16 %v11020
        %v11187 = vunpack.c.l.b16 %v11021
        %v11188 = vpack.c.b16 %v11109, %v11108
        %v11189 = vpack.c.b16 %v11111, %v11110
        %v11190 = vpack.c.b16 %v11113, %v11112
        %v11191 = vpack.c.b16 %v11115, %v11114
        %v11192 = vpack.c.b16 %v11117, %v11116
        %v11193 = vpack.c.b16 %v11119, %v11118
        %v11194 = vpack.c.b16 %v11121, %v11120
        %v11195 = vpack.c.b16 %v11123, %v11122
        %v11196 = vpack.c.b16 %v11125, %v11124
        %v11197 = vpack.c.b16 %v11127, %v11126
        %v11198 = vpack.c.b16 %v11129, %v11128
        %v11199 = vpack.c.b16 %v11131, %v11130
        %v11200 = vpack.c.b16 %v11133, %v11132
        %v11201 = vpack.c.b16 %v11135, %v11134
        %v11202 = vpack.c.b16 %v11137, %v11136
        %v11203 = vpack.c.b16 %v11139, %v11138
        %v11204 = vpack.c.b16 %v11141, %v11140
        %v11205 = vpack.c.b16 %v11143, %v11142
        %v11206 = vpack.c.b16 %v11145, %v11144
        %v11207 = vpack.c.b16 %v11147, %v11146
        %v11208 = vpack.c.b16 %v11149, %v11148
        %v11209 = vpack.c.b16 %v11151, %v11150
        %v11210 = vpack.c.b16 %v11153, %v11152
        %v11211 = vpack.c.b16 %v11155, %v11154
        %v11212 = vpack.c.b16 %v11157, %v11156
        %v11213 = vpack.c.b16 %v11159, %v11158
        %v11214 = vpack.c.b16 %v11161, %v11160
        %v11215 = vpack.c.b16 %v11163, %v11162
        %v11216 = vpack.c.b16 %v11165, %v11164
        %v11217 = vpack.c.b16 %v11167, %v11166
        %v11218 = vpack.c.b16 %v11169, %v11168
        %v11219 = vpack.c.b16 %v11171, %v11170
        %v11220 = vpack.c.b16 %v11173, %v11172
        %v11221 = vpack.c.b16 %v11175, %v11174
        %v11222 = vpack.c.b16 %v11177, %v11176
        %v11223 = vpack.c.b16 %v11179, %v11178
        %v11224 = vpack.c.b16 %v11181, %v11180
        %v11225 = vpack.c.b16 %v11183, %v11182
        %v11226 = vpack.c.b16 %v11185, %v11184
        %v11227 = vpack.c.b16 %v11187, %v11186
        %11268 = vmatprep.subr.bf16.mxu0 0
        %11269 = vmatpush1.bf16.msra.mxu0 %v11188
        %11270 = vmatprep.subr.bf16.mxu0 0
        %11271 = vmatpush1.bf16.msra.mxu0 %v11189
        %11272 = vmatprep.subr.bf16.mxu0 0
        %11273 = vmatpush1.bf16.msra.mxu0 %v11190
        %11274 = vmatprep.subr.bf16.mxu0 0
        %11275 = vmatpush1.bf16.msra.mxu0 %v11191
        %11276 = vmatprep.subr.bf16.mxu0 0
        %11277 = vmatpush1.bf16.msra.mxu0 %v11192
        %11278 = vmatprep.subr.bf16.mxu0 0
        %11279 = vmatpush1.bf16.msra.mxu0 %v11193
        %11280 = vmatprep.subr.bf16.mxu0 0
        %11281 = vmatpush1.bf16.msra.mxu0 %v11194
        %11282 = vmatprep.subr.bf16.mxu0 0
        %11283 = vmatpush1.bf16.msra.mxu0 %v11195
        %11284 = vmatprep.subr.bf16.mxu0 0
        %11285 = vmatpush1.bf16.msra.mxu0 %v11196
        %11286 = vmatprep.subr.bf16.mxu0 0
        %11287 = vmatpush1.bf16.msra.mxu0 %v11197
        %11288 = vmatprep.subr.bf16.mxu0 0
        %11289 = vmatpush1.bf16.msra.mxu0 %v11198
        %11290 = vmatprep.subr.bf16.mxu0 0
        %11291 = vmatpush1.bf16.msra.mxu0 %v11199
        %11292 = vmatprep.subr.bf16.mxu0 0
        %11293 = vmatpush1.bf16.msra.mxu0 %v11200
        %11294 = vmatprep.subr.bf16.mxu0 0
        %11295 = vmatpush1.bf16.msra.mxu0 %v11201
        %11296 = vmatprep.subr.bf16.mxu0 0
        %11297 = vmatpush1.bf16.msra.mxu0 %v11202
        %11298 = vmatprep.subr.bf16.mxu0 0
        %11299 = vmatpush1.bf16.msra.mxu0 %v11203
        %11300 = vmatprep.mubr.bf16.mxu0 %v11023
        %11301 = vmatmul.mubr.bf16.gmra.mrb[0].mxu0 %v11022
        %v11302 = vpop.f32.mrb[0].mxu0
        %v11303 = vadd.f32 %v11027, %v11302
        %v11304 = vpop.f32.mrb[0].mxu0
        %v11305 = vpop.f32.mrb[0].mxu0
        %v11306 = vpop.f32.mrb[0].mxu0
        %11307 = vdwg.mxu0
        %11308 = vmatprep.subr.bf16.mxu0 0
        %11309 = vmatpush1.bf16.msra.mxu0 %v11204
        %11310 = vmatprep.subr.bf16.mxu0 0
        %11311 = vmatpush1.bf16.msra.mxu0 %v11205
        %11312 = vmatprep.subr.bf16.mxu0 0
        %11313 = vmatpush1.bf16.msra.mxu0 %v11206
        %11314 = vmatprep.subr.bf16.mxu0 0
        %11315 = vmatpush1.bf16.msra.mxu0 %v11207
        %11316 = vmatprep.subr.bf16.mxu0 0
        %11317 = vmatpush1.bf16.msra.mxu0 %v11208
        %11318 = vmatprep.subr.bf16.mxu0 0
        %11319 = vmatpush1.bf16.msra.mxu0 %v11209
        %11320 = vmatprep.subr.bf16.mxu0 0
        %11321 = vmatpush1.bf16.msra.mxu0 %v11210
        %11322 = vmatprep.subr.bf16.mxu0 0
        %11323 = vmatpush1.bf16.msra.mxu0 %v11211
        %11324 = vmatprep.subr.bf16.mxu0 0
        %11325 = vmatpush1.bf16.msra.mxu0 %v11212
        %11326 = vmatprep.subr.bf16.mxu0 0
        %11327 = vmatpush1.bf16.msra.mxu0 %v11213
        %11328 = vmatprep.subr.bf16.mxu0 0
        %11329 = vmatpush1.bf16.msra.mxu0 %v11214
        %11330 = vmatprep.subr.bf16.mxu0 0
        %11331 = vmatpush1.bf16.msra.mxu0 %v11215
        %11332 = vmatprep.subr.bf16.mxu0 0
        %11333 = vmatpush1.bf16.msra.mxu0 %v11216
        %11334 = vmatprep.subr.bf16.mxu0 0
        %11335 = vmatpush1.bf16.msra.mxu0 %v11217
        %11336 = vmatprep.subr.bf16.mxu0 0
        %11337 = vmatpush1.bf16.msra.mxu0 %v11218
        %11338 = vmatprep.subr.bf16.mxu0 0
        %11339 = vmatpush1.bf16.msra.mxu0 %v11219
        %11340 = vmatprep.mubr.bf16.mxu0 %v11025
        %11341 = vmatmul.mubr.bf16.gmra.mrb[0].mxu0 %v11024
        %v11342 = vpop.f32.mrb[0].mxu0
        %v11343 = vadd.f32 %v11303, %v11342
        %v11344 = vpop.f32.mrb[0].mxu0
        %v11345 = vpop.f32.mrb[0].mxu0
        %v11346 = vpop.f32.mrb[0].mxu0
        %11347 = vdwg.mxu0
        %11348 = vmatprep.subr.bf16.mxu0 0
        %11349 = vmatpush1.bf16.msra.mxu0 %v11220
        %11350 = vmatprep.subr.bf16.mxu0 0
        %11351 = vmatpush1.bf16.msra.mxu0 %v11221
        %11352 = vmatprep.subr.bf16.mxu0 0
        %11353 = vmatpush1.bf16.msra.mxu0 %v11222
        %11354 = vmatprep.subr.bf16.mxu0 0
        %11355 = vmatpush1.bf16.msra.mxu0 %v11223
        %11356 = vmatprep.subr.bf16.mxu0 0
        %11357 = vmatpush1.bf16.msra.mxu0 %v11224
        %11358 = vmatprep.subr.bf16.mxu0 0
        %11359 = vmatpush1.bf16.msra.mxu0 %v11225
        %11360 = vmatprep.subr.bf16.mxu0 0
        %11361 = vmatpush1.bf16.msra.mxu0 %v11226
        %11362 = vmatprep.subr.bf16.mxu0 0
        %11363 = vmatpush1.bf16.msra.mxu0 %v11227
        %11364 = vmatprep.subr.bf16.mxu0 0
        %11365 = vmatpush1.bf16.msra.mxu0 0
        %11366 = vmatprep.subr.bf16.mxu0 0
        %11367 = vmatpush1.bf16.msra.mxu0 0
        %11368 = vmatprep.subr.bf16.mxu0 0
        %11369 = vmatpush1.bf16.msra.mxu0 0
        %11370 = vmatprep.subr.bf16.mxu0 0
        %11371 = vmatpush1.bf16.msra.mxu0 0
        %11372 = vmatprep.subr.bf16.mxu0 0
        %11373 = vmatpush1.bf16.msra.mxu0 0
        %11374 = vmatprep.subr.bf16.mxu0 0
        %11375 = vmatpush1.bf16.msra.mxu0 0
        %11376 = vmatprep.subr.bf16.mxu0 0
        %11377 = vmatpush1.bf16.msra.mxu0 0
        %11378 = vmatprep.subr.bf16.mxu0 0
        %11379 = vmatpush1.bf16.msra.mxu0 0
        %11380 = vmatprep.mubr.bf16.mxu0 0
        %11381 = vmatmul.mubr.bf16.gmra.mrb[0].mxu0 %v11026
        %v11382 = vpop.f32.mrb[0].mxu0
        %v11383 = vadd.f32 %v11343, %v11382
        %v11384 = vpop.f32.mrb[0].mxu0
        %v11385 = vpop.f32.mrb[0].mxu0
        %v11386 = vpop.f32.mrb[0].mxu0
        %11387 = vdwg.mxu0
        %v11388 = vsel %vm1989, %v11383, -inf
        %11389 = vmax.xlane.f32.xlu0 %v11388
        %v11390 = vpop.xlane.xlu0 %11389
        %v11391 = vsub.f32 %v11383, %v11390
        %v11392 = vmul.f32 %v11391, 1.442695
        %v11393 = vpow.pop %v11392
        %v11394 = vsel %vm1989, %v11393, 0.0
        %11395 = vadd.xlane.f32.xlu0 %v11394
        %v11396 = vpop.xlane.xlu0 %11395
        %v11397 = vrcp.pop %v11396
        %v11398 = vmul.f32 %v11393, %v11397
        %11399 = vst [vmem:[%s729] sm:$0x1] %v11398
        %s11400 = sand.u32 %s555, 1
        %s11401 = scalar_lea.sflag [#allocation3], %s11400
        %s11402 = sand.u32 %s555, 1
        %s11403 = scalar_lea.vmem [#allocation2], %s11402
        // Predicated region
        $region117: #{my_module_forward.1} parent=115 // pred_check
          %p11404 = pneg %p565
        $region118: #{my_module_forward.1} parent=115 // pred_check_branch
          %11406 = sbr.rel (%p11404) target = $region120
        $region119: #{my_module_forward.1} parent=115 // pred_region
          %s11408 = ssub.s32 16, 16
          %11409 = vsyncadd %s11401, %s11408
          %s11410 = smul.addr %s38, 16
          %s11411 = scalar_lea.hbm %s24, %s11410
          %s11413 = sshll.u32 %s11403, 4
          %s11414 = int_to_ptr.vmem [resolvable:$true] %s11413
          %11416 = dma.vmem_to_hbm [thread:$0]  %s11414, 16, %s11411, %s11401
        $region120: #{my_module_forward.1} parent=115 // pred_fallthru
          _
      $region116: #{my_module_forward.1} parent=5 // pred_fallthru
        _
      %p11417 = scmp.le.s32.totalorder 2, %s33
      // Predicated region
      $region121: #{my_module_forward.1} parent=5 // pred_check
        %p11418 = pneg %p11417
      $region122: #{my_module_forward.1} parent=5 // pred_check_branch
        %11420 = sbr.rel (%p11418) target = $region124
      $region123: #{my_module_forward.1} parent=5 // pred_region
        %s11421 = ssub.s32 %s33, 2
        // Predicated region
        $region125: #{my_module_forward.1} parent=123 // pred_check
          %p11422 = pneg %p571
        $region126: #{my_module_forward.1} parent=123 // pred_check_branch
          %11424 = sbr.rel (%p11422) target = $region128
        $region127: #{my_module_forward.1} parent=123 // pred_region
          %s11425 = sand.u32 %s556, 1
          %s11426 = scalar_lea.sflag [#allocation3], %s11425
          %s11427 = sand.u32 %s556, 1
          %s11428 = scalar_lea.vmem [#allocation2], %s11427
          %11429 = dma.done %s11426, 16
        $region128: #{my_module_forward.1} parent=123 // pred_fallthru
          _
      $region124: #{my_module_forward.1} parent=5 // pred_fallthru
        _
    $region6: #{my_module_forward.1} parent=1 // loop_footer
      %s37 = sadd.s32 1, %s33
    $region7: #{my_module_forward.1} parent=1 // loop_footer_branch
      %32 = sbr.rel target = $region3
    $region8: #{my_module_forward.1} parent=1 // loop_exit
      _
    %11430 = vsyncpa [#allocation3], 1
    %s11431 = scalar_lea.sflag [#allocation3], 1
    %11432 = vsyncpa %s11431, 1

</llo_original>
